<compile_context>
chip_gen: v7x
topology: tpu7x:2x2x1
jax: 0.10.0
libtpu: 0.0.40
codegen_flags: <defaults>
</compile_context>

<pallas_src>
import functools
import math

import jax
import jax.numpy as jnp
import numpy as np
from jax import lax
from jax.experimental import pallas as pl
from jax.experimental.pallas import tpu as pltpu


def siren_kernel(x_ref, *refs, n_sine_layers, n_layers):
    """refs = (w0, b0, w1, b1, ..., wL, bL, out_ref).

    x_ref:   (TM, in_features)   -- natural coords layout (no host transpose)
    w_i:     (out_i, in_i)       -- omega pre-folded for sine layers
    b_i:     (out_i, 1)          -- omega pre-folded for sine layers
    out_ref: (out_features, TM)  -- lane-dense store (points on lanes)
    """
    out_ref = refs[-1]
    wb = refs[:-1]

    xt = x_ref[...]                                    # (TM, in_f), f32

    # Layer 0: contract the in_features axis of BOTH operands (rhs-transposed
    # matmul, same dot_general pattern as q @ k^T in flash attention).  Avoids
    # any transpose of the point tile.  K == in_features is tiny, but the MXU
    # is nowhere near the binding unit for this network.
    w0 = wb[0][...]                                    # (h0, in_f)
    b0 = wb[1][...]                                    # (h0, 1) -> broadcast over lanes
    y = lax.dot_general(
        w0, xt,
        dimension_numbers=(((1,), (1,)), ((), ())),
        preferred_element_type=jnp.float32,
    ) + b0                                             # (h0, TM)
    x = jnp.sin(y) if 0 < n_sine_layers else y

    # Remaining layers: standard (out, in) @ (in, TM) MXU matmuls, statically
    # unrolled (4 layers at the demo config).  Activations stay (features, TM).
    for layer in range(1, n_layers):
        w = wb[2 * layer][...]                         # (out_i, in_i)
        b = wb[2 * layer + 1][...]                     # (out_i, 1)
        y = jnp.dot(w, x, preferred_element_type=jnp.float32) + b
        x = jnp.sin(y) if layer < n_sine_layers else y

    out_ref[...] = x.astype(out_ref.dtype)


def _choose_tm(n, tm_max=2048, align=512):
    """Largest multiple of `align` (<= tm_max) that still yields >= 2 grid
    steps when n allows it, so both v7x TensorCores receive work."""
    if n <= align:
        return align
    largest_with_two_steps = ((n - 1) // align) * align   # largest multiple < n
    return max(align, min(tm_max, largest_with_two_steps))


def siren_forward(coords, params, omegas, outermost_linear, tm=None):
    """coords: (N, in_features); params: list of (W:(out,in), b:(out,1)).

    Returns (output:(N, out_features), coords) like the PyTorch module."""
    N, in_f = coords.shape
    n_layers = len(params)
    out_f = params[-1][0].shape[0]
    n_sine = n_layers - 1 if outermost_linear else n_layers

    # Host-side omega folding: done once, outside the kernel (free).
    folded = []
    for i, (w, b) in enumerate(params):
        if i < n_sine:
            folded.append((w * omegas[i], b * omegas[i]))
        else:
            folded.append((w, b))

    if tm is None:
        tm = _choose_tm(N)
    num_tiles = pl.cdiv(N, tm)
    grid = (num_tiles,)

    coords_f32 = coords.astype(jnp.float32)            # (N, in_f): natural layout

    flat_inputs = []
    in_specs = [pl.BlockSpec((tm, in_f), lambda i: (i, 0))]
    for (w, b) in folded:
        flat_inputs.append(w)
        flat_inputs.append(b)
        # Grid-invariant residents.  For much larger hidden sizes, add
        # pipeline_mode=pl.Buffered(1) to drop the second VMEM copy (matters
        # against v7x's 64 MiB VMEM; negligible at hidden=32).
        in_specs.append(pl.BlockSpec(w.shape, lambda i: (0, 0)))
        in_specs.append(pl.BlockSpec(b.shape, lambda i: (0, 0)))

    # Advisory cost hint, consistent with what the kernel actually computes
    # (grid coverage, not just N).
    n_cover = int(num_tiles) * int(tm)
    flops = 2 * n_cover * sum(int(w.shape[0]) * int(w.shape[1]) for w, _ in params)
    transcendentals = n_cover * sum(int(params[i][0].shape[0]) for i in range(n_sine))
    bytes_accessed = int(
        N * in_f * 4
        + sum(int(w.size) * 4 + int(b.size) * 4 for w, b in params)
        + N * out_f * 4
    )

    kernel = functools.partial(siren_kernel, n_sine_layers=n_sine, n_layers=n_layers)

    out_t = pl.pallas_call(
        kernel,
        out_shape=jax.ShapeDtypeStruct((out_f, N), jnp.float32),
        grid_spec=pltpu.PrefetchScalarGridSpec(
            num_scalar_prefetch=0,
            grid=grid,
            in_specs=in_specs,
            out_specs=pl.BlockSpec((out_f, tm), lambda i: (0, i)),
        ),
        compiler_params=pltpu.CompilerParams(
            # Megacore sharding on v7x; if a trace shows only one TC active,
            # switch to pltpu.CORE_PARALLEL or add an explicit leading axis of 2.
            dimension_semantics=("parallel",),
            vmem_limit_bytes=32 * 1024 * 1024,          # safe on v5e/v6e/v7x
        ),
        cost_estimate=pl.CostEstimate(
            flops=int(flops),
            transcendentals=int(transcendentals),
            bytes_accessed=bytes_accessed,
        ),
    )(coords_f32, *flat_inputs)

    # Lane-dense (out_f, N) store inside the kernel; tiny wrapper transpose
    # back to the module's (N, out_f).  Skip this if the consumer can take
    # (out_f, N) directly.
    out = out_t.T

    # TODO(synk): coords.clone().detach().requires_grad_(True) is autograd
    # bookkeeping with no JAX-forward equivalent; coords is returned unchanged.
    return out, coords


def init_siren_params(key, in_features, hidden_features, hidden_layers, out_features,
                      first_omega_0, hidden_omega_0, outermost_linear):
    """Deterministic init matching SineLayer.init_weights / nn.Linear bias init
    (period == 0 path).  Weights use the PyTorch (out, in) convention."""
    params = []
    omegas = []

    def linear_init(k, fan_in, fan_out, w_bound, is_uniform_pm1=False):
        kw, kb = jax.random.split(k)
        if is_uniform_pm1:
            w = jax.random.uniform(kw, (fan_out, fan_in), jnp.float32, -1.0, 1.0)
        else:
            w = jax.random.uniform(kw, (fan_out, fan_in), jnp.float32, -w_bound, w_bound)
        b_bound = 1.0 / math.sqrt(fan_in)  # default nn.Linear bias init
        b = jax.random.uniform(kb, (fan_out, 1), jnp.float32, -b_bound, b_bound)
        return w, b

    keys = jax.random.split(key, hidden_layers + 2)

    # first SineLayer: weight ~ U(-1, 1), omega = first_omega_0
    params.append(linear_init(keys[0], in_features, hidden_features, 0.0, True))
    omegas.append(float(first_omega_0))

    # hidden SineLayers: weight ~ U(-sqrt(6/in)/omega, +sqrt(6/in)/omega)
    for i in range(hidden_layers):
        bound = math.sqrt(6.0 / hidden_features) / hidden_omega_0
        params.append(linear_init(keys[1 + i], hidden_features, hidden_features, bound))
        omegas.append(float(hidden_omega_0))

    # final layer (SineLayer unless outermost_linear)
    bound = math.sqrt(6.0 / hidden_features) / hidden_omega_0
    params.append(linear_init(keys[-1], hidden_features, out_features, bound))
    omegas.append(float(hidden_omega_0))  # unused if outermost_linear

    return params, omegas


def siren_reference(coords, params, omegas, outermost_linear):
    """Pure-JAX reference in the original (unfolded) PyTorch formulation."""
    x = coords.astype(jnp.float32)
    n_layers = len(params)
    for i, (w, b) in enumerate(params):
        y = x @ w.T + b.reshape(1, -1)
        if i == n_layers - 1 and outermost_linear:
            x = y
        else:
            x = jnp.sin(omegas[i] * y)
    return x


if __name__ == "__main__":
    # Small SIREN: 2D coords -> 32 hidden, 2 hidden layers -> 3 outputs.
    in_features = 2
    hidden_features = 32
    hidden_layers = 2
    out_features = 3
    first_omega_0 = 30.0
    hidden_omega_0 = 30.0
    outermost_linear = False  # module default: final layer is a SineLayer
    N = 1000                  # NOT a tile multiple -> exercises the masked tail block

    key = jax.random.PRNGKey(0)
    kp, kc = jax.random.split(key)
    params, omegas = init_siren_params(
        kp, in_features, hidden_features, hidden_layers, out_features,
        first_omega_0, hidden_omega_0, outermost_linear)

    coords = jax.random.uniform(kc, (N, in_features), jnp.float32, -1.0, 1.0)

    # tm auto-chosen: N=1000 -> TM=512, grid=(2,) (two steps -> both v7x TCs busy,
    # second block is a Pallas-masked partial tile).
    out, coords_out = siren_forward(coords, params, omegas, outermost_linear)
    out = jax.block_until_ready(out)

    ref = siren_reference(coords, params, omegas, outermost_linear)
    # Tolerance accounts for host-side omega folding (fp reassociation of
    # omega*(Wx+b) with omega=30 across 4 layers) and MXU vs XLA accumulation
    # order; a real bug would produce O(1) errors.
    np.testing.assert_allclose(np.asarray(out), np.asarray(ref), rtol=1e-4, atol=1e-4)
    assert out.shape == (N, out_features)
    assert coords_out.shape == coords.shape

    print("KERNEL_OK")
</pallas_src>

<mosaic_0001>
module attributes {stable_mosaic.version = 11 : i64} {
  func.func @siren_kernel(%arg0: i32, %arg1: memref<512x2xf32, #tpu.memory_space<vmem>>, %arg2: memref<32x2xf32, #tpu.memory_space<vmem>>, %arg3: memref<32x1xf32, #tpu.memory_space<vmem>>, %arg4: memref<32x32xf32, #tpu.memory_space<vmem>>, %arg5: memref<32x1xf32, #tpu.memory_space<vmem>>, %arg6: memref<32x32xf32, #tpu.memory_space<vmem>>, %arg7: memref<32x1xf32, #tpu.memory_space<vmem>>, %arg8: memref<3x32xf32, #tpu.memory_space<vmem>>, %arg9: memref<3x1xf32, #tpu.memory_space<vmem>>, %arg10: memref<3x512xf32, #tpu.memory_space<vmem>>) attributes {dimension_semantics = [#tpu.dimension_semantics<parallel>], iteration_bounds = array<i64: 2>, scalar_prefetch = 0 : i64, scratch_operands = 0 : i64, tpu.core_type = #tpu.core_type<tc>, window_params = [{transform_indices = @transform_0, window_bounds = array<i64: 512, 2>}, {pipeline_mode = #tpu.pipeline_mode<synchronous>, transform_indices = @transform_1, window_bounds = array<i64: 32, 2>}, {pipeline_mode = #tpu.pipeline_mode<synchronous>, transform_indices = @transform_2, window_bounds = array<i64: 32, 1>}, {pipeline_mode = #tpu.pipeline_mode<synchronous>, transform_indices = @transform_3, window_bounds = array<i64: 32, 32>}, {pipeline_mode = #tpu.pipeline_mode<synchronous>, transform_indices = @transform_4, window_bounds = array<i64: 32, 1>}, {pipeline_mode = #tpu.pipeline_mode<synchronous>, transform_indices = @transform_5, window_bounds = array<i64: 32, 32>}, {pipeline_mode = #tpu.pipeline_mode<synchronous>, transform_indices = @transform_6, window_bounds = array<i64: 32, 1>}, {pipeline_mode = #tpu.pipeline_mode<synchronous>, transform_indices = @transform_7, window_bounds = array<i64: 3, 32>}, {pipeline_mode = #tpu.pipeline_mode<synchronous>, transform_indices = @transform_8, window_bounds = array<i64: 3, 1>}, {transform_indices = @transform_9, window_bounds = array<i64: 3, 512>}]} {
    %c0 = arith.constant 0 : index
    %c0_0 = arith.constant 0 : index
    %0 = vector.load %arg1[%c0, %c0_0] : memref<512x2xf32, #tpu.memory_space<vmem>>, vector<512x2xf32>
    %c0_1 = arith.constant 0 : index
    %c0_2 = arith.constant 0 : index
    %1 = vector.load %arg2[%c0_1, %c0_2] : memref<32x2xf32, #tpu.memory_space<vmem>>, vector<32x2xf32>
    %c0_3 = arith.constant 0 : index
    %c0_4 = arith.constant 0 : index
    %2 = vector.load %arg3[%c0_3, %c0_4] : memref<32x1xf32, #tpu.memory_space<vmem>>, vector<32x1xf32>
    %cst = arith.constant dense<0.000000e+00> : vector<32x512xf32>
    %3 = tpu.matmul %1, %0, %cst {dimension_numbers = #tpu.dot_dimension_numbers<[1], [1], [0], [0], [0, 0, 1, 0], [], []>} : vector<32x2xf32>, vector<512x2xf32>, vector<32x512xf32> -> vector<32x512xf32>
    %4 = vector.broadcast %2 : vector<32x1xf32> to vector<32x512xf32>
    %5 = arith.addf %3, %4 : vector<32x512xf32>
    %6 = math.sin %5 : vector<32x512xf32>
    %c0_5 = arith.constant 0 : index
    %c0_6 = arith.constant 0 : index
    %7 = vector.load %arg4[%c0_5, %c0_6] : memref<32x32xf32, #tpu.memory_space<vmem>>, vector<32x32xf32>
    %c0_7 = arith.constant 0 : index
    %c0_8 = arith.constant 0 : index
    %8 = vector.load %arg5[%c0_7, %c0_8] : memref<32x1xf32, #tpu.memory_space<vmem>>, vector<32x1xf32>
    %cst_9 = arith.constant dense<0.000000e+00> : vector<32x512xf32>
    %9 = tpu.matmul %7, %6, %cst_9 {dimension_numbers = #tpu.dot_dimension_numbers<[1], [0], [0], [1], [0, 0, 1, 1], [], []>} : vector<32x32xf32>, vector<32x512xf32>, vector<32x512xf32> -> vector<32x512xf32>
    %10 = vector.broadcast %8 : vector<32x1xf32> to vector<32x512xf32>
    %11 = arith.addf %9, %10 : vector<32x512xf32>
    %12 = math.sin %11 : vector<32x512xf32>
    %c0_10 = arith.constant 0 : index
    %c0_11 = arith.constant 0 : index
    %13 = vector.load %arg6[%c0_10, %c0_11] : memref<32x32xf32, #tpu.memory_space<vmem>>, vector<32x32xf32>
    %c0_12 = arith.constant 0 : index
    %c0_13 = arith.constant 0 : index
    %14 = vector.load %arg7[%c0_12, %c0_13] : memref<32x1xf32, #tpu.memory_space<vmem>>, vector<32x1xf32>
    %cst_14 = arith.constant dense<0.000000e+00> : vector<32x512xf32>
    %15 = tpu.matmul %13, %12, %cst_14 {dimension_numbers = #tpu.dot_dimension_numbers<[1], [0], [0], [1], [0, 0, 1, 1], [], []>} : vector<32x32xf32>, vector<32x512xf32>, vector<32x512xf32> -> vector<32x512xf32>
    %16 = vector.broadcast %14 : vector<32x1xf32> to vector<32x512xf32>
    %17 = arith.addf %15, %16 : vector<32x512xf32>
    %18 = math.sin %17 : vector<32x512xf32>
    %c0_15 = arith.constant 0 : index
    %c0_16 = arith.constant 0 : index
    %19 = vector.load %arg8[%c0_15, %c0_16] : memref<3x32xf32, #tpu.memory_space<vmem>>, vector<3x32xf32>
    %c0_17 = arith.constant 0 : index
    %c0_18 = arith.constant 0 : index
    %20 = vector.load %arg9[%c0_17, %c0_18] : memref<3x1xf32, #tpu.memory_space<vmem>>, vector<3x1xf32>
    %cst_19 = arith.constant dense<0.000000e+00> : vector<3x512xf32>
    %21 = tpu.matmul %19, %18, %cst_19 {dimension_numbers = #tpu.dot_dimension_numbers<[1], [0], [0], [1], [0, 0, 1, 1], [], []>} : vector<3x32xf32>, vector<32x512xf32>, vector<3x512xf32> -> vector<3x512xf32>
    %22 = vector.broadcast %20 : vector<3x1xf32> to vector<3x512xf32>
    %23 = arith.addf %21, %22 : vector<3x512xf32>
    %24 = math.sin %23 : vector<3x512xf32>
    %c0_20 = arith.constant 0 : index
    %c0_21 = arith.constant 0 : index
    %25 = vector.load %arg10[%c0_20, %c0_21] : memref<3x512xf32, #tpu.memory_space<vmem>>, vector<3x512xf32>
    tpu.vector_store %arg10[%c0_20, %c0_21], %24 {strides = array<i32>} : memref<3x512xf32, #tpu.memory_space<vmem>>, vector<3x512xf32>,
    return
  }
  func.func @transform_0(%arg0: i32) -> (i32, i32) {
    %c0_i32 = arith.constant 0 : i32
    %c0_i32_0 = arith.constant 0 : i32
    return %arg0, %c0_i32 : i32, i32
  }
  func.func @transform_1(%arg0: i32) -> (i32, i32) {
    %c0_i32 = arith.constant 0 : i32
    %c0_i32_0 = arith.constant 0 : i32
    %c0_i32_1 = arith.constant 0 : i32
    return %c0_i32, %c0_i32_0 : i32, i32
  }
  func.func @transform_2(%arg0: i32) -> (i32, i32) {
    %c0_i32 = arith.constant 0 : i32
    %c0_i32_0 = arith.constant 0 : i32
    %c0_i32_1 = arith.constant 0 : i32
    return %c0_i32, %c0_i32_0 : i32, i32
  }
  func.func @transform_3(%arg0: i32) -> (i32, i32) {
    %c0_i32 = arith.constant 0 : i32
    %c0_i32_0 = arith.constant 0 : i32
    %c0_i32_1 = arith.constant 0 : i32
    return %c0_i32, %c0_i32_0 : i32, i32
  }
  func.func @transform_4(%arg0: i32) -> (i32, i32) {
    %c0_i32 = arith.constant 0 : i32
    %c0_i32_0 = arith.constant 0 : i32
    %c0_i32_1 = arith.constant 0 : i32
    return %c0_i32, %c0_i32_0 : i32, i32
  }
  func.func @transform_5(%arg0: i32) -> (i32, i32) {
    %c0_i32 = arith.constant 0 : i32
    %c0_i32_0 = arith.constant 0 : i32
    %c0_i32_1 = arith.constant 0 : i32
    return %c0_i32, %c0_i32_0 : i32, i32
  }
  func.func @transform_6(%arg0: i32) -> (i32, i32) {
    %c0_i32 = arith.constant 0 : i32
    %c0_i32_0 = arith.constant 0 : i32
    %c0_i32_1 = arith.constant 0 : i32
    return %c0_i32, %c0_i32_0 : i32, i32
  }
  func.func @transform_7(%arg0: i32) -> (i32, i32) {
    %c0_i32 = arith.constant 0 : i32
    %c0_i32_0 = arith.constant 0 : i32
    %c0_i32_1 = arith.constant 0 : i32
    return %c0_i32, %c0_i32_0 : i32, i32
  }
  func.func @transform_8(%arg0: i32) -> (i32, i32) {
    %c0_i32 = arith.constant 0 : i32
    %c0_i32_0 = arith.constant 0 : i32
    %c0_i32_1 = arith.constant 0 : i32
    return %c0_i32, %c0_i32_0 : i32, i32
  }
  func.func @transform_9(%arg0: i32) -> (i32, i32) {
    %c0_i32 = arith.constant 0 : i32
    %c0_i32_0 = arith.constant 0 : i32
    return %c0_i32, %arg0 : i32, i32
  }
}

</mosaic_0001>

<llo_original>
// kernel: tpu_custom_call.1
$region0: #{tpu_custom_call.1}
  #allocation0 [shape = 'u32[]', space=smem, size = 0x4, offset = 0x4, fixed_abs, tag = 'smem constant byte address 0x4 - core index']
  #allocation1 [shape = 'u32[144,128]{1,0:T(1,128)}', space=vmem, size = 0x12000, scoped, tag = 'internal scratch']
  %s0 = inlined_call_operand.vmem [shape: f32[1000,2], index: 0, kind: input, shape index: {}]
  %s1 = inlined_call_operand.vmem [shape: f32[32,2], index: 1, kind: input, shape index: {}]
  %s2 = inlined_call_operand.vmem [shape: f32[32,1], index: 2, kind: input, shape index: {}]
  %s3 = inlined_call_operand.vmem [shape: f32[32,32], index: 3, kind: input, shape index: {}]
  %s4 = inlined_call_operand.vmem [shape: f32[32,1], index: 4, kind: input, shape index: {}]
  %s5 = inlined_call_operand.vmem [shape: f32[32,32], index: 5, kind: input, shape index: {}]
  %s6 = inlined_call_operand.vmem [shape: f32[32,1], index: 6, kind: input, shape index: {}]
  %s7 = inlined_call_operand.vmem [shape: f32[3,32], index: 7, kind: input, shape index: {}]
  %s8 = inlined_call_operand.vmem [shape: f32[3,1], index: 8, kind: input, shape index: {}]
  %s9 = inlined_call_operand.hbm [shape: f32[3,1000], index: 9, kind: output, shape index: {}]
  %s10 = sld [smem:[#allocation0]]
  $region69: #{tpu_custom_call.1} parent=0
    _
  %s12 = ssub.s32 1, %s10
  %s13 = scalar_select 0, %s12, %s10
  $region1: #{tpu_custom_call.1} parent=0
    #allocation2 [shape = 'u8[16384]{0}', space=vmem, size = 0x4000, scoped, tag = 'output window, operand 0']
    #allocation3 [shape = 's32[2]{0}', space=sflag, size = 0x8, scoped, tag = 'scoped memory for tpu_custom_call.1']
    %14 = vsyncpa [#allocation3], 0
    %s15 = scalar_lea.sflag [#allocation3], 1
    %16 = vsyncpa %s15, 0
    loop: start=0, step=1, limit=4
    $region2: #{tpu_custom_call.1} parent=1 // loop_pre_header
      _
    $region3: #{tpu_custom_call.1} parent=1 // loop_header
      %s18 = sphi 0, %s22
      %p19 = scmp.ge.s32.totalorder %s18, 4
      %s28 = sphi 0, %s30
      %s31 = sphi 0, %s28
      %s32 = sphi 0, %s31
      %s48 = sphi 0, %s32
      %s52 = sphi 0, %s52
      %s54 = sphi 0, %s52
      %s55 = sphi 0, %s54
      %s69 = sphi 0, %s55
      %s73 = sphi 0, %s73
      %s75 = sphi 0, %s73
      %s76 = sphi 0, %s75
      %s90 = sphi 0, %s76
      %s94 = sphi 0, %s94
      %s96 = sphi 0, %s94
      %s97 = sphi 0, %s96
      %s111 = sphi 0, %s97
      %s115 = sphi 0, %s115
      %s117 = sphi 0, %s115
      %s118 = sphi 0, %s117
      %s132 = sphi 0, %s118
      %s136 = sphi 0, %s136
      %s138 = sphi 0, %s136
      %s139 = sphi 0, %s138
      %s153 = sphi 0, %s139
      %s157 = sphi 0, %s157
      %s159 = sphi 0, %s157
      %s160 = sphi 0, %s159
      %s174 = sphi 0, %s160
      %s178 = sphi 0, %s178
      %s180 = sphi 0, %s178
      %s181 = sphi 0, %s180
      %s195 = sphi 0, %s181
      %s199 = sphi 0, %s199
      %s201 = sphi 0, %s199
      %s202 = sphi 0, %s201
      %s216 = sphi 0, %s202
      %s222 = sphi 0, %s224
      %s225 = sphi 0, %s222
      %s226 = sphi 0, %s225
      %s242 = sphi 0, %s226
    $region4: #{tpu_custom_call.1} parent=1 // loop_header_branch
      %21 = sbr.rel (%p19) target = $region8
    $region5: #{tpu_custom_call.1} parent=1 // loop_body
      %s23 = ssub.s32 %s18, 1
      %s24 = ssub.s32 %s18, 2
      %s25 = sadd.s32 %s18, 1
      %s26 = ssub.s32 %s18, %s25
      %p27 = scmp.eq.s32.totalorder %s26, 0
      %s29 = sadd.s32 %s28, 1
      %s30 = scalar_select %p27, %s28, %s29
      %p33 = pneg %p27
      %p34 = scmp.eq.s32.totalorder %s18, 1
      %p35 = por %p33, %p34
      %p36 = scmp.ne.s32.totalorder %s28, %s31
      %p37 = scmp.eq.s32.totalorder %s18, 0
      %p38 = por %p36, %p37
      %p39 = scmp.ne.s32.totalorder %s28, %s31
      %p40 = scmp.eq.s32.totalorder %s23, 1
      %p41 = por %p39, %p40
      %p42 = scmp.ne.s32.totalorder %s31, %s32
      %p43 = scmp.eq.s32.totalorder %s23, 0
      %p44 = por %p42, %p43
      %p45 = scmp.ne.s32.totalorder %s31, %s32
      %p46 = scmp.eq.s32.totalorder %s24, 1
      %p47 = por %p45, %p46
      %p49 = scmp.ne.s32.totalorder %s32, %s48
      %p50 = scmp.eq.s32.totalorder %s24, 0
      %p51 = por %p49, %p50
      %s53 = sadd.s32 %s52, 1
      %p56 = scmp.eq.s32.totalorder %s18, 1
      %p57 = scmp.ne.s32.totalorder %s52, %s54
      %p58 = scmp.eq.s32.totalorder %s18, 0
      %p59 = por %p57, %p58
      %p60 = scmp.ne.s32.totalorder %s52, %s54
      %p61 = scmp.eq.s32.totalorder %s23, 1
      %p62 = por %p60, %p61
      %p63 = scmp.ne.s32.totalorder %s54, %s55
      %p64 = scmp.eq.s32.totalorder %s23, 0
      %p65 = por %p63, %p64
      %p66 = scmp.ne.s32.totalorder %s54, %s55
      %p67 = scmp.eq.s32.totalorder %s24, 1
      %p68 = por %p66, %p67
      %p70 = scmp.ne.s32.totalorder %s55, %s69
      %p71 = scmp.eq.s32.totalorder %s24, 0
      %p72 = por %p70, %p71
      %s74 = sadd.s32 %s73, 1
      %p77 = scmp.eq.s32.totalorder %s18, 1
      %p78 = scmp.ne.s32.totalorder %s73, %s75
      %p79 = scmp.eq.s32.totalorder %s18, 0
      %p80 = por %p78, %p79
      %p81 = scmp.ne.s32.totalorder %s73, %s75
      %p82 = scmp.eq.s32.totalorder %s23, 1
      %p83 = por %p81, %p82
      %p84 = scmp.ne.s32.totalorder %s75, %s76
      %p85 = scmp.eq.s32.totalorder %s23, 0
      %p86 = por %p84, %p85
      %p87 = scmp.ne.s32.totalorder %s75, %s76
      %p88 = scmp.eq.s32.totalorder %s24, 1
      %p89 = por %p87, %p88
      %p91 = scmp.ne.s32.totalorder %s76, %s90
      %p92 = scmp.eq.s32.totalorder %s24, 0
      %p93 = por %p91, %p92
      %s95 = sadd.s32 %s94, 1
      %p98 = scmp.eq.s32.totalorder %s18, 1
      %p99 = scmp.ne.s32.totalorder %s94, %s96
      %p100 = scmp.eq.s32.totalorder %s18, 0
      %p101 = por %p99, %p100
      %p102 = scmp.ne.s32.totalorder %s94, %s96
      %p103 = scmp.eq.s32.totalorder %s23, 1
      %p104 = por %p102, %p103
      %p105 = scmp.ne.s32.totalorder %s96, %s97
      %p106 = scmp.eq.s32.totalorder %s23, 0
      %p107 = por %p105, %p106
      %p108 = scmp.ne.s32.totalorder %s96, %s97
      %p109 = scmp.eq.s32.totalorder %s24, 1
      %p110 = por %p108, %p109
      %p112 = scmp.ne.s32.totalorder %s97, %s111
      %p113 = scmp.eq.s32.totalorder %s24, 0
      %p114 = por %p112, %p113
      %s116 = sadd.s32 %s115, 1
      %p119 = scmp.eq.s32.totalorder %s18, 1
      %p120 = scmp.ne.s32.totalorder %s115, %s117
      %p121 = scmp.eq.s32.totalorder %s18, 0
      %p122 = por %p120, %p121
      %p123 = scmp.ne.s32.totalorder %s115, %s117
      %p124 = scmp.eq.s32.totalorder %s23, 1
      %p125 = por %p123, %p124
      %p126 = scmp.ne.s32.totalorder %s117, %s118
      %p127 = scmp.eq.s32.totalorder %s23, 0
      %p128 = por %p126, %p127
      %p129 = scmp.ne.s32.totalorder %s117, %s118
      %p130 = scmp.eq.s32.totalorder %s24, 1
      %p131 = por %p129, %p130
      %p133 = scmp.ne.s32.totalorder %s118, %s132
      %p134 = scmp.eq.s32.totalorder %s24, 0
      %p135 = por %p133, %p134
      %s137 = sadd.s32 %s136, 1
      %p140 = scmp.eq.s32.totalorder %s18, 1
      %p141 = scmp.ne.s32.totalorder %s136, %s138
      %p142 = scmp.eq.s32.totalorder %s18, 0
      %p143 = por %p141, %p142
      %p144 = scmp.ne.s32.totalorder %s136, %s138
      %p145 = scmp.eq.s32.totalorder %s23, 1
      %p146 = por %p144, %p145
      %p147 = scmp.ne.s32.totalorder %s138, %s139
      %p148 = scmp.eq.s32.totalorder %s23, 0
      %p149 = por %p147, %p148
      %p150 = scmp.ne.s32.totalorder %s138, %s139
      %p151 = scmp.eq.s32.totalorder %s24, 1
      %p152 = por %p150, %p151
      %p154 = scmp.ne.s32.totalorder %s139, %s153
      %p155 = scmp.eq.s32.totalorder %s24, 0
      %p156 = por %p154, %p155
      %s158 = sadd.s32 %s157, 1
      %p161 = scmp.eq.s32.totalorder %s18, 1
      %p162 = scmp.ne.s32.totalorder %s157, %s159
      %p163 = scmp.eq.s32.totalorder %s18, 0
      %p164 = por %p162, %p163
      %p165 = scmp.ne.s32.totalorder %s157, %s159
      %p166 = scmp.eq.s32.totalorder %s23, 1
      %p167 = por %p165, %p166
      %p168 = scmp.ne.s32.totalorder %s159, %s160
      %p169 = scmp.eq.s32.totalorder %s23, 0
      %p170 = por %p168, %p169
      %p171 = scmp.ne.s32.totalorder %s159, %s160
      %p172 = scmp.eq.s32.totalorder %s24, 1
      %p173 = por %p171, %p172
      %p175 = scmp.ne.s32.totalorder %s160, %s174
      %p176 = scmp.eq.s32.totalorder %s24, 0
      %p177 = por %p175, %p176
      %s179 = sadd.s32 %s178, 1
      %p182 = scmp.eq.s32.totalorder %s18, 1
      %p183 = scmp.ne.s32.totalorder %s178, %s180
      %p184 = scmp.eq.s32.totalorder %s18, 0
      %p185 = por %p183, %p184
      %p186 = scmp.ne.s32.totalorder %s178, %s180
      %p187 = scmp.eq.s32.totalorder %s23, 1
      %p188 = por %p186, %p187
      %p189 = scmp.ne.s32.totalorder %s180, %s181
      %p190 = scmp.eq.s32.totalorder %s23, 0
      %p191 = por %p189, %p190
      %p192 = scmp.ne.s32.totalorder %s180, %s181
      %p193 = scmp.eq.s32.totalorder %s24, 1
      %p194 = por %p192, %p193
      %p196 = scmp.ne.s32.totalorder %s181, %s195
      %p197 = scmp.eq.s32.totalorder %s24, 0
      %p198 = por %p196, %p197
      %s200 = sadd.s32 %s199, 1
      %p203 = scmp.eq.s32.totalorder %s18, 1
      %p204 = scmp.ne.s32.totalorder %s199, %s201
      %p205 = scmp.eq.s32.totalorder %s18, 0
      %p206 = por %p204, %p205
      %p207 = scmp.ne.s32.totalorder %s199, %s201
      %p208 = scmp.eq.s32.totalorder %s23, 1
      %p209 = por %p207, %p208
      %p210 = scmp.ne.s32.totalorder %s201, %s202
      %p211 = scmp.eq.s32.totalorder %s23, 0
      %p212 = por %p210, %p211
      %p213 = scmp.ne.s32.totalorder %s201, %s202
      %p214 = scmp.eq.s32.totalorder %s24, 1
      %p215 = por %p213, %p214
      %p217 = scmp.ne.s32.totalorder %s202, %s216
      %p218 = scmp.eq.s32.totalorder %s24, 0
      %p219 = por %p217, %p218
      %s220 = ssub.s32 %s18, %s25
      %p221 = scmp.eq.s32.totalorder %s220, 0
      %s223 = sadd.s32 %s222, 1
      %s224 = scalar_select %p221, %s222, %s223
      %p227 = pneg %p221
      %p228 = scmp.eq.s32.totalorder %s18, 1
      %p229 = por %p227, %p228
      %p230 = scmp.ne.s32.totalorder %s222, %s225
      %p231 = scmp.eq.s32.totalorder %s18, 0
      %p232 = por %p230, %p231
      %p233 = scmp.ne.s32.totalorder %s222, %s225
      %p234 = scmp.eq.s32.totalorder %s23, 1
      %p235 = por %p233, %p234
      %p236 = scmp.ne.s32.totalorder %s225, %s226
      %p237 = scmp.eq.s32.totalorder %s23, 0
      %p238 = por %p236, %p237
      %p239 = scmp.ne.s32.totalorder %s225, %s226
      %p240 = scmp.eq.s32.totalorder %s24, 1
      %p241 = por %p239, %p240
      %p243 = scmp.ne.s32.totalorder %s226, %s242
      %p244 = scmp.eq.s32.totalorder %s24, 0
      %p245 = por %p243, %p244
      %p246 = scmp.le.s32.totalorder 1, %s18
      %p247 = scmp.lt.s32.totalorder %s18, 3
      %p248 = pnand %p246, %p247
      %p249 = pneg %p248
      // Predicated region
      $region9: #{tpu_custom_call.1} parent=5 // pred_check
        _
      $region10: #{tpu_custom_call.1} parent=5 // pred_check_branch
        %251 = sbr.rel (%p248) target = $region12
      $region11: #{tpu_custom_call.1} parent=5 // pred_region
        %s252 = ssub.s32 %s18, 1
        // Predicated region
        $region13: #{tpu_custom_call.1} parent=11 // pred_check
          %p253 = pneg %p65
        $region14: #{tpu_custom_call.1} parent=11 // pred_check_branch
          %255 = sbr.rel (%p253) target = $region16
        $region15: #{tpu_custom_call.1} parent=11 // pred_region
          _
        $region16: #{tpu_custom_call.1} parent=11 // pred_fallthru
          _
        // Predicated region
        $region17: #{tpu_custom_call.1} parent=11 // pred_check
          %p256 = pneg %p86
        $region18: #{tpu_custom_call.1} parent=11 // pred_check_branch
          %258 = sbr.rel (%p256) target = $region20
        $region19: #{tpu_custom_call.1} parent=11 // pred_region
          _
        $region20: #{tpu_custom_call.1} parent=11 // pred_fallthru
          _
        // Predicated region
        $region21: #{tpu_custom_call.1} parent=11 // pred_check
          %p259 = pneg %p107
        $region22: #{tpu_custom_call.1} parent=11 // pred_check_branch
          %261 = sbr.rel (%p259) target = $region24
        $region23: #{tpu_custom_call.1} parent=11 // pred_region
          _
        $region24: #{tpu_custom_call.1} parent=11 // pred_fallthru
          _
        // Predicated region
        $region25: #{tpu_custom_call.1} parent=11 // pred_check
          %p262 = pneg %p128
        $region26: #{tpu_custom_call.1} parent=11 // pred_check_branch
          %264 = sbr.rel (%p262) target = $region28
        $region27: #{tpu_custom_call.1} parent=11 // pred_region
          _
        $region28: #{tpu_custom_call.1} parent=11 // pred_fallthru
          _
        // Predicated region
        $region29: #{tpu_custom_call.1} parent=11 // pred_check
          %p265 = pneg %p149
        $region30: #{tpu_custom_call.1} parent=11 // pred_check_branch
          %267 = sbr.rel (%p265) target = $region32
        $region31: #{tpu_custom_call.1} parent=11 // pred_region
          _
        $region32: #{tpu_custom_call.1} parent=11 // pred_fallthru
          _
        // Predicated region
        $region33: #{tpu_custom_call.1} parent=11 // pred_check
          %p268 = pneg %p170
        $region34: #{tpu_custom_call.1} parent=11 // pred_check_branch
          %270 = sbr.rel (%p268) target = $region36
        $region35: #{tpu_custom_call.1} parent=11 // pred_region
          _
        $region36: #{tpu_custom_call.1} parent=11 // pred_fallthru
          _
        // Predicated region
        $region37: #{tpu_custom_call.1} parent=11 // pred_check
          %p271 = pneg %p191
        $region38: #{tpu_custom_call.1} parent=11 // pred_check_branch
          %273 = sbr.rel (%p271) target = $region40
        $region39: #{tpu_custom_call.1} parent=11 // pred_region
          _
        $region40: #{tpu_custom_call.1} parent=11 // pred_fallthru
          _
        // Predicated region
        $region41: #{tpu_custom_call.1} parent=11 // pred_check
          %p274 = pneg %p212
        $region42: #{tpu_custom_call.1} parent=11 // pred_check_branch
          %276 = sbr.rel (%p274) target = $region44
        $region43: #{tpu_custom_call.1} parent=11 // pred_region
          _
        $region44: #{tpu_custom_call.1} parent=11 // pred_fallthru
          _
      $region12: #{tpu_custom_call.1} parent=5 // pred_fallthru
        _
      %p277 = scmp.lt.s32.totalorder %s18, 2
      // Predicated region
      $region45: #{tpu_custom_call.1} parent=5 // pred_check
        %p278 = pneg %p277
      $region46: #{tpu_custom_call.1} parent=5 // pred_check_branch
        %280 = sbr.rel (%p278) target = $region48
      $region47: #{tpu_custom_call.1} parent=5 // pred_region
        // Predicated region
        $region49: #{tpu_custom_call.1} parent=47 // pred_check
          %p281 = pneg %p38
        $region50: #{tpu_custom_call.1} parent=47 // pred_check_branch
          %283 = sbr.rel (%p281) target = $region52
        $region51: #{tpu_custom_call.1} parent=47 // pred_region
          %s284 = smul.u32 64, %s18
          %s285 = ssub.s32 125, %s284
          %p286 = scmp.lt.s32.totalorder %s285, 64
          %s287 = scalar_select %p286, %s285, 64
          %s288 = smul.u32 128, %s287
          %p289 = scmp.lt.s32.totalorder %s284, 124
          %s290 = scalar_select %p289, %s284, 124
          %s291 = smul.addr %s290, 8
          %s292 = scalar_lea.vmem %s0, %s291
          %s293 = smul.u32 64, %s18
          %s294 = ssub.s32 125, %s293
          %p295 = scmp.lt.s32.totalorder %s294, 64
          %s296 = scalar_select %p295, %s294, 64
          %s297 = smul.u32 128, %s296
        $region52: #{tpu_custom_call.1} parent=47 // pred_fallthru
          _
      $region48: #{tpu_custom_call.1} parent=5 // pred_fallthru
        _
      %p298 = scmp.le.s32.totalorder 1, %s18
      %p299 = scmp.lt.s32.totalorder %s18, 3
      %p300 = pnand %p298, %p299
      %p301 = pneg %p300
      // Predicated region
      $region53: #{tpu_custom_call.1} parent=5 // pred_check
        _
      $region54: #{tpu_custom_call.1} parent=5 // pred_check_branch
        %303 = sbr.rel (%p300) target = $region56
      $region55: #{tpu_custom_call.1} parent=5 // pred_region
        %s304 = ssub.s32 %s18, 1
        %s305 = smul.u32 64, %s23
        %s306 = ssub.s32 125, %s305
        %p307 = scmp.lt.s32.totalorder %s306, 64
        %s308 = scalar_select %p307, %s306, 64
        %s309 = smul.u32 128, %s308
        %p310 = scmp.lt.s32.totalorder %s305, 124
        %s311 = scalar_select %p310, %s305, 124
        %s312 = smul.addr %s311, 8
        %s313 = scalar_lea.vmem %s0, %s312
        %p314 = pneg %p44
        %p315 = pneg %p41
        %p316 = pneg %p65
        %p317 = pneg %p62
        %p318 = pneg %p86
        %p319 = pneg %p83
        %p320 = pneg %p107
        %p321 = pneg %p104
        %p322 = pneg %p128
        %p323 = pneg %p125
        %p324 = pneg %p149
        %p325 = pneg %p146
        %p326 = pneg %p170
        %p327 = pneg %p167
        %p328 = pneg %p191
        %p329 = pneg %p188
        %p330 = pneg %p212
        %p331 = pneg %p209
        %p332 = pneg %p238
        %p333 = pneg %p235
        %s334 = sand.u32 %s225, 1
        %s335 = scalar_lea.sflag [#allocation3], %s334
        %s336 = sand.u32 %s225, 1
        %s337 = smul.addr %s336, 16
        %s338 = scalar_lea.vmem [#allocation2], %s337
        %s339 = smul.u32 64, %s23
        %s340 = ssub.s32 125, %s339
        %p341 = scmp.lt.s32.totalorder %s340, 64
        %s342 = scalar_select %p341, %s340, 64
        %s343 = smul.u32 128, %s342
        %p344 = scmp.lt.s32.totalorder %s339, 124
        %s345 = scalar_select %p344, %s339, 124
        %s346 = smul.addr %s345, 8
        %s347 = scalar_lea.vmem %s0, %s346
        %s348 = smul.u32 64, %s23
        %s349 = ssub.s32 125, %s348
        %p350 = scmp.lt.s32.totalorder %s349, 64
        %s351 = scalar_select %p350, %s349, 64
        %s352 = smul.u32 128, %s351
        %s353 = smul.u32 4, %s23
        %v354 = vld [vmem:[%s347] sm:$0xff]
        %v355 = vld [vmem:[%s347 + $0x8] sm:$0xff]
        %v356 = vld [vmem:[%s347 + $0x10] sm:$0xff]
        %v357 = vld [vmem:[%s347 + $0x18] sm:$0xff]
        %v358 = vld [vmem:[%s347 + $0x20] sm:$0xff]
        %v359 = vld [vmem:[%s347 + $0x28] sm:$0xff]
        %v360 = vld [vmem:[%s347 + $0x30] sm:$0xff]
        %v361 = vld [vmem:[%s347 + $0x38] sm:$0xff]
        %v362 = vld [vmem:[%s347 + $0x40] sm:$0xff]
        %v363 = vld [vmem:[%s347 + $0x48] sm:$0xff]
        %v364 = vld [vmem:[%s347 + $0x50] sm:$0xff]
        %v365 = vld [vmem:[%s347 + $0x58] sm:$0xff]
        %v366 = vld [vmem:[%s347 + $0x60] sm:$0xff]
        %v367 = vld [vmem:[%s347 + $0x68] sm:$0xff]
        %v368 = vld [vmem:[%s347 + $0x70] sm:$0xff]
        %v369 = vld [vmem:[%s347 + $0x78] sm:$0xff]
        %v370 = vld [vmem:[%s347 + $0x80] sm:$0xff]
        %v371 = vld [vmem:[%s347 + $0x88] sm:$0xff]
        %v372 = vld [vmem:[%s347 + $0x90] sm:$0xff]
        %v373 = vld [vmem:[%s347 + $0x98] sm:$0xff]
        %v374 = vld [vmem:[%s347 + $0xa0] sm:$0xff]
        %v375 = vld [vmem:[%s347 + $0xa8] sm:$0xff]
        %v376 = vld [vmem:[%s347 + $0xb0] sm:$0xff]
        %v377 = vld [vmem:[%s347 + $0xb8] sm:$0xff]
        %v378 = vld [vmem:[%s347 + $0xc0] sm:$0xff]
        %v379 = vld [vmem:[%s347 + $0xc8] sm:$0xff]
        %v380 = vld [vmem:[%s347 + $0xd0] sm:$0xff]
        %v381 = vld [vmem:[%s347 + $0xd8] sm:$0xff]
        %v382 = vld [vmem:[%s347 + $0xe0] sm:$0xff]
        %v383 = vld [vmem:[%s347 + $0xe8] sm:$0xff]
        %v384 = vld [vmem:[%s347 + $0xf0] sm:$0xff]
        %v385 = vld [vmem:[%s347 + $0xf8] sm:$0xff]
        %v386 = vld [vmem:[%s347 + $0x100] sm:$0xff]
        %v387 = vld [vmem:[%s347 + $0x108] sm:$0xff]
        %v388 = vld [vmem:[%s347 + $0x110] sm:$0xff]
        %v389 = vld [vmem:[%s347 + $0x118] sm:$0xff]
        %v390 = vld [vmem:[%s347 + $0x120] sm:$0xff]
        %v391 = vld [vmem:[%s347 + $0x128] sm:$0xff]
        %v392 = vld [vmem:[%s347 + $0x130] sm:$0xff]
        %v393 = vld [vmem:[%s347 + $0x138] sm:$0xff]
        %v394 = vld [vmem:[%s347 + $0x140] sm:$0xff]
        %v395 = vld [vmem:[%s347 + $0x148] sm:$0xff]
        %v396 = vld [vmem:[%s347 + $0x150] sm:$0xff]
        %v397 = vld [vmem:[%s347 + $0x158] sm:$0xff]
        %v398 = vld [vmem:[%s347 + $0x160] sm:$0xff]
        %v399 = vld [vmem:[%s347 + $0x168] sm:$0xff]
        %v400 = vld [vmem:[%s347 + $0x170] sm:$0xff]
        %v401 = vld [vmem:[%s347 + $0x178] sm:$0xff]
        %v402 = vld [vmem:[%s347 + $0x180] sm:$0xff]
        %v403 = vld [vmem:[%s347 + $0x188] sm:$0xff]
        %v404 = vld [vmem:[%s347 + $0x190] sm:$0xff]
        %v405 = vld [vmem:[%s347 + $0x198] sm:$0xff]
        %v406 = vld [vmem:[%s347 + $0x1a0] sm:$0xff]
        %v407 = vld [vmem:[%s347 + $0x1a8] sm:$0xff]
        %v408 = vld [vmem:[%s347 + $0x1b0] sm:$0xff]
        %v409 = vld [vmem:[%s347 + $0x1b8] sm:$0xff]
        %v410 = vld [vmem:[%s347 + $0x1c0] sm:$0xff]
        %v411 = vld [vmem:[%s347 + $0x1c8] sm:$0xff]
        %v412 = vld [vmem:[%s347 + $0x1d0] sm:$0xff]
        %v413 = vld [vmem:[%s347 + $0x1d8] sm:$0xff]
        %v414 = vld [vmem:[%s347 + $0x1e0] sm:$0xff]
        %v415 = vld [vmem:[%s347 + $0x1e8] sm:$0xff]
        %v416 = vld [vmem:[%s347 + $0x1f0] sm:$0xff]
        %v417 = vld [vmem:[%s347 + $0x1f8] sm:$0xff]
        %v418 = vld [vmem:[%s1] sm:$0xff]
        %v419 = vld [vmem:[%s1 + $0x8] sm:$0xff]
        %v420 = vld [vmem:[%s1 + $0x10] sm:$0xff]
        %v421 = vld [vmem:[%s1 + $0x18] sm:$0xff]
        %v422 = vld [vmem:[%s2] sm:$0xff]
        %v423 = vld [vmem:[%s2 + $0x8] sm:$0xff]
        %v424 = vld [vmem:[%s2 + $0x10] sm:$0xff]
        %v425 = vld [vmem:[%s2 + $0x18] sm:$0xff]
        %427 = vset.pattern.permute.xlu0 0
        %428 = vperm.xlu0 %427, %v422
        %v429 = vpop.permute.xlu0 %428
        %432 = vset.pattern.permute.xlu0 0
        %433 = vperm.xlu0 %432, %v423
        %v434 = vpop.permute.xlu0 %433
        %437 = vset.pattern.permute.xlu0 0
        %438 = vperm.xlu0 %437, %v424
        %v439 = vpop.permute.xlu0 %438
        %442 = vset.pattern.permute.xlu0 0
        %443 = vperm.xlu0 %442, %v425
        %v444 = vpop.permute.xlu0 %443
        %vm446 = vcmask 15360
        %v448 = vsel %vm446, %v418, 0
        %v451 = vsel %vm446, %v419, 0
        %v454 = vsel %vm446, %v420, 0
        %v457 = vsel %vm446, %v421, 0
        %v460 = vsel %vm446, %v354, 0
        %v463 = vsel %vm446, %v355, 0
        %v466 = vsel %vm446, %v356, 0
        %v469 = vsel %vm446, %v357, 0
        %v472 = vsel %vm446, %v358, 0
        %v475 = vsel %vm446, %v359, 0
        %v478 = vsel %vm446, %v360, 0
        %v481 = vsel %vm446, %v361, 0
        %v484 = vsel %vm446, %v362, 0
        %v487 = vsel %vm446, %v363, 0
        %v490 = vsel %vm446, %v364, 0
        %v493 = vsel %vm446, %v365, 0
        %v496 = vsel %vm446, %v366, 0
        %v499 = vsel %vm446, %v367, 0
        %v502 = vsel %vm446, %v368, 0
        %v505 = vsel %vm446, %v369, 0
        %v508 = vsel %vm446, %v370, 0
        %v511 = vsel %vm446, %v371, 0
        %v514 = vsel %vm446, %v372, 0
        %v517 = vsel %vm446, %v373, 0
        %v520 = vsel %vm446, %v374, 0
        %v523 = vsel %vm446, %v375, 0
        %v526 = vsel %vm446, %v376, 0
        %v529 = vsel %vm446, %v377, 0
        %v532 = vsel %vm446, %v378, 0
        %v535 = vsel %vm446, %v379, 0
        %v538 = vsel %vm446, %v380, 0
        %v541 = vsel %vm446, %v381, 0
        %v544 = vsel %vm446, %v382, 0
        %v547 = vsel %vm446, %v383, 0
        %v550 = vsel %vm446, %v384, 0
        %v553 = vsel %vm446, %v385, 0
        %v556 = vsel %vm446, %v386, 0
        %v559 = vsel %vm446, %v387, 0
        %v562 = vsel %vm446, %v388, 0
        %v565 = vsel %vm446, %v389, 0
        %v568 = vsel %vm446, %v390, 0
        %v571 = vsel %vm446, %v391, 0
        %v574 = vsel %vm446, %v392, 0
        %v577 = vsel %vm446, %v393, 0
        %v580 = vsel %vm446, %v394, 0
        %v583 = vsel %vm446, %v395, 0
        %v586 = vsel %vm446, %v396, 0
        %v589 = vsel %vm446, %v397, 0
        %v592 = vsel %vm446, %v398, 0
        %v595 = vsel %vm446, %v399, 0
        %v598 = vsel %vm446, %v400, 0
        %v601 = vsel %vm446, %v401, 0
        %v604 = vsel %vm446, %v402, 0
        %v607 = vsel %vm446, %v403, 0
        %v610 = vsel %vm446, %v404, 0
        %v613 = vsel %vm446, %v405, 0
        %v616 = vsel %vm446, %v406, 0
        %v619 = vsel %vm446, %v407, 0
        %v622 = vsel %vm446, %v408, 0
        %v625 = vsel %vm446, %v409, 0
        %v628 = vsel %vm446, %v410, 0
        %v631 = vsel %vm446, %v411, 0
        %v634 = vsel %vm446, %v412, 0
        %v637 = vsel %vm446, %v413, 0
        %v640 = vsel %vm446, %v414, 0
        %v643 = vsel %vm446, %v415, 0
        %v646 = vsel %vm446, %v416, 0
        %v649 = vsel %vm446, %v417, 0
        %651 = vmatprep.subr.mxu0 0.0
        %652 = vmatpush1.xpose.msra.mxu0 %v460
        %653 = vmatprep.subr.mxu0 0.0
        %654 = vmatpush1.xpose.msra.mxu0 %v463
        %655 = vmatprep.subr.mxu0 0.0
        %656 = vmatpush1.xpose.msra.mxu0 %v466
        %657 = vmatprep.subr.mxu0 0.0
        %658 = vmatpush1.xpose.msra.mxu0 %v469
        %659 = vmatprep.subr.mxu0 0.0
        %660 = vmatpush1.xpose.msra.mxu0 %v472
        %661 = vmatprep.subr.mxu0 0.0
        %662 = vmatpush1.xpose.msra.mxu0 %v475
        %663 = vmatprep.subr.mxu0 0.0
        %664 = vmatpush1.xpose.msra.mxu0 %v478
        %665 = vmatprep.subr.mxu0 0.0
        %666 = vmatpush1.xpose.msra.mxu0 %v481
        %667 = vmatprep.subr.mxu0 0.0
        %668 = vmatpush1.xpose.msra.mxu0 %v484
        %669 = vmatprep.subr.mxu0 0.0
        %670 = vmatpush1.xpose.msra.mxu0 %v487
        %671 = vmatprep.subr.mxu0 0.0
        %672 = vmatpush1.xpose.msra.mxu0 %v490
        %673 = vmatprep.subr.mxu0 0.0
        %674 = vmatpush1.xpose.msra.mxu0 %v493
        %675 = vmatprep.subr.mxu0 0.0
        %676 = vmatpush1.xpose.msra.mxu0 %v496
        %677 = vmatprep.subr.mxu0 0.0
        %678 = vmatpush1.xpose.msra.mxu0 %v499
        %679 = vmatprep.subr.mxu0 0.0
        %680 = vmatpush1.xpose.msra.mxu0 %v502
        %681 = vmatprep.subr.mxu0 0.0
        %682 = vmatpush1.xpose.msra.mxu0 %v505
        %683 = vmatprep.subr.mxu0 0.0
        %684 = vmatpush1.xpose.msra.mxu0 %v508
        %685 = vmatprep.subr.mxu0 0.0
        %686 = vmatpush1.xpose.msra.mxu0 %v511
        %687 = vmatprep.subr.mxu0 0.0
        %688 = vmatpush1.xpose.msra.mxu0 %v514
        %689 = vmatprep.subr.mxu0 0.0
        %690 = vmatpush1.xpose.msra.mxu0 %v517
        %691 = vmatprep.subr.mxu0 0.0
        %692 = vmatpush1.xpose.msra.mxu0 %v520
        %693 = vmatprep.subr.mxu0 0.0
        %694 = vmatpush1.xpose.msra.mxu0 %v523
        %695 = vmatprep.subr.mxu0 0.0
        %696 = vmatpush1.xpose.msra.mxu0 %v526
        %697 = vmatprep.subr.mxu0 0.0
        %698 = vmatpush1.xpose.msra.mxu0 %v529
        %699 = vmatprep.subr.mxu0 0.0
        %700 = vmatpush1.xpose.msra.mxu0 %v532
        %701 = vmatprep.subr.mxu0 0.0
        %702 = vmatpush1.xpose.msra.mxu0 %v535
        %703 = vmatprep.subr.mxu0 0.0
        %704 = vmatpush1.xpose.msra.mxu0 %v538
        %705 = vmatprep.subr.mxu0 0.0
        %706 = vmatpush1.xpose.msra.mxu0 %v541
        %707 = vmatprep.subr.mxu0 0.0
        %708 = vmatpush1.xpose.msra.mxu0 %v544
        %709 = vmatprep.subr.mxu0 0.0
        %710 = vmatpush1.xpose.msra.mxu0 %v547
        %711 = vmatprep.subr.mxu0 0.0
        %712 = vmatpush1.xpose.msra.mxu0 %v550
        %713 = vmatprep.subr.mxu0 0.0
        %714 = vmatpush1.xpose.msra.mxu0 %v553
        %715 = vmatprep.mubr.f32.mxu0 0.0
        %716 = vmatmul.mubr.f32.gmra.mrb[0].mxu0 %v448
        %v717 = vpop.f32.mrb[0].mxu0
        %v718 = vadd.f32 %v429, %v717
        %v719 = vpop.f32.mrb[0].mxu0
        %v720 = vadd.f32 %v429, %v719
        %721 = vmatprep.mubr.f32.mxu0 0.0
        %722 = vmatmul.mubr.f32.gmra.mrb[0].mxu0 %v451
        %v723 = vpop.f32.mrb[0].mxu0
        %v724 = vadd.f32 %v434, %v723
        %v725 = vpop.f32.mrb[0].mxu0
        %v726 = vadd.f32 %v434, %v725
        %727 = vmatprep.mubr.f32.mxu0 0.0
        %728 = vmatmul.mubr.f32.gmra.mrb[0].mxu0 %v454
        %v729 = vpop.f32.mrb[0].mxu0
        %v730 = vadd.f32 %v439, %v729
        %v731 = vpop.f32.mrb[0].mxu0
        %v732 = vadd.f32 %v439, %v731
        %733 = vmatprep.mubr.f32.mxu0 0.0
        %734 = vmatmul.mubr.f32.gmra.mrb[0].mxu0 %v457
        %v735 = vpop.f32.mrb[0].mxu0
        %v736 = vadd.f32 %v444, %v735
        %v737 = vpop.f32.mrb[0].mxu0
        %v738 = vadd.f32 %v444, %v737
        %739 = vdwg.mxu0
        %740 = vmatprep.subr.mxu0 0.0
        %741 = vmatpush1.xpose.msra.mxu0 %v556
        %742 = vmatprep.subr.mxu0 0.0
        %743 = vmatpush1.xpose.msra.mxu0 %v559
        %744 = vmatprep.subr.mxu0 0.0
        %745 = vmatpush1.xpose.msra.mxu0 %v562
        %746 = vmatprep.subr.mxu0 0.0
        %747 = vmatpush1.xpose.msra.mxu0 %v565
        %748 = vmatprep.subr.mxu0 0.0
        %749 = vmatpush1.xpose.msra.mxu0 %v568
        %750 = vmatprep.subr.mxu0 0.0
        %751 = vmatpush1.xpose.msra.mxu0 %v571
        %752 = vmatprep.subr.mxu0 0.0
        %753 = vmatpush1.xpose.msra.mxu0 %v574
        %754 = vmatprep.subr.mxu0 0.0
        %755 = vmatpush1.xpose.msra.mxu0 %v577
        %756 = vmatprep.subr.mxu0 0.0
        %757 = vmatpush1.xpose.msra.mxu0 %v580
        %758 = vmatprep.subr.mxu0 0.0
        %759 = vmatpush1.xpose.msra.mxu0 %v583
        %760 = vmatprep.subr.mxu0 0.0
        %761 = vmatpush1.xpose.msra.mxu0 %v586
        %762 = vmatprep.subr.mxu0 0.0
        %763 = vmatpush1.xpose.msra.mxu0 %v589
        %764 = vmatprep.subr.mxu0 0.0
        %765 = vmatpush1.xpose.msra.mxu0 %v592
        %766 = vmatprep.subr.mxu0 0.0
        %767 = vmatpush1.xpose.msra.mxu0 %v595
        %768 = vmatprep.subr.mxu0 0.0
        %769 = vmatpush1.xpose.msra.mxu0 %v598
        %770 = vmatprep.subr.mxu0 0.0
        %771 = vmatpush1.xpose.msra.mxu0 %v601
        %772 = vmatprep.subr.mxu0 0.0
        %773 = vmatpush1.xpose.msra.mxu0 %v604
        %774 = vmatprep.subr.mxu0 0.0
        %775 = vmatpush1.xpose.msra.mxu0 %v607
        %776 = vmatprep.subr.mxu0 0.0
        %777 = vmatpush1.xpose.msra.mxu0 %v610
        %778 = vmatprep.subr.mxu0 0.0
        %779 = vmatpush1.xpose.msra.mxu0 %v613
        %780 = vmatprep.subr.mxu0 0.0
        %781 = vmatpush1.xpose.msra.mxu0 %v616
        %782 = vmatprep.subr.mxu0 0.0
        %783 = vmatpush1.xpose.msra.mxu0 %v619
        %784 = vmatprep.subr.mxu0 0.0
        %785 = vmatpush1.xpose.msra.mxu0 %v622
        %786 = vmatprep.subr.mxu0 0.0
        %787 = vmatpush1.xpose.msra.mxu0 %v625
        %788 = vmatprep.subr.mxu0 0.0
        %789 = vmatpush1.xpose.msra.mxu0 %v628
        %790 = vmatprep.subr.mxu0 0.0
        %791 = vmatpush1.xpose.msra.mxu0 %v631
        %792 = vmatprep.subr.mxu0 0.0
        %793 = vmatpush1.xpose.msra.mxu0 %v634
        %794 = vmatprep.subr.mxu0 0.0
        %795 = vmatpush1.xpose.msra.mxu0 %v637
        %796 = vmatprep.subr.mxu0 0.0
        %797 = vmatpush1.xpose.msra.mxu0 %v640
        %798 = vmatprep.subr.mxu0 0.0
        %799 = vmatpush1.xpose.msra.mxu0 %v643
        %800 = vmatprep.subr.mxu0 0.0
        %801 = vmatpush1.xpose.msra.mxu0 %v646
        %802 = vmatprep.subr.mxu0 0.0
        %803 = vmatpush1.xpose.msra.mxu0 %v649
        %804 = vmatprep.mubr.f32.mxu0 0.0
        %805 = vmatmul.mubr.f32.gmra.mrb[0].mxu0 %v448
        %v806 = vpop.f32.mrb[0].mxu0
        %v807 = vadd.f32 %v429, %v806
        %v808 = vpop.f32.mrb[0].mxu0
        %v809 = vadd.f32 %v429, %v808
        %810 = vmatprep.mubr.f32.mxu0 0.0
        %811 = vmatmul.mubr.f32.gmra.mrb[0].mxu0 %v451
        %v812 = vpop.f32.mrb[0].mxu0
        %v813 = vadd.f32 %v434, %v812
        %v814 = vpop.f32.mrb[0].mxu0
        %v815 = vadd.f32 %v434, %v814
        %816 = vmatprep.mubr.f32.mxu0 0.0
        %817 = vmatmul.mubr.f32.gmra.mrb[0].mxu0 %v454
        %v818 = vpop.f32.mrb[0].mxu0
        %v819 = vadd.f32 %v439, %v818
        %v820 = vpop.f32.mrb[0].mxu0
        %v821 = vadd.f32 %v439, %v820
        %822 = vmatprep.mubr.f32.mxu0 0.0
        %823 = vmatmul.mubr.f32.gmra.mrb[0].mxu0 %v457
        %v824 = vpop.f32.mrb[0].mxu0
        %v825 = vadd.f32 %v444, %v824
        %v826 = vpop.f32.mrb[0].mxu0
        %v827 = vadd.f32 %v444, %v826
        %828 = vdwg.mxu0
        %v829 = vand.u32 2147483647, %v718
        %vm830 = vcmp.le.f32.partialorder %v829, 0.7853982
        %vm831 = vcmp.lt.s32.totalorder %v718, 0
        %v832 = vand.u32 %v718, 2139095040
        %v833 = vshrl.u32 %v832, 23
        %v834 = vsub.s32 %v833, 127
        %v835 = vand.u32 2147483647, %v718
        %v836 = vand.u32 %v835, 8388607
        %v837 = vor.u32 %v836, 8388608
        %v838 = vsub.s32 0, %v837
        %v839 = vadd.s32 %v834, 1
        %vm840 = vcmp.gt.s32.totalorder %v839, 0
        %v841 = vsel %vm840, %v839, 0
        %v842 = vshrl.u32 %v841, 5
        %v843 = vand.u32 %v841, 31
        %v844 = vsub.s32 32, %v843
        %v845 = vshrl.u32 683565275, %v844
        %v846 = vshll.u32 683565275, %v843
        %v847 = vshrl.u32 2475754826, %v844
        %v848 = vor.u32 %v846, %v847
        %v849 = vshll.u32 2475754826, %v843
        %v850 = vshrl.u32 2131351028, %v844
        %v851 = vor.u32 %v849, %v850
        %v852 = vshll.u32 2131351028, %v843
        %v853 = vshrl.u32 2102212464, %v844
        %v854 = vor.u32 %v852, %v853
        %v855 = vshll.u32 2102212464, %v843
        %v856 = vshrl.u32 920167782, %v844
        %v857 = vor.u32 %v855, %v856
        %v858 = vshll.u32 920167782, %v843
        %v859 = vshrl.u32 1326507024, %v844
        %v860 = vor.u32 %v858, %v859
        %vm861 = vcmp.lt.s32.totalorder %v842, 1
        %vm862 = vcmp.lt.s32.totalorder %v842, 2
        %vm863 = vcmp.lt.s32.totalorder %v842, 3
        %vm864 = vcmp.lt.s32.totalorder %v842, 4
        %v865 = vsel %vm861, %v845, %v848
        %v866 = vsel %vm864, %v854, 2102212464
        %v867 = vsel %vm863, %v851, %v866
        %v868 = vsel %vm862, %v865, %v867
        %v869 = vsel %vm861, %v848, %v851
        %v870 = vsel %vm864, %v857, 920167782
        %v871 = vsel %vm863, %v854, %v870
        %v872 = vsel %vm862, %v869, %v871
        %v873 = vsel %vm861, %v851, %v854
        %v874 = vsel %vm864, %v860, 1326507024
        %v875 = vsel %vm863, %v857, %v874
        %v876 = vsel %vm862, %v873, %v875
        %v877 = vshll.u32 %v837, 8
        %v878 = vmul.u32.u64.compose %v877, %v876
        %v879 = vextract.low.u32 %v878
        %v880 = vextract.high.u32 %v878
        %v881 = vmul.u32.u64.compose %v877, %v872
        %v882 = vextract.low.u32 %v881
        %v883 = vextract.high.u32 %v881
        %v884 = vmul.u32 %v877, %v868
        %v885 = vadd.s32 %v880, %v882
        %vm886 = vc.u32 %v880, %v882
        %v887 = vadd.s32 %v883, 1
        %v888 = vsel %vm886, %v887, %v883
        %v889 = vadd.s32 %v884, %v888
        %v890 = vadd.s32 %v889, 536870912
        %v891 = vshrl.u32 %v890, 30
        %v892 = vshll.u32 %v891, 30
        %v893 = vsub.s32 %v889, %v892
        %vm894 = vcmp.lt.s32.totalorder %v893, 0
        %v895 = vsub.s32 0, %v893
        %v896 = vsel %vm894, %v895, %v893
        %v897 = vclz %v896
        %v898 = vsub.s32 %v897, 2
        %vm899 = vcmp.gt.s32.totalorder 0, %v898
        %v900 = vsel %vm899, 0, %v898
        %v901 = vsub.s32 32, %v900
        %v902 = vshll.u32 %v893, %v900
        %v903 = vshrl.u32 %v885, %v901
        %v904 = vor.u32 %v902, %v903
        %v905 = vsub.s32 4294967266, %v900
        %v906 = vadd.s32 %v905, 127
        %v907 = vshll.u32 %v906, 23
        %v908 = vor.u32 4788187, %v907
        %v909 = vand.u32 2147483647, %v908
        %v911 = vcvt.s32.f32 %v904
        %v912 = vmul.f32 %v911, %v909
        %v913 = vxor.u32 %v912, 2147483648
        %v914 = vsel %vm831, %v913, %v912
        %v915 = vsub.s32 4, %v891
        %v916 = vsel %vm831, %v915, %v891
        %v917 = vsel %vm830, %v718, %v914
        %v918 = vsel %vm830, 0, %v916
        %v919 = vcosq.f32.pop %v917
        %v920 = vsinq.f32.pop %v917
        %vm921 = vweird.f32 %v718
        %v922 = vadd.s32 %v918, 3
        %v923 = vand.u32 %v922, 3
        %vm924 = vcmp.lt.s32.totalorder %v923, 2
        %vm925 = vcmp.eq.s32.totalorder %v923, 0
        %v926 = vxor.u32 %v920, 2147483648
        %v927 = vsel %vm925, %v919, %v926
        %vm928 = vcmp.eq.s32.totalorder %v923, 2
        %v929 = vxor.u32 %v919, 2147483648
        %v930 = vsel %vm928, %v929, %v920
        %v931 = vsel %vm924, %v927, %v930
        %v932 = vsel %vm921, nan, %v931
        %v933 = vand.u32 2147483647, %v720
        %vm934 = vcmp.le.f32.partialorder %v933, 0.7853982
        %vm935 = vcmp.lt.s32.totalorder %v720, 0
        %v936 = vand.u32 %v720, 2139095040
        %v937 = vshrl.u32 %v936, 23
        %v938 = vsub.s32 %v937, 127
        %v939 = vand.u32 2147483647, %v720
        %v940 = vand.u32 %v939, 8388607
        %v941 = vor.u32 %v940, 8388608
        %v942 = vsub.s32 0, %v941
        %v943 = vadd.s32 %v938, 1
        %vm944 = vcmp.gt.s32.totalorder %v943, 0
        %v945 = vsel %vm944, %v943, 0
        %v946 = vshrl.u32 %v945, 5
        %v947 = vand.u32 %v945, 31
        %v948 = vsub.s32 32, %v947
        %v949 = vshrl.u32 683565275, %v948
        %v950 = vshll.u32 683565275, %v947
        %v951 = vshrl.u32 2475754826, %v948
        %v952 = vor.u32 %v950, %v951
        %v953 = vshll.u32 2475754826, %v947
        %v954 = vshrl.u32 2131351028, %v948
        %v955 = vor.u32 %v953, %v954
        %v956 = vshll.u32 2131351028, %v947
        %v957 = vshrl.u32 2102212464, %v948
        %v958 = vor.u32 %v956, %v957
        %v959 = vshll.u32 2102212464, %v947
        %v960 = vshrl.u32 920167782, %v948
        %v961 = vor.u32 %v959, %v960
        %v962 = vshll.u32 920167782, %v947
        %v963 = vshrl.u32 1326507024, %v948
        %v964 = vor.u32 %v962, %v963
        %vm965 = vcmp.lt.s32.totalorder %v946, 1
        %vm966 = vcmp.lt.s32.totalorder %v946, 2
        %vm967 = vcmp.lt.s32.totalorder %v946, 3
        %vm968 = vcmp.lt.s32.totalorder %v946, 4
        %v969 = vsel %vm965, %v949, %v952
        %v970 = vsel %vm968, %v958, 2102212464
        %v971 = vsel %vm967, %v955, %v970
        %v972 = vsel %vm966, %v969, %v971
        %v973 = vsel %vm965, %v952, %v955
        %v974 = vsel %vm968, %v961, 920167782
        %v975 = vsel %vm967, %v958, %v974
        %v976 = vsel %vm966, %v973, %v975
        %v977 = vsel %vm965, %v955, %v958
        %v978 = vsel %vm968, %v964, 1326507024
        %v979 = vsel %vm967, %v961, %v978
        %v980 = vsel %vm966, %v977, %v979
        %v981 = vshll.u32 %v941, 8
        %v982 = vmul.u32.u64.compose %v981, %v980
        %v983 = vextract.low.u32 %v982
        %v984 = vextract.high.u32 %v982
        %v985 = vmul.u32.u64.compose %v981, %v976
        %v986 = vextract.low.u32 %v985
        %v987 = vextract.high.u32 %v985
        %v988 = vmul.u32 %v981, %v972
        %v989 = vadd.s32 %v984, %v986
        %vm990 = vc.u32 %v984, %v986
        %v991 = vadd.s32 %v987, 1
        %v992 = vsel %vm990, %v991, %v987
        %v993 = vadd.s32 %v988, %v992
        %v994 = vadd.s32 %v993, 536870912
        %v995 = vshrl.u32 %v994, 30
        %v996 = vshll.u32 %v995, 30
        %v997 = vsub.s32 %v993, %v996
        %vm998 = vcmp.lt.s32.totalorder %v997, 0
        %v999 = vsub.s32 0, %v997
        %v1000 = vsel %vm998, %v999, %v997
        %v1001 = vclz %v1000
        %v1002 = vsub.s32 %v1001, 2
        %vm1003 = vcmp.gt.s32.totalorder 0, %v1002
        %v1004 = vsel %vm1003, 0, %v1002
        %v1005 = vsub.s32 32, %v1004
        %v1006 = vshll.u32 %v997, %v1004
        %v1007 = vshrl.u32 %v989, %v1005
        %v1008 = vor.u32 %v1006, %v1007
        %v1009 = vsub.s32 4294967266, %v1004
        %v1010 = vadd.s32 %v1009, 127
        %v1011 = vshll.u32 %v1010, 23
        %v1012 = vor.u32 4788187, %v1011
        %v1013 = vand.u32 2147483647, %v1012
        %v1015 = vcvt.s32.f32 %v1008
        %v1016 = vmul.f32 %v1015, %v1013
        %v1017 = vxor.u32 %v1016, 2147483648
        %v1018 = vsel %vm935, %v1017, %v1016
        %v1019 = vsub.s32 4, %v995
        %v1020 = vsel %vm935, %v1019, %v995
        %v1021 = vsel %vm934, %v720, %v1018
        %v1022 = vsel %vm934, 0, %v1020
        %v1023 = vcosq.f32.pop %v1021
        %v1024 = vsinq.f32.pop %v1021
        %vm1025 = vweird.f32 %v720
        %v1026 = vadd.s32 %v1022, 3
        %v1027 = vand.u32 %v1026, 3
        %vm1028 = vcmp.lt.s32.totalorder %v1027, 2
        %vm1029 = vcmp.eq.s32.totalorder %v1027, 0
        %v1030 = vxor.u32 %v1024, 2147483648
        %v1031 = vsel %vm1029, %v1023, %v1030
        %vm1032 = vcmp.eq.s32.totalorder %v1027, 2
        %v1033 = vxor.u32 %v1023, 2147483648
        %v1034 = vsel %vm1032, %v1033, %v1024
        %v1035 = vsel %vm1028, %v1031, %v1034
        %v1036 = vsel %vm1025, nan, %v1035
        %v1037 = vand.u32 2147483647, %v807
        %vm1038 = vcmp.le.f32.partialorder %v1037, 0.7853982
        %vm1039 = vcmp.lt.s32.totalorder %v807, 0
        %v1040 = vand.u32 %v807, 2139095040
        %v1041 = vshrl.u32 %v1040, 23
        %v1042 = vsub.s32 %v1041, 127
        %v1043 = vand.u32 2147483647, %v807
        %v1044 = vand.u32 %v1043, 8388607
        %v1045 = vor.u32 %v1044, 8388608
        %v1046 = vsub.s32 0, %v1045
        %v1047 = vadd.s32 %v1042, 1
        %vm1048 = vcmp.gt.s32.totalorder %v1047, 0
        %v1049 = vsel %vm1048, %v1047, 0
        %v1050 = vshrl.u32 %v1049, 5
        %v1051 = vand.u32 %v1049, 31
        %v1052 = vsub.s32 32, %v1051
        %v1053 = vshrl.u32 683565275, %v1052
        %v1054 = vshll.u32 683565275, %v1051
        %v1055 = vshrl.u32 2475754826, %v1052
        %v1056 = vor.u32 %v1054, %v1055
        %v1057 = vshll.u32 2475754826, %v1051
        %v1058 = vshrl.u32 2131351028, %v1052
        %v1059 = vor.u32 %v1057, %v1058
        %v1060 = vshll.u32 2131351028, %v1051
        %v1061 = vshrl.u32 2102212464, %v1052
        %v1062 = vor.u32 %v1060, %v1061
        %v1063 = vshll.u32 2102212464, %v1051
        %v1064 = vshrl.u32 920167782, %v1052
        %v1065 = vor.u32 %v1063, %v1064
        %v1066 = vshll.u32 920167782, %v1051
        %v1067 = vshrl.u32 1326507024, %v1052
        %v1068 = vor.u32 %v1066, %v1067
        %vm1069 = vcmp.lt.s32.totalorder %v1050, 1
        %vm1070 = vcmp.lt.s32.totalorder %v1050, 2
        %vm1071 = vcmp.lt.s32.totalorder %v1050, 3
        %vm1072 = vcmp.lt.s32.totalorder %v1050, 4
        %v1073 = vsel %vm1069, %v1053, %v1056
        %v1074 = vsel %vm1072, %v1062, 2102212464
        %v1075 = vsel %vm1071, %v1059, %v1074
        %v1076 = vsel %vm1070, %v1073, %v1075
        %v1077 = vsel %vm1069, %v1056, %v1059
        %v1078 = vsel %vm1072, %v1065, 920167782
        %v1079 = vsel %vm1071, %v1062, %v1078
        %v1080 = vsel %vm1070, %v1077, %v1079
        %v1081 = vsel %vm1069, %v1059, %v1062
        %v1082 = vsel %vm1072, %v1068, 1326507024
        %v1083 = vsel %vm1071, %v1065, %v1082
        %v1084 = vsel %vm1070, %v1081, %v1083
        %v1085 = vshll.u32 %v1045, 8
        %v1086 = vmul.u32.u64.compose %v1085, %v1084
        %v1087 = vextract.low.u32 %v1086
        %v1088 = vextract.high.u32 %v1086
        %v1089 = vmul.u32.u64.compose %v1085, %v1080
        %v1090 = vextract.low.u32 %v1089
        %v1091 = vextract.high.u32 %v1089
        %v1092 = vmul.u32 %v1085, %v1076
        %v1093 = vadd.s32 %v1088, %v1090
        %vm1094 = vc.u32 %v1088, %v1090
        %v1095 = vadd.s32 %v1091, 1
        %v1096 = vsel %vm1094, %v1095, %v1091
        %v1097 = vadd.s32 %v1092, %v1096
        %v1098 = vadd.s32 %v1097, 536870912
        %v1099 = vshrl.u32 %v1098, 30
        %v1100 = vshll.u32 %v1099, 30
        %v1101 = vsub.s32 %v1097, %v1100
        %vm1102 = vcmp.lt.s32.totalorder %v1101, 0
        %v1103 = vsub.s32 0, %v1101
        %v1104 = vsel %vm1102, %v1103, %v1101
        %v1105 = vclz %v1104
        %v1106 = vsub.s32 %v1105, 2
        %vm1107 = vcmp.gt.s32.totalorder 0, %v1106
        %v1108 = vsel %vm1107, 0, %v1106
        %v1109 = vsub.s32 32, %v1108
        %v1110 = vshll.u32 %v1101, %v1108
        %v1111 = vshrl.u32 %v1093, %v1109
        %v1112 = vor.u32 %v1110, %v1111
        %v1113 = vsub.s32 4294967266, %v1108
        %v1114 = vadd.s32 %v1113, 127
        %v1115 = vshll.u32 %v1114, 23
        %v1116 = vor.u32 4788187, %v1115
        %v1117 = vand.u32 2147483647, %v1116
        %v1119 = vcvt.s32.f32 %v1112
        %v1120 = vmul.f32 %v1119, %v1117
        %v1121 = vxor.u32 %v1120, 2147483648
        %v1122 = vsel %vm1039, %v1121, %v1120
        %v1123 = vsub.s32 4, %v1099
        %v1124 = vsel %vm1039, %v1123, %v1099
        %v1125 = vsel %vm1038, %v807, %v1122
        %v1126 = vsel %vm1038, 0, %v1124
        %v1127 = vcosq.f32.pop %v1125
        %v1128 = vsinq.f32.pop %v1125
        %vm1129 = vweird.f32 %v807
        %v1130 = vadd.s32 %v1126, 3
        %v1131 = vand.u32 %v1130, 3
        %vm1132 = vcmp.lt.s32.totalorder %v1131, 2
        %vm1133 = vcmp.eq.s32.totalorder %v1131, 0
        %v1134 = vxor.u32 %v1128, 2147483648
        %v1135 = vsel %vm1133, %v1127, %v1134
        %vm1136 = vcmp.eq.s32.totalorder %v1131, 2
        %v1137 = vxor.u32 %v1127, 2147483648
        %v1138 = vsel %vm1136, %v1137, %v1128
        %v1139 = vsel %vm1132, %v1135, %v1138
        %v1140 = vsel %vm1129, nan, %v1139
        %v1141 = vand.u32 2147483647, %v809
        %vm1142 = vcmp.le.f32.partialorder %v1141, 0.7853982
        %vm1143 = vcmp.lt.s32.totalorder %v809, 0
        %v1144 = vand.u32 %v809, 2139095040
        %v1145 = vshrl.u32 %v1144, 23
        %v1146 = vsub.s32 %v1145, 127
        %v1147 = vand.u32 2147483647, %v809
        %v1148 = vand.u32 %v1147, 8388607
        %v1149 = vor.u32 %v1148, 8388608
        %v1150 = vsub.s32 0, %v1149
        %v1151 = vadd.s32 %v1146, 1
        %vm1152 = vcmp.gt.s32.totalorder %v1151, 0
        %v1153 = vsel %vm1152, %v1151, 0
        %v1154 = vshrl.u32 %v1153, 5
        %v1155 = vand.u32 %v1153, 31
        %v1156 = vsub.s32 32, %v1155
        %v1157 = vshrl.u32 683565275, %v1156
        %v1158 = vshll.u32 683565275, %v1155
        %v1159 = vshrl.u32 2475754826, %v1156
        %v1160 = vor.u32 %v1158, %v1159
        %v1161 = vshll.u32 2475754826, %v1155
        %v1162 = vshrl.u32 2131351028, %v1156
        %v1163 = vor.u32 %v1161, %v1162
        %v1164 = vshll.u32 2131351028, %v1155
        %v1165 = vshrl.u32 2102212464, %v1156
        %v1166 = vor.u32 %v1164, %v1165
        %v1167 = vshll.u32 2102212464, %v1155
        %v1168 = vshrl.u32 920167782, %v1156
        %v1169 = vor.u32 %v1167, %v1168
        %v1170 = vshll.u32 920167782, %v1155
        %v1171 = vshrl.u32 1326507024, %v1156
        %v1172 = vor.u32 %v1170, %v1171
        %vm1173 = vcmp.lt.s32.totalorder %v1154, 1
        %vm1174 = vcmp.lt.s32.totalorder %v1154, 2
        %vm1175 = vcmp.lt.s32.totalorder %v1154, 3
        %vm1176 = vcmp.lt.s32.totalorder %v1154, 4
        %v1177 = vsel %vm1173, %v1157, %v1160
        %v1178 = vsel %vm1176, %v1166, 2102212464
        %v1179 = vsel %vm1175, %v1163, %v1178
        %v1180 = vsel %vm1174, %v1177, %v1179
        %v1181 = vsel %vm1173, %v1160, %v1163
        %v1182 = vsel %vm1176, %v1169, 920167782
        %v1183 = vsel %vm1175, %v1166, %v1182
        %v1184 = vsel %vm1174, %v1181, %v1183
        %v1185 = vsel %vm1173, %v1163, %v1166
        %v1186 = vsel %vm1176, %v1172, 1326507024
        %v1187 = vsel %vm1175, %v1169, %v1186
        %v1188 = vsel %vm1174, %v1185, %v1187
        %v1189 = vshll.u32 %v1149, 8
        %v1190 = vmul.u32.u64.compose %v1189, %v1188
        %v1191 = vextract.low.u32 %v1190
        %v1192 = vextract.high.u32 %v1190
        %v1193 = vmul.u32.u64.compose %v1189, %v1184
        %v1194 = vextract.low.u32 %v1193
        %v1195 = vextract.high.u32 %v1193
        %v1196 = vmul.u32 %v1189, %v1180
        %v1197 = vadd.s32 %v1192, %v1194
        %vm1198 = vc.u32 %v1192, %v1194
        %v1199 = vadd.s32 %v1195, 1
        %v1200 = vsel %vm1198, %v1199, %v1195
        %v1201 = vadd.s32 %v1196, %v1200
        %v1202 = vadd.s32 %v1201, 536870912
        %v1203 = vshrl.u32 %v1202, 30
        %v1204 = vshll.u32 %v1203, 30
        %v1205 = vsub.s32 %v1201, %v1204
        %vm1206 = vcmp.lt.s32.totalorder %v1205, 0
        %v1207 = vsub.s32 0, %v1205
        %v1208 = vsel %vm1206, %v1207, %v1205
        %v1209 = vclz %v1208
        %v1210 = vsub.s32 %v1209, 2
        %vm1211 = vcmp.gt.s32.totalorder 0, %v1210
        %v1212 = vsel %vm1211, 0, %v1210
        %v1213 = vsub.s32 32, %v1212
        %v1214 = vshll.u32 %v1205, %v1212
        %v1215 = vshrl.u32 %v1197, %v1213
        %v1216 = vor.u32 %v1214, %v1215
        %v1217 = vsub.s32 4294967266, %v1212
        %v1218 = vadd.s32 %v1217, 127
        %v1219 = vshll.u32 %v1218, 23
        %v1220 = vor.u32 4788187, %v1219
        %v1221 = vand.u32 2147483647, %v1220
        %v1223 = vcvt.s32.f32 %v1216
        %v1224 = vmul.f32 %v1223, %v1221
        %v1225 = vxor.u32 %v1224, 2147483648
        %v1226 = vsel %vm1143, %v1225, %v1224
        %v1227 = vsub.s32 4, %v1203
        %v1228 = vsel %vm1143, %v1227, %v1203
        %v1229 = vsel %vm1142, %v809, %v1226
        %v1230 = vsel %vm1142, 0, %v1228
        %v1231 = vcosq.f32.pop %v1229
        %v1232 = vsinq.f32.pop %v1229
        %vm1233 = vweird.f32 %v809
        %v1234 = vadd.s32 %v1230, 3
        %v1235 = vand.u32 %v1234, 3
        %vm1236 = vcmp.lt.s32.totalorder %v1235, 2
        %vm1237 = vcmp.eq.s32.totalorder %v1235, 0
        %v1238 = vxor.u32 %v1232, 2147483648
        %v1239 = vsel %vm1237, %v1231, %v1238
        %vm1240 = vcmp.eq.s32.totalorder %v1235, 2
        %v1241 = vxor.u32 %v1231, 2147483648
        %v1242 = vsel %vm1240, %v1241, %v1232
        %v1243 = vsel %vm1236, %v1239, %v1242
        %v1244 = vsel %vm1233, nan, %v1243
        %v1245 = vand.u32 2147483647, %v724
        %vm1246 = vcmp.le.f32.partialorder %v1245, 0.7853982
        %vm1247 = vcmp.lt.s32.totalorder %v724, 0
        %v1248 = vand.u32 %v724, 2139095040
        %v1249 = vshrl.u32 %v1248, 23
        %v1250 = vsub.s32 %v1249, 127
        %v1251 = vand.u32 2147483647, %v724
        %v1252 = vand.u32 %v1251, 8388607
        %v1253 = vor.u32 %v1252, 8388608
        %v1254 = vsub.s32 0, %v1253
        %v1255 = vadd.s32 %v1250, 1
        %vm1256 = vcmp.gt.s32.totalorder %v1255, 0
        %v1257 = vsel %vm1256, %v1255, 0
        %v1258 = vshrl.u32 %v1257, 5
        %v1259 = vand.u32 %v1257, 31
        %v1260 = vsub.s32 32, %v1259
        %v1261 = vshrl.u32 683565275, %v1260
        %v1262 = vshll.u32 683565275, %v1259
        %v1263 = vshrl.u32 2475754826, %v1260
        %v1264 = vor.u32 %v1262, %v1263
        %v1265 = vshll.u32 2475754826, %v1259
        %v1266 = vshrl.u32 2131351028, %v1260
        %v1267 = vor.u32 %v1265, %v1266
        %v1268 = vshll.u32 2131351028, %v1259
        %v1269 = vshrl.u32 2102212464, %v1260
        %v1270 = vor.u32 %v1268, %v1269
        %v1271 = vshll.u32 2102212464, %v1259
        %v1272 = vshrl.u32 920167782, %v1260
        %v1273 = vor.u32 %v1271, %v1272
        %v1274 = vshll.u32 920167782, %v1259
        %v1275 = vshrl.u32 1326507024, %v1260
        %v1276 = vor.u32 %v1274, %v1275
        %vm1277 = vcmp.lt.s32.totalorder %v1258, 1
        %vm1278 = vcmp.lt.s32.totalorder %v1258, 2
        %vm1279 = vcmp.lt.s32.totalorder %v1258, 3
        %vm1280 = vcmp.lt.s32.totalorder %v1258, 4
        %v1281 = vsel %vm1277, %v1261, %v1264
        %v1282 = vsel %vm1280, %v1270, 2102212464
        %v1283 = vsel %vm1279, %v1267, %v1282
        %v1284 = vsel %vm1278, %v1281, %v1283
        %v1285 = vsel %vm1277, %v1264, %v1267
        %v1286 = vsel %vm1280, %v1273, 920167782
        %v1287 = vsel %vm1279, %v1270, %v1286
        %v1288 = vsel %vm1278, %v1285, %v1287
        %v1289 = vsel %vm1277, %v1267, %v1270
        %v1290 = vsel %vm1280, %v1276, 1326507024
        %v1291 = vsel %vm1279, %v1273, %v1290
        %v1292 = vsel %vm1278, %v1289, %v1291
        %v1293 = vshll.u32 %v1253, 8
        %v1294 = vmul.u32.u64.compose %v1293, %v1292
        %v1295 = vextract.low.u32 %v1294
        %v1296 = vextract.high.u32 %v1294
        %v1297 = vmul.u32.u64.compose %v1293, %v1288
        %v1298 = vextract.low.u32 %v1297
        %v1299 = vextract.high.u32 %v1297
        %v1300 = vmul.u32 %v1293, %v1284
        %v1301 = vadd.s32 %v1296, %v1298
        %vm1302 = vc.u32 %v1296, %v1298
        %v1303 = vadd.s32 %v1299, 1
        %v1304 = vsel %vm1302, %v1303, %v1299
        %v1305 = vadd.s32 %v1300, %v1304
        %v1306 = vadd.s32 %v1305, 536870912
        %v1307 = vshrl.u32 %v1306, 30
        %v1308 = vshll.u32 %v1307, 30
        %v1309 = vsub.s32 %v1305, %v1308
        %vm1310 = vcmp.lt.s32.totalorder %v1309, 0
        %v1311 = vsub.s32 0, %v1309
        %v1312 = vsel %vm1310, %v1311, %v1309
        %v1313 = vclz %v1312
        %v1314 = vsub.s32 %v1313, 2
        %vm1315 = vcmp.gt.s32.totalorder 0, %v1314
        %v1316 = vsel %vm1315, 0, %v1314
        %v1317 = vsub.s32 32, %v1316
        %v1318 = vshll.u32 %v1309, %v1316
        %v1319 = vshrl.u32 %v1301, %v1317
        %v1320 = vor.u32 %v1318, %v1319
        %v1321 = vsub.s32 4294967266, %v1316
        %v1322 = vadd.s32 %v1321, 127
        %v1323 = vshll.u32 %v1322, 23
        %v1324 = vor.u32 4788187, %v1323
        %v1325 = vand.u32 2147483647, %v1324
        %v1327 = vcvt.s32.f32 %v1320
        %v1328 = vmul.f32 %v1327, %v1325
        %v1329 = vxor.u32 %v1328, 2147483648
        %v1330 = vsel %vm1247, %v1329, %v1328
        %v1331 = vsub.s32 4, %v1307
        %v1332 = vsel %vm1247, %v1331, %v1307
        %v1333 = vsel %vm1246, %v724, %v1330
        %v1334 = vsel %vm1246, 0, %v1332
        %v1335 = vcosq.f32.pop %v1333
        %v1336 = vsinq.f32.pop %v1333
        %vm1337 = vweird.f32 %v724
        %v1338 = vadd.s32 %v1334, 3
        %v1339 = vand.u32 %v1338, 3
        %vm1340 = vcmp.lt.s32.totalorder %v1339, 2
        %vm1341 = vcmp.eq.s32.totalorder %v1339, 0
        %v1342 = vxor.u32 %v1336, 2147483648
        %v1343 = vsel %vm1341, %v1335, %v1342
        %vm1344 = vcmp.eq.s32.totalorder %v1339, 2
        %v1345 = vxor.u32 %v1335, 2147483648
        %v1346 = vsel %vm1344, %v1345, %v1336
        %v1347 = vsel %vm1340, %v1343, %v1346
        %v1348 = vsel %vm1337, nan, %v1347
        %v1349 = vand.u32 2147483647, %v726
        %vm1350 = vcmp.le.f32.partialorder %v1349, 0.7853982
        %vm1351 = vcmp.lt.s32.totalorder %v726, 0
        %v1352 = vand.u32 %v726, 2139095040
        %v1353 = vshrl.u32 %v1352, 23
        %v1354 = vsub.s32 %v1353, 127
        %v1355 = vand.u32 2147483647, %v726
        %v1356 = vand.u32 %v1355, 8388607
        %v1357 = vor.u32 %v1356, 8388608
        %v1358 = vsub.s32 0, %v1357
        %v1359 = vadd.s32 %v1354, 1
        %vm1360 = vcmp.gt.s32.totalorder %v1359, 0
        %v1361 = vsel %vm1360, %v1359, 0
        %v1362 = vshrl.u32 %v1361, 5
        %v1363 = vand.u32 %v1361, 31
        %v1364 = vsub.s32 32, %v1363
        %v1365 = vshrl.u32 683565275, %v1364
        %v1366 = vshll.u32 683565275, %v1363
        %v1367 = vshrl.u32 2475754826, %v1364
        %v1368 = vor.u32 %v1366, %v1367
        %v1369 = vshll.u32 2475754826, %v1363
        %v1370 = vshrl.u32 2131351028, %v1364
        %v1371 = vor.u32 %v1369, %v1370
        %v1372 = vshll.u32 2131351028, %v1363
        %v1373 = vshrl.u32 2102212464, %v1364
        %v1374 = vor.u32 %v1372, %v1373
        %v1375 = vshll.u32 2102212464, %v1363
        %v1376 = vshrl.u32 920167782, %v1364
        %v1377 = vor.u32 %v1375, %v1376
        %v1378 = vshll.u32 920167782, %v1363
        %v1379 = vshrl.u32 1326507024, %v1364
        %v1380 = vor.u32 %v1378, %v1379
        %vm1381 = vcmp.lt.s32.totalorder %v1362, 1
        %vm1382 = vcmp.lt.s32.totalorder %v1362, 2
        %vm1383 = vcmp.lt.s32.totalorder %v1362, 3
        %vm1384 = vcmp.lt.s32.totalorder %v1362, 4
        %v1385 = vsel %vm1381, %v1365, %v1368
        %v1386 = vsel %vm1384, %v1374, 2102212464
        %v1387 = vsel %vm1383, %v1371, %v1386
        %v1388 = vsel %vm1382, %v1385, %v1387
        %v1389 = vsel %vm1381, %v1368, %v1371
        %v1390 = vsel %vm1384, %v1377, 920167782
        %v1391 = vsel %vm1383, %v1374, %v1390
        %v1392 = vsel %vm1382, %v1389, %v1391
        %v1393 = vsel %vm1381, %v1371, %v1374
        %v1394 = vsel %vm1384, %v1380, 1326507024
        %v1395 = vsel %vm1383, %v1377, %v1394
        %v1396 = vsel %vm1382, %v1393, %v1395
        %v1397 = vshll.u32 %v1357, 8
        %v1398 = vmul.u32.u64.compose %v1397, %v1396
        %v1399 = vextract.low.u32 %v1398
        %v1400 = vextract.high.u32 %v1398
        %v1401 = vmul.u32.u64.compose %v1397, %v1392
        %v1402 = vextract.low.u32 %v1401
        %v1403 = vextract.high.u32 %v1401
        %v1404 = vmul.u32 %v1397, %v1388
        %v1405 = vadd.s32 %v1400, %v1402
        %vm1406 = vc.u32 %v1400, %v1402
        %v1407 = vadd.s32 %v1403, 1
        %v1408 = vsel %vm1406, %v1407, %v1403
        %v1409 = vadd.s32 %v1404, %v1408
        %v1410 = vadd.s32 %v1409, 536870912
        %v1411 = vshrl.u32 %v1410, 30
        %v1412 = vshll.u32 %v1411, 30
        %v1413 = vsub.s32 %v1409, %v1412
        %vm1414 = vcmp.lt.s32.totalorder %v1413, 0
        %v1415 = vsub.s32 0, %v1413
        %v1416 = vsel %vm1414, %v1415, %v1413
        %v1417 = vclz %v1416
        %v1418 = vsub.s32 %v1417, 2
        %vm1419 = vcmp.gt.s32.totalorder 0, %v1418
        %v1420 = vsel %vm1419, 0, %v1418
        %v1421 = vsub.s32 32, %v1420
        %v1422 = vshll.u32 %v1413, %v1420
        %v1423 = vshrl.u32 %v1405, %v1421
        %v1424 = vor.u32 %v1422, %v1423
        %v1425 = vsub.s32 4294967266, %v1420
        %v1426 = vadd.s32 %v1425, 127
        %v1427 = vshll.u32 %v1426, 23
        %v1428 = vor.u32 4788187, %v1427
        %v1429 = vand.u32 2147483647, %v1428
        %v1431 = vcvt.s32.f32 %v1424
        %v1432 = vmul.f32 %v1431, %v1429
        %v1433 = vxor.u32 %v1432, 2147483648
        %v1434 = vsel %vm1351, %v1433, %v1432
        %v1435 = vsub.s32 4, %v1411
        %v1436 = vsel %vm1351, %v1435, %v1411
        %v1437 = vsel %vm1350, %v726, %v1434
        %v1438 = vsel %vm1350, 0, %v1436
        %v1439 = vcosq.f32.pop %v1437
        %v1440 = vsinq.f32.pop %v1437
        %vm1441 = vweird.f32 %v726
        %v1442 = vadd.s32 %v1438, 3
        %v1443 = vand.u32 %v1442, 3
        %vm1444 = vcmp.lt.s32.totalorder %v1443, 2
        %vm1445 = vcmp.eq.s32.totalorder %v1443, 0
        %v1446 = vxor.u32 %v1440, 2147483648
        %v1447 = vsel %vm1445, %v1439, %v1446
        %vm1448 = vcmp.eq.s32.totalorder %v1443, 2
        %v1449 = vxor.u32 %v1439, 2147483648
        %v1450 = vsel %vm1448, %v1449, %v1440
        %v1451 = vsel %vm1444, %v1447, %v1450
        %v1452 = vsel %vm1441, nan, %v1451
        %v1453 = vand.u32 2147483647, %v813
        %vm1454 = vcmp.le.f32.partialorder %v1453, 0.7853982
        %vm1455 = vcmp.lt.s32.totalorder %v813, 0
        %v1456 = vand.u32 %v813, 2139095040
        %v1457 = vshrl.u32 %v1456, 23
        %v1458 = vsub.s32 %v1457, 127
        %v1459 = vand.u32 2147483647, %v813
        %v1460 = vand.u32 %v1459, 8388607
        %v1461 = vor.u32 %v1460, 8388608
        %v1462 = vsub.s32 0, %v1461
        %v1463 = vadd.s32 %v1458, 1
        %vm1464 = vcmp.gt.s32.totalorder %v1463, 0
        %v1465 = vsel %vm1464, %v1463, 0
        %v1466 = vshrl.u32 %v1465, 5
        %v1467 = vand.u32 %v1465, 31
        %v1468 = vsub.s32 32, %v1467
        %v1469 = vshrl.u32 683565275, %v1468
        %v1470 = vshll.u32 683565275, %v1467
        %v1471 = vshrl.u32 2475754826, %v1468
        %v1472 = vor.u32 %v1470, %v1471
        %v1473 = vshll.u32 2475754826, %v1467
        %v1474 = vshrl.u32 2131351028, %v1468
        %v1475 = vor.u32 %v1473, %v1474
        %v1476 = vshll.u32 2131351028, %v1467
        %v1477 = vshrl.u32 2102212464, %v1468
        %v1478 = vor.u32 %v1476, %v1477
        %v1479 = vshll.u32 2102212464, %v1467
        %v1480 = vshrl.u32 920167782, %v1468
        %v1481 = vor.u32 %v1479, %v1480
        %v1482 = vshll.u32 920167782, %v1467
        %v1483 = vshrl.u32 1326507024, %v1468
        %v1484 = vor.u32 %v1482, %v1483
        %vm1485 = vcmp.lt.s32.totalorder %v1466, 1
        %vm1486 = vcmp.lt.s32.totalorder %v1466, 2
        %vm1487 = vcmp.lt.s32.totalorder %v1466, 3
        %vm1488 = vcmp.lt.s32.totalorder %v1466, 4
        %v1489 = vsel %vm1485, %v1469, %v1472
        %v1490 = vsel %vm1488, %v1478, 2102212464
        %v1491 = vsel %vm1487, %v1475, %v1490
        %v1492 = vsel %vm1486, %v1489, %v1491
        %v1493 = vsel %vm1485, %v1472, %v1475
        %v1494 = vsel %vm1488, %v1481, 920167782
        %v1495 = vsel %vm1487, %v1478, %v1494
        %v1496 = vsel %vm1486, %v1493, %v1495
        %v1497 = vsel %vm1485, %v1475, %v1478
        %v1498 = vsel %vm1488, %v1484, 1326507024
        %v1499 = vsel %vm1487, %v1481, %v1498
        %v1500 = vsel %vm1486, %v1497, %v1499
        %v1501 = vshll.u32 %v1461, 8
        %v1502 = vmul.u32.u64.compose %v1501, %v1500
        %v1503 = vextract.low.u32 %v1502
        %v1504 = vextract.high.u32 %v1502
        %v1505 = vmul.u32.u64.compose %v1501, %v1496
        %v1506 = vextract.low.u32 %v1505
        %v1507 = vextract.high.u32 %v1505
        %v1508 = vmul.u32 %v1501, %v1492
        %v1509 = vadd.s32 %v1504, %v1506
        %vm1510 = vc.u32 %v1504, %v1506
        %v1511 = vadd.s32 %v1507, 1
        %v1512 = vsel %vm1510, %v1511, %v1507
        %v1513 = vadd.s32 %v1508, %v1512
        %v1514 = vadd.s32 %v1513, 536870912
        %v1515 = vshrl.u32 %v1514, 30
        %v1516 = vshll.u32 %v1515, 30
        %v1517 = vsub.s32 %v1513, %v1516
        %vm1518 = vcmp.lt.s32.totalorder %v1517, 0
        %v1519 = vsub.s32 0, %v1517
        %v1520 = vsel %vm1518, %v1519, %v1517
        %v1521 = vclz %v1520
        %v1522 = vsub.s32 %v1521, 2
        %vm1523 = vcmp.gt.s32.totalorder 0, %v1522
        %v1524 = vsel %vm1523, 0, %v1522
        %v1525 = vsub.s32 32, %v1524
        %v1526 = vshll.u32 %v1517, %v1524
        %v1527 = vshrl.u32 %v1509, %v1525
        %v1528 = vor.u32 %v1526, %v1527
        %v1529 = vsub.s32 4294967266, %v1524
        %v1530 = vadd.s32 %v1529, 127
        %v1531 = vshll.u32 %v1530, 23
        %v1532 = vor.u32 4788187, %v1531
        %v1533 = vand.u32 2147483647, %v1532
        %v1535 = vcvt.s32.f32 %v1528
        %v1536 = vmul.f32 %v1535, %v1533
        %v1537 = vxor.u32 %v1536, 2147483648
        %v1538 = vsel %vm1455, %v1537, %v1536
        %v1539 = vsub.s32 4, %v1515
        %v1540 = vsel %vm1455, %v1539, %v1515
        %v1541 = vsel %vm1454, %v813, %v1538
        %v1542 = vsel %vm1454, 0, %v1540
        %v1543 = vcosq.f32.pop %v1541
        %v1544 = vsinq.f32.pop %v1541
        %vm1545 = vweird.f32 %v813
        %v1546 = vadd.s32 %v1542, 3
        %v1547 = vand.u32 %v1546, 3
        %vm1548 = vcmp.lt.s32.totalorder %v1547, 2
        %vm1549 = vcmp.eq.s32.totalorder %v1547, 0
        %v1550 = vxor.u32 %v1544, 2147483648
        %v1551 = vsel %vm1549, %v1543, %v1550
        %vm1552 = vcmp.eq.s32.totalorder %v1547, 2
        %v1553 = vxor.u32 %v1543, 2147483648
        %v1554 = vsel %vm1552, %v1553, %v1544
        %v1555 = vsel %vm1548, %v1551, %v1554
        %v1556 = vsel %vm1545, nan, %v1555
        %v1557 = vand.u32 2147483647, %v815
        %vm1558 = vcmp.le.f32.partialorder %v1557, 0.7853982
        %vm1559 = vcmp.lt.s32.totalorder %v815, 0
        %v1560 = vand.u32 %v815, 2139095040
        %v1561 = vshrl.u32 %v1560, 23
        %v1562 = vsub.s32 %v1561, 127
        %v1563 = vand.u32 2147483647, %v815
        %v1564 = vand.u32 %v1563, 8388607
        %v1565 = vor.u32 %v1564, 8388608
        %v1566 = vsub.s32 0, %v1565
        %v1567 = vadd.s32 %v1562, 1
        %vm1568 = vcmp.gt.s32.totalorder %v1567, 0
        %v1569 = vsel %vm1568, %v1567, 0
        %v1570 = vshrl.u32 %v1569, 5
        %v1571 = vand.u32 %v1569, 31
        %v1572 = vsub.s32 32, %v1571
        %v1573 = vshrl.u32 683565275, %v1572
        %v1574 = vshll.u32 683565275, %v1571
        %v1575 = vshrl.u32 2475754826, %v1572
        %v1576 = vor.u32 %v1574, %v1575
        %v1577 = vshll.u32 2475754826, %v1571
        %v1578 = vshrl.u32 2131351028, %v1572
        %v1579 = vor.u32 %v1577, %v1578
        %v1580 = vshll.u32 2131351028, %v1571
        %v1581 = vshrl.u32 2102212464, %v1572
        %v1582 = vor.u32 %v1580, %v1581
        %v1583 = vshll.u32 2102212464, %v1571
        %v1584 = vshrl.u32 920167782, %v1572
        %v1585 = vor.u32 %v1583, %v1584
        %v1586 = vshll.u32 920167782, %v1571
        %v1587 = vshrl.u32 1326507024, %v1572
        %v1588 = vor.u32 %v1586, %v1587
        %vm1589 = vcmp.lt.s32.totalorder %v1570, 1
        %vm1590 = vcmp.lt.s32.totalorder %v1570, 2
        %vm1591 = vcmp.lt.s32.totalorder %v1570, 3
        %vm1592 = vcmp.lt.s32.totalorder %v1570, 4
        %v1593 = vsel %vm1589, %v1573, %v1576
        %v1594 = vsel %vm1592, %v1582, 2102212464
        %v1595 = vsel %vm1591, %v1579, %v1594
        %v1596 = vsel %vm1590, %v1593, %v1595
        %v1597 = vsel %vm1589, %v1576, %v1579
        %v1598 = vsel %vm1592, %v1585, 920167782
        %v1599 = vsel %vm1591, %v1582, %v1598
        %v1600 = vsel %vm1590, %v1597, %v1599
        %v1601 = vsel %vm1589, %v1579, %v1582
        %v1602 = vsel %vm1592, %v1588, 1326507024
        %v1603 = vsel %vm1591, %v1585, %v1602
        %v1604 = vsel %vm1590, %v1601, %v1603
        %v1605 = vshll.u32 %v1565, 8
        %v1606 = vmul.u32.u64.compose %v1605, %v1604
        %v1607 = vextract.low.u32 %v1606
        %v1608 = vextract.high.u32 %v1606
        %v1609 = vmul.u32.u64.compose %v1605, %v1600
        %v1610 = vextract.low.u32 %v1609
        %v1611 = vextract.high.u32 %v1609
        %v1612 = vmul.u32 %v1605, %v1596
        %v1613 = vadd.s32 %v1608, %v1610
        %vm1614 = vc.u32 %v1608, %v1610
        %v1615 = vadd.s32 %v1611, 1
        %v1616 = vsel %vm1614, %v1615, %v1611
        %v1617 = vadd.s32 %v1612, %v1616
        %v1618 = vadd.s32 %v1617, 536870912
        %v1619 = vshrl.u32 %v1618, 30
        %v1620 = vshll.u32 %v1619, 30
        %v1621 = vsub.s32 %v1617, %v1620
        %vm1622 = vcmp.lt.s32.totalorder %v1621, 0
        %v1623 = vsub.s32 0, %v1621
        %v1624 = vsel %vm1622, %v1623, %v1621
        %v1625 = vclz %v1624
        %v1626 = vsub.s32 %v1625, 2
        %vm1627 = vcmp.gt.s32.totalorder 0, %v1626
        %v1628 = vsel %vm1627, 0, %v1626
        %v1629 = vsub.s32 32, %v1628
        %v1630 = vshll.u32 %v1621, %v1628
        %v1631 = vshrl.u32 %v1613, %v1629
        %v1632 = vor.u32 %v1630, %v1631
        %v1633 = vsub.s32 4294967266, %v1628
        %v1634 = vadd.s32 %v1633, 127
        %v1635 = vshll.u32 %v1634, 23
        %v1636 = vor.u32 4788187, %v1635
        %v1637 = vand.u32 2147483647, %v1636
        %v1639 = vcvt.s32.f32 %v1632
        %v1640 = vmul.f32 %v1639, %v1637
        %v1641 = vxor.u32 %v1640, 2147483648
        %v1642 = vsel %vm1559, %v1641, %v1640
        %v1643 = vsub.s32 4, %v1619
        %v1644 = vsel %vm1559, %v1643, %v1619
        %v1645 = vsel %vm1558, %v815, %v1642
        %v1646 = vsel %vm1558, 0, %v1644
        %v1647 = vcosq.f32.pop %v1645
        %v1648 = vsinq.f32.pop %v1645
        %vm1649 = vweird.f32 %v815
        %v1650 = vadd.s32 %v1646, 3
        %v1651 = vand.u32 %v1650, 3
        %vm1652 = vcmp.lt.s32.totalorder %v1651, 2
        %vm1653 = vcmp.eq.s32.totalorder %v1651, 0
        %v1654 = vxor.u32 %v1648, 2147483648
        %v1655 = vsel %vm1653, %v1647, %v1654
        %vm1656 = vcmp.eq.s32.totalorder %v1651, 2
        %v1657 = vxor.u32 %v1647, 2147483648
        %v1658 = vsel %vm1656, %v1657, %v1648
        %v1659 = vsel %vm1652, %v1655, %v1658
        %v1660 = vsel %vm1649, nan, %v1659
        %v1661 = vand.u32 2147483647, %v730
        %vm1662 = vcmp.le.f32.partialorder %v1661, 0.7853982
        %vm1663 = vcmp.lt.s32.totalorder %v730, 0
        %v1664 = vand.u32 %v730, 2139095040
        %v1665 = vshrl.u32 %v1664, 23
        %v1666 = vsub.s32 %v1665, 127
        %v1667 = vand.u32 2147483647, %v730
        %v1668 = vand.u32 %v1667, 8388607
        %v1669 = vor.u32 %v1668, 8388608
        %v1670 = vsub.s32 0, %v1669
        %v1671 = vadd.s32 %v1666, 1
        %vm1672 = vcmp.gt.s32.totalorder %v1671, 0
        %v1673 = vsel %vm1672, %v1671, 0
        %v1674 = vshrl.u32 %v1673, 5
        %v1675 = vand.u32 %v1673, 31
        %v1676 = vsub.s32 32, %v1675
        %v1677 = vshrl.u32 683565275, %v1676
        %v1678 = vshll.u32 683565275, %v1675
        %v1679 = vshrl.u32 2475754826, %v1676
        %v1680 = vor.u32 %v1678, %v1679
        %v1681 = vshll.u32 2475754826, %v1675
        %v1682 = vshrl.u32 2131351028, %v1676
        %v1683 = vor.u32 %v1681, %v1682
        %v1684 = vshll.u32 2131351028, %v1675
        %v1685 = vshrl.u32 2102212464, %v1676
        %v1686 = vor.u32 %v1684, %v1685
        %v1687 = vshll.u32 2102212464, %v1675
        %v1688 = vshrl.u32 920167782, %v1676
        %v1689 = vor.u32 %v1687, %v1688
        %v1690 = vshll.u32 920167782, %v1675
        %v1691 = vshrl.u32 1326507024, %v1676
        %v1692 = vor.u32 %v1690, %v1691
        %vm1693 = vcmp.lt.s32.totalorder %v1674, 1
        %vm1694 = vcmp.lt.s32.totalorder %v1674, 2
        %vm1695 = vcmp.lt.s32.totalorder %v1674, 3
        %vm1696 = vcmp.lt.s32.totalorder %v1674, 4
        %v1697 = vsel %vm1693, %v1677, %v1680
        %v1698 = vsel %vm1696, %v1686, 2102212464
        %v1699 = vsel %vm1695, %v1683, %v1698
        %v1700 = vsel %vm1694, %v1697, %v1699
        %v1701 = vsel %vm1693, %v1680, %v1683
        %v1702 = vsel %vm1696, %v1689, 920167782
        %v1703 = vsel %vm1695, %v1686, %v1702
        %v1704 = vsel %vm1694, %v1701, %v1703
        %v1705 = vsel %vm1693, %v1683, %v1686
        %v1706 = vsel %vm1696, %v1692, 1326507024
        %v1707 = vsel %vm1695, %v1689, %v1706
        %v1708 = vsel %vm1694, %v1705, %v1707
        %v1709 = vshll.u32 %v1669, 8
        %v1710 = vmul.u32.u64.compose %v1709, %v1708
        %v1711 = vextract.low.u32 %v1710
        %v1712 = vextract.high.u32 %v1710
        %v1713 = vmul.u32.u64.compose %v1709, %v1704
        %v1714 = vextract.low.u32 %v1713
        %v1715 = vextract.high.u32 %v1713
        %v1716 = vmul.u32 %v1709, %v1700
        %v1717 = vadd.s32 %v1712, %v1714
        %vm1718 = vc.u32 %v1712, %v1714
        %v1719 = vadd.s32 %v1715, 1
        %v1720 = vsel %vm1718, %v1719, %v1715
        %v1721 = vadd.s32 %v1716, %v1720
        %v1722 = vadd.s32 %v1721, 536870912
        %v1723 = vshrl.u32 %v1722, 30
        %v1724 = vshll.u32 %v1723, 30
        %v1725 = vsub.s32 %v1721, %v1724
        %vm1726 = vcmp.lt.s32.totalorder %v1725, 0
        %v1727 = vsub.s32 0, %v1725
        %v1728 = vsel %vm1726, %v1727, %v1725
        %v1729 = vclz %v1728
        %v1730 = vsub.s32 %v1729, 2
        %vm1731 = vcmp.gt.s32.totalorder 0, %v1730
        %v1732 = vsel %vm1731, 0, %v1730
        %v1733 = vsub.s32 32, %v1732
        %v1734 = vshll.u32 %v1725, %v1732
        %v1735 = vshrl.u32 %v1717, %v1733
        %v1736 = vor.u32 %v1734, %v1735
        %v1737 = vsub.s32 4294967266, %v1732
        %v1738 = vadd.s32 %v1737, 127
        %v1739 = vshll.u32 %v1738, 23
        %v1740 = vor.u32 4788187, %v1739
        %v1741 = vand.u32 2147483647, %v1740
        %v1743 = vcvt.s32.f32 %v1736
        %v1744 = vmul.f32 %v1743, %v1741
        %v1745 = vxor.u32 %v1744, 2147483648
        %v1746 = vsel %vm1663, %v1745, %v1744
        %v1747 = vsub.s32 4, %v1723
        %v1748 = vsel %vm1663, %v1747, %v1723
        %v1749 = vsel %vm1662, %v730, %v1746
        %v1750 = vsel %vm1662, 0, %v1748
        %v1751 = vcosq.f32.pop %v1749
        %v1752 = vsinq.f32.pop %v1749
        %vm1753 = vweird.f32 %v730
        %v1754 = vadd.s32 %v1750, 3
        %v1755 = vand.u32 %v1754, 3
        %vm1756 = vcmp.lt.s32.totalorder %v1755, 2
        %vm1757 = vcmp.eq.s32.totalorder %v1755, 0
        %v1758 = vxor.u32 %v1752, 2147483648
        %v1759 = vsel %vm1757, %v1751, %v1758
        %vm1760 = vcmp.eq.s32.totalorder %v1755, 2
        %v1761 = vxor.u32 %v1751, 2147483648
        %v1762 = vsel %vm1760, %v1761, %v1752
        %v1763 = vsel %vm1756, %v1759, %v1762
        %v1764 = vsel %vm1753, nan, %v1763
        %v1765 = vand.u32 2147483647, %v732
        %vm1766 = vcmp.le.f32.partialorder %v1765, 0.7853982
        %vm1767 = vcmp.lt.s32.totalorder %v732, 0
        %v1768 = vand.u32 %v732, 2139095040
        %v1769 = vshrl.u32 %v1768, 23
        %v1770 = vsub.s32 %v1769, 127
        %v1771 = vand.u32 2147483647, %v732
        %v1772 = vand.u32 %v1771, 8388607
        %v1773 = vor.u32 %v1772, 8388608
        %v1774 = vsub.s32 0, %v1773
        %v1775 = vadd.s32 %v1770, 1
        %vm1776 = vcmp.gt.s32.totalorder %v1775, 0
        %v1777 = vsel %vm1776, %v1775, 0
        %v1778 = vshrl.u32 %v1777, 5
        %v1779 = vand.u32 %v1777, 31
        %v1780 = vsub.s32 32, %v1779
        %v1781 = vshrl.u32 683565275, %v1780
        %v1782 = vshll.u32 683565275, %v1779
        %v1783 = vshrl.u32 2475754826, %v1780
        %v1784 = vor.u32 %v1782, %v1783
        %v1785 = vshll.u32 2475754826, %v1779
        %v1786 = vshrl.u32 2131351028, %v1780
        %v1787 = vor.u32 %v1785, %v1786
        %v1788 = vshll.u32 2131351028, %v1779
        %v1789 = vshrl.u32 2102212464, %v1780
        %v1790 = vor.u32 %v1788, %v1789
        %v1791 = vshll.u32 2102212464, %v1779
        %v1792 = vshrl.u32 920167782, %v1780
        %v1793 = vor.u32 %v1791, %v1792
        %v1794 = vshll.u32 920167782, %v1779
        %v1795 = vshrl.u32 1326507024, %v1780
        %v1796 = vor.u32 %v1794, %v1795
        %vm1797 = vcmp.lt.s32.totalorder %v1778, 1
        %vm1798 = vcmp.lt.s32.totalorder %v1778, 2
        %vm1799 = vcmp.lt.s32.totalorder %v1778, 3
        %vm1800 = vcmp.lt.s32.totalorder %v1778, 4
        %v1801 = vsel %vm1797, %v1781, %v1784
        %v1802 = vsel %vm1800, %v1790, 2102212464
        %v1803 = vsel %vm1799, %v1787, %v1802
        %v1804 = vsel %vm1798, %v1801, %v1803
        %v1805 = vsel %vm1797, %v1784, %v1787
        %v1806 = vsel %vm1800, %v1793, 920167782
        %v1807 = vsel %vm1799, %v1790, %v1806
        %v1808 = vsel %vm1798, %v1805, %v1807
        %v1809 = vsel %vm1797, %v1787, %v1790
        %v1810 = vsel %vm1800, %v1796, 1326507024
        %v1811 = vsel %vm1799, %v1793, %v1810
        %v1812 = vsel %vm1798, %v1809, %v1811
        %v1813 = vshll.u32 %v1773, 8
        %v1814 = vmul.u32.u64.compose %v1813, %v1812
        %v1815 = vextract.low.u32 %v1814
        %v1816 = vextract.high.u32 %v1814
        %v1817 = vmul.u32.u64.compose %v1813, %v1808
        %v1818 = vextract.low.u32 %v1817
        %v1819 = vextract.high.u32 %v1817
        %v1820 = vmul.u32 %v1813, %v1804
        %v1821 = vadd.s32 %v1816, %v1818
        %vm1822 = vc.u32 %v1816, %v1818
        %v1823 = vadd.s32 %v1819, 1
        %v1824 = vsel %vm1822, %v1823, %v1819
        %v1825 = vadd.s32 %v1820, %v1824
        %v1826 = vadd.s32 %v1825, 536870912
        %v1827 = vshrl.u32 %v1826, 30
        %v1828 = vshll.u32 %v1827, 30
        %v1829 = vsub.s32 %v1825, %v1828
        %vm1830 = vcmp.lt.s32.totalorder %v1829, 0
        %v1831 = vsub.s32 0, %v1829
        %v1832 = vsel %vm1830, %v1831, %v1829
        %v1833 = vclz %v1832
        %v1834 = vsub.s32 %v1833, 2
        %vm1835 = vcmp.gt.s32.totalorder 0, %v1834
        %v1836 = vsel %vm1835, 0, %v1834
        %v1837 = vsub.s32 32, %v1836
        %v1838 = vshll.u32 %v1829, %v1836
        %v1839 = vshrl.u32 %v1821, %v1837
        %v1840 = vor.u32 %v1838, %v1839
        %v1841 = vsub.s32 4294967266, %v1836
        %v1842 = vadd.s32 %v1841, 127
        %v1843 = vshll.u32 %v1842, 23
        %v1844 = vor.u32 4788187, %v1843
        %v1845 = vand.u32 2147483647, %v1844
        %v1847 = vcvt.s32.f32 %v1840
        %v1848 = vmul.f32 %v1847, %v1845
        %v1849 = vxor.u32 %v1848, 2147483648
        %v1850 = vsel %vm1767, %v1849, %v1848
        %v1851 = vsub.s32 4, %v1827
        %v1852 = vsel %vm1767, %v1851, %v1827
        %v1853 = vsel %vm1766, %v732, %v1850
        %v1854 = vsel %vm1766, 0, %v1852
        %v1855 = vcosq.f32.pop %v1853
        %v1856 = vsinq.f32.pop %v1853
        %vm1857 = vweird.f32 %v732
        %v1858 = vadd.s32 %v1854, 3
        %v1859 = vand.u32 %v1858, 3
        %vm1860 = vcmp.lt.s32.totalorder %v1859, 2
        %vm1861 = vcmp.eq.s32.totalorder %v1859, 0
        %v1862 = vxor.u32 %v1856, 2147483648
        %v1863 = vsel %vm1861, %v1855, %v1862
        %vm1864 = vcmp.eq.s32.totalorder %v1859, 2
        %v1865 = vxor.u32 %v1855, 2147483648
        %v1866 = vsel %vm1864, %v1865, %v1856
        %v1867 = vsel %vm1860, %v1863, %v1866
        %v1868 = vsel %vm1857, nan, %v1867
        %v1869 = vand.u32 2147483647, %v819
        %vm1870 = vcmp.le.f32.partialorder %v1869, 0.7853982
        %vm1871 = vcmp.lt.s32.totalorder %v819, 0
        %v1872 = vand.u32 %v819, 2139095040
        %v1873 = vshrl.u32 %v1872, 23
        %v1874 = vsub.s32 %v1873, 127
        %v1875 = vand.u32 2147483647, %v819
        %v1876 = vand.u32 %v1875, 8388607
        %v1877 = vor.u32 %v1876, 8388608
        %v1878 = vsub.s32 0, %v1877
        %v1879 = vadd.s32 %v1874, 1
        %vm1880 = vcmp.gt.s32.totalorder %v1879, 0
        %v1881 = vsel %vm1880, %v1879, 0
        %v1882 = vshrl.u32 %v1881, 5
        %v1883 = vand.u32 %v1881, 31
        %v1884 = vsub.s32 32, %v1883
        %v1885 = vshrl.u32 683565275, %v1884
        %v1886 = vshll.u32 683565275, %v1883
        %v1887 = vshrl.u32 2475754826, %v1884
        %v1888 = vor.u32 %v1886, %v1887
        %v1889 = vshll.u32 2475754826, %v1883
        %v1890 = vshrl.u32 2131351028, %v1884
        %v1891 = vor.u32 %v1889, %v1890
        %v1892 = vshll.u32 2131351028, %v1883
        %v1893 = vshrl.u32 2102212464, %v1884
        %v1894 = vor.u32 %v1892, %v1893
        %v1895 = vshll.u32 2102212464, %v1883
        %v1896 = vshrl.u32 920167782, %v1884
        %v1897 = vor.u32 %v1895, %v1896
        %v1898 = vshll.u32 920167782, %v1883
        %v1899 = vshrl.u32 1326507024, %v1884
        %v1900 = vor.u32 %v1898, %v1899
        %vm1901 = vcmp.lt.s32.totalorder %v1882, 1
        %vm1902 = vcmp.lt.s32.totalorder %v1882, 2
        %vm1903 = vcmp.lt.s32.totalorder %v1882, 3
        %vm1904 = vcmp.lt.s32.totalorder %v1882, 4
        %v1905 = vsel %vm1901, %v1885, %v1888
        %v1906 = vsel %vm1904, %v1894, 2102212464
        %v1907 = vsel %vm1903, %v1891, %v1906
        %v1908 = vsel %vm1902, %v1905, %v1907
        %v1909 = vsel %vm1901, %v1888, %v1891
        %v1910 = vsel %vm1904, %v1897, 920167782
        %v1911 = vsel %vm1903, %v1894, %v1910
        %v1912 = vsel %vm1902, %v1909, %v1911
        %v1913 = vsel %vm1901, %v1891, %v1894
        %v1914 = vsel %vm1904, %v1900, 1326507024
        %v1915 = vsel %vm1903, %v1897, %v1914
        %v1916 = vsel %vm1902, %v1913, %v1915
        %v1917 = vshll.u32 %v1877, 8
        %v1918 = vmul.u32.u64.compose %v1917, %v1916
        %v1919 = vextract.low.u32 %v1918
        %v1920 = vextract.high.u32 %v1918
        %v1921 = vmul.u32.u64.compose %v1917, %v1912
        %v1922 = vextract.low.u32 %v1921
        %v1923 = vextract.high.u32 %v1921
        %v1924 = vmul.u32 %v1917, %v1908
        %v1925 = vadd.s32 %v1920, %v1922
        %vm1926 = vc.u32 %v1920, %v1922
        %v1927 = vadd.s32 %v1923, 1
        %v1928 = vsel %vm1926, %v1927, %v1923
        %v1929 = vadd.s32 %v1924, %v1928
        %v1930 = vadd.s32 %v1929, 536870912
        %v1931 = vshrl.u32 %v1930, 30
        %v1932 = vshll.u32 %v1931, 30
        %v1933 = vsub.s32 %v1929, %v1932
        %vm1934 = vcmp.lt.s32.totalorder %v1933, 0
        %v1935 = vsub.s32 0, %v1933
        %v1936 = vsel %vm1934, %v1935, %v1933
        %v1937 = vclz %v1936
        %v1938 = vsub.s32 %v1937, 2
        %vm1939 = vcmp.gt.s32.totalorder 0, %v1938
        %v1940 = vsel %vm1939, 0, %v1938
        %v1941 = vsub.s32 32, %v1940
        %v1942 = vshll.u32 %v1933, %v1940
        %v1943 = vshrl.u32 %v1925, %v1941
        %v1944 = vor.u32 %v1942, %v1943
        %v1945 = vsub.s32 4294967266, %v1940
        %v1946 = vadd.s32 %v1945, 127
        %v1947 = vshll.u32 %v1946, 23
        %v1948 = vor.u32 4788187, %v1947
        %v1949 = vand.u32 2147483647, %v1948
        %v1951 = vcvt.s32.f32 %v1944
        %v1952 = vmul.f32 %v1951, %v1949
        %v1953 = vxor.u32 %v1952, 2147483648
        %v1954 = vsel %vm1871, %v1953, %v1952
        %v1955 = vsub.s32 4, %v1931
        %v1956 = vsel %vm1871, %v1955, %v1931
        %v1957 = vsel %vm1870, %v819, %v1954
        %v1958 = vsel %vm1870, 0, %v1956
        %v1959 = vcosq.f32.pop %v1957
        %v1960 = vsinq.f32.pop %v1957
        %vm1961 = vweird.f32 %v819
        %v1962 = vadd.s32 %v1958, 3
        %v1963 = vand.u32 %v1962, 3
        %vm1964 = vcmp.lt.s32.totalorder %v1963, 2
        %vm1965 = vcmp.eq.s32.totalorder %v1963, 0
        %v1966 = vxor.u32 %v1960, 2147483648
        %v1967 = vsel %vm1965, %v1959, %v1966
        %vm1968 = vcmp.eq.s32.totalorder %v1963, 2
        %v1969 = vxor.u32 %v1959, 2147483648
        %v1970 = vsel %vm1968, %v1969, %v1960
        %v1971 = vsel %vm1964, %v1967, %v1970
        %v1972 = vsel %vm1961, nan, %v1971
        %v1973 = vand.u32 2147483647, %v821
        %vm1974 = vcmp.le.f32.partialorder %v1973, 0.7853982
        %vm1975 = vcmp.lt.s32.totalorder %v821, 0
        %v1976 = vand.u32 %v821, 2139095040
        %v1977 = vshrl.u32 %v1976, 23
        %v1978 = vsub.s32 %v1977, 127
        %v1979 = vand.u32 2147483647, %v821
        %v1980 = vand.u32 %v1979, 8388607
        %v1981 = vor.u32 %v1980, 8388608
        %v1982 = vsub.s32 0, %v1981
        %v1983 = vadd.s32 %v1978, 1
        %vm1984 = vcmp.gt.s32.totalorder %v1983, 0
        %v1985 = vsel %vm1984, %v1983, 0
        %v1986 = vshrl.u32 %v1985, 5
        %v1987 = vand.u32 %v1985, 31
        %v1988 = vsub.s32 32, %v1987
        %v1989 = vshrl.u32 683565275, %v1988
        %v1990 = vshll.u32 683565275, %v1987
        %v1991 = vshrl.u32 2475754826, %v1988
        %v1992 = vor.u32 %v1990, %v1991
        %v1993 = vshll.u32 2475754826, %v1987
        %v1994 = vshrl.u32 2131351028, %v1988
        %v1995 = vor.u32 %v1993, %v1994
        %v1996 = vshll.u32 2131351028, %v1987
        %v1997 = vshrl.u32 2102212464, %v1988
        %v1998 = vor.u32 %v1996, %v1997
        %v1999 = vshll.u32 2102212464, %v1987
        %v2000 = vshrl.u32 920167782, %v1988
        %v2001 = vor.u32 %v1999, %v2000
        %v2002 = vshll.u32 920167782, %v1987
        %v2003 = vshrl.u32 1326507024, %v1988
        %v2004 = vor.u32 %v2002, %v2003
        %vm2005 = vcmp.lt.s32.totalorder %v1986, 1
        %vm2006 = vcmp.lt.s32.totalorder %v1986, 2
        %vm2007 = vcmp.lt.s32.totalorder %v1986, 3
        %vm2008 = vcmp.lt.s32.totalorder %v1986, 4
        %v2009 = vsel %vm2005, %v1989, %v1992
        %v2010 = vsel %vm2008, %v1998, 2102212464
        %v2011 = vsel %vm2007, %v1995, %v2010
        %v2012 = vsel %vm2006, %v2009, %v2011
        %v2013 = vsel %vm2005, %v1992, %v1995
        %v2014 = vsel %vm2008, %v2001, 920167782
        %v2015 = vsel %vm2007, %v1998, %v2014
        %v2016 = vsel %vm2006, %v2013, %v2015
        %v2017 = vsel %vm2005, %v1995, %v1998
        %v2018 = vsel %vm2008, %v2004, 1326507024
        %v2019 = vsel %vm2007, %v2001, %v2018
        %v2020 = vsel %vm2006, %v2017, %v2019
        %v2021 = vshll.u32 %v1981, 8
        %v2022 = vmul.u32.u64.compose %v2021, %v2020
        %v2023 = vextract.low.u32 %v2022
        %v2024 = vextract.high.u32 %v2022
        %v2025 = vmul.u32.u64.compose %v2021, %v2016
        %v2026 = vextract.low.u32 %v2025
        %v2027 = vextract.high.u32 %v2025
        %v2028 = vmul.u32 %v2021, %v2012
        %v2029 = vadd.s32 %v2024, %v2026
        %vm2030 = vc.u32 %v2024, %v2026
        %v2031 = vadd.s32 %v2027, 1
        %v2032 = vsel %vm2030, %v2031, %v2027
        %v2033 = vadd.s32 %v2028, %v2032
        %v2034 = vadd.s32 %v2033, 536870912
        %v2035 = vshrl.u32 %v2034, 30
        %v2036 = vshll.u32 %v2035, 30
        %v2037 = vsub.s32 %v2033, %v2036
        %vm2038 = vcmp.lt.s32.totalorder %v2037, 0
        %v2039 = vsub.s32 0, %v2037
        %v2040 = vsel %vm2038, %v2039, %v2037
        %v2041 = vclz %v2040
        %v2042 = vsub.s32 %v2041, 2
        %vm2043 = vcmp.gt.s32.totalorder 0, %v2042
        %v2044 = vsel %vm2043, 0, %v2042
        %v2045 = vsub.s32 32, %v2044
        %v2046 = vshll.u32 %v2037, %v2044
        %v2047 = vshrl.u32 %v2029, %v2045
        %v2048 = vor.u32 %v2046, %v2047
        %v2049 = vsub.s32 4294967266, %v2044
        %v2050 = vadd.s32 %v2049, 127
        %v2051 = vshll.u32 %v2050, 23
        %v2052 = vor.u32 4788187, %v2051
        %v2053 = vand.u32 2147483647, %v2052
        %v2055 = vcvt.s32.f32 %v2048
        %v2056 = vmul.f32 %v2055, %v2053
        %v2057 = vxor.u32 %v2056, 2147483648
        %v2058 = vsel %vm1975, %v2057, %v2056
        %v2059 = vsub.s32 4, %v2035
        %v2060 = vsel %vm1975, %v2059, %v2035
        %v2061 = vsel %vm1974, %v821, %v2058
        %v2062 = vsel %vm1974, 0, %v2060
        %v2063 = vcosq.f32.pop %v2061
        %v2064 = vsinq.f32.pop %v2061
        %vm2065 = vweird.f32 %v821
        %v2066 = vadd.s32 %v2062, 3
        %v2067 = vand.u32 %v2066, 3
        %vm2068 = vcmp.lt.s32.totalorder %v2067, 2
        %vm2069 = vcmp.eq.s32.totalorder %v2067, 0
        %v2070 = vxor.u32 %v2064, 2147483648
        %v2071 = vsel %vm2069, %v2063, %v2070
        %vm2072 = vcmp.eq.s32.totalorder %v2067, 2
        %v2073 = vxor.u32 %v2063, 2147483648
        %v2074 = vsel %vm2072, %v2073, %v2064
        %v2075 = vsel %vm2068, %v2071, %v2074
        %v2076 = vsel %vm2065, nan, %v2075
        %v2077 = vand.u32 2147483647, %v736
        %vm2078 = vcmp.le.f32.partialorder %v2077, 0.7853982
        %vm2079 = vcmp.lt.s32.totalorder %v736, 0
        %v2080 = vand.u32 %v736, 2139095040
        %v2081 = vshrl.u32 %v2080, 23
        %v2082 = vsub.s32 %v2081, 127
        %v2083 = vand.u32 2147483647, %v736
        %v2084 = vand.u32 %v2083, 8388607
        %v2085 = vor.u32 %v2084, 8388608
        %v2086 = vsub.s32 0, %v2085
        %v2087 = vadd.s32 %v2082, 1
        %vm2088 = vcmp.gt.s32.totalorder %v2087, 0
        %v2089 = vsel %vm2088, %v2087, 0
        %v2090 = vshrl.u32 %v2089, 5
        %v2091 = vand.u32 %v2089, 31
        %v2092 = vsub.s32 32, %v2091
        %v2093 = vshrl.u32 683565275, %v2092
        %v2094 = vshll.u32 683565275, %v2091
        %v2095 = vshrl.u32 2475754826, %v2092
        %v2096 = vor.u32 %v2094, %v2095
        %v2097 = vshll.u32 2475754826, %v2091
        %v2098 = vshrl.u32 2131351028, %v2092
        %v2099 = vor.u32 %v2097, %v2098
        %v2100 = vshll.u32 2131351028, %v2091
        %v2101 = vshrl.u32 2102212464, %v2092
        %v2102 = vor.u32 %v2100, %v2101
        %v2103 = vshll.u32 2102212464, %v2091
        %v2104 = vshrl.u32 920167782, %v2092
        %v2105 = vor.u32 %v2103, %v2104
        %v2106 = vshll.u32 920167782, %v2091
        %v2107 = vshrl.u32 1326507024, %v2092
        %v2108 = vor.u32 %v2106, %v2107
        %vm2109 = vcmp.lt.s32.totalorder %v2090, 1
        %vm2110 = vcmp.lt.s32.totalorder %v2090, 2
        %vm2111 = vcmp.lt.s32.totalorder %v2090, 3
        %vm2112 = vcmp.lt.s32.totalorder %v2090, 4
        %v2113 = vsel %vm2109, %v2093, %v2096
        %v2114 = vsel %vm2112, %v2102, 2102212464
        %v2115 = vsel %vm2111, %v2099, %v2114
        %v2116 = vsel %vm2110, %v2113, %v2115
        %v2117 = vsel %vm2109, %v2096, %v2099
        %v2118 = vsel %vm2112, %v2105, 920167782
        %v2119 = vsel %vm2111, %v2102, %v2118
        %v2120 = vsel %vm2110, %v2117, %v2119
        %v2121 = vsel %vm2109, %v2099, %v2102
        %v2122 = vsel %vm2112, %v2108, 1326507024
        %v2123 = vsel %vm2111, %v2105, %v2122
        %v2124 = vsel %vm2110, %v2121, %v2123
        %v2125 = vshll.u32 %v2085, 8
        %v2126 = vmul.u32.u64.compose %v2125, %v2124
        %v2127 = vextract.low.u32 %v2126
        %v2128 = vextract.high.u32 %v2126
        %v2129 = vmul.u32.u64.compose %v2125, %v2120
        %v2130 = vextract.low.u32 %v2129
        %v2131 = vextract.high.u32 %v2129
        %v2132 = vmul.u32 %v2125, %v2116
        %v2133 = vadd.s32 %v2128, %v2130
        %vm2134 = vc.u32 %v2128, %v2130
        %v2135 = vadd.s32 %v2131, 1
        %v2136 = vsel %vm2134, %v2135, %v2131
        %v2137 = vadd.s32 %v2132, %v2136
        %v2138 = vadd.s32 %v2137, 536870912
        %v2139 = vshrl.u32 %v2138, 30
        %v2140 = vshll.u32 %v2139, 30
        %v2141 = vsub.s32 %v2137, %v2140
        %vm2142 = vcmp.lt.s32.totalorder %v2141, 0
        %v2143 = vsub.s32 0, %v2141
        %v2144 = vsel %vm2142, %v2143, %v2141
        %v2145 = vclz %v2144
        %v2146 = vsub.s32 %v2145, 2
        %vm2147 = vcmp.gt.s32.totalorder 0, %v2146
        %v2148 = vsel %vm2147, 0, %v2146
        %v2149 = vsub.s32 32, %v2148
        %v2150 = vshll.u32 %v2141, %v2148
        %v2151 = vshrl.u32 %v2133, %v2149
        %v2152 = vor.u32 %v2150, %v2151
        %v2153 = vsub.s32 4294967266, %v2148
        %v2154 = vadd.s32 %v2153, 127
        %v2155 = vshll.u32 %v2154, 23
        %v2156 = vor.u32 4788187, %v2155
        %v2157 = vand.u32 2147483647, %v2156
        %v2159 = vcvt.s32.f32 %v2152
        %v2160 = vmul.f32 %v2159, %v2157
        %v2161 = vxor.u32 %v2160, 2147483648
        %v2162 = vsel %vm2079, %v2161, %v2160
        %v2163 = vsub.s32 4, %v2139
        %v2164 = vsel %vm2079, %v2163, %v2139
        %v2165 = vsel %vm2078, %v736, %v2162
        %v2166 = vsel %vm2078, 0, %v2164
        %v2167 = vcosq.f32.pop %v2165
        %v2168 = vsinq.f32.pop %v2165
        %vm2169 = vweird.f32 %v736
        %v2170 = vadd.s32 %v2166, 3
        %v2171 = vand.u32 %v2170, 3
        %vm2172 = vcmp.lt.s32.totalorder %v2171, 2
        %vm2173 = vcmp.eq.s32.totalorder %v2171, 0
        %v2174 = vxor.u32 %v2168, 2147483648
        %v2175 = vsel %vm2173, %v2167, %v2174
        %vm2176 = vcmp.eq.s32.totalorder %v2171, 2
        %v2177 = vxor.u32 %v2167, 2147483648
        %v2178 = vsel %vm2176, %v2177, %v2168
        %v2179 = vsel %vm2172, %v2175, %v2178
        %v2180 = vsel %vm2169, nan, %v2179
        %v2181 = vand.u32 2147483647, %v738
        %vm2182 = vcmp.le.f32.partialorder %v2181, 0.7853982
        %vm2183 = vcmp.lt.s32.totalorder %v738, 0
        %v2184 = vand.u32 %v738, 2139095040
        %v2185 = vshrl.u32 %v2184, 23
        %v2186 = vsub.s32 %v2185, 127
        %v2187 = vand.u32 2147483647, %v738
        %v2188 = vand.u32 %v2187, 8388607
        %v2189 = vor.u32 %v2188, 8388608
        %v2190 = vsub.s32 0, %v2189
        %v2191 = vadd.s32 %v2186, 1
        %vm2192 = vcmp.gt.s32.totalorder %v2191, 0
        %v2193 = vsel %vm2192, %v2191, 0
        %v2194 = vshrl.u32 %v2193, 5
        %v2195 = vand.u32 %v2193, 31
        %v2196 = vsub.s32 32, %v2195
        %v2197 = vshrl.u32 683565275, %v2196
        %v2198 = vshll.u32 683565275, %v2195
        %v2199 = vshrl.u32 2475754826, %v2196
        %v2200 = vor.u32 %v2198, %v2199
        %v2201 = vshll.u32 2475754826, %v2195
        %v2202 = vshrl.u32 2131351028, %v2196
        %v2203 = vor.u32 %v2201, %v2202
        %v2204 = vshll.u32 2131351028, %v2195
        %v2205 = vshrl.u32 2102212464, %v2196
        %v2206 = vor.u32 %v2204, %v2205
        %v2207 = vshll.u32 2102212464, %v2195
        %v2208 = vshrl.u32 920167782, %v2196
        %v2209 = vor.u32 %v2207, %v2208
        %v2210 = vshll.u32 920167782, %v2195
        %v2211 = vshrl.u32 1326507024, %v2196
        %v2212 = vor.u32 %v2210, %v2211
        %vm2213 = vcmp.lt.s32.totalorder %v2194, 1
        %vm2214 = vcmp.lt.s32.totalorder %v2194, 2
        %vm2215 = vcmp.lt.s32.totalorder %v2194, 3
        %vm2216 = vcmp.lt.s32.totalorder %v2194, 4
        %v2217 = vsel %vm2213, %v2197, %v2200
        %v2218 = vsel %vm2216, %v2206, 2102212464
        %v2219 = vsel %vm2215, %v2203, %v2218
        %v2220 = vsel %vm2214, %v2217, %v2219
        %v2221 = vsel %vm2213, %v2200, %v2203
        %v2222 = vsel %vm2216, %v2209, 920167782
        %v2223 = vsel %vm2215, %v2206, %v2222
        %v2224 = vsel %vm2214, %v2221, %v2223
        %v2225 = vsel %vm2213, %v2203, %v2206
        %v2226 = vsel %vm2216, %v2212, 1326507024
        %v2227 = vsel %vm2215, %v2209, %v2226
        %v2228 = vsel %vm2214, %v2225, %v2227
        %v2229 = vshll.u32 %v2189, 8
        %v2230 = vmul.u32.u64.compose %v2229, %v2228
        %v2231 = vextract.low.u32 %v2230
        %v2232 = vextract.high.u32 %v2230
        %v2233 = vmul.u32.u64.compose %v2229, %v2224
        %v2234 = vextract.low.u32 %v2233
        %v2235 = vextract.high.u32 %v2233
        %v2236 = vmul.u32 %v2229, %v2220
        %v2237 = vadd.s32 %v2232, %v2234
        %vm2238 = vc.u32 %v2232, %v2234
        %v2239 = vadd.s32 %v2235, 1
        %v2240 = vsel %vm2238, %v2239, %v2235
        %v2241 = vadd.s32 %v2236, %v2240
        %v2242 = vadd.s32 %v2241, 536870912
        %v2243 = vshrl.u32 %v2242, 30
        %v2244 = vshll.u32 %v2243, 30
        %v2245 = vsub.s32 %v2241, %v2244
        %vm2246 = vcmp.lt.s32.totalorder %v2245, 0
        %v2247 = vsub.s32 0, %v2245
        %v2248 = vsel %vm2246, %v2247, %v2245
        %v2249 = vclz %v2248
        %v2250 = vsub.s32 %v2249, 2
        %vm2251 = vcmp.gt.s32.totalorder 0, %v2250
        %v2252 = vsel %vm2251, 0, %v2250
        %v2253 = vsub.s32 32, %v2252
        %v2254 = vshll.u32 %v2245, %v2252
        %v2255 = vshrl.u32 %v2237, %v2253
        %v2256 = vor.u32 %v2254, %v2255
        %v2257 = vsub.s32 4294967266, %v2252
        %v2258 = vadd.s32 %v2257, 127
        %v2259 = vshll.u32 %v2258, 23
        %v2260 = vor.u32 4788187, %v2259
        %v2261 = vand.u32 2147483647, %v2260
        %v2263 = vcvt.s32.f32 %v2256
        %v2264 = vmul.f32 %v2263, %v2261
        %v2265 = vxor.u32 %v2264, 2147483648
        %v2266 = vsel %vm2183, %v2265, %v2264
        %v2267 = vsub.s32 4, %v2243
        %v2268 = vsel %vm2183, %v2267, %v2243
        %v2269 = vsel %vm2182, %v738, %v2266
        %v2270 = vsel %vm2182, 0, %v2268
        %v2271 = vcosq.f32.pop %v2269
        %v2272 = vsinq.f32.pop %v2269
        %vm2273 = vweird.f32 %v738
        %v2274 = vadd.s32 %v2270, 3
        %v2275 = vand.u32 %v2274, 3
        %vm2276 = vcmp.lt.s32.totalorder %v2275, 2
        %vm2277 = vcmp.eq.s32.totalorder %v2275, 0
        %v2278 = vxor.u32 %v2272, 2147483648
        %v2279 = vsel %vm2277, %v2271, %v2278
        %vm2280 = vcmp.eq.s32.totalorder %v2275, 2
        %v2281 = vxor.u32 %v2271, 2147483648
        %v2282 = vsel %vm2280, %v2281, %v2272
        %v2283 = vsel %vm2276, %v2279, %v2282
        %v2284 = vsel %vm2273, nan, %v2283
        %v2285 = vand.u32 2147483647, %v825
        %vm2286 = vcmp.le.f32.partialorder %v2285, 0.7853982
        %vm2287 = vcmp.lt.s32.totalorder %v825, 0
        %v2288 = vand.u32 %v825, 2139095040
        %v2289 = vshrl.u32 %v2288, 23
        %v2290 = vsub.s32 %v2289, 127
        %v2291 = vand.u32 2147483647, %v825
        %v2292 = vand.u32 %v2291, 8388607
        %v2293 = vor.u32 %v2292, 8388608
        %v2294 = vsub.s32 0, %v2293
        %v2295 = vadd.s32 %v2290, 1
        %vm2296 = vcmp.gt.s32.totalorder %v2295, 0
        %v2297 = vsel %vm2296, %v2295, 0
        %v2298 = vshrl.u32 %v2297, 5
        %v2299 = vand.u32 %v2297, 31
        %v2300 = vsub.s32 32, %v2299
        %v2301 = vshrl.u32 683565275, %v2300
        %v2302 = vshll.u32 683565275, %v2299
        %v2303 = vshrl.u32 2475754826, %v2300
        %v2304 = vor.u32 %v2302, %v2303
        %v2305 = vshll.u32 2475754826, %v2299
        %v2306 = vshrl.u32 2131351028, %v2300
        %v2307 = vor.u32 %v2305, %v2306
        %v2308 = vshll.u32 2131351028, %v2299
        %v2309 = vshrl.u32 2102212464, %v2300
        %v2310 = vor.u32 %v2308, %v2309
        %v2311 = vshll.u32 2102212464, %v2299
        %v2312 = vshrl.u32 920167782, %v2300
        %v2313 = vor.u32 %v2311, %v2312
        %v2314 = vshll.u32 920167782, %v2299
        %v2315 = vshrl.u32 1326507024, %v2300
        %v2316 = vor.u32 %v2314, %v2315
        %vm2317 = vcmp.lt.s32.totalorder %v2298, 1
        %vm2318 = vcmp.lt.s32.totalorder %v2298, 2
        %vm2319 = vcmp.lt.s32.totalorder %v2298, 3
        %vm2320 = vcmp.lt.s32.totalorder %v2298, 4
        %v2321 = vsel %vm2317, %v2301, %v2304
        %v2322 = vsel %vm2320, %v2310, 2102212464
        %v2323 = vsel %vm2319, %v2307, %v2322
        %v2324 = vsel %vm2318, %v2321, %v2323
        %v2325 = vsel %vm2317, %v2304, %v2307
        %v2326 = vsel %vm2320, %v2313, 920167782
        %v2327 = vsel %vm2319, %v2310, %v2326
        %v2328 = vsel %vm2318, %v2325, %v2327
        %v2329 = vsel %vm2317, %v2307, %v2310
        %v2330 = vsel %vm2320, %v2316, 1326507024
        %v2331 = vsel %vm2319, %v2313, %v2330
        %v2332 = vsel %vm2318, %v2329, %v2331
        %v2333 = vshll.u32 %v2293, 8
        %v2334 = vmul.u32.u64.compose %v2333, %v2332
        %v2335 = vextract.low.u32 %v2334
        %v2336 = vextract.high.u32 %v2334
        %v2337 = vmul.u32.u64.compose %v2333, %v2328
        %v2338 = vextract.low.u32 %v2337
        %v2339 = vextract.high.u32 %v2337
        %v2340 = vmul.u32 %v2333, %v2324
        %v2341 = vadd.s32 %v2336, %v2338
        %vm2342 = vc.u32 %v2336, %v2338
        %v2343 = vadd.s32 %v2339, 1
        %v2344 = vsel %vm2342, %v2343, %v2339
        %v2345 = vadd.s32 %v2340, %v2344
        %v2346 = vadd.s32 %v2345, 536870912
        %v2347 = vshrl.u32 %v2346, 30
        %v2348 = vshll.u32 %v2347, 30
        %v2349 = vsub.s32 %v2345, %v2348
        %vm2350 = vcmp.lt.s32.totalorder %v2349, 0
        %v2351 = vsub.s32 0, %v2349
        %v2352 = vsel %vm2350, %v2351, %v2349
        %v2353 = vclz %v2352
        %v2354 = vsub.s32 %v2353, 2
        %vm2355 = vcmp.gt.s32.totalorder 0, %v2354
        %v2356 = vsel %vm2355, 0, %v2354
        %v2357 = vsub.s32 32, %v2356
        %v2358 = vshll.u32 %v2349, %v2356
        %v2359 = vshrl.u32 %v2341, %v2357
        %v2360 = vor.u32 %v2358, %v2359
        %v2361 = vsub.s32 4294967266, %v2356
        %v2362 = vadd.s32 %v2361, 127
        %v2363 = vshll.u32 %v2362, 23
        %v2364 = vor.u32 4788187, %v2363
        %v2365 = vand.u32 2147483647, %v2364
        %v2367 = vcvt.s32.f32 %v2360
        %v2368 = vmul.f32 %v2367, %v2365
        %v2369 = vxor.u32 %v2368, 2147483648
        %v2370 = vsel %vm2287, %v2369, %v2368
        %v2371 = vsub.s32 4, %v2347
        %v2372 = vsel %vm2287, %v2371, %v2347
        %v2373 = vsel %vm2286, %v825, %v2370
        %v2374 = vsel %vm2286, 0, %v2372
        %v2375 = vcosq.f32.pop %v2373
        %v2376 = vsinq.f32.pop %v2373
        %vm2377 = vweird.f32 %v825
        %v2378 = vadd.s32 %v2374, 3
        %v2379 = vand.u32 %v2378, 3
        %vm2380 = vcmp.lt.s32.totalorder %v2379, 2
        %vm2381 = vcmp.eq.s32.totalorder %v2379, 0
        %v2382 = vxor.u32 %v2376, 2147483648
        %v2383 = vsel %vm2381, %v2375, %v2382
        %vm2384 = vcmp.eq.s32.totalorder %v2379, 2
        %v2385 = vxor.u32 %v2375, 2147483648
        %v2386 = vsel %vm2384, %v2385, %v2376
        %v2387 = vsel %vm2380, %v2383, %v2386
        %v2388 = vsel %vm2377, nan, %v2387
        %v2389 = vand.u32 2147483647, %v827
        %vm2390 = vcmp.le.f32.partialorder %v2389, 0.7853982
        %vm2391 = vcmp.lt.s32.totalorder %v827, 0
        %v2392 = vand.u32 %v827, 2139095040
        %v2393 = vshrl.u32 %v2392, 23
        %v2394 = vsub.s32 %v2393, 127
        %v2395 = vand.u32 2147483647, %v827
        %v2396 = vand.u32 %v2395, 8388607
        %v2397 = vor.u32 %v2396, 8388608
        %v2398 = vsub.s32 0, %v2397
        %v2399 = vadd.s32 %v2394, 1
        %vm2400 = vcmp.gt.s32.totalorder %v2399, 0
        %v2401 = vsel %vm2400, %v2399, 0
        %v2402 = vshrl.u32 %v2401, 5
        %v2403 = vand.u32 %v2401, 31
        %v2404 = vsub.s32 32, %v2403
        %v2405 = vshrl.u32 683565275, %v2404
        %v2406 = vshll.u32 683565275, %v2403
        %v2407 = vshrl.u32 2475754826, %v2404
        %v2408 = vor.u32 %v2406, %v2407
        %v2409 = vshll.u32 2475754826, %v2403
        %v2410 = vshrl.u32 2131351028, %v2404
        %v2411 = vor.u32 %v2409, %v2410
        %v2412 = vshll.u32 2131351028, %v2403
        %v2413 = vshrl.u32 2102212464, %v2404
        %v2414 = vor.u32 %v2412, %v2413
        %v2415 = vshll.u32 2102212464, %v2403
        %v2416 = vshrl.u32 920167782, %v2404
        %v2417 = vor.u32 %v2415, %v2416
        %v2418 = vshll.u32 920167782, %v2403
        %v2419 = vshrl.u32 1326507024, %v2404
        %v2420 = vor.u32 %v2418, %v2419
        %vm2421 = vcmp.lt.s32.totalorder %v2402, 1
        %vm2422 = vcmp.lt.s32.totalorder %v2402, 2
        %vm2423 = vcmp.lt.s32.totalorder %v2402, 3
        %vm2424 = vcmp.lt.s32.totalorder %v2402, 4
        %v2425 = vsel %vm2421, %v2405, %v2408
        %v2426 = vsel %vm2424, %v2414, 2102212464
        %v2427 = vsel %vm2423, %v2411, %v2426
        %v2428 = vsel %vm2422, %v2425, %v2427
        %v2429 = vsel %vm2421, %v2408, %v2411
        %v2430 = vsel %vm2424, %v2417, 920167782
        %v2431 = vsel %vm2423, %v2414, %v2430
        %v2432 = vsel %vm2422, %v2429, %v2431
        %v2433 = vsel %vm2421, %v2411, %v2414
        %v2434 = vsel %vm2424, %v2420, 1326507024
        %v2435 = vsel %vm2423, %v2417, %v2434
        %v2436 = vsel %vm2422, %v2433, %v2435
        %v2437 = vshll.u32 %v2397, 8
        %v2438 = vmul.u32.u64.compose %v2437, %v2436
        %v2439 = vextract.low.u32 %v2438
        %v2440 = vextract.high.u32 %v2438
        %v2441 = vmul.u32.u64.compose %v2437, %v2432
        %v2442 = vextract.low.u32 %v2441
        %v2443 = vextract.high.u32 %v2441
        %v2444 = vmul.u32 %v2437, %v2428
        %v2445 = vadd.s32 %v2440, %v2442
        %vm2446 = vc.u32 %v2440, %v2442
        %v2447 = vadd.s32 %v2443, 1
        %v2448 = vsel %vm2446, %v2447, %v2443
        %v2449 = vadd.s32 %v2444, %v2448
        %v2450 = vadd.s32 %v2449, 536870912
        %v2451 = vshrl.u32 %v2450, 30
        %v2452 = vshll.u32 %v2451, 30
        %v2453 = vsub.s32 %v2449, %v2452
        %vm2454 = vcmp.lt.s32.totalorder %v2453, 0
        %v2455 = vsub.s32 0, %v2453
        %v2456 = vsel %vm2454, %v2455, %v2453
        %v2457 = vclz %v2456
        %v2458 = vsub.s32 %v2457, 2
        %vm2459 = vcmp.gt.s32.totalorder 0, %v2458
        %v2460 = vsel %vm2459, 0, %v2458
        %v2461 = vsub.s32 32, %v2460
        %v2462 = vshll.u32 %v2453, %v2460
        %v2463 = vshrl.u32 %v2445, %v2461
        %v2464 = vor.u32 %v2462, %v2463
        %v2465 = vsub.s32 4294967266, %v2460
        %v2466 = vadd.s32 %v2465, 127
        %v2467 = vshll.u32 %v2466, 23
        %v2468 = vor.u32 4788187, %v2467
        %v2469 = vand.u32 2147483647, %v2468
        %v2471 = vcvt.s32.f32 %v2464
        %v2472 = vmul.f32 %v2471, %v2469
        %v2473 = vxor.u32 %v2472, 2147483648
        %v2474 = vsel %vm2391, %v2473, %v2472
        %v2475 = vsub.s32 4, %v2451
        %v2476 = vsel %vm2391, %v2475, %v2451
        %v2477 = vsel %vm2390, %v827, %v2474
        %v2478 = vsel %vm2390, 0, %v2476
        %v2479 = vcosq.f32.pop %v2477
        %v2480 = vsinq.f32.pop %v2477
        %vm2481 = vweird.f32 %v827
        %v2482 = vadd.s32 %v2478, 3
        %v2483 = vand.u32 %v2482, 3
        %vm2484 = vcmp.lt.s32.totalorder %v2483, 2
        %vm2485 = vcmp.eq.s32.totalorder %v2483, 0
        %v2486 = vxor.u32 %v2480, 2147483648
        %v2487 = vsel %vm2485, %v2479, %v2486
        %vm2488 = vcmp.eq.s32.totalorder %v2483, 2
        %v2489 = vxor.u32 %v2479, 2147483648
        %v2490 = vsel %vm2488, %v2489, %v2480
        %v2491 = vsel %vm2484, %v2487, %v2490
        %v2492 = vsel %vm2481, nan, %v2491
        %v2493 = vld [vmem:[%s3] sm:$0xff]
        %v2494 = vld [vmem:[%s3 + $0x8] sm:$0xff]
        %v2495 = vld [vmem:[%s3 + $0x10] sm:$0xff]
        %v2496 = vld [vmem:[%s3 + $0x18] sm:$0xff]
        %v2497 = vld [vmem:[%s4] sm:$0xff]
        %v2498 = vld [vmem:[%s4 + $0x8] sm:$0xff]
        %v2499 = vld [vmem:[%s4 + $0x10] sm:$0xff]
        %v2500 = vld [vmem:[%s4 + $0x18] sm:$0xff]
        %2502 = vset.pattern.permute.xlu0 0
        %2503 = vperm.xlu0 %2502, %v2497
        %v2504 = vpop.permute.xlu0 %2503
        %2507 = vset.pattern.permute.xlu0 0
        %2508 = vperm.xlu0 %2507, %v2498
        %v2509 = vpop.permute.xlu0 %2508
        %2512 = vset.pattern.permute.xlu0 0
        %2513 = vperm.xlu0 %2512, %v2499
        %v2514 = vpop.permute.xlu0 %2513
        %2517 = vset.pattern.permute.xlu0 0
        %2518 = vperm.xlu0 %2517, %v2500
        %v2519 = vpop.permute.xlu0 %2518
        %vm2521 = vcmask 261120
        %v2523 = vsel %vm2521, %v2493, 0
        %v2526 = vsel %vm2521, %v2494, 0
        %v2529 = vsel %vm2521, %v2495, 0
        %v2532 = vsel %vm2521, %v2496, 0
        %2534 = vmatprep.subr.mxu0 %v1036
        %2535 = vmatpush1.msra.mxu0 %v932
        %2536 = vmatprep.subr.mxu0 %v1452
        %2537 = vmatpush1.msra.mxu0 %v1348
        %2538 = vmatprep.subr.mxu0 %v1868
        %2539 = vmatpush1.msra.mxu0 %v1764
        %2540 = vmatprep.subr.mxu0 %v2284
        %2541 = vmatpush1.msra.mxu0 %v2180
        %2542 = vmatprep.subr.mxu0 0.0
        %2543 = vmatpush1.msra.mxu0 0.0
        %2544 = vmatprep.subr.mxu0 0.0
        %2545 = vmatpush1.msra.mxu0 0.0
        %2546 = vmatprep.subr.mxu0 0.0
        %2547 = vmatpush1.msra.mxu0 0.0
        %2548 = vmatprep.subr.mxu0 0.0
        %2549 = vmatpush1.msra.mxu0 0.0
        %2550 = vmatprep.subr.mxu0 0.0
        %2551 = vmatpush1.msra.mxu0 0.0
        %2552 = vmatprep.subr.mxu0 0.0
        %2553 = vmatpush1.msra.mxu0 0.0
        %2554 = vmatprep.subr.mxu0 0.0
        %2555 = vmatpush1.msra.mxu0 0.0
        %2556 = vmatprep.subr.mxu0 0.0
        %2557 = vmatpush1.msra.mxu0 0.0
        %2558 = vmatprep.subr.mxu0 0.0
        %2559 = vmatpush1.msra.mxu0 0.0
        %2560 = vmatprep.subr.mxu0 0.0
        %2561 = vmatpush1.msra.mxu0 0.0
        %2562 = vmatprep.subr.mxu0 0.0
        %2563 = vmatpush1.msra.mxu0 0.0
        %2564 = vmatprep.subr.mxu0 0.0
        %2565 = vmatpush1.msra.mxu0 0.0
        %2566 = vmatprep.subr.mxu0 0.0
        %2567 = vmatpush1.msra.mxu0 0.0
        %2568 = vmatprep.subr.mxu0 0.0
        %2569 = vmatpush1.msra.mxu0 0.0
        %2570 = vmatprep.subr.mxu0 0.0
        %2571 = vmatpush1.msra.mxu0 0.0
        %2572 = vmatprep.subr.mxu0 0.0
        %2573 = vmatpush1.msra.mxu0 0.0
        %2574 = vmatprep.subr.mxu0 0.0
        %2575 = vmatpush1.msra.mxu0 0.0
        %2576 = vmatprep.subr.mxu0 0.0
        %2577 = vmatpush1.msra.mxu0 0.0
        %2578 = vmatprep.subr.mxu0 0.0
        %2579 = vmatpush1.msra.mxu0 0.0
        %2580 = vmatprep.subr.mxu0 0.0
        %2581 = vmatpush1.msra.mxu0 0.0
        %2582 = vmatprep.subr.mxu0 0.0
        %2583 = vmatpush1.msra.mxu0 0.0
        %2584 = vmatprep.subr.mxu0 0.0
        %2585 = vmatpush1.msra.mxu0 0.0
        %2586 = vmatprep.subr.mxu0 0.0
        %2587 = vmatpush1.msra.mxu0 0.0
        %2588 = vmatprep.subr.mxu0 0.0
        %2589 = vmatpush1.msra.mxu0 0.0
        %2590 = vmatprep.subr.mxu0 0.0
        %2591 = vmatpush1.msra.mxu0 0.0
        %2592 = vmatprep.subr.mxu0 0.0
        %2593 = vmatpush1.msra.mxu0 0.0
        %2594 = vmatprep.subr.mxu0 0.0
        %2595 = vmatpush1.msra.mxu0 0.0
        %2596 = vmatprep.subr.mxu0 0.0
        %2597 = vmatpush1.msra.mxu0 0.0
        %2598 = vmatprep.mubr.f32.mxu0 0.0
        %2599 = vmatmul.mubr.f32.gmra.mrb[0].mxu0 %v2523
        %v2600 = vpop.f32.mrb[0].mxu0
        %v2601 = vadd.f32 %v2504, %v2600
        %v2602 = vpop.f32.mrb[0].mxu0
        %v2603 = vadd.f32 %v2504, %v2602
        %2604 = vmatprep.mubr.f32.mxu0 0.0
        %2605 = vmatmul.mubr.f32.gmra.mrb[0].mxu0 %v2526
        %v2606 = vpop.f32.mrb[0].mxu0
        %v2607 = vadd.f32 %v2509, %v2606
        %v2608 = vpop.f32.mrb[0].mxu0
        %v2609 = vadd.f32 %v2509, %v2608
        %2610 = vmatprep.mubr.f32.mxu0 0.0
        %2611 = vmatmul.mubr.f32.gmra.mrb[0].mxu0 %v2529
        %v2612 = vpop.f32.mrb[0].mxu0
        %v2613 = vadd.f32 %v2514, %v2612
        %v2614 = vpop.f32.mrb[0].mxu0
        %v2615 = vadd.f32 %v2514, %v2614
        %2616 = vmatprep.mubr.f32.mxu0 0.0
        %2617 = vmatmul.mubr.f32.gmra.mrb[0].mxu0 %v2532
        %v2618 = vpop.f32.mrb[0].mxu0
        %v2619 = vadd.f32 %v2519, %v2618
        %v2620 = vpop.f32.mrb[0].mxu0
        %v2621 = vadd.f32 %v2519, %v2620
        %2622 = vdwg.mxu0
        %2623 = vmatprep.subr.mxu0 %v1244
        %2624 = vmatpush1.msra.mxu0 %v1140
        %2625 = vmatprep.subr.mxu0 %v1660
        %2626 = vmatpush1.msra.mxu0 %v1556
        %2627 = vmatprep.subr.mxu0 %v2076
        %2628 = vmatpush1.msra.mxu0 %v1972
        %2629 = vmatprep.subr.mxu0 %v2492
        %2630 = vmatpush1.msra.mxu0 %v2388
        %2631 = vmatprep.subr.mxu0 0.0
        %2632 = vmatpush1.msra.mxu0 0.0
        %2633 = vmatprep.subr.mxu0 0.0
        %2634 = vmatpush1.msra.mxu0 0.0
        %2635 = vmatprep.subr.mxu0 0.0
        %2636 = vmatpush1.msra.mxu0 0.0
        %2637 = vmatprep.subr.mxu0 0.0
        %2638 = vmatpush1.msra.mxu0 0.0
        %2639 = vmatprep.subr.mxu0 0.0
        %2640 = vmatpush1.msra.mxu0 0.0
        %2641 = vmatprep.subr.mxu0 0.0
        %2642 = vmatpush1.msra.mxu0 0.0
        %2643 = vmatprep.subr.mxu0 0.0
        %2644 = vmatpush1.msra.mxu0 0.0
        %2645 = vmatprep.subr.mxu0 0.0
        %2646 = vmatpush1.msra.mxu0 0.0
        %2647 = vmatprep.subr.mxu0 0.0
        %2648 = vmatpush1.msra.mxu0 0.0
        %2649 = vmatprep.subr.mxu0 0.0
        %2650 = vmatpush1.msra.mxu0 0.0
        %2651 = vmatprep.subr.mxu0 0.0
        %2652 = vmatpush1.msra.mxu0 0.0
        %2653 = vmatprep.subr.mxu0 0.0
        %2654 = vmatpush1.msra.mxu0 0.0
        %2655 = vmatprep.subr.mxu0 0.0
        %2656 = vmatpush1.msra.mxu0 0.0
        %2657 = vmatprep.subr.mxu0 0.0
        %2658 = vmatpush1.msra.mxu0 0.0
        %2659 = vmatprep.subr.mxu0 0.0
        %2660 = vmatpush1.msra.mxu0 0.0
        %2661 = vmatprep.subr.mxu0 0.0
        %2662 = vmatpush1.msra.mxu0 0.0
        %2663 = vmatprep.subr.mxu0 0.0
        %2664 = vmatpush1.msra.mxu0 0.0
        %2665 = vmatprep.subr.mxu0 0.0
        %2666 = vmatpush1.msra.mxu0 0.0
        %2667 = vmatprep.subr.mxu0 0.0
        %2668 = vmatpush1.msra.mxu0 0.0
        %2669 = vmatprep.subr.mxu0 0.0
        %2670 = vmatpush1.msra.mxu0 0.0
        %2671 = vmatprep.subr.mxu0 0.0
        %2672 = vmatpush1.msra.mxu0 0.0
        %2673 = vmatprep.subr.mxu0 0.0
        %2674 = vmatpush1.msra.mxu0 0.0
        %2675 = vmatprep.subr.mxu0 0.0
        %2676 = vmatpush1.msra.mxu0 0.0
        %2677 = vmatprep.subr.mxu0 0.0
        %2678 = vmatpush1.msra.mxu0 0.0
        %2679 = vmatprep.subr.mxu0 0.0
        %2680 = vmatpush1.msra.mxu0 0.0
        %2681 = vmatprep.subr.mxu0 0.0
        %2682 = vmatpush1.msra.mxu0 0.0
        %2683 = vmatprep.subr.mxu0 0.0
        %2684 = vmatpush1.msra.mxu0 0.0
        %2685 = vmatprep.subr.mxu0 0.0
        %2686 = vmatpush1.msra.mxu0 0.0
        %2687 = vmatprep.mubr.f32.mxu0 0.0
        %2688 = vmatmul.mubr.f32.gmra.mrb[0].mxu0 %v2523
        %v2689 = vpop.f32.mrb[0].mxu0
        %v2690 = vadd.f32 %v2504, %v2689
        %v2691 = vpop.f32.mrb[0].mxu0
        %v2692 = vadd.f32 %v2504, %v2691
        %2693 = vmatprep.mubr.f32.mxu0 0.0
        %2694 = vmatmul.mubr.f32.gmra.mrb[0].mxu0 %v2526
        %v2695 = vpop.f32.mrb[0].mxu0
        %v2696 = vadd.f32 %v2509, %v2695
        %v2697 = vpop.f32.mrb[0].mxu0
        %v2698 = vadd.f32 %v2509, %v2697
        %2699 = vmatprep.mubr.f32.mxu0 0.0
        %2700 = vmatmul.mubr.f32.gmra.mrb[0].mxu0 %v2529
        %v2701 = vpop.f32.mrb[0].mxu0
        %v2702 = vadd.f32 %v2514, %v2701
        %v2703 = vpop.f32.mrb[0].mxu0
        %v2704 = vadd.f32 %v2514, %v2703
        %2705 = vmatprep.mubr.f32.mxu0 0.0
        %2706 = vmatmul.mubr.f32.gmra.mrb[0].mxu0 %v2532
        %v2707 = vpop.f32.mrb[0].mxu0
        %v2708 = vadd.f32 %v2519, %v2707
        %v2709 = vpop.f32.mrb[0].mxu0
        %v2710 = vadd.f32 %v2519, %v2709
        %2711 = vdwg.mxu0
        %v2712 = vand.u32 2147483647, %v2601
        %vm2713 = vcmp.le.f32.partialorder %v2712, 0.7853982
        %vm2714 = vcmp.lt.s32.totalorder %v2601, 0
        %v2715 = vand.u32 %v2601, 2139095040
        %v2716 = vshrl.u32 %v2715, 23
        %v2717 = vsub.s32 %v2716, 127
        %v2718 = vand.u32 2147483647, %v2601
        %v2719 = vand.u32 %v2718, 8388607
        %v2720 = vor.u32 %v2719, 8388608
        %v2721 = vsub.s32 0, %v2720
        %v2722 = vadd.s32 %v2717, 1
        %vm2723 = vcmp.gt.s32.totalorder %v2722, 0
        %v2724 = vsel %vm2723, %v2722, 0
        %v2725 = vshrl.u32 %v2724, 5
        %v2726 = vand.u32 %v2724, 31
        %v2727 = vsub.s32 32, %v2726
        %v2728 = vshrl.u32 683565275, %v2727
        %v2729 = vshll.u32 683565275, %v2726
        %v2730 = vshrl.u32 2475754826, %v2727
        %v2731 = vor.u32 %v2729, %v2730
        %v2732 = vshll.u32 2475754826, %v2726
        %v2733 = vshrl.u32 2131351028, %v2727
        %v2734 = vor.u32 %v2732, %v2733
        %v2735 = vshll.u32 2131351028, %v2726
        %v2736 = vshrl.u32 2102212464, %v2727
        %v2737 = vor.u32 %v2735, %v2736
        %v2738 = vshll.u32 2102212464, %v2726
        %v2739 = vshrl.u32 920167782, %v2727
        %v2740 = vor.u32 %v2738, %v2739
        %v2741 = vshll.u32 920167782, %v2726
        %v2742 = vshrl.u32 1326507024, %v2727
        %v2743 = vor.u32 %v2741, %v2742
        %vm2744 = vcmp.lt.s32.totalorder %v2725, 1
        %vm2745 = vcmp.lt.s32.totalorder %v2725, 2
        %vm2746 = vcmp.lt.s32.totalorder %v2725, 3
        %vm2747 = vcmp.lt.s32.totalorder %v2725, 4
        %v2748 = vsel %vm2744, %v2728, %v2731
        %v2749 = vsel %vm2747, %v2737, 2102212464
        %v2750 = vsel %vm2746, %v2734, %v2749
        %v2751 = vsel %vm2745, %v2748, %v2750
        %v2752 = vsel %vm2744, %v2731, %v2734
        %v2753 = vsel %vm2747, %v2740, 920167782
        %v2754 = vsel %vm2746, %v2737, %v2753
        %v2755 = vsel %vm2745, %v2752, %v2754
        %v2756 = vsel %vm2744, %v2734, %v2737
        %v2757 = vsel %vm2747, %v2743, 1326507024
        %v2758 = vsel %vm2746, %v2740, %v2757
        %v2759 = vsel %vm2745, %v2756, %v2758
        %v2760 = vshll.u32 %v2720, 8
        %v2761 = vmul.u32.u64.compose %v2760, %v2759
        %v2762 = vextract.low.u32 %v2761
        %v2763 = vextract.high.u32 %v2761
        %v2764 = vmul.u32.u64.compose %v2760, %v2755
        %v2765 = vextract.low.u32 %v2764
        %v2766 = vextract.high.u32 %v2764
        %v2767 = vmul.u32 %v2760, %v2751
        %v2768 = vadd.s32 %v2763, %v2765
        %vm2769 = vc.u32 %v2763, %v2765
        %v2770 = vadd.s32 %v2766, 1
        %v2771 = vsel %vm2769, %v2770, %v2766
        %v2772 = vadd.s32 %v2767, %v2771
        %v2773 = vadd.s32 %v2772, 536870912
        %v2774 = vshrl.u32 %v2773, 30
        %v2775 = vshll.u32 %v2774, 30
        %v2776 = vsub.s32 %v2772, %v2775
        %vm2777 = vcmp.lt.s32.totalorder %v2776, 0
        %v2778 = vsub.s32 0, %v2776
        %v2779 = vsel %vm2777, %v2778, %v2776
        %v2780 = vclz %v2779
        %v2781 = vsub.s32 %v2780, 2
        %vm2782 = vcmp.gt.s32.totalorder 0, %v2781
        %v2783 = vsel %vm2782, 0, %v2781
        %v2784 = vsub.s32 32, %v2783
        %v2785 = vshll.u32 %v2776, %v2783
        %v2786 = vshrl.u32 %v2768, %v2784
        %v2787 = vor.u32 %v2785, %v2786
        %v2788 = vsub.s32 4294967266, %v2783
        %v2789 = vadd.s32 %v2788, 127
        %v2790 = vshll.u32 %v2789, 23
        %v2791 = vor.u32 4788187, %v2790
        %v2792 = vand.u32 2147483647, %v2791
        %v2794 = vcvt.s32.f32 %v2787
        %v2795 = vmul.f32 %v2794, %v2792
        %v2796 = vxor.u32 %v2795, 2147483648
        %v2797 = vsel %vm2714, %v2796, %v2795
        %v2798 = vsub.s32 4, %v2774
        %v2799 = vsel %vm2714, %v2798, %v2774
        %v2800 = vsel %vm2713, %v2601, %v2797
        %v2801 = vsel %vm2713, 0, %v2799
        %v2802 = vcosq.f32.pop %v2800
        %v2803 = vsinq.f32.pop %v2800
        %vm2804 = vweird.f32 %v2601
        %v2805 = vadd.s32 %v2801, 3
        %v2806 = vand.u32 %v2805, 3
        %vm2807 = vcmp.lt.s32.totalorder %v2806, 2
        %vm2808 = vcmp.eq.s32.totalorder %v2806, 0
        %v2809 = vxor.u32 %v2803, 2147483648
        %v2810 = vsel %vm2808, %v2802, %v2809
        %vm2811 = vcmp.eq.s32.totalorder %v2806, 2
        %v2812 = vxor.u32 %v2802, 2147483648
        %v2813 = vsel %vm2811, %v2812, %v2803
        %v2814 = vsel %vm2807, %v2810, %v2813
        %v2815 = vsel %vm2804, nan, %v2814
        %v2816 = vand.u32 2147483647, %v2603
        %vm2817 = vcmp.le.f32.partialorder %v2816, 0.7853982
        %vm2818 = vcmp.lt.s32.totalorder %v2603, 0
        %v2819 = vand.u32 %v2603, 2139095040
        %v2820 = vshrl.u32 %v2819, 23
        %v2821 = vsub.s32 %v2820, 127
        %v2822 = vand.u32 2147483647, %v2603
        %v2823 = vand.u32 %v2822, 8388607
        %v2824 = vor.u32 %v2823, 8388608
        %v2825 = vsub.s32 0, %v2824
        %v2826 = vadd.s32 %v2821, 1
        %vm2827 = vcmp.gt.s32.totalorder %v2826, 0
        %v2828 = vsel %vm2827, %v2826, 0
        %v2829 = vshrl.u32 %v2828, 5
        %v2830 = vand.u32 %v2828, 31
        %v2831 = vsub.s32 32, %v2830
        %v2832 = vshrl.u32 683565275, %v2831
        %v2833 = vshll.u32 683565275, %v2830
        %v2834 = vshrl.u32 2475754826, %v2831
        %v2835 = vor.u32 %v2833, %v2834
        %v2836 = vshll.u32 2475754826, %v2830
        %v2837 = vshrl.u32 2131351028, %v2831
        %v2838 = vor.u32 %v2836, %v2837
        %v2839 = vshll.u32 2131351028, %v2830
        %v2840 = vshrl.u32 2102212464, %v2831
        %v2841 = vor.u32 %v2839, %v2840
        %v2842 = vshll.u32 2102212464, %v2830
        %v2843 = vshrl.u32 920167782, %v2831
        %v2844 = vor.u32 %v2842, %v2843
        %v2845 = vshll.u32 920167782, %v2830
        %v2846 = vshrl.u32 1326507024, %v2831
        %v2847 = vor.u32 %v2845, %v2846
        %vm2848 = vcmp.lt.s32.totalorder %v2829, 1
        %vm2849 = vcmp.lt.s32.totalorder %v2829, 2
        %vm2850 = vcmp.lt.s32.totalorder %v2829, 3
        %vm2851 = vcmp.lt.s32.totalorder %v2829, 4
        %v2852 = vsel %vm2848, %v2832, %v2835
        %v2853 = vsel %vm2851, %v2841, 2102212464
        %v2854 = vsel %vm2850, %v2838, %v2853
        %v2855 = vsel %vm2849, %v2852, %v2854
        %v2856 = vsel %vm2848, %v2835, %v2838
        %v2857 = vsel %vm2851, %v2844, 920167782
        %v2858 = vsel %vm2850, %v2841, %v2857
        %v2859 = vsel %vm2849, %v2856, %v2858
        %v2860 = vsel %vm2848, %v2838, %v2841
        %v2861 = vsel %vm2851, %v2847, 1326507024
        %v2862 = vsel %vm2850, %v2844, %v2861
        %v2863 = vsel %vm2849, %v2860, %v2862
        %v2864 = vshll.u32 %v2824, 8
        %v2865 = vmul.u32.u64.compose %v2864, %v2863
        %v2866 = vextract.low.u32 %v2865
        %v2867 = vextract.high.u32 %v2865
        %v2868 = vmul.u32.u64.compose %v2864, %v2859
        %v2869 = vextract.low.u32 %v2868
        %v2870 = vextract.high.u32 %v2868
        %v2871 = vmul.u32 %v2864, %v2855
        %v2872 = vadd.s32 %v2867, %v2869
        %vm2873 = vc.u32 %v2867, %v2869
        %v2874 = vadd.s32 %v2870, 1
        %v2875 = vsel %vm2873, %v2874, %v2870
        %v2876 = vadd.s32 %v2871, %v2875
        %v2877 = vadd.s32 %v2876, 536870912
        %v2878 = vshrl.u32 %v2877, 30
        %v2879 = vshll.u32 %v2878, 30
        %v2880 = vsub.s32 %v2876, %v2879
        %vm2881 = vcmp.lt.s32.totalorder %v2880, 0
        %v2882 = vsub.s32 0, %v2880
        %v2883 = vsel %vm2881, %v2882, %v2880
        %v2884 = vclz %v2883
        %v2885 = vsub.s32 %v2884, 2
        %vm2886 = vcmp.gt.s32.totalorder 0, %v2885
        %v2887 = vsel %vm2886, 0, %v2885
        %v2888 = vsub.s32 32, %v2887
        %v2889 = vshll.u32 %v2880, %v2887
        %v2890 = vshrl.u32 %v2872, %v2888
        %v2891 = vor.u32 %v2889, %v2890
        %v2892 = vsub.s32 4294967266, %v2887
        %v2893 = vadd.s32 %v2892, 127
        %v2894 = vshll.u32 %v2893, 23
        %v2895 = vor.u32 4788187, %v2894
        %v2896 = vand.u32 2147483647, %v2895
        %v2898 = vcvt.s32.f32 %v2891
        %v2899 = vmul.f32 %v2898, %v2896
        %v2900 = vxor.u32 %v2899, 2147483648
        %v2901 = vsel %vm2818, %v2900, %v2899
        %v2902 = vsub.s32 4, %v2878
        %v2903 = vsel %vm2818, %v2902, %v2878
        %v2904 = vsel %vm2817, %v2603, %v2901
        %v2905 = vsel %vm2817, 0, %v2903
        %v2906 = vcosq.f32.pop %v2904
        %v2907 = vsinq.f32.pop %v2904
        %vm2908 = vweird.f32 %v2603
        %v2909 = vadd.s32 %v2905, 3
        %v2910 = vand.u32 %v2909, 3
        %vm2911 = vcmp.lt.s32.totalorder %v2910, 2
        %vm2912 = vcmp.eq.s32.totalorder %v2910, 0
        %v2913 = vxor.u32 %v2907, 2147483648
        %v2914 = vsel %vm2912, %v2906, %v2913
        %vm2915 = vcmp.eq.s32.totalorder %v2910, 2
        %v2916 = vxor.u32 %v2906, 2147483648
        %v2917 = vsel %vm2915, %v2916, %v2907
        %v2918 = vsel %vm2911, %v2914, %v2917
        %v2919 = vsel %vm2908, nan, %v2918
        %v2920 = vand.u32 2147483647, %v2690
        %vm2921 = vcmp.le.f32.partialorder %v2920, 0.7853982
        %vm2922 = vcmp.lt.s32.totalorder %v2690, 0
        %v2923 = vand.u32 %v2690, 2139095040
        %v2924 = vshrl.u32 %v2923, 23
        %v2925 = vsub.s32 %v2924, 127
        %v2926 = vand.u32 2147483647, %v2690
        %v2927 = vand.u32 %v2926, 8388607
        %v2928 = vor.u32 %v2927, 8388608
        %v2929 = vsub.s32 0, %v2928
        %v2930 = vadd.s32 %v2925, 1
        %vm2931 = vcmp.gt.s32.totalorder %v2930, 0
        %v2932 = vsel %vm2931, %v2930, 0
        %v2933 = vshrl.u32 %v2932, 5
        %v2934 = vand.u32 %v2932, 31
        %v2935 = vsub.s32 32, %v2934
        %v2936 = vshrl.u32 683565275, %v2935
        %v2937 = vshll.u32 683565275, %v2934
        %v2938 = vshrl.u32 2475754826, %v2935
        %v2939 = vor.u32 %v2937, %v2938
        %v2940 = vshll.u32 2475754826, %v2934
        %v2941 = vshrl.u32 2131351028, %v2935
        %v2942 = vor.u32 %v2940, %v2941
        %v2943 = vshll.u32 2131351028, %v2934
        %v2944 = vshrl.u32 2102212464, %v2935
        %v2945 = vor.u32 %v2943, %v2944
        %v2946 = vshll.u32 2102212464, %v2934
        %v2947 = vshrl.u32 920167782, %v2935
        %v2948 = vor.u32 %v2946, %v2947
        %v2949 = vshll.u32 920167782, %v2934
        %v2950 = vshrl.u32 1326507024, %v2935
        %v2951 = vor.u32 %v2949, %v2950
        %vm2952 = vcmp.lt.s32.totalorder %v2933, 1
        %vm2953 = vcmp.lt.s32.totalorder %v2933, 2
        %vm2954 = vcmp.lt.s32.totalorder %v2933, 3
        %vm2955 = vcmp.lt.s32.totalorder %v2933, 4
        %v2956 = vsel %vm2952, %v2936, %v2939
        %v2957 = vsel %vm2955, %v2945, 2102212464
        %v2958 = vsel %vm2954, %v2942, %v2957
        %v2959 = vsel %vm2953, %v2956, %v2958
        %v2960 = vsel %vm2952, %v2939, %v2942
        %v2961 = vsel %vm2955, %v2948, 920167782
        %v2962 = vsel %vm2954, %v2945, %v2961
        %v2963 = vsel %vm2953, %v2960, %v2962
        %v2964 = vsel %vm2952, %v2942, %v2945
        %v2965 = vsel %vm2955, %v2951, 1326507024
        %v2966 = vsel %vm2954, %v2948, %v2965
        %v2967 = vsel %vm2953, %v2964, %v2966
        %v2968 = vshll.u32 %v2928, 8
        %v2969 = vmul.u32.u64.compose %v2968, %v2967
        %v2970 = vextract.low.u32 %v2969
        %v2971 = vextract.high.u32 %v2969
        %v2972 = vmul.u32.u64.compose %v2968, %v2963
        %v2973 = vextract.low.u32 %v2972
        %v2974 = vextract.high.u32 %v2972
        %v2975 = vmul.u32 %v2968, %v2959
        %v2976 = vadd.s32 %v2971, %v2973
        %vm2977 = vc.u32 %v2971, %v2973
        %v2978 = vadd.s32 %v2974, 1
        %v2979 = vsel %vm2977, %v2978, %v2974
        %v2980 = vadd.s32 %v2975, %v2979
        %v2981 = vadd.s32 %v2980, 536870912
        %v2982 = vshrl.u32 %v2981, 30
        %v2983 = vshll.u32 %v2982, 30
        %v2984 = vsub.s32 %v2980, %v2983
        %vm2985 = vcmp.lt.s32.totalorder %v2984, 0
        %v2986 = vsub.s32 0, %v2984
        %v2987 = vsel %vm2985, %v2986, %v2984
        %v2988 = vclz %v2987
        %v2989 = vsub.s32 %v2988, 2
        %vm2990 = vcmp.gt.s32.totalorder 0, %v2989
        %v2991 = vsel %vm2990, 0, %v2989
        %v2992 = vsub.s32 32, %v2991
        %v2993 = vshll.u32 %v2984, %v2991
        %v2994 = vshrl.u32 %v2976, %v2992
        %v2995 = vor.u32 %v2993, %v2994
        %v2996 = vsub.s32 4294967266, %v2991
        %v2997 = vadd.s32 %v2996, 127
        %v2998 = vshll.u32 %v2997, 23
        %v2999 = vor.u32 4788187, %v2998
        %v3000 = vand.u32 2147483647, %v2999
        %v3002 = vcvt.s32.f32 %v2995
        %v3003 = vmul.f32 %v3002, %v3000
        %v3004 = vxor.u32 %v3003, 2147483648
        %v3005 = vsel %vm2922, %v3004, %v3003
        %v3006 = vsub.s32 4, %v2982
        %v3007 = vsel %vm2922, %v3006, %v2982
        %v3008 = vsel %vm2921, %v2690, %v3005
        %v3009 = vsel %vm2921, 0, %v3007
        %v3010 = vcosq.f32.pop %v3008
        %v3011 = vsinq.f32.pop %v3008
        %vm3012 = vweird.f32 %v2690
        %v3013 = vadd.s32 %v3009, 3
        %v3014 = vand.u32 %v3013, 3
        %vm3015 = vcmp.lt.s32.totalorder %v3014, 2
        %vm3016 = vcmp.eq.s32.totalorder %v3014, 0
        %v3017 = vxor.u32 %v3011, 2147483648
        %v3018 = vsel %vm3016, %v3010, %v3017
        %vm3019 = vcmp.eq.s32.totalorder %v3014, 2
        %v3020 = vxor.u32 %v3010, 2147483648
        %v3021 = vsel %vm3019, %v3020, %v3011
        %v3022 = vsel %vm3015, %v3018, %v3021
        %v3023 = vsel %vm3012, nan, %v3022
        %v3024 = vand.u32 2147483647, %v2692
        %vm3025 = vcmp.le.f32.partialorder %v3024, 0.7853982
        %vm3026 = vcmp.lt.s32.totalorder %v2692, 0
        %v3027 = vand.u32 %v2692, 2139095040
        %v3028 = vshrl.u32 %v3027, 23
        %v3029 = vsub.s32 %v3028, 127
        %v3030 = vand.u32 2147483647, %v2692
        %v3031 = vand.u32 %v3030, 8388607
        %v3032 = vor.u32 %v3031, 8388608
        %v3033 = vsub.s32 0, %v3032
        %v3034 = vadd.s32 %v3029, 1
        %vm3035 = vcmp.gt.s32.totalorder %v3034, 0
        %v3036 = vsel %vm3035, %v3034, 0
        %v3037 = vshrl.u32 %v3036, 5
        %v3038 = vand.u32 %v3036, 31
        %v3039 = vsub.s32 32, %v3038
        %v3040 = vshrl.u32 683565275, %v3039
        %v3041 = vshll.u32 683565275, %v3038
        %v3042 = vshrl.u32 2475754826, %v3039
        %v3043 = vor.u32 %v3041, %v3042
        %v3044 = vshll.u32 2475754826, %v3038
        %v3045 = vshrl.u32 2131351028, %v3039
        %v3046 = vor.u32 %v3044, %v3045
        %v3047 = vshll.u32 2131351028, %v3038
        %v3048 = vshrl.u32 2102212464, %v3039
        %v3049 = vor.u32 %v3047, %v3048
        %v3050 = vshll.u32 2102212464, %v3038
        %v3051 = vshrl.u32 920167782, %v3039
        %v3052 = vor.u32 %v3050, %v3051
        %v3053 = vshll.u32 920167782, %v3038
        %v3054 = vshrl.u32 1326507024, %v3039
        %v3055 = vor.u32 %v3053, %v3054
        %vm3056 = vcmp.lt.s32.totalorder %v3037, 1
        %vm3057 = vcmp.lt.s32.totalorder %v3037, 2
        %vm3058 = vcmp.lt.s32.totalorder %v3037, 3
        %vm3059 = vcmp.lt.s32.totalorder %v3037, 4
        %v3060 = vsel %vm3056, %v3040, %v3043
        %v3061 = vsel %vm3059, %v3049, 2102212464
        %v3062 = vsel %vm3058, %v3046, %v3061
        %v3063 = vsel %vm3057, %v3060, %v3062
        %v3064 = vsel %vm3056, %v3043, %v3046
        %v3065 = vsel %vm3059, %v3052, 920167782
        %v3066 = vsel %vm3058, %v3049, %v3065
        %v3067 = vsel %vm3057, %v3064, %v3066
        %v3068 = vsel %vm3056, %v3046, %v3049
        %v3069 = vsel %vm3059, %v3055, 1326507024
        %v3070 = vsel %vm3058, %v3052, %v3069
        %v3071 = vsel %vm3057, %v3068, %v3070
        %v3072 = vshll.u32 %v3032, 8
        %v3073 = vmul.u32.u64.compose %v3072, %v3071
        %v3074 = vextract.low.u32 %v3073
        %v3075 = vextract.high.u32 %v3073
        %v3076 = vmul.u32.u64.compose %v3072, %v3067
        %v3077 = vextract.low.u32 %v3076
        %v3078 = vextract.high.u32 %v3076
        %v3079 = vmul.u32 %v3072, %v3063
        %v3080 = vadd.s32 %v3075, %v3077
        %vm3081 = vc.u32 %v3075, %v3077
        %v3082 = vadd.s32 %v3078, 1
        %v3083 = vsel %vm3081, %v3082, %v3078
        %v3084 = vadd.s32 %v3079, %v3083
        %v3085 = vadd.s32 %v3084, 536870912
        %v3086 = vshrl.u32 %v3085, 30
        %v3087 = vshll.u32 %v3086, 30
        %v3088 = vsub.s32 %v3084, %v3087
        %vm3089 = vcmp.lt.s32.totalorder %v3088, 0
        %v3090 = vsub.s32 0, %v3088
        %v3091 = vsel %vm3089, %v3090, %v3088
        %v3092 = vclz %v3091
        %v3093 = vsub.s32 %v3092, 2
        %vm3094 = vcmp.gt.s32.totalorder 0, %v3093
        %v3095 = vsel %vm3094, 0, %v3093
        %v3096 = vsub.s32 32, %v3095
        %v3097 = vshll.u32 %v3088, %v3095
        %v3098 = vshrl.u32 %v3080, %v3096
        %v3099 = vor.u32 %v3097, %v3098
        %v3100 = vsub.s32 4294967266, %v3095
        %v3101 = vadd.s32 %v3100, 127
        %v3102 = vshll.u32 %v3101, 23
        %v3103 = vor.u32 4788187, %v3102
        %v3104 = vand.u32 2147483647, %v3103
        %v3106 = vcvt.s32.f32 %v3099
        %v3107 = vmul.f32 %v3106, %v3104
        %v3108 = vxor.u32 %v3107, 2147483648
        %v3109 = vsel %vm3026, %v3108, %v3107
        %v3110 = vsub.s32 4, %v3086
        %v3111 = vsel %vm3026, %v3110, %v3086
        %v3112 = vsel %vm3025, %v2692, %v3109
        %v3113 = vsel %vm3025, 0, %v3111
        %v3114 = vcosq.f32.pop %v3112
        %v3115 = vsinq.f32.pop %v3112
        %vm3116 = vweird.f32 %v2692
        %v3117 = vadd.s32 %v3113, 3
        %v3118 = vand.u32 %v3117, 3
        %vm3119 = vcmp.lt.s32.totalorder %v3118, 2
        %vm3120 = vcmp.eq.s32.totalorder %v3118, 0
        %v3121 = vxor.u32 %v3115, 2147483648
        %v3122 = vsel %vm3120, %v3114, %v3121
        %vm3123 = vcmp.eq.s32.totalorder %v3118, 2
        %v3124 = vxor.u32 %v3114, 2147483648
        %v3125 = vsel %vm3123, %v3124, %v3115
        %v3126 = vsel %vm3119, %v3122, %v3125
        %v3127 = vsel %vm3116, nan, %v3126
        %v3128 = vand.u32 2147483647, %v2607
        %vm3129 = vcmp.le.f32.partialorder %v3128, 0.7853982
        %vm3130 = vcmp.lt.s32.totalorder %v2607, 0
        %v3131 = vand.u32 %v2607, 2139095040
        %v3132 = vshrl.u32 %v3131, 23
        %v3133 = vsub.s32 %v3132, 127
        %v3134 = vand.u32 2147483647, %v2607
        %v3135 = vand.u32 %v3134, 8388607
        %v3136 = vor.u32 %v3135, 8388608
        %v3137 = vsub.s32 0, %v3136
        %v3138 = vadd.s32 %v3133, 1
        %vm3139 = vcmp.gt.s32.totalorder %v3138, 0
        %v3140 = vsel %vm3139, %v3138, 0
        %v3141 = vshrl.u32 %v3140, 5
        %v3142 = vand.u32 %v3140, 31
        %v3143 = vsub.s32 32, %v3142
        %v3144 = vshrl.u32 683565275, %v3143
        %v3145 = vshll.u32 683565275, %v3142
        %v3146 = vshrl.u32 2475754826, %v3143
        %v3147 = vor.u32 %v3145, %v3146
        %v3148 = vshll.u32 2475754826, %v3142
        %v3149 = vshrl.u32 2131351028, %v3143
        %v3150 = vor.u32 %v3148, %v3149
        %v3151 = vshll.u32 2131351028, %v3142
        %v3152 = vshrl.u32 2102212464, %v3143
        %v3153 = vor.u32 %v3151, %v3152
        %v3154 = vshll.u32 2102212464, %v3142
        %v3155 = vshrl.u32 920167782, %v3143
        %v3156 = vor.u32 %v3154, %v3155
        %v3157 = vshll.u32 920167782, %v3142
        %v3158 = vshrl.u32 1326507024, %v3143
        %v3159 = vor.u32 %v3157, %v3158
        %vm3160 = vcmp.lt.s32.totalorder %v3141, 1
        %vm3161 = vcmp.lt.s32.totalorder %v3141, 2
        %vm3162 = vcmp.lt.s32.totalorder %v3141, 3
        %vm3163 = vcmp.lt.s32.totalorder %v3141, 4
        %v3164 = vsel %vm3160, %v3144, %v3147
        %v3165 = vsel %vm3163, %v3153, 2102212464
        %v3166 = vsel %vm3162, %v3150, %v3165
        %v3167 = vsel %vm3161, %v3164, %v3166
        %v3168 = vsel %vm3160, %v3147, %v3150
        %v3169 = vsel %vm3163, %v3156, 920167782
        %v3170 = vsel %vm3162, %v3153, %v3169
        %v3171 = vsel %vm3161, %v3168, %v3170
        %v3172 = vsel %vm3160, %v3150, %v3153
        %v3173 = vsel %vm3163, %v3159, 1326507024
        %v3174 = vsel %vm3162, %v3156, %v3173
        %v3175 = vsel %vm3161, %v3172, %v3174
        %v3176 = vshll.u32 %v3136, 8
        %v3177 = vmul.u32.u64.compose %v3176, %v3175
        %v3178 = vextract.low.u32 %v3177
        %v3179 = vextract.high.u32 %v3177
        %v3180 = vmul.u32.u64.compose %v3176, %v3171
        %v3181 = vextract.low.u32 %v3180
        %v3182 = vextract.high.u32 %v3180
        %v3183 = vmul.u32 %v3176, %v3167
        %v3184 = vadd.s32 %v3179, %v3181
        %vm3185 = vc.u32 %v3179, %v3181
        %v3186 = vadd.s32 %v3182, 1
        %v3187 = vsel %vm3185, %v3186, %v3182
        %v3188 = vadd.s32 %v3183, %v3187
        %v3189 = vadd.s32 %v3188, 536870912
        %v3190 = vshrl.u32 %v3189, 30
        %v3191 = vshll.u32 %v3190, 30
        %v3192 = vsub.s32 %v3188, %v3191
        %vm3193 = vcmp.lt.s32.totalorder %v3192, 0
        %v3194 = vsub.s32 0, %v3192
        %v3195 = vsel %vm3193, %v3194, %v3192
        %v3196 = vclz %v3195
        %v3197 = vsub.s32 %v3196, 2
        %vm3198 = vcmp.gt.s32.totalorder 0, %v3197
        %v3199 = vsel %vm3198, 0, %v3197
        %v3200 = vsub.s32 32, %v3199
        %v3201 = vshll.u32 %v3192, %v3199
        %v3202 = vshrl.u32 %v3184, %v3200
        %v3203 = vor.u32 %v3201, %v3202
        %v3204 = vsub.s32 4294967266, %v3199
        %v3205 = vadd.s32 %v3204, 127
        %v3206 = vshll.u32 %v3205, 23
        %v3207 = vor.u32 4788187, %v3206
        %v3208 = vand.u32 2147483647, %v3207
        %v3210 = vcvt.s32.f32 %v3203
        %v3211 = vmul.f32 %v3210, %v3208
        %v3212 = vxor.u32 %v3211, 2147483648
        %v3213 = vsel %vm3130, %v3212, %v3211
        %v3214 = vsub.s32 4, %v3190
        %v3215 = vsel %vm3130, %v3214, %v3190
        %v3216 = vsel %vm3129, %v2607, %v3213
        %v3217 = vsel %vm3129, 0, %v3215
        %v3218 = vcosq.f32.pop %v3216
        %v3219 = vsinq.f32.pop %v3216
        %vm3220 = vweird.f32 %v2607
        %v3221 = vadd.s32 %v3217, 3
        %v3222 = vand.u32 %v3221, 3
        %vm3223 = vcmp.lt.s32.totalorder %v3222, 2
        %vm3224 = vcmp.eq.s32.totalorder %v3222, 0
        %v3225 = vxor.u32 %v3219, 2147483648
        %v3226 = vsel %vm3224, %v3218, %v3225
        %vm3227 = vcmp.eq.s32.totalorder %v3222, 2
        %v3228 = vxor.u32 %v3218, 2147483648
        %v3229 = vsel %vm3227, %v3228, %v3219
        %v3230 = vsel %vm3223, %v3226, %v3229
        %v3231 = vsel %vm3220, nan, %v3230
        %v3232 = vand.u32 2147483647, %v2609
        %vm3233 = vcmp.le.f32.partialorder %v3232, 0.7853982
        %vm3234 = vcmp.lt.s32.totalorder %v2609, 0
        %v3235 = vand.u32 %v2609, 2139095040
        %v3236 = vshrl.u32 %v3235, 23
        %v3237 = vsub.s32 %v3236, 127
        %v3238 = vand.u32 2147483647, %v2609
        %v3239 = vand.u32 %v3238, 8388607
        %v3240 = vor.u32 %v3239, 8388608
        %v3241 = vsub.s32 0, %v3240
        %v3242 = vadd.s32 %v3237, 1
        %vm3243 = vcmp.gt.s32.totalorder %v3242, 0
        %v3244 = vsel %vm3243, %v3242, 0
        %v3245 = vshrl.u32 %v3244, 5
        %v3246 = vand.u32 %v3244, 31
        %v3247 = vsub.s32 32, %v3246
        %v3248 = vshrl.u32 683565275, %v3247
        %v3249 = vshll.u32 683565275, %v3246
        %v3250 = vshrl.u32 2475754826, %v3247
        %v3251 = vor.u32 %v3249, %v3250
        %v3252 = vshll.u32 2475754826, %v3246
        %v3253 = vshrl.u32 2131351028, %v3247
        %v3254 = vor.u32 %v3252, %v3253
        %v3255 = vshll.u32 2131351028, %v3246
        %v3256 = vshrl.u32 2102212464, %v3247
        %v3257 = vor.u32 %v3255, %v3256
        %v3258 = vshll.u32 2102212464, %v3246
        %v3259 = vshrl.u32 920167782, %v3247
        %v3260 = vor.u32 %v3258, %v3259
        %v3261 = vshll.u32 920167782, %v3246
        %v3262 = vshrl.u32 1326507024, %v3247
        %v3263 = vor.u32 %v3261, %v3262
        %vm3264 = vcmp.lt.s32.totalorder %v3245, 1
        %vm3265 = vcmp.lt.s32.totalorder %v3245, 2
        %vm3266 = vcmp.lt.s32.totalorder %v3245, 3
        %vm3267 = vcmp.lt.s32.totalorder %v3245, 4
        %v3268 = vsel %vm3264, %v3248, %v3251
        %v3269 = vsel %vm3267, %v3257, 2102212464
        %v3270 = vsel %vm3266, %v3254, %v3269
        %v3271 = vsel %vm3265, %v3268, %v3270
        %v3272 = vsel %vm3264, %v3251, %v3254
        %v3273 = vsel %vm3267, %v3260, 920167782
        %v3274 = vsel %vm3266, %v3257, %v3273
        %v3275 = vsel %vm3265, %v3272, %v3274
        %v3276 = vsel %vm3264, %v3254, %v3257
        %v3277 = vsel %vm3267, %v3263, 1326507024
        %v3278 = vsel %vm3266, %v3260, %v3277
        %v3279 = vsel %vm3265, %v3276, %v3278
        %v3280 = vshll.u32 %v3240, 8
        %v3281 = vmul.u32.u64.compose %v3280, %v3279
        %v3282 = vextract.low.u32 %v3281
        %v3283 = vextract.high.u32 %v3281
        %v3284 = vmul.u32.u64.compose %v3280, %v3275
        %v3285 = vextract.low.u32 %v3284
        %v3286 = vextract.high.u32 %v3284
        %v3287 = vmul.u32 %v3280, %v3271
        %v3288 = vadd.s32 %v3283, %v3285
        %vm3289 = vc.u32 %v3283, %v3285
        %v3290 = vadd.s32 %v3286, 1
        %v3291 = vsel %vm3289, %v3290, %v3286
        %v3292 = vadd.s32 %v3287, %v3291
        %v3293 = vadd.s32 %v3292, 536870912
        %v3294 = vshrl.u32 %v3293, 30
        %v3295 = vshll.u32 %v3294, 30
        %v3296 = vsub.s32 %v3292, %v3295
        %vm3297 = vcmp.lt.s32.totalorder %v3296, 0
        %v3298 = vsub.s32 0, %v3296
        %v3299 = vsel %vm3297, %v3298, %v3296
        %v3300 = vclz %v3299
        %v3301 = vsub.s32 %v3300, 2
        %vm3302 = vcmp.gt.s32.totalorder 0, %v3301
        %v3303 = vsel %vm3302, 0, %v3301
        %v3304 = vsub.s32 32, %v3303
        %v3305 = vshll.u32 %v3296, %v3303
        %v3306 = vshrl.u32 %v3288, %v3304
        %v3307 = vor.u32 %v3305, %v3306
        %v3308 = vsub.s32 4294967266, %v3303
        %v3309 = vadd.s32 %v3308, 127
        %v3310 = vshll.u32 %v3309, 23
        %v3311 = vor.u32 4788187, %v3310
        %v3312 = vand.u32 2147483647, %v3311
        %v3314 = vcvt.s32.f32 %v3307
        %v3315 = vmul.f32 %v3314, %v3312
        %v3316 = vxor.u32 %v3315, 2147483648
        %v3317 = vsel %vm3234, %v3316, %v3315
        %v3318 = vsub.s32 4, %v3294
        %v3319 = vsel %vm3234, %v3318, %v3294
        %v3320 = vsel %vm3233, %v2609, %v3317
        %v3321 = vsel %vm3233, 0, %v3319
        %v3322 = vcosq.f32.pop %v3320
        %v3323 = vsinq.f32.pop %v3320
        %vm3324 = vweird.f32 %v2609
        %v3325 = vadd.s32 %v3321, 3
        %v3326 = vand.u32 %v3325, 3
        %vm3327 = vcmp.lt.s32.totalorder %v3326, 2
        %vm3328 = vcmp.eq.s32.totalorder %v3326, 0
        %v3329 = vxor.u32 %v3323, 2147483648
        %v3330 = vsel %vm3328, %v3322, %v3329
        %vm3331 = vcmp.eq.s32.totalorder %v3326, 2
        %v3332 = vxor.u32 %v3322, 2147483648
        %v3333 = vsel %vm3331, %v3332, %v3323
        %v3334 = vsel %vm3327, %v3330, %v3333
        %v3335 = vsel %vm3324, nan, %v3334
        %v3336 = vand.u32 2147483647, %v2696
        %vm3337 = vcmp.le.f32.partialorder %v3336, 0.7853982
        %vm3338 = vcmp.lt.s32.totalorder %v2696, 0
        %v3339 = vand.u32 %v2696, 2139095040
        %v3340 = vshrl.u32 %v3339, 23
        %v3341 = vsub.s32 %v3340, 127
        %v3342 = vand.u32 2147483647, %v2696
        %v3343 = vand.u32 %v3342, 8388607
        %v3344 = vor.u32 %v3343, 8388608
        %v3345 = vsub.s32 0, %v3344
        %v3346 = vadd.s32 %v3341, 1
        %vm3347 = vcmp.gt.s32.totalorder %v3346, 0
        %v3348 = vsel %vm3347, %v3346, 0
        %v3349 = vshrl.u32 %v3348, 5
        %v3350 = vand.u32 %v3348, 31
        %v3351 = vsub.s32 32, %v3350
        %v3352 = vshrl.u32 683565275, %v3351
        %v3353 = vshll.u32 683565275, %v3350
        %v3354 = vshrl.u32 2475754826, %v3351
        %v3355 = vor.u32 %v3353, %v3354
        %v3356 = vshll.u32 2475754826, %v3350
        %v3357 = vshrl.u32 2131351028, %v3351
        %v3358 = vor.u32 %v3356, %v3357
        %v3359 = vshll.u32 2131351028, %v3350
        %v3360 = vshrl.u32 2102212464, %v3351
        %v3361 = vor.u32 %v3359, %v3360
        %v3362 = vshll.u32 2102212464, %v3350
        %v3363 = vshrl.u32 920167782, %v3351
        %v3364 = vor.u32 %v3362, %v3363
        %v3365 = vshll.u32 920167782, %v3350
        %v3366 = vshrl.u32 1326507024, %v3351
        %v3367 = vor.u32 %v3365, %v3366
        %vm3368 = vcmp.lt.s32.totalorder %v3349, 1
        %vm3369 = vcmp.lt.s32.totalorder %v3349, 2
        %vm3370 = vcmp.lt.s32.totalorder %v3349, 3
        %vm3371 = vcmp.lt.s32.totalorder %v3349, 4
        %v3372 = vsel %vm3368, %v3352, %v3355
        %v3373 = vsel %vm3371, %v3361, 2102212464
        %v3374 = vsel %vm3370, %v3358, %v3373
        %v3375 = vsel %vm3369, %v3372, %v3374
        %v3376 = vsel %vm3368, %v3355, %v3358
        %v3377 = vsel %vm3371, %v3364, 920167782
        %v3378 = vsel %vm3370, %v3361, %v3377
        %v3379 = vsel %vm3369, %v3376, %v3378
        %v3380 = vsel %vm3368, %v3358, %v3361
        %v3381 = vsel %vm3371, %v3367, 1326507024
        %v3382 = vsel %vm3370, %v3364, %v3381
        %v3383 = vsel %vm3369, %v3380, %v3382
        %v3384 = vshll.u32 %v3344, 8
        %v3385 = vmul.u32.u64.compose %v3384, %v3383
        %v3386 = vextract.low.u32 %v3385
        %v3387 = vextract.high.u32 %v3385
        %v3388 = vmul.u32.u64.compose %v3384, %v3379
        %v3389 = vextract.low.u32 %v3388
        %v3390 = vextract.high.u32 %v3388
        %v3391 = vmul.u32 %v3384, %v3375
        %v3392 = vadd.s32 %v3387, %v3389
        %vm3393 = vc.u32 %v3387, %v3389
        %v3394 = vadd.s32 %v3390, 1
        %v3395 = vsel %vm3393, %v3394, %v3390
        %v3396 = vadd.s32 %v3391, %v3395
        %v3397 = vadd.s32 %v3396, 536870912
        %v3398 = vshrl.u32 %v3397, 30
        %v3399 = vshll.u32 %v3398, 30
        %v3400 = vsub.s32 %v3396, %v3399
        %vm3401 = vcmp.lt.s32.totalorder %v3400, 0
        %v3402 = vsub.s32 0, %v3400
        %v3403 = vsel %vm3401, %v3402, %v3400
        %v3404 = vclz %v3403
        %v3405 = vsub.s32 %v3404, 2
        %vm3406 = vcmp.gt.s32.totalorder 0, %v3405
        %v3407 = vsel %vm3406, 0, %v3405
        %v3408 = vsub.s32 32, %v3407
        %v3409 = vshll.u32 %v3400, %v3407
        %v3410 = vshrl.u32 %v3392, %v3408
        %v3411 = vor.u32 %v3409, %v3410
        %v3412 = vsub.s32 4294967266, %v3407
        %v3413 = vadd.s32 %v3412, 127
        %v3414 = vshll.u32 %v3413, 23
        %v3415 = vor.u32 4788187, %v3414
        %v3416 = vand.u32 2147483647, %v3415
        %v3418 = vcvt.s32.f32 %v3411
        %v3419 = vmul.f32 %v3418, %v3416
        %v3420 = vxor.u32 %v3419, 2147483648
        %v3421 = vsel %vm3338, %v3420, %v3419
        %v3422 = vsub.s32 4, %v3398
        %v3423 = vsel %vm3338, %v3422, %v3398
        %v3424 = vsel %vm3337, %v2696, %v3421
        %v3425 = vsel %vm3337, 0, %v3423
        %v3426 = vcosq.f32.pop %v3424
        %v3427 = vsinq.f32.pop %v3424
        %vm3428 = vweird.f32 %v2696
        %v3429 = vadd.s32 %v3425, 3
        %v3430 = vand.u32 %v3429, 3
        %vm3431 = vcmp.lt.s32.totalorder %v3430, 2
        %vm3432 = vcmp.eq.s32.totalorder %v3430, 0
        %v3433 = vxor.u32 %v3427, 2147483648
        %v3434 = vsel %vm3432, %v3426, %v3433
        %vm3435 = vcmp.eq.s32.totalorder %v3430, 2
        %v3436 = vxor.u32 %v3426, 2147483648
        %v3437 = vsel %vm3435, %v3436, %v3427
        %v3438 = vsel %vm3431, %v3434, %v3437
        %v3439 = vsel %vm3428, nan, %v3438
        %v3440 = vand.u32 2147483647, %v2698
        %vm3441 = vcmp.le.f32.partialorder %v3440, 0.7853982
        %vm3442 = vcmp.lt.s32.totalorder %v2698, 0
        %v3443 = vand.u32 %v2698, 2139095040
        %v3444 = vshrl.u32 %v3443, 23
        %v3445 = vsub.s32 %v3444, 127
        %v3446 = vand.u32 2147483647, %v2698
        %v3447 = vand.u32 %v3446, 8388607
        %v3448 = vor.u32 %v3447, 8388608
        %v3449 = vsub.s32 0, %v3448
        %v3450 = vadd.s32 %v3445, 1
        %vm3451 = vcmp.gt.s32.totalorder %v3450, 0
        %v3452 = vsel %vm3451, %v3450, 0
        %v3453 = vshrl.u32 %v3452, 5
        %v3454 = vand.u32 %v3452, 31
        %v3455 = vsub.s32 32, %v3454
        %v3456 = vshrl.u32 683565275, %v3455
        %v3457 = vshll.u32 683565275, %v3454
        %v3458 = vshrl.u32 2475754826, %v3455
        %v3459 = vor.u32 %v3457, %v3458
        %v3460 = vshll.u32 2475754826, %v3454
        %v3461 = vshrl.u32 2131351028, %v3455
        %v3462 = vor.u32 %v3460, %v3461
        %v3463 = vshll.u32 2131351028, %v3454
        %v3464 = vshrl.u32 2102212464, %v3455
        %v3465 = vor.u32 %v3463, %v3464
        %v3466 = vshll.u32 2102212464, %v3454
        %v3467 = vshrl.u32 920167782, %v3455
        %v3468 = vor.u32 %v3466, %v3467
        %v3469 = vshll.u32 920167782, %v3454
        %v3470 = vshrl.u32 1326507024, %v3455
        %v3471 = vor.u32 %v3469, %v3470
        %vm3472 = vcmp.lt.s32.totalorder %v3453, 1
        %vm3473 = vcmp.lt.s32.totalorder %v3453, 2
        %vm3474 = vcmp.lt.s32.totalorder %v3453, 3
        %vm3475 = vcmp.lt.s32.totalorder %v3453, 4
        %v3476 = vsel %vm3472, %v3456, %v3459
        %v3477 = vsel %vm3475, %v3465, 2102212464
        %v3478 = vsel %vm3474, %v3462, %v3477
        %v3479 = vsel %vm3473, %v3476, %v3478
        %v3480 = vsel %vm3472, %v3459, %v3462
        %v3481 = vsel %vm3475, %v3468, 920167782
        %v3482 = vsel %vm3474, %v3465, %v3481
        %v3483 = vsel %vm3473, %v3480, %v3482
        %v3484 = vsel %vm3472, %v3462, %v3465
        %v3485 = vsel %vm3475, %v3471, 1326507024
        %v3486 = vsel %vm3474, %v3468, %v3485
        %v3487 = vsel %vm3473, %v3484, %v3486
        %v3488 = vshll.u32 %v3448, 8
        %v3489 = vmul.u32.u64.compose %v3488, %v3487
        %v3490 = vextract.low.u32 %v3489
        %v3491 = vextract.high.u32 %v3489
        %v3492 = vmul.u32.u64.compose %v3488, %v3483
        %v3493 = vextract.low.u32 %v3492
        %v3494 = vextract.high.u32 %v3492
        %v3495 = vmul.u32 %v3488, %v3479
        %v3496 = vadd.s32 %v3491, %v3493
        %vm3497 = vc.u32 %v3491, %v3493
        %v3498 = vadd.s32 %v3494, 1
        %v3499 = vsel %vm3497, %v3498, %v3494
        %v3500 = vadd.s32 %v3495, %v3499
        %v3501 = vadd.s32 %v3500, 536870912
        %v3502 = vshrl.u32 %v3501, 30
        %v3503 = vshll.u32 %v3502, 30
        %v3504 = vsub.s32 %v3500, %v3503
        %vm3505 = vcmp.lt.s32.totalorder %v3504, 0
        %v3506 = vsub.s32 0, %v3504
        %v3507 = vsel %vm3505, %v3506, %v3504
        %v3508 = vclz %v3507
        %v3509 = vsub.s32 %v3508, 2
        %vm3510 = vcmp.gt.s32.totalorder 0, %v3509
        %v3511 = vsel %vm3510, 0, %v3509
        %v3512 = vsub.s32 32, %v3511
        %v3513 = vshll.u32 %v3504, %v3511
        %v3514 = vshrl.u32 %v3496, %v3512
        %v3515 = vor.u32 %v3513, %v3514
        %v3516 = vsub.s32 4294967266, %v3511
        %v3517 = vadd.s32 %v3516, 127
        %v3518 = vshll.u32 %v3517, 23
        %v3519 = vor.u32 4788187, %v3518
        %v3520 = vand.u32 2147483647, %v3519
        %v3522 = vcvt.s32.f32 %v3515
        %v3523 = vmul.f32 %v3522, %v3520
        %v3524 = vxor.u32 %v3523, 2147483648
        %v3525 = vsel %vm3442, %v3524, %v3523
        %v3526 = vsub.s32 4, %v3502
        %v3527 = vsel %vm3442, %v3526, %v3502
        %v3528 = vsel %vm3441, %v2698, %v3525
        %v3529 = vsel %vm3441, 0, %v3527
        %v3530 = vcosq.f32.pop %v3528
        %v3531 = vsinq.f32.pop %v3528
        %vm3532 = vweird.f32 %v2698
        %v3533 = vadd.s32 %v3529, 3
        %v3534 = vand.u32 %v3533, 3
        %vm3535 = vcmp.lt.s32.totalorder %v3534, 2
        %vm3536 = vcmp.eq.s32.totalorder %v3534, 0
        %v3537 = vxor.u32 %v3531, 2147483648
        %v3538 = vsel %vm3536, %v3530, %v3537
        %vm3539 = vcmp.eq.s32.totalorder %v3534, 2
        %v3540 = vxor.u32 %v3530, 2147483648
        %v3541 = vsel %vm3539, %v3540, %v3531
        %v3542 = vsel %vm3535, %v3538, %v3541
        %v3543 = vsel %vm3532, nan, %v3542
        %v3544 = vand.u32 2147483647, %v2613
        %vm3545 = vcmp.le.f32.partialorder %v3544, 0.7853982
        %vm3546 = vcmp.lt.s32.totalorder %v2613, 0
        %v3547 = vand.u32 %v2613, 2139095040
        %v3548 = vshrl.u32 %v3547, 23
        %v3549 = vsub.s32 %v3548, 127
        %v3550 = vand.u32 2147483647, %v2613
        %v3551 = vand.u32 %v3550, 8388607
        %v3552 = vor.u32 %v3551, 8388608
        %v3553 = vsub.s32 0, %v3552
        %v3554 = vadd.s32 %v3549, 1
        %vm3555 = vcmp.gt.s32.totalorder %v3554, 0
        %v3556 = vsel %vm3555, %v3554, 0
        %v3557 = vshrl.u32 %v3556, 5
        %v3558 = vand.u32 %v3556, 31
        %v3559 = vsub.s32 32, %v3558
        %v3560 = vshrl.u32 683565275, %v3559
        %v3561 = vshll.u32 683565275, %v3558
        %v3562 = vshrl.u32 2475754826, %v3559
        %v3563 = vor.u32 %v3561, %v3562
        %v3564 = vshll.u32 2475754826, %v3558
        %v3565 = vshrl.u32 2131351028, %v3559
        %v3566 = vor.u32 %v3564, %v3565
        %v3567 = vshll.u32 2131351028, %v3558
        %v3568 = vshrl.u32 2102212464, %v3559
        %v3569 = vor.u32 %v3567, %v3568
        %v3570 = vshll.u32 2102212464, %v3558
        %v3571 = vshrl.u32 920167782, %v3559
        %v3572 = vor.u32 %v3570, %v3571
        %v3573 = vshll.u32 920167782, %v3558
        %v3574 = vshrl.u32 1326507024, %v3559
        %v3575 = vor.u32 %v3573, %v3574
        %vm3576 = vcmp.lt.s32.totalorder %v3557, 1
        %vm3577 = vcmp.lt.s32.totalorder %v3557, 2
        %vm3578 = vcmp.lt.s32.totalorder %v3557, 3
        %vm3579 = vcmp.lt.s32.totalorder %v3557, 4
        %v3580 = vsel %vm3576, %v3560, %v3563
        %v3581 = vsel %vm3579, %v3569, 2102212464
        %v3582 = vsel %vm3578, %v3566, %v3581
        %v3583 = vsel %vm3577, %v3580, %v3582
        %v3584 = vsel %vm3576, %v3563, %v3566
        %v3585 = vsel %vm3579, %v3572, 920167782
        %v3586 = vsel %vm3578, %v3569, %v3585
        %v3587 = vsel %vm3577, %v3584, %v3586
        %v3588 = vsel %vm3576, %v3566, %v3569
        %v3589 = vsel %vm3579, %v3575, 1326507024
        %v3590 = vsel %vm3578, %v3572, %v3589
        %v3591 = vsel %vm3577, %v3588, %v3590
        %v3592 = vshll.u32 %v3552, 8
        %v3593 = vmul.u32.u64.compose %v3592, %v3591
        %v3594 = vextract.low.u32 %v3593
        %v3595 = vextract.high.u32 %v3593
        %v3596 = vmul.u32.u64.compose %v3592, %v3587
        %v3597 = vextract.low.u32 %v3596
        %v3598 = vextract.high.u32 %v3596
        %v3599 = vmul.u32 %v3592, %v3583
        %v3600 = vadd.s32 %v3595, %v3597
        %vm3601 = vc.u32 %v3595, %v3597
        %v3602 = vadd.s32 %v3598, 1
        %v3603 = vsel %vm3601, %v3602, %v3598
        %v3604 = vadd.s32 %v3599, %v3603
        %v3605 = vadd.s32 %v3604, 536870912
        %v3606 = vshrl.u32 %v3605, 30
        %v3607 = vshll.u32 %v3606, 30
        %v3608 = vsub.s32 %v3604, %v3607
        %vm3609 = vcmp.lt.s32.totalorder %v3608, 0
        %v3610 = vsub.s32 0, %v3608
        %v3611 = vsel %vm3609, %v3610, %v3608
        %v3612 = vclz %v3611
        %v3613 = vsub.s32 %v3612, 2
        %vm3614 = vcmp.gt.s32.totalorder 0, %v3613
        %v3615 = vsel %vm3614, 0, %v3613
        %v3616 = vsub.s32 32, %v3615
        %v3617 = vshll.u32 %v3608, %v3615
        %v3618 = vshrl.u32 %v3600, %v3616
        %v3619 = vor.u32 %v3617, %v3618
        %v3620 = vsub.s32 4294967266, %v3615
        %v3621 = vadd.s32 %v3620, 127
        %v3622 = vshll.u32 %v3621, 23
        %v3623 = vor.u32 4788187, %v3622
        %v3624 = vand.u32 2147483647, %v3623
        %v3626 = vcvt.s32.f32 %v3619
        %v3627 = vmul.f32 %v3626, %v3624
        %v3628 = vxor.u32 %v3627, 2147483648
        %v3629 = vsel %vm3546, %v3628, %v3627
        %v3630 = vsub.s32 4, %v3606
        %v3631 = vsel %vm3546, %v3630, %v3606
        %v3632 = vsel %vm3545, %v2613, %v3629
        %v3633 = vsel %vm3545, 0, %v3631
        %v3634 = vcosq.f32.pop %v3632
        %v3635 = vsinq.f32.pop %v3632
        %vm3636 = vweird.f32 %v2613
        %v3637 = vadd.s32 %v3633, 3
        %v3638 = vand.u32 %v3637, 3
        %vm3639 = vcmp.lt.s32.totalorder %v3638, 2
        %vm3640 = vcmp.eq.s32.totalorder %v3638, 0
        %v3641 = vxor.u32 %v3635, 2147483648
        %v3642 = vsel %vm3640, %v3634, %v3641
        %vm3643 = vcmp.eq.s32.totalorder %v3638, 2
        %v3644 = vxor.u32 %v3634, 2147483648
        %v3645 = vsel %vm3643, %v3644, %v3635
        %v3646 = vsel %vm3639, %v3642, %v3645
        %v3647 = vsel %vm3636, nan, %v3646
        %v3648 = vand.u32 2147483647, %v2615
        %vm3649 = vcmp.le.f32.partialorder %v3648, 0.7853982
        %vm3650 = vcmp.lt.s32.totalorder %v2615, 0
        %v3651 = vand.u32 %v2615, 2139095040
        %v3652 = vshrl.u32 %v3651, 23
        %v3653 = vsub.s32 %v3652, 127
        %v3654 = vand.u32 2147483647, %v2615
        %v3655 = vand.u32 %v3654, 8388607
        %v3656 = vor.u32 %v3655, 8388608
        %v3657 = vsub.s32 0, %v3656
        %v3658 = vadd.s32 %v3653, 1
        %vm3659 = vcmp.gt.s32.totalorder %v3658, 0
        %v3660 = vsel %vm3659, %v3658, 0
        %v3661 = vshrl.u32 %v3660, 5
        %v3662 = vand.u32 %v3660, 31
        %v3663 = vsub.s32 32, %v3662
        %v3664 = vshrl.u32 683565275, %v3663
        %v3665 = vshll.u32 683565275, %v3662
        %v3666 = vshrl.u32 2475754826, %v3663
        %v3667 = vor.u32 %v3665, %v3666
        %v3668 = vshll.u32 2475754826, %v3662
        %v3669 = vshrl.u32 2131351028, %v3663
        %v3670 = vor.u32 %v3668, %v3669
        %v3671 = vshll.u32 2131351028, %v3662
        %v3672 = vshrl.u32 2102212464, %v3663
        %v3673 = vor.u32 %v3671, %v3672
        %v3674 = vshll.u32 2102212464, %v3662
        %v3675 = vshrl.u32 920167782, %v3663
        %v3676 = vor.u32 %v3674, %v3675
        %v3677 = vshll.u32 920167782, %v3662
        %v3678 = vshrl.u32 1326507024, %v3663
        %v3679 = vor.u32 %v3677, %v3678
        %vm3680 = vcmp.lt.s32.totalorder %v3661, 1
        %vm3681 = vcmp.lt.s32.totalorder %v3661, 2
        %vm3682 = vcmp.lt.s32.totalorder %v3661, 3
        %vm3683 = vcmp.lt.s32.totalorder %v3661, 4
        %v3684 = vsel %vm3680, %v3664, %v3667
        %v3685 = vsel %vm3683, %v3673, 2102212464
        %v3686 = vsel %vm3682, %v3670, %v3685
        %v3687 = vsel %vm3681, %v3684, %v3686
        %v3688 = vsel %vm3680, %v3667, %v3670
        %v3689 = vsel %vm3683, %v3676, 920167782
        %v3690 = vsel %vm3682, %v3673, %v3689
        %v3691 = vsel %vm3681, %v3688, %v3690
        %v3692 = vsel %vm3680, %v3670, %v3673
        %v3693 = vsel %vm3683, %v3679, 1326507024
        %v3694 = vsel %vm3682, %v3676, %v3693
        %v3695 = vsel %vm3681, %v3692, %v3694
        %v3696 = vshll.u32 %v3656, 8
        %v3697 = vmul.u32.u64.compose %v3696, %v3695
        %v3698 = vextract.low.u32 %v3697
        %v3699 = vextract.high.u32 %v3697
        %v3700 = vmul.u32.u64.compose %v3696, %v3691
        %v3701 = vextract.low.u32 %v3700
        %v3702 = vextract.high.u32 %v3700
        %v3703 = vmul.u32 %v3696, %v3687
        %v3704 = vadd.s32 %v3699, %v3701
        %vm3705 = vc.u32 %v3699, %v3701
        %v3706 = vadd.s32 %v3702, 1
        %v3707 = vsel %vm3705, %v3706, %v3702
        %v3708 = vadd.s32 %v3703, %v3707
        %v3709 = vadd.s32 %v3708, 536870912
        %v3710 = vshrl.u32 %v3709, 30
        %v3711 = vshll.u32 %v3710, 30
        %v3712 = vsub.s32 %v3708, %v3711
        %vm3713 = vcmp.lt.s32.totalorder %v3712, 0
        %v3714 = vsub.s32 0, %v3712
        %v3715 = vsel %vm3713, %v3714, %v3712
        %v3716 = vclz %v3715
        %v3717 = vsub.s32 %v3716, 2
        %vm3718 = vcmp.gt.s32.totalorder 0, %v3717
        %v3719 = vsel %vm3718, 0, %v3717
        %v3720 = vsub.s32 32, %v3719
        %v3721 = vshll.u32 %v3712, %v3719
        %v3722 = vshrl.u32 %v3704, %v3720
        %v3723 = vor.u32 %v3721, %v3722
        %v3724 = vsub.s32 4294967266, %v3719
        %v3725 = vadd.s32 %v3724, 127
        %v3726 = vshll.u32 %v3725, 23
        %v3727 = vor.u32 4788187, %v3726
        %v3728 = vand.u32 2147483647, %v3727
        %v3730 = vcvt.s32.f32 %v3723
        %v3731 = vmul.f32 %v3730, %v3728
        %v3732 = vxor.u32 %v3731, 2147483648
        %v3733 = vsel %vm3650, %v3732, %v3731
        %v3734 = vsub.s32 4, %v3710
        %v3735 = vsel %vm3650, %v3734, %v3710
        %v3736 = vsel %vm3649, %v2615, %v3733
        %v3737 = vsel %vm3649, 0, %v3735
        %v3738 = vcosq.f32.pop %v3736
        %v3739 = vsinq.f32.pop %v3736
        %vm3740 = vweird.f32 %v2615
        %v3741 = vadd.s32 %v3737, 3
        %v3742 = vand.u32 %v3741, 3
        %vm3743 = vcmp.lt.s32.totalorder %v3742, 2
        %vm3744 = vcmp.eq.s32.totalorder %v3742, 0
        %v3745 = vxor.u32 %v3739, 2147483648
        %v3746 = vsel %vm3744, %v3738, %v3745
        %vm3747 = vcmp.eq.s32.totalorder %v3742, 2
        %v3748 = vxor.u32 %v3738, 2147483648
        %v3749 = vsel %vm3747, %v3748, %v3739
        %v3750 = vsel %vm3743, %v3746, %v3749
        %v3751 = vsel %vm3740, nan, %v3750
        %v3752 = vand.u32 2147483647, %v2702
        %vm3753 = vcmp.le.f32.partialorder %v3752, 0.7853982
        %vm3754 = vcmp.lt.s32.totalorder %v2702, 0
        %v3755 = vand.u32 %v2702, 2139095040
        %v3756 = vshrl.u32 %v3755, 23
        %v3757 = vsub.s32 %v3756, 127
        %v3758 = vand.u32 2147483647, %v2702
        %v3759 = vand.u32 %v3758, 8388607
        %v3760 = vor.u32 %v3759, 8388608
        %v3761 = vsub.s32 0, %v3760
        %v3762 = vadd.s32 %v3757, 1
        %vm3763 = vcmp.gt.s32.totalorder %v3762, 0
        %v3764 = vsel %vm3763, %v3762, 0
        %v3765 = vshrl.u32 %v3764, 5
        %v3766 = vand.u32 %v3764, 31
        %v3767 = vsub.s32 32, %v3766
        %v3768 = vshrl.u32 683565275, %v3767
        %v3769 = vshll.u32 683565275, %v3766
        %v3770 = vshrl.u32 2475754826, %v3767
        %v3771 = vor.u32 %v3769, %v3770
        %v3772 = vshll.u32 2475754826, %v3766
        %v3773 = vshrl.u32 2131351028, %v3767
        %v3774 = vor.u32 %v3772, %v3773
        %v3775 = vshll.u32 2131351028, %v3766
        %v3776 = vshrl.u32 2102212464, %v3767
        %v3777 = vor.u32 %v3775, %v3776
        %v3778 = vshll.u32 2102212464, %v3766
        %v3779 = vshrl.u32 920167782, %v3767
        %v3780 = vor.u32 %v3778, %v3779
        %v3781 = vshll.u32 920167782, %v3766
        %v3782 = vshrl.u32 1326507024, %v3767
        %v3783 = vor.u32 %v3781, %v3782
        %vm3784 = vcmp.lt.s32.totalorder %v3765, 1
        %vm3785 = vcmp.lt.s32.totalorder %v3765, 2
        %vm3786 = vcmp.lt.s32.totalorder %v3765, 3
        %vm3787 = vcmp.lt.s32.totalorder %v3765, 4
        %v3788 = vsel %vm3784, %v3768, %v3771
        %v3789 = vsel %vm3787, %v3777, 2102212464
        %v3790 = vsel %vm3786, %v3774, %v3789
        %v3791 = vsel %vm3785, %v3788, %v3790
        %v3792 = vsel %vm3784, %v3771, %v3774
        %v3793 = vsel %vm3787, %v3780, 920167782
        %v3794 = vsel %vm3786, %v3777, %v3793
        %v3795 = vsel %vm3785, %v3792, %v3794
        %v3796 = vsel %vm3784, %v3774, %v3777
        %v3797 = vsel %vm3787, %v3783, 1326507024
        %v3798 = vsel %vm3786, %v3780, %v3797
        %v3799 = vsel %vm3785, %v3796, %v3798
        %v3800 = vshll.u32 %v3760, 8
        %v3801 = vmul.u32.u64.compose %v3800, %v3799
        %v3802 = vextract.low.u32 %v3801
        %v3803 = vextract.high.u32 %v3801
        %v3804 = vmul.u32.u64.compose %v3800, %v3795
        %v3805 = vextract.low.u32 %v3804
        %v3806 = vextract.high.u32 %v3804
        %v3807 = vmul.u32 %v3800, %v3791
        %v3808 = vadd.s32 %v3803, %v3805
        %vm3809 = vc.u32 %v3803, %v3805
        %v3810 = vadd.s32 %v3806, 1
        %v3811 = vsel %vm3809, %v3810, %v3806
        %v3812 = vadd.s32 %v3807, %v3811
        %v3813 = vadd.s32 %v3812, 536870912
        %v3814 = vshrl.u32 %v3813, 30
        %v3815 = vshll.u32 %v3814, 30
        %v3816 = vsub.s32 %v3812, %v3815
        %vm3817 = vcmp.lt.s32.totalorder %v3816, 0
        %v3818 = vsub.s32 0, %v3816
        %v3819 = vsel %vm3817, %v3818, %v3816
        %v3820 = vclz %v3819
        %v3821 = vsub.s32 %v3820, 2
        %vm3822 = vcmp.gt.s32.totalorder 0, %v3821
        %v3823 = vsel %vm3822, 0, %v3821
        %v3824 = vsub.s32 32, %v3823
        %v3825 = vshll.u32 %v3816, %v3823
        %v3826 = vshrl.u32 %v3808, %v3824
        %v3827 = vor.u32 %v3825, %v3826
        %v3828 = vsub.s32 4294967266, %v3823
        %v3829 = vadd.s32 %v3828, 127
        %v3830 = vshll.u32 %v3829, 23
        %v3831 = vor.u32 4788187, %v3830
        %v3832 = vand.u32 2147483647, %v3831
        %v3834 = vcvt.s32.f32 %v3827
        %v3835 = vmul.f32 %v3834, %v3832
        %v3836 = vxor.u32 %v3835, 2147483648
        %v3837 = vsel %vm3754, %v3836, %v3835
        %v3838 = vsub.s32 4, %v3814
        %v3839 = vsel %vm3754, %v3838, %v3814
        %v3840 = vsel %vm3753, %v2702, %v3837
        %v3841 = vsel %vm3753, 0, %v3839
        %v3842 = vcosq.f32.pop %v3840
        %v3843 = vsinq.f32.pop %v3840
        %vm3844 = vweird.f32 %v2702
        %v3845 = vadd.s32 %v3841, 3
        %v3846 = vand.u32 %v3845, 3
        %vm3847 = vcmp.lt.s32.totalorder %v3846, 2
        %vm3848 = vcmp.eq.s32.totalorder %v3846, 0
        %v3849 = vxor.u32 %v3843, 2147483648
        %v3850 = vsel %vm3848, %v3842, %v3849
        %vm3851 = vcmp.eq.s32.totalorder %v3846, 2
        %v3852 = vxor.u32 %v3842, 2147483648
        %v3853 = vsel %vm3851, %v3852, %v3843
        %v3854 = vsel %vm3847, %v3850, %v3853
        %v3855 = vsel %vm3844, nan, %v3854
        %v3856 = vand.u32 2147483647, %v2704
        %vm3857 = vcmp.le.f32.partialorder %v3856, 0.7853982
        %vm3858 = vcmp.lt.s32.totalorder %v2704, 0
        %v3859 = vand.u32 %v2704, 2139095040
        %v3860 = vshrl.u32 %v3859, 23
        %v3861 = vsub.s32 %v3860, 127
        %v3862 = vand.u32 2147483647, %v2704
        %v3863 = vand.u32 %v3862, 8388607
        %v3864 = vor.u32 %v3863, 8388608
        %v3865 = vsub.s32 0, %v3864
        %v3866 = vadd.s32 %v3861, 1
        %vm3867 = vcmp.gt.s32.totalorder %v3866, 0
        %v3868 = vsel %vm3867, %v3866, 0
        %v3869 = vshrl.u32 %v3868, 5
        %v3870 = vand.u32 %v3868, 31
        %v3871 = vsub.s32 32, %v3870
        %v3872 = vshrl.u32 683565275, %v3871
        %v3873 = vshll.u32 683565275, %v3870
        %v3874 = vshrl.u32 2475754826, %v3871
        %v3875 = vor.u32 %v3873, %v3874
        %v3876 = vshll.u32 2475754826, %v3870
        %v3877 = vshrl.u32 2131351028, %v3871
        %v3878 = vor.u32 %v3876, %v3877
        %v3879 = vshll.u32 2131351028, %v3870
        %v3880 = vshrl.u32 2102212464, %v3871
        %v3881 = vor.u32 %v3879, %v3880
        %v3882 = vshll.u32 2102212464, %v3870
        %v3883 = vshrl.u32 920167782, %v3871
        %v3884 = vor.u32 %v3882, %v3883
        %v3885 = vshll.u32 920167782, %v3870
        %v3886 = vshrl.u32 1326507024, %v3871
        %v3887 = vor.u32 %v3885, %v3886
        %vm3888 = vcmp.lt.s32.totalorder %v3869, 1
        %vm3889 = vcmp.lt.s32.totalorder %v3869, 2
        %vm3890 = vcmp.lt.s32.totalorder %v3869, 3
        %vm3891 = vcmp.lt.s32.totalorder %v3869, 4
        %v3892 = vsel %vm3888, %v3872, %v3875
        %v3893 = vsel %vm3891, %v3881, 2102212464
        %v3894 = vsel %vm3890, %v3878, %v3893
        %v3895 = vsel %vm3889, %v3892, %v3894
        %v3896 = vsel %vm3888, %v3875, %v3878
        %v3897 = vsel %vm3891, %v3884, 920167782
        %v3898 = vsel %vm3890, %v3881, %v3897
        %v3899 = vsel %vm3889, %v3896, %v3898
        %v3900 = vsel %vm3888, %v3878, %v3881
        %v3901 = vsel %vm3891, %v3887, 1326507024
        %v3902 = vsel %vm3890, %v3884, %v3901
        %v3903 = vsel %vm3889, %v3900, %v3902
        %v3904 = vshll.u32 %v3864, 8
        %v3905 = vmul.u32.u64.compose %v3904, %v3903
        %v3906 = vextract.low.u32 %v3905
        %v3907 = vextract.high.u32 %v3905
        %v3908 = vmul.u32.u64.compose %v3904, %v3899
        %v3909 = vextract.low.u32 %v3908
        %v3910 = vextract.high.u32 %v3908
        %v3911 = vmul.u32 %v3904, %v3895
        %v3912 = vadd.s32 %v3907, %v3909
        %vm3913 = vc.u32 %v3907, %v3909
        %v3914 = vadd.s32 %v3910, 1
        %v3915 = vsel %vm3913, %v3914, %v3910
        %v3916 = vadd.s32 %v3911, %v3915
        %v3917 = vadd.s32 %v3916, 536870912
        %v3918 = vshrl.u32 %v3917, 30
        %v3919 = vshll.u32 %v3918, 30
        %v3920 = vsub.s32 %v3916, %v3919
        %vm3921 = vcmp.lt.s32.totalorder %v3920, 0
        %v3922 = vsub.s32 0, %v3920
        %v3923 = vsel %vm3921, %v3922, %v3920
        %v3924 = vclz %v3923
        %v3925 = vsub.s32 %v3924, 2
        %vm3926 = vcmp.gt.s32.totalorder 0, %v3925
        %v3927 = vsel %vm3926, 0, %v3925
        %v3928 = vsub.s32 32, %v3927
        %v3929 = vshll.u32 %v3920, %v3927
        %v3930 = vshrl.u32 %v3912, %v3928
        %v3931 = vor.u32 %v3929, %v3930
        %v3932 = vsub.s32 4294967266, %v3927
        %v3933 = vadd.s32 %v3932, 127
        %v3934 = vshll.u32 %v3933, 23
        %v3935 = vor.u32 4788187, %v3934
        %v3936 = vand.u32 2147483647, %v3935
        %v3938 = vcvt.s32.f32 %v3931
        %v3939 = vmul.f32 %v3938, %v3936
        %v3940 = vxor.u32 %v3939, 2147483648
        %v3941 = vsel %vm3858, %v3940, %v3939
        %v3942 = vsub.s32 4, %v3918
        %v3943 = vsel %vm3858, %v3942, %v3918
        %v3944 = vsel %vm3857, %v2704, %v3941
        %v3945 = vsel %vm3857, 0, %v3943
        %v3946 = vcosq.f32.pop %v3944
        %v3947 = vsinq.f32.pop %v3944
        %vm3948 = vweird.f32 %v2704
        %v3949 = vadd.s32 %v3945, 3
        %v3950 = vand.u32 %v3949, 3
        %vm3951 = vcmp.lt.s32.totalorder %v3950, 2
        %vm3952 = vcmp.eq.s32.totalorder %v3950, 0
        %v3953 = vxor.u32 %v3947, 2147483648
        %v3954 = vsel %vm3952, %v3946, %v3953
        %vm3955 = vcmp.eq.s32.totalorder %v3950, 2
        %v3956 = vxor.u32 %v3946, 2147483648
        %v3957 = vsel %vm3955, %v3956, %v3947
        %v3958 = vsel %vm3951, %v3954, %v3957
        %v3959 = vsel %vm3948, nan, %v3958
        %v3960 = vand.u32 2147483647, %v2619
        %vm3961 = vcmp.le.f32.partialorder %v3960, 0.7853982
        %vm3962 = vcmp.lt.s32.totalorder %v2619, 0
        %v3963 = vand.u32 %v2619, 2139095040
        %v3964 = vshrl.u32 %v3963, 23
        %v3965 = vsub.s32 %v3964, 127
        %v3966 = vand.u32 2147483647, %v2619
        %v3967 = vand.u32 %v3966, 8388607
        %v3968 = vor.u32 %v3967, 8388608
        %v3969 = vsub.s32 0, %v3968
        %v3970 = vadd.s32 %v3965, 1
        %vm3971 = vcmp.gt.s32.totalorder %v3970, 0
        %v3972 = vsel %vm3971, %v3970, 0
        %v3973 = vshrl.u32 %v3972, 5
        %v3974 = vand.u32 %v3972, 31
        %v3975 = vsub.s32 32, %v3974
        %v3976 = vshrl.u32 683565275, %v3975
        %v3977 = vshll.u32 683565275, %v3974
        %v3978 = vshrl.u32 2475754826, %v3975
        %v3979 = vor.u32 %v3977, %v3978
        %v3980 = vshll.u32 2475754826, %v3974
        %v3981 = vshrl.u32 2131351028, %v3975
        %v3982 = vor.u32 %v3980, %v3981
        %v3983 = vshll.u32 2131351028, %v3974
        %v3984 = vshrl.u32 2102212464, %v3975
        %v3985 = vor.u32 %v3983, %v3984
        %v3986 = vshll.u32 2102212464, %v3974
        %v3987 = vshrl.u32 920167782, %v3975
        %v3988 = vor.u32 %v3986, %v3987
        %v3989 = vshll.u32 920167782, %v3974
        %v3990 = vshrl.u32 1326507024, %v3975
        %v3991 = vor.u32 %v3989, %v3990
        %vm3992 = vcmp.lt.s32.totalorder %v3973, 1
        %vm3993 = vcmp.lt.s32.totalorder %v3973, 2
        %vm3994 = vcmp.lt.s32.totalorder %v3973, 3
        %vm3995 = vcmp.lt.s32.totalorder %v3973, 4
        %v3996 = vsel %vm3992, %v3976, %v3979
        %v3997 = vsel %vm3995, %v3985, 2102212464
        %v3998 = vsel %vm3994, %v3982, %v3997
        %v3999 = vsel %vm3993, %v3996, %v3998
        %v4000 = vsel %vm3992, %v3979, %v3982
        %v4001 = vsel %vm3995, %v3988, 920167782
        %v4002 = vsel %vm3994, %v3985, %v4001
        %v4003 = vsel %vm3993, %v4000, %v4002
        %v4004 = vsel %vm3992, %v3982, %v3985
        %v4005 = vsel %vm3995, %v3991, 1326507024
        %v4006 = vsel %vm3994, %v3988, %v4005
        %v4007 = vsel %vm3993, %v4004, %v4006
        %v4008 = vshll.u32 %v3968, 8
        %v4009 = vmul.u32.u64.compose %v4008, %v4007
        %v4010 = vextract.low.u32 %v4009
        %v4011 = vextract.high.u32 %v4009
        %v4012 = vmul.u32.u64.compose %v4008, %v4003
        %v4013 = vextract.low.u32 %v4012
        %v4014 = vextract.high.u32 %v4012
        %v4015 = vmul.u32 %v4008, %v3999
        %v4016 = vadd.s32 %v4011, %v4013
        %vm4017 = vc.u32 %v4011, %v4013
        %v4018 = vadd.s32 %v4014, 1
        %v4019 = vsel %vm4017, %v4018, %v4014
        %v4020 = vadd.s32 %v4015, %v4019
        %v4021 = vadd.s32 %v4020, 536870912
        %v4022 = vshrl.u32 %v4021, 30
        %v4023 = vshll.u32 %v4022, 30
        %v4024 = vsub.s32 %v4020, %v4023
        %vm4025 = vcmp.lt.s32.totalorder %v4024, 0
        %v4026 = vsub.s32 0, %v4024
        %v4027 = vsel %vm4025, %v4026, %v4024
        %v4028 = vclz %v4027
        %v4029 = vsub.s32 %v4028, 2
        %vm4030 = vcmp.gt.s32.totalorder 0, %v4029
        %v4031 = vsel %vm4030, 0, %v4029
        %v4032 = vsub.s32 32, %v4031
        %v4033 = vshll.u32 %v4024, %v4031
        %v4034 = vshrl.u32 %v4016, %v4032
        %v4035 = vor.u32 %v4033, %v4034
        %v4036 = vsub.s32 4294967266, %v4031
        %v4037 = vadd.s32 %v4036, 127
        %v4038 = vshll.u32 %v4037, 23
        %v4039 = vor.u32 4788187, %v4038
        %v4040 = vand.u32 2147483647, %v4039
        %v4042 = vcvt.s32.f32 %v4035
        %v4043 = vmul.f32 %v4042, %v4040
        %v4044 = vxor.u32 %v4043, 2147483648
        %v4045 = vsel %vm3962, %v4044, %v4043
        %v4046 = vsub.s32 4, %v4022
        %v4047 = vsel %vm3962, %v4046, %v4022
        %v4048 = vsel %vm3961, %v2619, %v4045
        %v4049 = vsel %vm3961, 0, %v4047
        %v4050 = vcosq.f32.pop %v4048
        %v4051 = vsinq.f32.pop %v4048
        %vm4052 = vweird.f32 %v2619
        %v4053 = vadd.s32 %v4049, 3
        %v4054 = vand.u32 %v4053, 3
        %vm4055 = vcmp.lt.s32.totalorder %v4054, 2
        %vm4056 = vcmp.eq.s32.totalorder %v4054, 0
        %v4057 = vxor.u32 %v4051, 2147483648
        %v4058 = vsel %vm4056, %v4050, %v4057
        %vm4059 = vcmp.eq.s32.totalorder %v4054, 2
        %v4060 = vxor.u32 %v4050, 2147483648
        %v4061 = vsel %vm4059, %v4060, %v4051
        %v4062 = vsel %vm4055, %v4058, %v4061
        %v4063 = vsel %vm4052, nan, %v4062
        %v4064 = vand.u32 2147483647, %v2621
        %vm4065 = vcmp.le.f32.partialorder %v4064, 0.7853982
        %vm4066 = vcmp.lt.s32.totalorder %v2621, 0
        %v4067 = vand.u32 %v2621, 2139095040
        %v4068 = vshrl.u32 %v4067, 23
        %v4069 = vsub.s32 %v4068, 127
        %v4070 = vand.u32 2147483647, %v2621
        %v4071 = vand.u32 %v4070, 8388607
        %v4072 = vor.u32 %v4071, 8388608
        %v4073 = vsub.s32 0, %v4072
        %v4074 = vadd.s32 %v4069, 1
        %vm4075 = vcmp.gt.s32.totalorder %v4074, 0
        %v4076 = vsel %vm4075, %v4074, 0
        %v4077 = vshrl.u32 %v4076, 5
        %v4078 = vand.u32 %v4076, 31
        %v4079 = vsub.s32 32, %v4078
        %v4080 = vshrl.u32 683565275, %v4079
        %v4081 = vshll.u32 683565275, %v4078
        %v4082 = vshrl.u32 2475754826, %v4079
        %v4083 = vor.u32 %v4081, %v4082
        %v4084 = vshll.u32 2475754826, %v4078
        %v4085 = vshrl.u32 2131351028, %v4079
        %v4086 = vor.u32 %v4084, %v4085
        %v4087 = vshll.u32 2131351028, %v4078
        %v4088 = vshrl.u32 2102212464, %v4079
        %v4089 = vor.u32 %v4087, %v4088
        %v4090 = vshll.u32 2102212464, %v4078
        %v4091 = vshrl.u32 920167782, %v4079
        %v4092 = vor.u32 %v4090, %v4091
        %v4093 = vshll.u32 920167782, %v4078
        %v4094 = vshrl.u32 1326507024, %v4079
        %v4095 = vor.u32 %v4093, %v4094
        %vm4096 = vcmp.lt.s32.totalorder %v4077, 1
        %vm4097 = vcmp.lt.s32.totalorder %v4077, 2
        %vm4098 = vcmp.lt.s32.totalorder %v4077, 3
        %vm4099 = vcmp.lt.s32.totalorder %v4077, 4
        %v4100 = vsel %vm4096, %v4080, %v4083
        %v4101 = vsel %vm4099, %v4089, 2102212464
        %v4102 = vsel %vm4098, %v4086, %v4101
        %v4103 = vsel %vm4097, %v4100, %v4102
        %v4104 = vsel %vm4096, %v4083, %v4086
        %v4105 = vsel %vm4099, %v4092, 920167782
        %v4106 = vsel %vm4098, %v4089, %v4105
        %v4107 = vsel %vm4097, %v4104, %v4106
        %v4108 = vsel %vm4096, %v4086, %v4089
        %v4109 = vsel %vm4099, %v4095, 1326507024
        %v4110 = vsel %vm4098, %v4092, %v4109
        %v4111 = vsel %vm4097, %v4108, %v4110
        %v4112 = vshll.u32 %v4072, 8
        %v4113 = vmul.u32.u64.compose %v4112, %v4111
        %v4114 = vextract.low.u32 %v4113
        %v4115 = vextract.high.u32 %v4113
        %v4116 = vmul.u32.u64.compose %v4112, %v4107
        %v4117 = vextract.low.u32 %v4116
        %v4118 = vextract.high.u32 %v4116
        %v4119 = vmul.u32 %v4112, %v4103
        %v4120 = vadd.s32 %v4115, %v4117
        %vm4121 = vc.u32 %v4115, %v4117
        %v4122 = vadd.s32 %v4118, 1
        %v4123 = vsel %vm4121, %v4122, %v4118
        %v4124 = vadd.s32 %v4119, %v4123
        %v4125 = vadd.s32 %v4124, 536870912
        %v4126 = vshrl.u32 %v4125, 30
        %v4127 = vshll.u32 %v4126, 30
        %v4128 = vsub.s32 %v4124, %v4127
        %vm4129 = vcmp.lt.s32.totalorder %v4128, 0
        %v4130 = vsub.s32 0, %v4128
        %v4131 = vsel %vm4129, %v4130, %v4128
        %v4132 = vclz %v4131
        %v4133 = vsub.s32 %v4132, 2
        %vm4134 = vcmp.gt.s32.totalorder 0, %v4133
        %v4135 = vsel %vm4134, 0, %v4133
        %v4136 = vsub.s32 32, %v4135
        %v4137 = vshll.u32 %v4128, %v4135
        %v4138 = vshrl.u32 %v4120, %v4136
        %v4139 = vor.u32 %v4137, %v4138
        %v4140 = vsub.s32 4294967266, %v4135
        %v4141 = vadd.s32 %v4140, 127
        %v4142 = vshll.u32 %v4141, 23
        %v4143 = vor.u32 4788187, %v4142
        %v4144 = vand.u32 2147483647, %v4143
        %v4146 = vcvt.s32.f32 %v4139
        %v4147 = vmul.f32 %v4146, %v4144
        %v4148 = vxor.u32 %v4147, 2147483648
        %v4149 = vsel %vm4066, %v4148, %v4147
        %v4150 = vsub.s32 4, %v4126
        %v4151 = vsel %vm4066, %v4150, %v4126
        %v4152 = vsel %vm4065, %v2621, %v4149
        %v4153 = vsel %vm4065, 0, %v4151
        %v4154 = vcosq.f32.pop %v4152
        %v4155 = vsinq.f32.pop %v4152
        %vm4156 = vweird.f32 %v2621
        %v4157 = vadd.s32 %v4153, 3
        %v4158 = vand.u32 %v4157, 3
        %vm4159 = vcmp.lt.s32.totalorder %v4158, 2
        %vm4160 = vcmp.eq.s32.totalorder %v4158, 0
        %v4161 = vxor.u32 %v4155, 2147483648
        %v4162 = vsel %vm4160, %v4154, %v4161
        %vm4163 = vcmp.eq.s32.totalorder %v4158, 2
        %v4164 = vxor.u32 %v4154, 2147483648
        %v4165 = vsel %vm4163, %v4164, %v4155
        %v4166 = vsel %vm4159, %v4162, %v4165
        %v4167 = vsel %vm4156, nan, %v4166
        %v4168 = vand.u32 2147483647, %v2708
        %vm4169 = vcmp.le.f32.partialorder %v4168, 0.7853982
        %vm4170 = vcmp.lt.s32.totalorder %v2708, 0
        %v4171 = vand.u32 %v2708, 2139095040
        %v4172 = vshrl.u32 %v4171, 23
        %v4173 = vsub.s32 %v4172, 127
        %v4174 = vand.u32 2147483647, %v2708
        %v4175 = vand.u32 %v4174, 8388607
        %v4176 = vor.u32 %v4175, 8388608
        %v4177 = vsub.s32 0, %v4176
        %v4178 = vadd.s32 %v4173, 1
        %vm4179 = vcmp.gt.s32.totalorder %v4178, 0
        %v4180 = vsel %vm4179, %v4178, 0
        %v4181 = vshrl.u32 %v4180, 5
        %v4182 = vand.u32 %v4180, 31
        %v4183 = vsub.s32 32, %v4182
        %v4184 = vshrl.u32 683565275, %v4183
        %v4185 = vshll.u32 683565275, %v4182
        %v4186 = vshrl.u32 2475754826, %v4183
        %v4187 = vor.u32 %v4185, %v4186
        %v4188 = vshll.u32 2475754826, %v4182
        %v4189 = vshrl.u32 2131351028, %v4183
        %v4190 = vor.u32 %v4188, %v4189
        %v4191 = vshll.u32 2131351028, %v4182
        %v4192 = vshrl.u32 2102212464, %v4183
        %v4193 = vor.u32 %v4191, %v4192
        %v4194 = vshll.u32 2102212464, %v4182
        %v4195 = vshrl.u32 920167782, %v4183
        %v4196 = vor.u32 %v4194, %v4195
        %v4197 = vshll.u32 920167782, %v4182
        %v4198 = vshrl.u32 1326507024, %v4183
        %v4199 = vor.u32 %v4197, %v4198
        %vm4200 = vcmp.lt.s32.totalorder %v4181, 1
        %vm4201 = vcmp.lt.s32.totalorder %v4181, 2
        %vm4202 = vcmp.lt.s32.totalorder %v4181, 3
        %vm4203 = vcmp.lt.s32.totalorder %v4181, 4
        %v4204 = vsel %vm4200, %v4184, %v4187
        %v4205 = vsel %vm4203, %v4193, 2102212464
        %v4206 = vsel %vm4202, %v4190, %v4205
        %v4207 = vsel %vm4201, %v4204, %v4206
        %v4208 = vsel %vm4200, %v4187, %v4190
        %v4209 = vsel %vm4203, %v4196, 920167782
        %v4210 = vsel %vm4202, %v4193, %v4209
        %v4211 = vsel %vm4201, %v4208, %v4210
        %v4212 = vsel %vm4200, %v4190, %v4193
        %v4213 = vsel %vm4203, %v4199, 1326507024
        %v4214 = vsel %vm4202, %v4196, %v4213
        %v4215 = vsel %vm4201, %v4212, %v4214
        %v4216 = vshll.u32 %v4176, 8
        %v4217 = vmul.u32.u64.compose %v4216, %v4215
        %v4218 = vextract.low.u32 %v4217
        %v4219 = vextract.high.u32 %v4217
        %v4220 = vmul.u32.u64.compose %v4216, %v4211
        %v4221 = vextract.low.u32 %v4220
        %v4222 = vextract.high.u32 %v4220
        %v4223 = vmul.u32 %v4216, %v4207
        %v4224 = vadd.s32 %v4219, %v4221
        %vm4225 = vc.u32 %v4219, %v4221
        %v4226 = vadd.s32 %v4222, 1
        %v4227 = vsel %vm4225, %v4226, %v4222
        %v4228 = vadd.s32 %v4223, %v4227
        %v4229 = vadd.s32 %v4228, 536870912
        %v4230 = vshrl.u32 %v4229, 30
        %v4231 = vshll.u32 %v4230, 30
        %v4232 = vsub.s32 %v4228, %v4231
        %vm4233 = vcmp.lt.s32.totalorder %v4232, 0
        %v4234 = vsub.s32 0, %v4232
        %v4235 = vsel %vm4233, %v4234, %v4232
        %v4236 = vclz %v4235
        %v4237 = vsub.s32 %v4236, 2
        %vm4238 = vcmp.gt.s32.totalorder 0, %v4237
        %v4239 = vsel %vm4238, 0, %v4237
        %v4240 = vsub.s32 32, %v4239
        %v4241 = vshll.u32 %v4232, %v4239
        %v4242 = vshrl.u32 %v4224, %v4240
        %v4243 = vor.u32 %v4241, %v4242
        %v4244 = vsub.s32 4294967266, %v4239
        %v4245 = vadd.s32 %v4244, 127
        %v4246 = vshll.u32 %v4245, 23
        %v4247 = vor.u32 4788187, %v4246
        %v4248 = vand.u32 2147483647, %v4247
        %v4250 = vcvt.s32.f32 %v4243
        %v4251 = vmul.f32 %v4250, %v4248
        %v4252 = vxor.u32 %v4251, 2147483648
        %v4253 = vsel %vm4170, %v4252, %v4251
        %v4254 = vsub.s32 4, %v4230
        %v4255 = vsel %vm4170, %v4254, %v4230
        %v4256 = vsel %vm4169, %v2708, %v4253
        %v4257 = vsel %vm4169, 0, %v4255
        %v4258 = vcosq.f32.pop %v4256
        %v4259 = vsinq.f32.pop %v4256
        %vm4260 = vweird.f32 %v2708
        %v4261 = vadd.s32 %v4257, 3
        %v4262 = vand.u32 %v4261, 3
        %vm4263 = vcmp.lt.s32.totalorder %v4262, 2
        %vm4264 = vcmp.eq.s32.totalorder %v4262, 0
        %v4265 = vxor.u32 %v4259, 2147483648
        %v4266 = vsel %vm4264, %v4258, %v4265
        %vm4267 = vcmp.eq.s32.totalorder %v4262, 2
        %v4268 = vxor.u32 %v4258, 2147483648
        %v4269 = vsel %vm4267, %v4268, %v4259
        %v4270 = vsel %vm4263, %v4266, %v4269
        %v4271 = vsel %vm4260, nan, %v4270
        %v4272 = vand.u32 2147483647, %v2710
        %vm4273 = vcmp.le.f32.partialorder %v4272, 0.7853982
        %vm4274 = vcmp.lt.s32.totalorder %v2710, 0
        %v4275 = vand.u32 %v2710, 2139095040
        %v4276 = vshrl.u32 %v4275, 23
        %v4277 = vsub.s32 %v4276, 127
        %v4278 = vand.u32 2147483647, %v2710
        %v4279 = vand.u32 %v4278, 8388607
        %v4280 = vor.u32 %v4279, 8388608
        %v4281 = vsub.s32 0, %v4280
        %v4282 = vadd.s32 %v4277, 1
        %vm4283 = vcmp.gt.s32.totalorder %v4282, 0
        %v4284 = vsel %vm4283, %v4282, 0
        %v4285 = vshrl.u32 %v4284, 5
        %v4286 = vand.u32 %v4284, 31
        %v4287 = vsub.s32 32, %v4286
        %v4288 = vshrl.u32 683565275, %v4287
        %v4289 = vshll.u32 683565275, %v4286
        %v4290 = vshrl.u32 2475754826, %v4287
        %v4291 = vor.u32 %v4289, %v4290
        %v4292 = vshll.u32 2475754826, %v4286
        %v4293 = vshrl.u32 2131351028, %v4287
        %v4294 = vor.u32 %v4292, %v4293
        %v4295 = vshll.u32 2131351028, %v4286
        %v4296 = vshrl.u32 2102212464, %v4287
        %v4297 = vor.u32 %v4295, %v4296
        %v4298 = vshll.u32 2102212464, %v4286
        %v4299 = vshrl.u32 920167782, %v4287
        %v4300 = vor.u32 %v4298, %v4299
        %v4301 = vshll.u32 920167782, %v4286
        %v4302 = vshrl.u32 1326507024, %v4287
        %v4303 = vor.u32 %v4301, %v4302
        %vm4304 = vcmp.lt.s32.totalorder %v4285, 1
        %vm4305 = vcmp.lt.s32.totalorder %v4285, 2
        %vm4306 = vcmp.lt.s32.totalorder %v4285, 3
        %vm4307 = vcmp.lt.s32.totalorder %v4285, 4
        %v4308 = vsel %vm4304, %v4288, %v4291
        %v4309 = vsel %vm4307, %v4297, 2102212464
        %v4310 = vsel %vm4306, %v4294, %v4309
        %v4311 = vsel %vm4305, %v4308, %v4310
        %v4312 = vsel %vm4304, %v4291, %v4294
        %v4313 = vsel %vm4307, %v4300, 920167782
        %v4314 = vsel %vm4306, %v4297, %v4313
        %v4315 = vsel %vm4305, %v4312, %v4314
        %v4316 = vsel %vm4304, %v4294, %v4297
        %v4317 = vsel %vm4307, %v4303, 1326507024
        %v4318 = vsel %vm4306, %v4300, %v4317
        %v4319 = vsel %vm4305, %v4316, %v4318
        %v4320 = vshll.u32 %v4280, 8
        %v4321 = vmul.u32.u64.compose %v4320, %v4319
        %v4322 = vextract.low.u32 %v4321
        %v4323 = vextract.high.u32 %v4321
        %v4324 = vmul.u32.u64.compose %v4320, %v4315
        %v4325 = vextract.low.u32 %v4324
        %v4326 = vextract.high.u32 %v4324
        %v4327 = vmul.u32 %v4320, %v4311
        %v4328 = vadd.s32 %v4323, %v4325
        %vm4329 = vc.u32 %v4323, %v4325
        %v4330 = vadd.s32 %v4326, 1
        %v4331 = vsel %vm4329, %v4330, %v4326
        %v4332 = vadd.s32 %v4327, %v4331
        %v4333 = vadd.s32 %v4332, 536870912
        %v4334 = vshrl.u32 %v4333, 30
        %v4335 = vshll.u32 %v4334, 30
        %v4336 = vsub.s32 %v4332, %v4335
        %vm4337 = vcmp.lt.s32.totalorder %v4336, 0
        %v4338 = vsub.s32 0, %v4336
        %v4339 = vsel %vm4337, %v4338, %v4336
        %v4340 = vclz %v4339
        %v4341 = vsub.s32 %v4340, 2
        %vm4342 = vcmp.gt.s32.totalorder 0, %v4341
        %v4343 = vsel %vm4342, 0, %v4341
        %v4344 = vsub.s32 32, %v4343
        %v4345 = vshll.u32 %v4336, %v4343
        %v4346 = vshrl.u32 %v4328, %v4344
        %v4347 = vor.u32 %v4345, %v4346
        %v4348 = vsub.s32 4294967266, %v4343
        %v4349 = vadd.s32 %v4348, 127
        %v4350 = vshll.u32 %v4349, 23
        %v4351 = vor.u32 4788187, %v4350
        %v4352 = vand.u32 2147483647, %v4351
        %v4354 = vcvt.s32.f32 %v4347
        %v4355 = vmul.f32 %v4354, %v4352
        %v4356 = vxor.u32 %v4355, 2147483648
        %v4357 = vsel %vm4274, %v4356, %v4355
        %v4358 = vsub.s32 4, %v4334
        %v4359 = vsel %vm4274, %v4358, %v4334
        %v4360 = vsel %vm4273, %v2710, %v4357
        %v4361 = vsel %vm4273, 0, %v4359
        %v4362 = vcosq.f32.pop %v4360
        %v4363 = vsinq.f32.pop %v4360
        %vm4364 = vweird.f32 %v2710
        %v4365 = vadd.s32 %v4361, 3
        %v4366 = vand.u32 %v4365, 3
        %vm4367 = vcmp.lt.s32.totalorder %v4366, 2
        %vm4368 = vcmp.eq.s32.totalorder %v4366, 0
        %v4369 = vxor.u32 %v4363, 2147483648
        %v4370 = vsel %vm4368, %v4362, %v4369
        %vm4371 = vcmp.eq.s32.totalorder %v4366, 2
        %v4372 = vxor.u32 %v4362, 2147483648
        %v4373 = vsel %vm4371, %v4372, %v4363
        %v4374 = vsel %vm4367, %v4370, %v4373
        %v4375 = vsel %vm4364, nan, %v4374
        %v4376 = vld [vmem:[%s5] sm:$0xff]
        %v4377 = vld [vmem:[%s5 + $0x8] sm:$0xff]
        %v4378 = vld [vmem:[%s5 + $0x10] sm:$0xff]
        %v4379 = vld [vmem:[%s5 + $0x18] sm:$0xff]
        %v4380 = vld [vmem:[%s6] sm:$0xff]
        %v4381 = vld [vmem:[%s6 + $0x8] sm:$0xff]
        %v4382 = vld [vmem:[%s6 + $0x10] sm:$0xff]
        %v4383 = vld [vmem:[%s6 + $0x18] sm:$0xff]
        %4385 = vset.pattern.permute.xlu0 0
        %4386 = vperm.xlu0 %4385, %v4380
        %v4387 = vpop.permute.xlu0 %4386
        %4390 = vset.pattern.permute.xlu0 0
        %4391 = vperm.xlu0 %4390, %v4381
        %v4392 = vpop.permute.xlu0 %4391
        %4395 = vset.pattern.permute.xlu0 0
        %4396 = vperm.xlu0 %4395, %v4382
        %v4397 = vpop.permute.xlu0 %4396
        %4400 = vset.pattern.permute.xlu0 0
        %4401 = vperm.xlu0 %4400, %v4383
        %v4402 = vpop.permute.xlu0 %4401
        %v4405 = vsel %vm2521, %v4376, 0
        %v4408 = vsel %vm2521, %v4377, 0
        %v4411 = vsel %vm2521, %v4378, 0
        %v4414 = vsel %vm2521, %v4379, 0
        %4416 = vmatprep.subr.mxu0 %v2919
        %4417 = vmatpush1.msra.mxu0 %v2815
        %4418 = vmatprep.subr.mxu0 %v3335
        %4419 = vmatpush1.msra.mxu0 %v3231
        %4420 = vmatprep.subr.mxu0 %v3751
        %4421 = vmatpush1.msra.mxu0 %v3647
        %4422 = vmatprep.subr.mxu0 %v4167
        %4423 = vmatpush1.msra.mxu0 %v4063
        %4424 = vmatprep.subr.mxu0 0.0
        %4425 = vmatpush1.msra.mxu0 0.0
        %4426 = vmatprep.subr.mxu0 0.0
        %4427 = vmatpush1.msra.mxu0 0.0
        %4428 = vmatprep.subr.mxu0 0.0
        %4429 = vmatpush1.msra.mxu0 0.0
        %4430 = vmatprep.subr.mxu0 0.0
        %4431 = vmatpush1.msra.mxu0 0.0
        %4432 = vmatprep.subr.mxu0 0.0
        %4433 = vmatpush1.msra.mxu0 0.0
        %4434 = vmatprep.subr.mxu0 0.0
        %4435 = vmatpush1.msra.mxu0 0.0
        %4436 = vmatprep.subr.mxu0 0.0
        %4437 = vmatpush1.msra.mxu0 0.0
        %4438 = vmatprep.subr.mxu0 0.0
        %4439 = vmatpush1.msra.mxu0 0.0
        %4440 = vmatprep.subr.mxu0 0.0
        %4441 = vmatpush1.msra.mxu0 0.0
        %4442 = vmatprep.subr.mxu0 0.0
        %4443 = vmatpush1.msra.mxu0 0.0
        %4444 = vmatprep.subr.mxu0 0.0
        %4445 = vmatpush1.msra.mxu0 0.0
        %4446 = vmatprep.subr.mxu0 0.0
        %4447 = vmatpush1.msra.mxu0 0.0
        %4448 = vmatprep.subr.mxu0 0.0
        %4449 = vmatpush1.msra.mxu0 0.0
        %4450 = vmatprep.subr.mxu0 0.0
        %4451 = vmatpush1.msra.mxu0 0.0
        %4452 = vmatprep.subr.mxu0 0.0
        %4453 = vmatpush1.msra.mxu0 0.0
        %4454 = vmatprep.subr.mxu0 0.0
        %4455 = vmatpush1.msra.mxu0 0.0
        %4456 = vmatprep.subr.mxu0 0.0
        %4457 = vmatpush1.msra.mxu0 0.0
        %4458 = vmatprep.subr.mxu0 0.0
        %4459 = vmatpush1.msra.mxu0 0.0
        %4460 = vmatprep.subr.mxu0 0.0
        %4461 = vmatpush1.msra.mxu0 0.0
        %4462 = vmatprep.subr.mxu0 0.0
        %4463 = vmatpush1.msra.mxu0 0.0
        %4464 = vmatprep.subr.mxu0 0.0
        %4465 = vmatpush1.msra.mxu0 0.0
        %4466 = vmatprep.subr.mxu0 0.0
        %4467 = vmatpush1.msra.mxu0 0.0
        %4468 = vmatprep.subr.mxu0 0.0
        %4469 = vmatpush1.msra.mxu0 0.0
        %4470 = vmatprep.subr.mxu0 0.0
        %4471 = vmatpush1.msra.mxu0 0.0
        %4472 = vmatprep.subr.mxu0 0.0
        %4473 = vmatpush1.msra.mxu0 0.0
        %4474 = vmatprep.subr.mxu0 0.0
        %4475 = vmatpush1.msra.mxu0 0.0
        %4476 = vmatprep.subr.mxu0 0.0
        %4477 = vmatpush1.msra.mxu0 0.0
        %4478 = vmatprep.subr.mxu0 0.0
        %4479 = vmatpush1.msra.mxu0 0.0
        %4480 = vmatprep.mubr.f32.mxu0 0.0
        %4481 = vmatmul.mubr.f32.gmra.mrb[0].mxu0 %v4405
        %v4482 = vpop.f32.mrb[0].mxu0
        %v4483 = vadd.f32 %v4387, %v4482
        %v4484 = vpop.f32.mrb[0].mxu0
        %v4485 = vadd.f32 %v4387, %v4484
        %4486 = vmatprep.mubr.f32.mxu0 0.0
        %4487 = vmatmul.mubr.f32.gmra.mrb[0].mxu0 %v4408
        %v4488 = vpop.f32.mrb[0].mxu0
        %v4489 = vadd.f32 %v4392, %v4488
        %v4490 = vpop.f32.mrb[0].mxu0
        %v4491 = vadd.f32 %v4392, %v4490
        %4492 = vmatprep.mubr.f32.mxu0 0.0
        %4493 = vmatmul.mubr.f32.gmra.mrb[0].mxu0 %v4411
        %v4494 = vpop.f32.mrb[0].mxu0
        %v4495 = vadd.f32 %v4397, %v4494
        %v4496 = vpop.f32.mrb[0].mxu0
        %v4497 = vadd.f32 %v4397, %v4496
        %4498 = vmatprep.mubr.f32.mxu0 0.0
        %4499 = vmatmul.mubr.f32.gmra.mrb[0].mxu0 %v4414
        %v4500 = vpop.f32.mrb[0].mxu0
        %v4501 = vadd.f32 %v4402, %v4500
        %v4502 = vpop.f32.mrb[0].mxu0
        %v4503 = vadd.f32 %v4402, %v4502
        %4504 = vdwg.mxu0
        %4505 = vmatprep.subr.mxu0 %v3127
        %4506 = vmatpush1.msra.mxu0 %v3023
        %4507 = vmatprep.subr.mxu0 %v3543
        %4508 = vmatpush1.msra.mxu0 %v3439
        %4509 = vmatprep.subr.mxu0 %v3959
        %4510 = vmatpush1.msra.mxu0 %v3855
        %4511 = vmatprep.subr.mxu0 %v4375
        %4512 = vmatpush1.msra.mxu0 %v4271
        %4513 = vmatprep.subr.mxu0 0.0
        %4514 = vmatpush1.msra.mxu0 0.0
        %4515 = vmatprep.subr.mxu0 0.0
        %4516 = vmatpush1.msra.mxu0 0.0
        %4517 = vmatprep.subr.mxu0 0.0
        %4518 = vmatpush1.msra.mxu0 0.0
        %4519 = vmatprep.subr.mxu0 0.0
        %4520 = vmatpush1.msra.mxu0 0.0
        %4521 = vmatprep.subr.mxu0 0.0
        %4522 = vmatpush1.msra.mxu0 0.0
        %4523 = vmatprep.subr.mxu0 0.0
        %4524 = vmatpush1.msra.mxu0 0.0
        %4525 = vmatprep.subr.mxu0 0.0
        %4526 = vmatpush1.msra.mxu0 0.0
        %4527 = vmatprep.subr.mxu0 0.0
        %4528 = vmatpush1.msra.mxu0 0.0
        %4529 = vmatprep.subr.mxu0 0.0
        %4530 = vmatpush1.msra.mxu0 0.0
        %4531 = vmatprep.subr.mxu0 0.0
        %4532 = vmatpush1.msra.mxu0 0.0
        %4533 = vmatprep.subr.mxu0 0.0
        %4534 = vmatpush1.msra.mxu0 0.0
        %4535 = vmatprep.subr.mxu0 0.0
        %4536 = vmatpush1.msra.mxu0 0.0
        %4537 = vmatprep.subr.mxu0 0.0
        %4538 = vmatpush1.msra.mxu0 0.0
        %4539 = vmatprep.subr.mxu0 0.0
        %4540 = vmatpush1.msra.mxu0 0.0
        %4541 = vmatprep.subr.mxu0 0.0
        %4542 = vmatpush1.msra.mxu0 0.0
        %4543 = vmatprep.subr.mxu0 0.0
        %4544 = vmatpush1.msra.mxu0 0.0
        %4545 = vmatprep.subr.mxu0 0.0
        %4546 = vmatpush1.msra.mxu0 0.0
        %4547 = vmatprep.subr.mxu0 0.0
        %4548 = vmatpush1.msra.mxu0 0.0
        %4549 = vmatprep.subr.mxu0 0.0
        %4550 = vmatpush1.msra.mxu0 0.0
        %4551 = vmatprep.subr.mxu0 0.0
        %4552 = vmatpush1.msra.mxu0 0.0
        %4553 = vmatprep.subr.mxu0 0.0
        %4554 = vmatpush1.msra.mxu0 0.0
        %4555 = vmatprep.subr.mxu0 0.0
        %4556 = vmatpush1.msra.mxu0 0.0
        %4557 = vmatprep.subr.mxu0 0.0
        %4558 = vmatpush1.msra.mxu0 0.0
        %4559 = vmatprep.subr.mxu0 0.0
        %4560 = vmatpush1.msra.mxu0 0.0
        %4561 = vmatprep.subr.mxu0 0.0
        %4562 = vmatpush1.msra.mxu0 0.0
        %4563 = vmatprep.subr.mxu0 0.0
        %4564 = vmatpush1.msra.mxu0 0.0
        %4565 = vmatprep.subr.mxu0 0.0
        %4566 = vmatpush1.msra.mxu0 0.0
        %4567 = vmatprep.subr.mxu0 0.0
        %4568 = vmatpush1.msra.mxu0 0.0
        %4569 = vmatprep.mubr.f32.mxu0 0.0
        %4570 = vmatmul.mubr.f32.gmra.mrb[0].mxu0 %v4405
        %v4571 = vpop.f32.mrb[0].mxu0
        %v4572 = vadd.f32 %v4387, %v4571
        %v4573 = vpop.f32.mrb[0].mxu0
        %v4574 = vadd.f32 %v4387, %v4573
        %4575 = vmatprep.mubr.f32.mxu0 0.0
        %4576 = vmatmul.mubr.f32.gmra.mrb[0].mxu0 %v4408
        %v4577 = vpop.f32.mrb[0].mxu0
        %v4578 = vadd.f32 %v4392, %v4577
        %v4579 = vpop.f32.mrb[0].mxu0
        %v4580 = vadd.f32 %v4392, %v4579
        %4581 = vmatprep.mubr.f32.mxu0 0.0
        %4582 = vmatmul.mubr.f32.gmra.mrb[0].mxu0 %v4411
        %v4583 = vpop.f32.mrb[0].mxu0
        %v4584 = vadd.f32 %v4397, %v4583
        %v4585 = vpop.f32.mrb[0].mxu0
        %v4586 = vadd.f32 %v4397, %v4585
        %4587 = vmatprep.mubr.f32.mxu0 0.0
        %4588 = vmatmul.mubr.f32.gmra.mrb[0].mxu0 %v4414
        %v4589 = vpop.f32.mrb[0].mxu0
        %v4590 = vadd.f32 %v4402, %v4589
        %v4591 = vpop.f32.mrb[0].mxu0
        %v4592 = vadd.f32 %v4402, %v4591
        %4593 = vdwg.mxu0
        %v4594 = vand.u32 2147483647, %v4483
        %vm4595 = vcmp.le.f32.partialorder %v4594, 0.7853982
        %vm4596 = vcmp.lt.s32.totalorder %v4483, 0
        %v4597 = vand.u32 %v4483, 2139095040
        %v4598 = vshrl.u32 %v4597, 23
        %v4599 = vsub.s32 %v4598, 127
        %v4600 = vand.u32 2147483647, %v4483
        %v4601 = vand.u32 %v4600, 8388607
        %v4602 = vor.u32 %v4601, 8388608
        %v4603 = vsub.s32 0, %v4602
        %v4604 = vadd.s32 %v4599, 1
        %vm4605 = vcmp.gt.s32.totalorder %v4604, 0
        %v4606 = vsel %vm4605, %v4604, 0
        %v4607 = vshrl.u32 %v4606, 5
        %v4608 = vand.u32 %v4606, 31
        %v4609 = vsub.s32 32, %v4608
        %v4610 = vshrl.u32 683565275, %v4609
        %v4611 = vshll.u32 683565275, %v4608
        %v4612 = vshrl.u32 2475754826, %v4609
        %v4613 = vor.u32 %v4611, %v4612
        %v4614 = vshll.u32 2475754826, %v4608
        %v4615 = vshrl.u32 2131351028, %v4609
        %v4616 = vor.u32 %v4614, %v4615
        %v4617 = vshll.u32 2131351028, %v4608
        %v4618 = vshrl.u32 2102212464, %v4609
        %v4619 = vor.u32 %v4617, %v4618
        %v4620 = vshll.u32 2102212464, %v4608
        %v4621 = vshrl.u32 920167782, %v4609
        %v4622 = vor.u32 %v4620, %v4621
        %v4623 = vshll.u32 920167782, %v4608
        %v4624 = vshrl.u32 1326507024, %v4609
        %v4625 = vor.u32 %v4623, %v4624
        %vm4626 = vcmp.lt.s32.totalorder %v4607, 1
        %vm4627 = vcmp.lt.s32.totalorder %v4607, 2
        %vm4628 = vcmp.lt.s32.totalorder %v4607, 3
        %vm4629 = vcmp.lt.s32.totalorder %v4607, 4
        %v4630 = vsel %vm4626, %v4610, %v4613
        %v4631 = vsel %vm4629, %v4619, 2102212464
        %v4632 = vsel %vm4628, %v4616, %v4631
        %v4633 = vsel %vm4627, %v4630, %v4632
        %v4634 = vsel %vm4626, %v4613, %v4616
        %v4635 = vsel %vm4629, %v4622, 920167782
        %v4636 = vsel %vm4628, %v4619, %v4635
        %v4637 = vsel %vm4627, %v4634, %v4636
        %v4638 = vsel %vm4626, %v4616, %v4619
        %v4639 = vsel %vm4629, %v4625, 1326507024
        %v4640 = vsel %vm4628, %v4622, %v4639
        %v4641 = vsel %vm4627, %v4638, %v4640
        %v4642 = vshll.u32 %v4602, 8
        %v4643 = vmul.u32.u64.compose %v4642, %v4641
        %v4644 = vextract.low.u32 %v4643
        %v4645 = vextract.high.u32 %v4643
        %v4646 = vmul.u32.u64.compose %v4642, %v4637
        %v4647 = vextract.low.u32 %v4646
        %v4648 = vextract.high.u32 %v4646
        %v4649 = vmul.u32 %v4642, %v4633
        %v4650 = vadd.s32 %v4645, %v4647
        %vm4651 = vc.u32 %v4645, %v4647
        %v4652 = vadd.s32 %v4648, 1
        %v4653 = vsel %vm4651, %v4652, %v4648
        %v4654 = vadd.s32 %v4649, %v4653
        %v4655 = vadd.s32 %v4654, 536870912
        %v4656 = vshrl.u32 %v4655, 30
        %v4657 = vshll.u32 %v4656, 30
        %v4658 = vsub.s32 %v4654, %v4657
        %vm4659 = vcmp.lt.s32.totalorder %v4658, 0
        %v4660 = vsub.s32 0, %v4658
        %v4661 = vsel %vm4659, %v4660, %v4658
        %v4662 = vclz %v4661
        %v4663 = vsub.s32 %v4662, 2
        %vm4664 = vcmp.gt.s32.totalorder 0, %v4663
        %v4665 = vsel %vm4664, 0, %v4663
        %v4666 = vsub.s32 32, %v4665
        %v4667 = vshll.u32 %v4658, %v4665
        %v4668 = vshrl.u32 %v4650, %v4666
        %v4669 = vor.u32 %v4667, %v4668
        %v4670 = vsub.s32 4294967266, %v4665
        %v4671 = vadd.s32 %v4670, 127
        %v4672 = vshll.u32 %v4671, 23
        %v4673 = vor.u32 4788187, %v4672
        %v4674 = vand.u32 2147483647, %v4673
        %v4676 = vcvt.s32.f32 %v4669
        %v4677 = vmul.f32 %v4676, %v4674
        %v4678 = vxor.u32 %v4677, 2147483648
        %v4679 = vsel %vm4596, %v4678, %v4677
        %v4680 = vsub.s32 4, %v4656
        %v4681 = vsel %vm4596, %v4680, %v4656
        %v4682 = vsel %vm4595, %v4483, %v4679
        %v4683 = vsel %vm4595, 0, %v4681
        %v4684 = vcosq.f32.pop %v4682
        %v4685 = vsinq.f32.pop %v4682
        %vm4686 = vweird.f32 %v4483
        %v4687 = vadd.s32 %v4683, 3
        %v4688 = vand.u32 %v4687, 3
        %vm4689 = vcmp.lt.s32.totalorder %v4688, 2
        %vm4690 = vcmp.eq.s32.totalorder %v4688, 0
        %v4691 = vxor.u32 %v4685, 2147483648
        %v4692 = vsel %vm4690, %v4684, %v4691
        %vm4693 = vcmp.eq.s32.totalorder %v4688, 2
        %v4694 = vxor.u32 %v4684, 2147483648
        %v4695 = vsel %vm4693, %v4694, %v4685
        %v4696 = vsel %vm4689, %v4692, %v4695
        %v4697 = vsel %vm4686, nan, %v4696
        %v4698 = vand.u32 2147483647, %v4485
        %vm4699 = vcmp.le.f32.partialorder %v4698, 0.7853982
        %vm4700 = vcmp.lt.s32.totalorder %v4485, 0
        %v4701 = vand.u32 %v4485, 2139095040
        %v4702 = vshrl.u32 %v4701, 23
        %v4703 = vsub.s32 %v4702, 127
        %v4704 = vand.u32 2147483647, %v4485
        %v4705 = vand.u32 %v4704, 8388607
        %v4706 = vor.u32 %v4705, 8388608
        %v4707 = vsub.s32 0, %v4706
        %v4708 = vadd.s32 %v4703, 1
        %vm4709 = vcmp.gt.s32.totalorder %v4708, 0
        %v4710 = vsel %vm4709, %v4708, 0
        %v4711 = vshrl.u32 %v4710, 5
        %v4712 = vand.u32 %v4710, 31
        %v4713 = vsub.s32 32, %v4712
        %v4714 = vshrl.u32 683565275, %v4713
        %v4715 = vshll.u32 683565275, %v4712
        %v4716 = vshrl.u32 2475754826, %v4713
        %v4717 = vor.u32 %v4715, %v4716
        %v4718 = vshll.u32 2475754826, %v4712
        %v4719 = vshrl.u32 2131351028, %v4713
        %v4720 = vor.u32 %v4718, %v4719
        %v4721 = vshll.u32 2131351028, %v4712
        %v4722 = vshrl.u32 2102212464, %v4713
        %v4723 = vor.u32 %v4721, %v4722
        %v4724 = vshll.u32 2102212464, %v4712
        %v4725 = vshrl.u32 920167782, %v4713
        %v4726 = vor.u32 %v4724, %v4725
        %v4727 = vshll.u32 920167782, %v4712
        %v4728 = vshrl.u32 1326507024, %v4713
        %v4729 = vor.u32 %v4727, %v4728
        %vm4730 = vcmp.lt.s32.totalorder %v4711, 1
        %vm4731 = vcmp.lt.s32.totalorder %v4711, 2
        %vm4732 = vcmp.lt.s32.totalorder %v4711, 3
        %vm4733 = vcmp.lt.s32.totalorder %v4711, 4
        %v4734 = vsel %vm4730, %v4714, %v4717
        %v4735 = vsel %vm4733, %v4723, 2102212464
        %v4736 = vsel %vm4732, %v4720, %v4735
        %v4737 = vsel %vm4731, %v4734, %v4736
        %v4738 = vsel %vm4730, %v4717, %v4720
        %v4739 = vsel %vm4733, %v4726, 920167782
        %v4740 = vsel %vm4732, %v4723, %v4739
        %v4741 = vsel %vm4731, %v4738, %v4740
        %v4742 = vsel %vm4730, %v4720, %v4723
        %v4743 = vsel %vm4733, %v4729, 1326507024
        %v4744 = vsel %vm4732, %v4726, %v4743
        %v4745 = vsel %vm4731, %v4742, %v4744
        %v4746 = vshll.u32 %v4706, 8
        %v4747 = vmul.u32.u64.compose %v4746, %v4745
        %v4748 = vextract.low.u32 %v4747
        %v4749 = vextract.high.u32 %v4747
        %v4750 = vmul.u32.u64.compose %v4746, %v4741
        %v4751 = vextract.low.u32 %v4750
        %v4752 = vextract.high.u32 %v4750
        %v4753 = vmul.u32 %v4746, %v4737
        %v4754 = vadd.s32 %v4749, %v4751
        %vm4755 = vc.u32 %v4749, %v4751
        %v4756 = vadd.s32 %v4752, 1
        %v4757 = vsel %vm4755, %v4756, %v4752
        %v4758 = vadd.s32 %v4753, %v4757
        %v4759 = vadd.s32 %v4758, 536870912
        %v4760 = vshrl.u32 %v4759, 30
        %v4761 = vshll.u32 %v4760, 30
        %v4762 = vsub.s32 %v4758, %v4761
        %vm4763 = vcmp.lt.s32.totalorder %v4762, 0
        %v4764 = vsub.s32 0, %v4762
        %v4765 = vsel %vm4763, %v4764, %v4762
        %v4766 = vclz %v4765
        %v4767 = vsub.s32 %v4766, 2
        %vm4768 = vcmp.gt.s32.totalorder 0, %v4767
        %v4769 = vsel %vm4768, 0, %v4767
        %v4770 = vsub.s32 32, %v4769
        %v4771 = vshll.u32 %v4762, %v4769
        %v4772 = vshrl.u32 %v4754, %v4770
        %v4773 = vor.u32 %v4771, %v4772
        %v4774 = vsub.s32 4294967266, %v4769
        %v4775 = vadd.s32 %v4774, 127
        %v4776 = vshll.u32 %v4775, 23
        %v4777 = vor.u32 4788187, %v4776
        %v4778 = vand.u32 2147483647, %v4777
        %v4780 = vcvt.s32.f32 %v4773
        %v4781 = vmul.f32 %v4780, %v4778
        %v4782 = vxor.u32 %v4781, 2147483648
        %v4783 = vsel %vm4700, %v4782, %v4781
        %v4784 = vsub.s32 4, %v4760
        %v4785 = vsel %vm4700, %v4784, %v4760
        %v4786 = vsel %vm4699, %v4485, %v4783
        %v4787 = vsel %vm4699, 0, %v4785
        %v4788 = vcosq.f32.pop %v4786
        %v4789 = vsinq.f32.pop %v4786
        %vm4790 = vweird.f32 %v4485
        %v4791 = vadd.s32 %v4787, 3
        %v4792 = vand.u32 %v4791, 3
        %vm4793 = vcmp.lt.s32.totalorder %v4792, 2
        %vm4794 = vcmp.eq.s32.totalorder %v4792, 0
        %v4795 = vxor.u32 %v4789, 2147483648
        %v4796 = vsel %vm4794, %v4788, %v4795
        %vm4797 = vcmp.eq.s32.totalorder %v4792, 2
        %v4798 = vxor.u32 %v4788, 2147483648
        %v4799 = vsel %vm4797, %v4798, %v4789
        %v4800 = vsel %vm4793, %v4796, %v4799
        %v4801 = vsel %vm4790, nan, %v4800
        %v4802 = vand.u32 2147483647, %v4572
        %vm4803 = vcmp.le.f32.partialorder %v4802, 0.7853982
        %vm4804 = vcmp.lt.s32.totalorder %v4572, 0
        %v4805 = vand.u32 %v4572, 2139095040
        %v4806 = vshrl.u32 %v4805, 23
        %v4807 = vsub.s32 %v4806, 127
        %v4808 = vand.u32 2147483647, %v4572
        %v4809 = vand.u32 %v4808, 8388607
        %v4810 = vor.u32 %v4809, 8388608
        %v4811 = vsub.s32 0, %v4810
        %v4812 = vadd.s32 %v4807, 1
        %vm4813 = vcmp.gt.s32.totalorder %v4812, 0
        %v4814 = vsel %vm4813, %v4812, 0
        %v4815 = vshrl.u32 %v4814, 5
        %v4816 = vand.u32 %v4814, 31
        %v4817 = vsub.s32 32, %v4816
        %v4818 = vshrl.u32 683565275, %v4817
        %v4819 = vshll.u32 683565275, %v4816
        %v4820 = vshrl.u32 2475754826, %v4817
        %v4821 = vor.u32 %v4819, %v4820
        %v4822 = vshll.u32 2475754826, %v4816
        %v4823 = vshrl.u32 2131351028, %v4817
        %v4824 = vor.u32 %v4822, %v4823
        %v4825 = vshll.u32 2131351028, %v4816
        %v4826 = vshrl.u32 2102212464, %v4817
        %v4827 = vor.u32 %v4825, %v4826
        %v4828 = vshll.u32 2102212464, %v4816
        %v4829 = vshrl.u32 920167782, %v4817
        %v4830 = vor.u32 %v4828, %v4829
        %v4831 = vshll.u32 920167782, %v4816
        %v4832 = vshrl.u32 1326507024, %v4817
        %v4833 = vor.u32 %v4831, %v4832
        %vm4834 = vcmp.lt.s32.totalorder %v4815, 1
        %vm4835 = vcmp.lt.s32.totalorder %v4815, 2
        %vm4836 = vcmp.lt.s32.totalorder %v4815, 3
        %vm4837 = vcmp.lt.s32.totalorder %v4815, 4
        %v4838 = vsel %vm4834, %v4818, %v4821
        %v4839 = vsel %vm4837, %v4827, 2102212464
        %v4840 = vsel %vm4836, %v4824, %v4839
        %v4841 = vsel %vm4835, %v4838, %v4840
        %v4842 = vsel %vm4834, %v4821, %v4824
        %v4843 = vsel %vm4837, %v4830, 920167782
        %v4844 = vsel %vm4836, %v4827, %v4843
        %v4845 = vsel %vm4835, %v4842, %v4844
        %v4846 = vsel %vm4834, %v4824, %v4827
        %v4847 = vsel %vm4837, %v4833, 1326507024
        %v4848 = vsel %vm4836, %v4830, %v4847
        %v4849 = vsel %vm4835, %v4846, %v4848
        %v4850 = vshll.u32 %v4810, 8
        %v4851 = vmul.u32.u64.compose %v4850, %v4849
        %v4852 = vextract.low.u32 %v4851
        %v4853 = vextract.high.u32 %v4851
        %v4854 = vmul.u32.u64.compose %v4850, %v4845
        %v4855 = vextract.low.u32 %v4854
        %v4856 = vextract.high.u32 %v4854
        %v4857 = vmul.u32 %v4850, %v4841
        %v4858 = vadd.s32 %v4853, %v4855
        %vm4859 = vc.u32 %v4853, %v4855
        %v4860 = vadd.s32 %v4856, 1
        %v4861 = vsel %vm4859, %v4860, %v4856
        %v4862 = vadd.s32 %v4857, %v4861
        %v4863 = vadd.s32 %v4862, 536870912
        %v4864 = vshrl.u32 %v4863, 30
        %v4865 = vshll.u32 %v4864, 30
        %v4866 = vsub.s32 %v4862, %v4865
        %vm4867 = vcmp.lt.s32.totalorder %v4866, 0
        %v4868 = vsub.s32 0, %v4866
        %v4869 = vsel %vm4867, %v4868, %v4866
        %v4870 = vclz %v4869
        %v4871 = vsub.s32 %v4870, 2
        %vm4872 = vcmp.gt.s32.totalorder 0, %v4871
        %v4873 = vsel %vm4872, 0, %v4871
        %v4874 = vsub.s32 32, %v4873
        %v4875 = vshll.u32 %v4866, %v4873
        %v4876 = vshrl.u32 %v4858, %v4874
        %v4877 = vor.u32 %v4875, %v4876
        %v4878 = vsub.s32 4294967266, %v4873
        %v4879 = vadd.s32 %v4878, 127
        %v4880 = vshll.u32 %v4879, 23
        %v4881 = vor.u32 4788187, %v4880
        %v4882 = vand.u32 2147483647, %v4881
        %v4884 = vcvt.s32.f32 %v4877
        %v4885 = vmul.f32 %v4884, %v4882
        %v4886 = vxor.u32 %v4885, 2147483648
        %v4887 = vsel %vm4804, %v4886, %v4885
        %v4888 = vsub.s32 4, %v4864
        %v4889 = vsel %vm4804, %v4888, %v4864
        %v4890 = vsel %vm4803, %v4572, %v4887
        %v4891 = vsel %vm4803, 0, %v4889
        %v4892 = vcosq.f32.pop %v4890
        %v4893 = vsinq.f32.pop %v4890
        %vm4894 = vweird.f32 %v4572
        %v4895 = vadd.s32 %v4891, 3
        %v4896 = vand.u32 %v4895, 3
        %vm4897 = vcmp.lt.s32.totalorder %v4896, 2
        %vm4898 = vcmp.eq.s32.totalorder %v4896, 0
        %v4899 = vxor.u32 %v4893, 2147483648
        %v4900 = vsel %vm4898, %v4892, %v4899
        %vm4901 = vcmp.eq.s32.totalorder %v4896, 2
        %v4902 = vxor.u32 %v4892, 2147483648
        %v4903 = vsel %vm4901, %v4902, %v4893
        %v4904 = vsel %vm4897, %v4900, %v4903
        %v4905 = vsel %vm4894, nan, %v4904
        %v4906 = vand.u32 2147483647, %v4574
        %vm4907 = vcmp.le.f32.partialorder %v4906, 0.7853982
        %vm4908 = vcmp.lt.s32.totalorder %v4574, 0
        %v4909 = vand.u32 %v4574, 2139095040
        %v4910 = vshrl.u32 %v4909, 23
        %v4911 = vsub.s32 %v4910, 127
        %v4912 = vand.u32 2147483647, %v4574
        %v4913 = vand.u32 %v4912, 8388607
        %v4914 = vor.u32 %v4913, 8388608
        %v4915 = vsub.s32 0, %v4914
        %v4916 = vadd.s32 %v4911, 1
        %vm4917 = vcmp.gt.s32.totalorder %v4916, 0
        %v4918 = vsel %vm4917, %v4916, 0
        %v4919 = vshrl.u32 %v4918, 5
        %v4920 = vand.u32 %v4918, 31
        %v4921 = vsub.s32 32, %v4920
        %v4922 = vshrl.u32 683565275, %v4921
        %v4923 = vshll.u32 683565275, %v4920
        %v4924 = vshrl.u32 2475754826, %v4921
        %v4925 = vor.u32 %v4923, %v4924
        %v4926 = vshll.u32 2475754826, %v4920
        %v4927 = vshrl.u32 2131351028, %v4921
        %v4928 = vor.u32 %v4926, %v4927
        %v4929 = vshll.u32 2131351028, %v4920
        %v4930 = vshrl.u32 2102212464, %v4921
        %v4931 = vor.u32 %v4929, %v4930
        %v4932 = vshll.u32 2102212464, %v4920
        %v4933 = vshrl.u32 920167782, %v4921
        %v4934 = vor.u32 %v4932, %v4933
        %v4935 = vshll.u32 920167782, %v4920
        %v4936 = vshrl.u32 1326507024, %v4921
        %v4937 = vor.u32 %v4935, %v4936
        %vm4938 = vcmp.lt.s32.totalorder %v4919, 1
        %vm4939 = vcmp.lt.s32.totalorder %v4919, 2
        %vm4940 = vcmp.lt.s32.totalorder %v4919, 3
        %vm4941 = vcmp.lt.s32.totalorder %v4919, 4
        %v4942 = vsel %vm4938, %v4922, %v4925
        %v4943 = vsel %vm4941, %v4931, 2102212464
        %v4944 = vsel %vm4940, %v4928, %v4943
        %v4945 = vsel %vm4939, %v4942, %v4944
        %v4946 = vsel %vm4938, %v4925, %v4928
        %v4947 = vsel %vm4941, %v4934, 920167782
        %v4948 = vsel %vm4940, %v4931, %v4947
        %v4949 = vsel %vm4939, %v4946, %v4948
        %v4950 = vsel %vm4938, %v4928, %v4931
        %v4951 = vsel %vm4941, %v4937, 1326507024
        %v4952 = vsel %vm4940, %v4934, %v4951
        %v4953 = vsel %vm4939, %v4950, %v4952
        %v4954 = vshll.u32 %v4914, 8
        %v4955 = vmul.u32.u64.compose %v4954, %v4953
        %v4956 = vextract.low.u32 %v4955
        %v4957 = vextract.high.u32 %v4955
        %v4958 = vmul.u32.u64.compose %v4954, %v4949
        %v4959 = vextract.low.u32 %v4958
        %v4960 = vextract.high.u32 %v4958
        %v4961 = vmul.u32 %v4954, %v4945
        %v4962 = vadd.s32 %v4957, %v4959
        %vm4963 = vc.u32 %v4957, %v4959
        %v4964 = vadd.s32 %v4960, 1
        %v4965 = vsel %vm4963, %v4964, %v4960
        %v4966 = vadd.s32 %v4961, %v4965
        %v4967 = vadd.s32 %v4966, 536870912
        %v4968 = vshrl.u32 %v4967, 30
        %v4969 = vshll.u32 %v4968, 30
        %v4970 = vsub.s32 %v4966, %v4969
        %vm4971 = vcmp.lt.s32.totalorder %v4970, 0
        %v4972 = vsub.s32 0, %v4970
        %v4973 = vsel %vm4971, %v4972, %v4970
        %v4974 = vclz %v4973
        %v4975 = vsub.s32 %v4974, 2
        %vm4976 = vcmp.gt.s32.totalorder 0, %v4975
        %v4977 = vsel %vm4976, 0, %v4975
        %v4978 = vsub.s32 32, %v4977
        %v4979 = vshll.u32 %v4970, %v4977
        %v4980 = vshrl.u32 %v4962, %v4978
        %v4981 = vor.u32 %v4979, %v4980
        %v4982 = vsub.s32 4294967266, %v4977
        %v4983 = vadd.s32 %v4982, 127
        %v4984 = vshll.u32 %v4983, 23
        %v4985 = vor.u32 4788187, %v4984
        %v4986 = vand.u32 2147483647, %v4985
        %v4988 = vcvt.s32.f32 %v4981
        %v4989 = vmul.f32 %v4988, %v4986
        %v4990 = vxor.u32 %v4989, 2147483648
        %v4991 = vsel %vm4908, %v4990, %v4989
        %v4992 = vsub.s32 4, %v4968
        %v4993 = vsel %vm4908, %v4992, %v4968
        %v4994 = vsel %vm4907, %v4574, %v4991
        %v4995 = vsel %vm4907, 0, %v4993
        %v4996 = vcosq.f32.pop %v4994
        %v4997 = vsinq.f32.pop %v4994
        %vm4998 = vweird.f32 %v4574
        %v4999 = vadd.s32 %v4995, 3
        %v5000 = vand.u32 %v4999, 3
        %vm5001 = vcmp.lt.s32.totalorder %v5000, 2
        %vm5002 = vcmp.eq.s32.totalorder %v5000, 0
        %v5003 = vxor.u32 %v4997, 2147483648
        %v5004 = vsel %vm5002, %v4996, %v5003
        %vm5005 = vcmp.eq.s32.totalorder %v5000, 2
        %v5006 = vxor.u32 %v4996, 2147483648
        %v5007 = vsel %vm5005, %v5006, %v4997
        %v5008 = vsel %vm5001, %v5004, %v5007
        %v5009 = vsel %vm4998, nan, %v5008
        %v5010 = vand.u32 2147483647, %v4489
        %vm5011 = vcmp.le.f32.partialorder %v5010, 0.7853982
        %vm5012 = vcmp.lt.s32.totalorder %v4489, 0
        %v5013 = vand.u32 %v4489, 2139095040
        %v5014 = vshrl.u32 %v5013, 23
        %v5015 = vsub.s32 %v5014, 127
        %v5016 = vand.u32 2147483647, %v4489
        %v5017 = vand.u32 %v5016, 8388607
        %v5018 = vor.u32 %v5017, 8388608
        %v5019 = vsub.s32 0, %v5018
        %v5020 = vadd.s32 %v5015, 1
        %vm5021 = vcmp.gt.s32.totalorder %v5020, 0
        %v5022 = vsel %vm5021, %v5020, 0
        %v5023 = vshrl.u32 %v5022, 5
        %v5024 = vand.u32 %v5022, 31
        %v5025 = vsub.s32 32, %v5024
        %v5026 = vshrl.u32 683565275, %v5025
        %v5027 = vshll.u32 683565275, %v5024
        %v5028 = vshrl.u32 2475754826, %v5025
        %v5029 = vor.u32 %v5027, %v5028
        %v5030 = vshll.u32 2475754826, %v5024
        %v5031 = vshrl.u32 2131351028, %v5025
        %v5032 = vor.u32 %v5030, %v5031
        %v5033 = vshll.u32 2131351028, %v5024
        %v5034 = vshrl.u32 2102212464, %v5025
        %v5035 = vor.u32 %v5033, %v5034
        %v5036 = vshll.u32 2102212464, %v5024
        %v5037 = vshrl.u32 920167782, %v5025
        %v5038 = vor.u32 %v5036, %v5037
        %v5039 = vshll.u32 920167782, %v5024
        %v5040 = vshrl.u32 1326507024, %v5025
        %v5041 = vor.u32 %v5039, %v5040
        %vm5042 = vcmp.lt.s32.totalorder %v5023, 1
        %vm5043 = vcmp.lt.s32.totalorder %v5023, 2
        %vm5044 = vcmp.lt.s32.totalorder %v5023, 3
        %vm5045 = vcmp.lt.s32.totalorder %v5023, 4
        %v5046 = vsel %vm5042, %v5026, %v5029
        %v5047 = vsel %vm5045, %v5035, 2102212464
        %v5048 = vsel %vm5044, %v5032, %v5047
        %v5049 = vsel %vm5043, %v5046, %v5048
        %v5050 = vsel %vm5042, %v5029, %v5032
        %v5051 = vsel %vm5045, %v5038, 920167782
        %v5052 = vsel %vm5044, %v5035, %v5051
        %v5053 = vsel %vm5043, %v5050, %v5052
        %v5054 = vsel %vm5042, %v5032, %v5035
        %v5055 = vsel %vm5045, %v5041, 1326507024
        %v5056 = vsel %vm5044, %v5038, %v5055
        %v5057 = vsel %vm5043, %v5054, %v5056
        %v5058 = vshll.u32 %v5018, 8
        %v5059 = vmul.u32.u64.compose %v5058, %v5057
        %v5060 = vextract.low.u32 %v5059
        %v5061 = vextract.high.u32 %v5059
        %v5062 = vmul.u32.u64.compose %v5058, %v5053
        %v5063 = vextract.low.u32 %v5062
        %v5064 = vextract.high.u32 %v5062
        %v5065 = vmul.u32 %v5058, %v5049
        %v5066 = vadd.s32 %v5061, %v5063
        %vm5067 = vc.u32 %v5061, %v5063
        %v5068 = vadd.s32 %v5064, 1
        %v5069 = vsel %vm5067, %v5068, %v5064
        %v5070 = vadd.s32 %v5065, %v5069
        %v5071 = vadd.s32 %v5070, 536870912
        %v5072 = vshrl.u32 %v5071, 30
        %v5073 = vshll.u32 %v5072, 30
        %v5074 = vsub.s32 %v5070, %v5073
        %vm5075 = vcmp.lt.s32.totalorder %v5074, 0
        %v5076 = vsub.s32 0, %v5074
        %v5077 = vsel %vm5075, %v5076, %v5074
        %v5078 = vclz %v5077
        %v5079 = vsub.s32 %v5078, 2
        %vm5080 = vcmp.gt.s32.totalorder 0, %v5079
        %v5081 = vsel %vm5080, 0, %v5079
        %v5082 = vsub.s32 32, %v5081
        %v5083 = vshll.u32 %v5074, %v5081
        %v5084 = vshrl.u32 %v5066, %v5082
        %v5085 = vor.u32 %v5083, %v5084
        %v5086 = vsub.s32 4294967266, %v5081
        %v5087 = vadd.s32 %v5086, 127
        %v5088 = vshll.u32 %v5087, 23
        %v5089 = vor.u32 4788187, %v5088
        %v5090 = vand.u32 2147483647, %v5089
        %v5092 = vcvt.s32.f32 %v5085
        %v5093 = vmul.f32 %v5092, %v5090
        %v5094 = vxor.u32 %v5093, 2147483648
        %v5095 = vsel %vm5012, %v5094, %v5093
        %v5096 = vsub.s32 4, %v5072
        %v5097 = vsel %vm5012, %v5096, %v5072
        %v5098 = vsel %vm5011, %v4489, %v5095
        %v5099 = vsel %vm5011, 0, %v5097
        %v5100 = vcosq.f32.pop %v5098
        %v5101 = vsinq.f32.pop %v5098
        %vm5102 = vweird.f32 %v4489
        %v5103 = vadd.s32 %v5099, 3
        %v5104 = vand.u32 %v5103, 3
        %vm5105 = vcmp.lt.s32.totalorder %v5104, 2
        %vm5106 = vcmp.eq.s32.totalorder %v5104, 0
        %v5107 = vxor.u32 %v5101, 2147483648
        %v5108 = vsel %vm5106, %v5100, %v5107
        %vm5109 = vcmp.eq.s32.totalorder %v5104, 2
        %v5110 = vxor.u32 %v5100, 2147483648
        %v5111 = vsel %vm5109, %v5110, %v5101
        %v5112 = vsel %vm5105, %v5108, %v5111
        %v5113 = vsel %vm5102, nan, %v5112
        %v5114 = vand.u32 2147483647, %v4491
        %vm5115 = vcmp.le.f32.partialorder %v5114, 0.7853982
        %vm5116 = vcmp.lt.s32.totalorder %v4491, 0
        %v5117 = vand.u32 %v4491, 2139095040
        %v5118 = vshrl.u32 %v5117, 23
        %v5119 = vsub.s32 %v5118, 127
        %v5120 = vand.u32 2147483647, %v4491
        %v5121 = vand.u32 %v5120, 8388607
        %v5122 = vor.u32 %v5121, 8388608
        %v5123 = vsub.s32 0, %v5122
        %v5124 = vadd.s32 %v5119, 1
        %vm5125 = vcmp.gt.s32.totalorder %v5124, 0
        %v5126 = vsel %vm5125, %v5124, 0
        %v5127 = vshrl.u32 %v5126, 5
        %v5128 = vand.u32 %v5126, 31
        %v5129 = vsub.s32 32, %v5128
        %v5130 = vshrl.u32 683565275, %v5129
        %v5131 = vshll.u32 683565275, %v5128
        %v5132 = vshrl.u32 2475754826, %v5129
        %v5133 = vor.u32 %v5131, %v5132
        %v5134 = vshll.u32 2475754826, %v5128
        %v5135 = vshrl.u32 2131351028, %v5129
        %v5136 = vor.u32 %v5134, %v5135
        %v5137 = vshll.u32 2131351028, %v5128
        %v5138 = vshrl.u32 2102212464, %v5129
        %v5139 = vor.u32 %v5137, %v5138
        %v5140 = vshll.u32 2102212464, %v5128
        %v5141 = vshrl.u32 920167782, %v5129
        %v5142 = vor.u32 %v5140, %v5141
        %v5143 = vshll.u32 920167782, %v5128
        %v5144 = vshrl.u32 1326507024, %v5129
        %v5145 = vor.u32 %v5143, %v5144
        %vm5146 = vcmp.lt.s32.totalorder %v5127, 1
        %vm5147 = vcmp.lt.s32.totalorder %v5127, 2
        %vm5148 = vcmp.lt.s32.totalorder %v5127, 3
        %vm5149 = vcmp.lt.s32.totalorder %v5127, 4
        %v5150 = vsel %vm5146, %v5130, %v5133
        %v5151 = vsel %vm5149, %v5139, 2102212464
        %v5152 = vsel %vm5148, %v5136, %v5151
        %v5153 = vsel %vm5147, %v5150, %v5152
        %v5154 = vsel %vm5146, %v5133, %v5136
        %v5155 = vsel %vm5149, %v5142, 920167782
        %v5156 = vsel %vm5148, %v5139, %v5155
        %v5157 = vsel %vm5147, %v5154, %v5156
        %v5158 = vsel %vm5146, %v5136, %v5139
        %v5159 = vsel %vm5149, %v5145, 1326507024
        %v5160 = vsel %vm5148, %v5142, %v5159
        %v5161 = vsel %vm5147, %v5158, %v5160
        %v5162 = vshll.u32 %v5122, 8
        %v5163 = vmul.u32.u64.compose %v5162, %v5161
        %v5164 = vextract.low.u32 %v5163
        %v5165 = vextract.high.u32 %v5163
        %v5166 = vmul.u32.u64.compose %v5162, %v5157
        %v5167 = vextract.low.u32 %v5166
        %v5168 = vextract.high.u32 %v5166
        %v5169 = vmul.u32 %v5162, %v5153
        %v5170 = vadd.s32 %v5165, %v5167
        %vm5171 = vc.u32 %v5165, %v5167
        %v5172 = vadd.s32 %v5168, 1
        %v5173 = vsel %vm5171, %v5172, %v5168
        %v5174 = vadd.s32 %v5169, %v5173
        %v5175 = vadd.s32 %v5174, 536870912
        %v5176 = vshrl.u32 %v5175, 30
        %v5177 = vshll.u32 %v5176, 30
        %v5178 = vsub.s32 %v5174, %v5177
        %vm5179 = vcmp.lt.s32.totalorder %v5178, 0
        %v5180 = vsub.s32 0, %v5178
        %v5181 = vsel %vm5179, %v5180, %v5178
        %v5182 = vclz %v5181
        %v5183 = vsub.s32 %v5182, 2
        %vm5184 = vcmp.gt.s32.totalorder 0, %v5183
        %v5185 = vsel %vm5184, 0, %v5183
        %v5186 = vsub.s32 32, %v5185
        %v5187 = vshll.u32 %v5178, %v5185
        %v5188 = vshrl.u32 %v5170, %v5186
        %v5189 = vor.u32 %v5187, %v5188
        %v5190 = vsub.s32 4294967266, %v5185
        %v5191 = vadd.s32 %v5190, 127
        %v5192 = vshll.u32 %v5191, 23
        %v5193 = vor.u32 4788187, %v5192
        %v5194 = vand.u32 2147483647, %v5193
        %v5196 = vcvt.s32.f32 %v5189
        %v5197 = vmul.f32 %v5196, %v5194
        %v5198 = vxor.u32 %v5197, 2147483648
        %v5199 = vsel %vm5116, %v5198, %v5197
        %v5200 = vsub.s32 4, %v5176
        %v5201 = vsel %vm5116, %v5200, %v5176
        %v5202 = vsel %vm5115, %v4491, %v5199
        %v5203 = vsel %vm5115, 0, %v5201
        %v5204 = vcosq.f32.pop %v5202
        %v5205 = vsinq.f32.pop %v5202
        %vm5206 = vweird.f32 %v4491
        %v5207 = vadd.s32 %v5203, 3
        %v5208 = vand.u32 %v5207, 3
        %vm5209 = vcmp.lt.s32.totalorder %v5208, 2
        %vm5210 = vcmp.eq.s32.totalorder %v5208, 0
        %v5211 = vxor.u32 %v5205, 2147483648
        %v5212 = vsel %vm5210, %v5204, %v5211
        %vm5213 = vcmp.eq.s32.totalorder %v5208, 2
        %v5214 = vxor.u32 %v5204, 2147483648
        %v5215 = vsel %vm5213, %v5214, %v5205
        %v5216 = vsel %vm5209, %v5212, %v5215
        %v5217 = vsel %vm5206, nan, %v5216
        %v5218 = vand.u32 2147483647, %v4578
        %vm5219 = vcmp.le.f32.partialorder %v5218, 0.7853982
        %vm5220 = vcmp.lt.s32.totalorder %v4578, 0
        %v5221 = vand.u32 %v4578, 2139095040
        %v5222 = vshrl.u32 %v5221, 23
        %v5223 = vsub.s32 %v5222, 127
        %v5224 = vand.u32 2147483647, %v4578
        %v5225 = vand.u32 %v5224, 8388607
        %v5226 = vor.u32 %v5225, 8388608
        %v5227 = vsub.s32 0, %v5226
        %v5228 = vadd.s32 %v5223, 1
        %vm5229 = vcmp.gt.s32.totalorder %v5228, 0
        %v5230 = vsel %vm5229, %v5228, 0
        %v5231 = vshrl.u32 %v5230, 5
        %v5232 = vand.u32 %v5230, 31
        %v5233 = vsub.s32 32, %v5232
        %v5234 = vshrl.u32 683565275, %v5233
        %v5235 = vshll.u32 683565275, %v5232
        %v5236 = vshrl.u32 2475754826, %v5233
        %v5237 = vor.u32 %v5235, %v5236
        %v5238 = vshll.u32 2475754826, %v5232
        %v5239 = vshrl.u32 2131351028, %v5233
        %v5240 = vor.u32 %v5238, %v5239
        %v5241 = vshll.u32 2131351028, %v5232
        %v5242 = vshrl.u32 2102212464, %v5233
        %v5243 = vor.u32 %v5241, %v5242
        %v5244 = vshll.u32 2102212464, %v5232
        %v5245 = vshrl.u32 920167782, %v5233
        %v5246 = vor.u32 %v5244, %v5245
        %v5247 = vshll.u32 920167782, %v5232
        %v5248 = vshrl.u32 1326507024, %v5233
        %v5249 = vor.u32 %v5247, %v5248
        %vm5250 = vcmp.lt.s32.totalorder %v5231, 1
        %vm5251 = vcmp.lt.s32.totalorder %v5231, 2
        %vm5252 = vcmp.lt.s32.totalorder %v5231, 3
        %vm5253 = vcmp.lt.s32.totalorder %v5231, 4
        %v5254 = vsel %vm5250, %v5234, %v5237
        %v5255 = vsel %vm5253, %v5243, 2102212464
        %v5256 = vsel %vm5252, %v5240, %v5255
        %v5257 = vsel %vm5251, %v5254, %v5256
        %v5258 = vsel %vm5250, %v5237, %v5240
        %v5259 = vsel %vm5253, %v5246, 920167782
        %v5260 = vsel %vm5252, %v5243, %v5259
        %v5261 = vsel %vm5251, %v5258, %v5260
        %v5262 = vsel %vm5250, %v5240, %v5243
        %v5263 = vsel %vm5253, %v5249, 1326507024
        %v5264 = vsel %vm5252, %v5246, %v5263
        %v5265 = vsel %vm5251, %v5262, %v5264
        %v5266 = vshll.u32 %v5226, 8
        %v5267 = vmul.u32.u64.compose %v5266, %v5265
        %v5268 = vextract.low.u32 %v5267
        %v5269 = vextract.high.u32 %v5267
        %v5270 = vmul.u32.u64.compose %v5266, %v5261
        %v5271 = vextract.low.u32 %v5270
        %v5272 = vextract.high.u32 %v5270
        %v5273 = vmul.u32 %v5266, %v5257
        %v5274 = vadd.s32 %v5269, %v5271
        %vm5275 = vc.u32 %v5269, %v5271
        %v5276 = vadd.s32 %v5272, 1
        %v5277 = vsel %vm5275, %v5276, %v5272
        %v5278 = vadd.s32 %v5273, %v5277
        %v5279 = vadd.s32 %v5278, 536870912
        %v5280 = vshrl.u32 %v5279, 30
        %v5281 = vshll.u32 %v5280, 30
        %v5282 = vsub.s32 %v5278, %v5281
        %vm5283 = vcmp.lt.s32.totalorder %v5282, 0
        %v5284 = vsub.s32 0, %v5282
        %v5285 = vsel %vm5283, %v5284, %v5282
        %v5286 = vclz %v5285
        %v5287 = vsub.s32 %v5286, 2
        %vm5288 = vcmp.gt.s32.totalorder 0, %v5287
        %v5289 = vsel %vm5288, 0, %v5287
        %v5290 = vsub.s32 32, %v5289
        %v5291 = vshll.u32 %v5282, %v5289
        %v5292 = vshrl.u32 %v5274, %v5290
        %v5293 = vor.u32 %v5291, %v5292
        %v5294 = vsub.s32 4294967266, %v5289
        %v5295 = vadd.s32 %v5294, 127
        %v5296 = vshll.u32 %v5295, 23
        %v5297 = vor.u32 4788187, %v5296
        %v5298 = vand.u32 2147483647, %v5297
        %v5300 = vcvt.s32.f32 %v5293
        %v5301 = vmul.f32 %v5300, %v5298
        %v5302 = vxor.u32 %v5301, 2147483648
        %v5303 = vsel %vm5220, %v5302, %v5301
        %v5304 = vsub.s32 4, %v5280
        %v5305 = vsel %vm5220, %v5304, %v5280
        %v5306 = vsel %vm5219, %v4578, %v5303
        %v5307 = vsel %vm5219, 0, %v5305
        %v5308 = vcosq.f32.pop %v5306
        %v5309 = vsinq.f32.pop %v5306
        %vm5310 = vweird.f32 %v4578
        %v5311 = vadd.s32 %v5307, 3
        %v5312 = vand.u32 %v5311, 3
        %vm5313 = vcmp.lt.s32.totalorder %v5312, 2
        %vm5314 = vcmp.eq.s32.totalorder %v5312, 0
        %v5315 = vxor.u32 %v5309, 2147483648
        %v5316 = vsel %vm5314, %v5308, %v5315
        %vm5317 = vcmp.eq.s32.totalorder %v5312, 2
        %v5318 = vxor.u32 %v5308, 2147483648
        %v5319 = vsel %vm5317, %v5318, %v5309
        %v5320 = vsel %vm5313, %v5316, %v5319
        %v5321 = vsel %vm5310, nan, %v5320
        %v5322 = vand.u32 2147483647, %v4580
        %vm5323 = vcmp.le.f32.partialorder %v5322, 0.7853982
        %vm5324 = vcmp.lt.s32.totalorder %v4580, 0
        %v5325 = vand.u32 %v4580, 2139095040
        %v5326 = vshrl.u32 %v5325, 23
        %v5327 = vsub.s32 %v5326, 127
        %v5328 = vand.u32 2147483647, %v4580
        %v5329 = vand.u32 %v5328, 8388607
        %v5330 = vor.u32 %v5329, 8388608
        %v5331 = vsub.s32 0, %v5330
        %v5332 = vadd.s32 %v5327, 1
        %vm5333 = vcmp.gt.s32.totalorder %v5332, 0
        %v5334 = vsel %vm5333, %v5332, 0
        %v5335 = vshrl.u32 %v5334, 5
        %v5336 = vand.u32 %v5334, 31
        %v5337 = vsub.s32 32, %v5336
        %v5338 = vshrl.u32 683565275, %v5337
        %v5339 = vshll.u32 683565275, %v5336
        %v5340 = vshrl.u32 2475754826, %v5337
        %v5341 = vor.u32 %v5339, %v5340
        %v5342 = vshll.u32 2475754826, %v5336
        %v5343 = vshrl.u32 2131351028, %v5337
        %v5344 = vor.u32 %v5342, %v5343
        %v5345 = vshll.u32 2131351028, %v5336
        %v5346 = vshrl.u32 2102212464, %v5337
        %v5347 = vor.u32 %v5345, %v5346
        %v5348 = vshll.u32 2102212464, %v5336
        %v5349 = vshrl.u32 920167782, %v5337
        %v5350 = vor.u32 %v5348, %v5349
        %v5351 = vshll.u32 920167782, %v5336
        %v5352 = vshrl.u32 1326507024, %v5337
        %v5353 = vor.u32 %v5351, %v5352
        %vm5354 = vcmp.lt.s32.totalorder %v5335, 1
        %vm5355 = vcmp.lt.s32.totalorder %v5335, 2
        %vm5356 = vcmp.lt.s32.totalorder %v5335, 3
        %vm5357 = vcmp.lt.s32.totalorder %v5335, 4
        %v5358 = vsel %vm5354, %v5338, %v5341
        %v5359 = vsel %vm5357, %v5347, 2102212464
        %v5360 = vsel %vm5356, %v5344, %v5359
        %v5361 = vsel %vm5355, %v5358, %v5360
        %v5362 = vsel %vm5354, %v5341, %v5344
        %v5363 = vsel %vm5357, %v5350, 920167782
        %v5364 = vsel %vm5356, %v5347, %v5363
        %v5365 = vsel %vm5355, %v5362, %v5364
        %v5366 = vsel %vm5354, %v5344, %v5347
        %v5367 = vsel %vm5357, %v5353, 1326507024
        %v5368 = vsel %vm5356, %v5350, %v5367
        %v5369 = vsel %vm5355, %v5366, %v5368
        %v5370 = vshll.u32 %v5330, 8
        %v5371 = vmul.u32.u64.compose %v5370, %v5369
        %v5372 = vextract.low.u32 %v5371
        %v5373 = vextract.high.u32 %v5371
        %v5374 = vmul.u32.u64.compose %v5370, %v5365
        %v5375 = vextract.low.u32 %v5374
        %v5376 = vextract.high.u32 %v5374
        %v5377 = vmul.u32 %v5370, %v5361
        %v5378 = vadd.s32 %v5373, %v5375
        %vm5379 = vc.u32 %v5373, %v5375
        %v5380 = vadd.s32 %v5376, 1
        %v5381 = vsel %vm5379, %v5380, %v5376
        %v5382 = vadd.s32 %v5377, %v5381
        %v5383 = vadd.s32 %v5382, 536870912
        %v5384 = vshrl.u32 %v5383, 30
        %v5385 = vshll.u32 %v5384, 30
        %v5386 = vsub.s32 %v5382, %v5385
        %vm5387 = vcmp.lt.s32.totalorder %v5386, 0
        %v5388 = vsub.s32 0, %v5386
        %v5389 = vsel %vm5387, %v5388, %v5386
        %v5390 = vclz %v5389
        %v5391 = vsub.s32 %v5390, 2
        %vm5392 = vcmp.gt.s32.totalorder 0, %v5391
        %v5393 = vsel %vm5392, 0, %v5391
        %v5394 = vsub.s32 32, %v5393
        %v5395 = vshll.u32 %v5386, %v5393
        %v5396 = vshrl.u32 %v5378, %v5394
        %v5397 = vor.u32 %v5395, %v5396
        %v5398 = vsub.s32 4294967266, %v5393
        %v5399 = vadd.s32 %v5398, 127
        %v5400 = vshll.u32 %v5399, 23
        %v5401 = vor.u32 4788187, %v5400
        %v5402 = vand.u32 2147483647, %v5401
        %v5404 = vcvt.s32.f32 %v5397
        %v5405 = vmul.f32 %v5404, %v5402
        %v5406 = vxor.u32 %v5405, 2147483648
        %v5407 = vsel %vm5324, %v5406, %v5405
        %v5408 = vsub.s32 4, %v5384
        %v5409 = vsel %vm5324, %v5408, %v5384
        %v5410 = vsel %vm5323, %v4580, %v5407
        %v5411 = vsel %vm5323, 0, %v5409
        %v5412 = vcosq.f32.pop %v5410
        %v5413 = vsinq.f32.pop %v5410
        %vm5414 = vweird.f32 %v4580
        %v5415 = vadd.s32 %v5411, 3
        %v5416 = vand.u32 %v5415, 3
        %vm5417 = vcmp.lt.s32.totalorder %v5416, 2
        %vm5418 = vcmp.eq.s32.totalorder %v5416, 0
        %v5419 = vxor.u32 %v5413, 2147483648
        %v5420 = vsel %vm5418, %v5412, %v5419
        %vm5421 = vcmp.eq.s32.totalorder %v5416, 2
        %v5422 = vxor.u32 %v5412, 2147483648
        %v5423 = vsel %vm5421, %v5422, %v5413
        %v5424 = vsel %vm5417, %v5420, %v5423
        %v5425 = vsel %vm5414, nan, %v5424
        %v5426 = vand.u32 2147483647, %v4495
        %vm5427 = vcmp.le.f32.partialorder %v5426, 0.7853982
        %vm5428 = vcmp.lt.s32.totalorder %v4495, 0
        %v5429 = vand.u32 %v4495, 2139095040
        %v5430 = vshrl.u32 %v5429, 23
        %v5431 = vsub.s32 %v5430, 127
        %v5432 = vand.u32 2147483647, %v4495
        %v5433 = vand.u32 %v5432, 8388607
        %v5434 = vor.u32 %v5433, 8388608
        %v5435 = vsub.s32 0, %v5434
        %v5436 = vadd.s32 %v5431, 1
        %vm5437 = vcmp.gt.s32.totalorder %v5436, 0
        %v5438 = vsel %vm5437, %v5436, 0
        %v5439 = vshrl.u32 %v5438, 5
        %v5440 = vand.u32 %v5438, 31
        %v5441 = vsub.s32 32, %v5440
        %v5442 = vshrl.u32 683565275, %v5441
        %v5443 = vshll.u32 683565275, %v5440
        %v5444 = vshrl.u32 2475754826, %v5441
        %v5445 = vor.u32 %v5443, %v5444
        %v5446 = vshll.u32 2475754826, %v5440
        %v5447 = vshrl.u32 2131351028, %v5441
        %v5448 = vor.u32 %v5446, %v5447
        %v5449 = vshll.u32 2131351028, %v5440
        %v5450 = vshrl.u32 2102212464, %v5441
        %v5451 = vor.u32 %v5449, %v5450
        %v5452 = vshll.u32 2102212464, %v5440
        %v5453 = vshrl.u32 920167782, %v5441
        %v5454 = vor.u32 %v5452, %v5453
        %v5455 = vshll.u32 920167782, %v5440
        %v5456 = vshrl.u32 1326507024, %v5441
        %v5457 = vor.u32 %v5455, %v5456
        %vm5458 = vcmp.lt.s32.totalorder %v5439, 1
        %vm5459 = vcmp.lt.s32.totalorder %v5439, 2
        %vm5460 = vcmp.lt.s32.totalorder %v5439, 3
        %vm5461 = vcmp.lt.s32.totalorder %v5439, 4
        %v5462 = vsel %vm5458, %v5442, %v5445
        %v5463 = vsel %vm5461, %v5451, 2102212464
        %v5464 = vsel %vm5460, %v5448, %v5463
        %v5465 = vsel %vm5459, %v5462, %v5464
        %v5466 = vsel %vm5458, %v5445, %v5448
        %v5467 = vsel %vm5461, %v5454, 920167782
        %v5468 = vsel %vm5460, %v5451, %v5467
        %v5469 = vsel %vm5459, %v5466, %v5468
        %v5470 = vsel %vm5458, %v5448, %v5451
        %v5471 = vsel %vm5461, %v5457, 1326507024
        %v5472 = vsel %vm5460, %v5454, %v5471
        %v5473 = vsel %vm5459, %v5470, %v5472
        %v5474 = vshll.u32 %v5434, 8
        %v5475 = vmul.u32.u64.compose %v5474, %v5473
        %v5476 = vextract.low.u32 %v5475
        %v5477 = vextract.high.u32 %v5475
        %v5478 = vmul.u32.u64.compose %v5474, %v5469
        %v5479 = vextract.low.u32 %v5478
        %v5480 = vextract.high.u32 %v5478
        %v5481 = vmul.u32 %v5474, %v5465
        %v5482 = vadd.s32 %v5477, %v5479
        %vm5483 = vc.u32 %v5477, %v5479
        %v5484 = vadd.s32 %v5480, 1
        %v5485 = vsel %vm5483, %v5484, %v5480
        %v5486 = vadd.s32 %v5481, %v5485
        %v5487 = vadd.s32 %v5486, 536870912
        %v5488 = vshrl.u32 %v5487, 30
        %v5489 = vshll.u32 %v5488, 30
        %v5490 = vsub.s32 %v5486, %v5489
        %vm5491 = vcmp.lt.s32.totalorder %v5490, 0
        %v5492 = vsub.s32 0, %v5490
        %v5493 = vsel %vm5491, %v5492, %v5490
        %v5494 = vclz %v5493
        %v5495 = vsub.s32 %v5494, 2
        %vm5496 = vcmp.gt.s32.totalorder 0, %v5495
        %v5497 = vsel %vm5496, 0, %v5495
        %v5498 = vsub.s32 32, %v5497
        %v5499 = vshll.u32 %v5490, %v5497
        %v5500 = vshrl.u32 %v5482, %v5498
        %v5501 = vor.u32 %v5499, %v5500
        %v5502 = vsub.s32 4294967266, %v5497
        %v5503 = vadd.s32 %v5502, 127
        %v5504 = vshll.u32 %v5503, 23
        %v5505 = vor.u32 4788187, %v5504
        %v5506 = vand.u32 2147483647, %v5505
        %v5508 = vcvt.s32.f32 %v5501
        %v5509 = vmul.f32 %v5508, %v5506
        %v5510 = vxor.u32 %v5509, 2147483648
        %v5511 = vsel %vm5428, %v5510, %v5509
        %v5512 = vsub.s32 4, %v5488
        %v5513 = vsel %vm5428, %v5512, %v5488
        %v5514 = vsel %vm5427, %v4495, %v5511
        %v5515 = vsel %vm5427, 0, %v5513
        %v5516 = vcosq.f32.pop %v5514
        %v5517 = vsinq.f32.pop %v5514
        %vm5518 = vweird.f32 %v4495
        %v5519 = vadd.s32 %v5515, 3
        %v5520 = vand.u32 %v5519, 3
        %vm5521 = vcmp.lt.s32.totalorder %v5520, 2
        %vm5522 = vcmp.eq.s32.totalorder %v5520, 0
        %v5523 = vxor.u32 %v5517, 2147483648
        %v5524 = vsel %vm5522, %v5516, %v5523
        %vm5525 = vcmp.eq.s32.totalorder %v5520, 2
        %v5526 = vxor.u32 %v5516, 2147483648
        %v5527 = vsel %vm5525, %v5526, %v5517
        %v5528 = vsel %vm5521, %v5524, %v5527
        %v5529 = vsel %vm5518, nan, %v5528
        %v5530 = vand.u32 2147483647, %v4497
        %vm5531 = vcmp.le.f32.partialorder %v5530, 0.7853982
        %vm5532 = vcmp.lt.s32.totalorder %v4497, 0
        %v5533 = vand.u32 %v4497, 2139095040
        %v5534 = vshrl.u32 %v5533, 23
        %v5535 = vsub.s32 %v5534, 127
        %v5536 = vand.u32 2147483647, %v4497
        %v5537 = vand.u32 %v5536, 8388607
        %v5538 = vor.u32 %v5537, 8388608
        %v5539 = vsub.s32 0, %v5538
        %v5540 = vadd.s32 %v5535, 1
        %vm5541 = vcmp.gt.s32.totalorder %v5540, 0
        %v5542 = vsel %vm5541, %v5540, 0
        %v5543 = vshrl.u32 %v5542, 5
        %v5544 = vand.u32 %v5542, 31
        %v5545 = vsub.s32 32, %v5544
        %v5546 = vshrl.u32 683565275, %v5545
        %v5547 = vshll.u32 683565275, %v5544
        %v5548 = vshrl.u32 2475754826, %v5545
        %v5549 = vor.u32 %v5547, %v5548
        %v5550 = vshll.u32 2475754826, %v5544
        %v5551 = vshrl.u32 2131351028, %v5545
        %v5552 = vor.u32 %v5550, %v5551
        %v5553 = vshll.u32 2131351028, %v5544
        %v5554 = vshrl.u32 2102212464, %v5545
        %v5555 = vor.u32 %v5553, %v5554
        %v5556 = vshll.u32 2102212464, %v5544
        %v5557 = vshrl.u32 920167782, %v5545
        %v5558 = vor.u32 %v5556, %v5557
        %v5559 = vshll.u32 920167782, %v5544
        %v5560 = vshrl.u32 1326507024, %v5545
        %v5561 = vor.u32 %v5559, %v5560
        %vm5562 = vcmp.lt.s32.totalorder %v5543, 1
        %vm5563 = vcmp.lt.s32.totalorder %v5543, 2
        %vm5564 = vcmp.lt.s32.totalorder %v5543, 3
        %vm5565 = vcmp.lt.s32.totalorder %v5543, 4
        %v5566 = vsel %vm5562, %v5546, %v5549
        %v5567 = vsel %vm5565, %v5555, 2102212464
        %v5568 = vsel %vm5564, %v5552, %v5567
        %v5569 = vsel %vm5563, %v5566, %v5568
        %v5570 = vsel %vm5562, %v5549, %v5552
        %v5571 = vsel %vm5565, %v5558, 920167782
        %v5572 = vsel %vm5564, %v5555, %v5571
        %v5573 = vsel %vm5563, %v5570, %v5572
        %v5574 = vsel %vm5562, %v5552, %v5555
        %v5575 = vsel %vm5565, %v5561, 1326507024
        %v5576 = vsel %vm5564, %v5558, %v5575
        %v5577 = vsel %vm5563, %v5574, %v5576
        %v5578 = vshll.u32 %v5538, 8
        %v5579 = vmul.u32.u64.compose %v5578, %v5577
        %v5580 = vextract.low.u32 %v5579
        %v5581 = vextract.high.u32 %v5579
        %v5582 = vmul.u32.u64.compose %v5578, %v5573
        %v5583 = vextract.low.u32 %v5582
        %v5584 = vextract.high.u32 %v5582
        %v5585 = vmul.u32 %v5578, %v5569
        %v5586 = vadd.s32 %v5581, %v5583
        %vm5587 = vc.u32 %v5581, %v5583
        %v5588 = vadd.s32 %v5584, 1
        %v5589 = vsel %vm5587, %v5588, %v5584
        %v5590 = vadd.s32 %v5585, %v5589
        %v5591 = vadd.s32 %v5590, 536870912
        %v5592 = vshrl.u32 %v5591, 30
        %v5593 = vshll.u32 %v5592, 30
        %v5594 = vsub.s32 %v5590, %v5593
        %vm5595 = vcmp.lt.s32.totalorder %v5594, 0
        %v5596 = vsub.s32 0, %v5594
        %v5597 = vsel %vm5595, %v5596, %v5594
        %v5598 = vclz %v5597
        %v5599 = vsub.s32 %v5598, 2
        %vm5600 = vcmp.gt.s32.totalorder 0, %v5599
        %v5601 = vsel %vm5600, 0, %v5599
        %v5602 = vsub.s32 32, %v5601
        %v5603 = vshll.u32 %v5594, %v5601
        %v5604 = vshrl.u32 %v5586, %v5602
        %v5605 = vor.u32 %v5603, %v5604
        %v5606 = vsub.s32 4294967266, %v5601
        %v5607 = vadd.s32 %v5606, 127
        %v5608 = vshll.u32 %v5607, 23
        %v5609 = vor.u32 4788187, %v5608
        %v5610 = vand.u32 2147483647, %v5609
        %v5612 = vcvt.s32.f32 %v5605
        %v5613 = vmul.f32 %v5612, %v5610
        %v5614 = vxor.u32 %v5613, 2147483648
        %v5615 = vsel %vm5532, %v5614, %v5613
        %v5616 = vsub.s32 4, %v5592
        %v5617 = vsel %vm5532, %v5616, %v5592
        %v5618 = vsel %vm5531, %v4497, %v5615
        %v5619 = vsel %vm5531, 0, %v5617
        %v5620 = vcosq.f32.pop %v5618
        %v5621 = vsinq.f32.pop %v5618
        %vm5622 = vweird.f32 %v4497
        %v5623 = vadd.s32 %v5619, 3
        %v5624 = vand.u32 %v5623, 3
        %vm5625 = vcmp.lt.s32.totalorder %v5624, 2
        %vm5626 = vcmp.eq.s32.totalorder %v5624, 0
        %v5627 = vxor.u32 %v5621, 2147483648
        %v5628 = vsel %vm5626, %v5620, %v5627
        %vm5629 = vcmp.eq.s32.totalorder %v5624, 2
        %v5630 = vxor.u32 %v5620, 2147483648
        %v5631 = vsel %vm5629, %v5630, %v5621
        %v5632 = vsel %vm5625, %v5628, %v5631
        %v5633 = vsel %vm5622, nan, %v5632
        %v5634 = vand.u32 2147483647, %v4584
        %vm5635 = vcmp.le.f32.partialorder %v5634, 0.7853982
        %vm5636 = vcmp.lt.s32.totalorder %v4584, 0
        %v5637 = vand.u32 %v4584, 2139095040
        %v5638 = vshrl.u32 %v5637, 23
        %v5639 = vsub.s32 %v5638, 127
        %v5640 = vand.u32 2147483647, %v4584
        %v5641 = vand.u32 %v5640, 8388607
        %v5642 = vor.u32 %v5641, 8388608
        %v5643 = vsub.s32 0, %v5642
        %v5644 = vadd.s32 %v5639, 1
        %vm5645 = vcmp.gt.s32.totalorder %v5644, 0
        %v5646 = vsel %vm5645, %v5644, 0
        %v5647 = vshrl.u32 %v5646, 5
        %v5648 = vand.u32 %v5646, 31
        %v5649 = vsub.s32 32, %v5648
        %v5650 = vshrl.u32 683565275, %v5649
        %v5651 = vshll.u32 683565275, %v5648
        %v5652 = vshrl.u32 2475754826, %v5649
        %v5653 = vor.u32 %v5651, %v5652
        %v5654 = vshll.u32 2475754826, %v5648
        %v5655 = vshrl.u32 2131351028, %v5649
        %v5656 = vor.u32 %v5654, %v5655
        %v5657 = vshll.u32 2131351028, %v5648
        %v5658 = vshrl.u32 2102212464, %v5649
        %v5659 = vor.u32 %v5657, %v5658
        %v5660 = vshll.u32 2102212464, %v5648
        %v5661 = vshrl.u32 920167782, %v5649
        %v5662 = vor.u32 %v5660, %v5661
        %v5663 = vshll.u32 920167782, %v5648
        %v5664 = vshrl.u32 1326507024, %v5649
        %v5665 = vor.u32 %v5663, %v5664
        %vm5666 = vcmp.lt.s32.totalorder %v5647, 1
        %vm5667 = vcmp.lt.s32.totalorder %v5647, 2
        %vm5668 = vcmp.lt.s32.totalorder %v5647, 3
        %vm5669 = vcmp.lt.s32.totalorder %v5647, 4
        %v5670 = vsel %vm5666, %v5650, %v5653
        %v5671 = vsel %vm5669, %v5659, 2102212464
        %v5672 = vsel %vm5668, %v5656, %v5671
        %v5673 = vsel %vm5667, %v5670, %v5672
        %v5674 = vsel %vm5666, %v5653, %v5656
        %v5675 = vsel %vm5669, %v5662, 920167782
        %v5676 = vsel %vm5668, %v5659, %v5675
        %v5677 = vsel %vm5667, %v5674, %v5676
        %v5678 = vsel %vm5666, %v5656, %v5659
        %v5679 = vsel %vm5669, %v5665, 1326507024
        %v5680 = vsel %vm5668, %v5662, %v5679
        %v5681 = vsel %vm5667, %v5678, %v5680
        %v5682 = vshll.u32 %v5642, 8
        %v5683 = vmul.u32.u64.compose %v5682, %v5681
        %v5684 = vextract.low.u32 %v5683
        %v5685 = vextract.high.u32 %v5683
        %v5686 = vmul.u32.u64.compose %v5682, %v5677
        %v5687 = vextract.low.u32 %v5686
        %v5688 = vextract.high.u32 %v5686
        %v5689 = vmul.u32 %v5682, %v5673
        %v5690 = vadd.s32 %v5685, %v5687
        %vm5691 = vc.u32 %v5685, %v5687
        %v5692 = vadd.s32 %v5688, 1
        %v5693 = vsel %vm5691, %v5692, %v5688
        %v5694 = vadd.s32 %v5689, %v5693
        %v5695 = vadd.s32 %v5694, 536870912
        %v5696 = vshrl.u32 %v5695, 30
        %v5697 = vshll.u32 %v5696, 30
        %v5698 = vsub.s32 %v5694, %v5697
        %vm5699 = vcmp.lt.s32.totalorder %v5698, 0
        %v5700 = vsub.s32 0, %v5698
        %v5701 = vsel %vm5699, %v5700, %v5698
        %v5702 = vclz %v5701
        %v5703 = vsub.s32 %v5702, 2
        %vm5704 = vcmp.gt.s32.totalorder 0, %v5703
        %v5705 = vsel %vm5704, 0, %v5703
        %v5706 = vsub.s32 32, %v5705
        %v5707 = vshll.u32 %v5698, %v5705
        %v5708 = vshrl.u32 %v5690, %v5706
        %v5709 = vor.u32 %v5707, %v5708
        %v5710 = vsub.s32 4294967266, %v5705
        %v5711 = vadd.s32 %v5710, 127
        %v5712 = vshll.u32 %v5711, 23
        %v5713 = vor.u32 4788187, %v5712
        %v5714 = vand.u32 2147483647, %v5713
        %v5716 = vcvt.s32.f32 %v5709
        %v5717 = vmul.f32 %v5716, %v5714
        %v5718 = vxor.u32 %v5717, 2147483648
        %v5719 = vsel %vm5636, %v5718, %v5717
        %v5720 = vsub.s32 4, %v5696
        %v5721 = vsel %vm5636, %v5720, %v5696
        %v5722 = vsel %vm5635, %v4584, %v5719
        %v5723 = vsel %vm5635, 0, %v5721
        %v5724 = vcosq.f32.pop %v5722
        %v5725 = vsinq.f32.pop %v5722
        %vm5726 = vweird.f32 %v4584
        %v5727 = vadd.s32 %v5723, 3
        %v5728 = vand.u32 %v5727, 3
        %vm5729 = vcmp.lt.s32.totalorder %v5728, 2
        %vm5730 = vcmp.eq.s32.totalorder %v5728, 0
        %v5731 = vxor.u32 %v5725, 2147483648
        %v5732 = vsel %vm5730, %v5724, %v5731
        %vm5733 = vcmp.eq.s32.totalorder %v5728, 2
        %v5734 = vxor.u32 %v5724, 2147483648
        %v5735 = vsel %vm5733, %v5734, %v5725
        %v5736 = vsel %vm5729, %v5732, %v5735
        %v5737 = vsel %vm5726, nan, %v5736
        %v5738 = vand.u32 2147483647, %v4586
        %vm5739 = vcmp.le.f32.partialorder %v5738, 0.7853982
        %vm5740 = vcmp.lt.s32.totalorder %v4586, 0
        %v5741 = vand.u32 %v4586, 2139095040
        %v5742 = vshrl.u32 %v5741, 23
        %v5743 = vsub.s32 %v5742, 127
        %v5744 = vand.u32 2147483647, %v4586
        %v5745 = vand.u32 %v5744, 8388607
        %v5746 = vor.u32 %v5745, 8388608
        %v5747 = vsub.s32 0, %v5746
        %v5748 = vadd.s32 %v5743, 1
        %vm5749 = vcmp.gt.s32.totalorder %v5748, 0
        %v5750 = vsel %vm5749, %v5748, 0
        %v5751 = vshrl.u32 %v5750, 5
        %v5752 = vand.u32 %v5750, 31
        %v5753 = vsub.s32 32, %v5752
        %v5754 = vshrl.u32 683565275, %v5753
        %v5755 = vshll.u32 683565275, %v5752
        %v5756 = vshrl.u32 2475754826, %v5753
        %v5757 = vor.u32 %v5755, %v5756
        %v5758 = vshll.u32 2475754826, %v5752
        %v5759 = vshrl.u32 2131351028, %v5753
        %v5760 = vor.u32 %v5758, %v5759
        %v5761 = vshll.u32 2131351028, %v5752
        %v5762 = vshrl.u32 2102212464, %v5753
        %v5763 = vor.u32 %v5761, %v5762
        %v5764 = vshll.u32 2102212464, %v5752
        %v5765 = vshrl.u32 920167782, %v5753
        %v5766 = vor.u32 %v5764, %v5765
        %v5767 = vshll.u32 920167782, %v5752
        %v5768 = vshrl.u32 1326507024, %v5753
        %v5769 = vor.u32 %v5767, %v5768
        %vm5770 = vcmp.lt.s32.totalorder %v5751, 1
        %vm5771 = vcmp.lt.s32.totalorder %v5751, 2
        %vm5772 = vcmp.lt.s32.totalorder %v5751, 3
        %vm5773 = vcmp.lt.s32.totalorder %v5751, 4
        %v5774 = vsel %vm5770, %v5754, %v5757
        %v5775 = vsel %vm5773, %v5763, 2102212464
        %v5776 = vsel %vm5772, %v5760, %v5775
        %v5777 = vsel %vm5771, %v5774, %v5776
        %v5778 = vsel %vm5770, %v5757, %v5760
        %v5779 = vsel %vm5773, %v5766, 920167782
        %v5780 = vsel %vm5772, %v5763, %v5779
        %v5781 = vsel %vm5771, %v5778, %v5780
        %v5782 = vsel %vm5770, %v5760, %v5763
        %v5783 = vsel %vm5773, %v5769, 1326507024
        %v5784 = vsel %vm5772, %v5766, %v5783
        %v5785 = vsel %vm5771, %v5782, %v5784
        %v5786 = vshll.u32 %v5746, 8
        %v5787 = vmul.u32.u64.compose %v5786, %v5785
        %v5788 = vextract.low.u32 %v5787
        %v5789 = vextract.high.u32 %v5787
        %v5790 = vmul.u32.u64.compose %v5786, %v5781
        %v5791 = vextract.low.u32 %v5790
        %v5792 = vextract.high.u32 %v5790
        %v5793 = vmul.u32 %v5786, %v5777
        %v5794 = vadd.s32 %v5789, %v5791
        %vm5795 = vc.u32 %v5789, %v5791
        %v5796 = vadd.s32 %v5792, 1
        %v5797 = vsel %vm5795, %v5796, %v5792
        %v5798 = vadd.s32 %v5793, %v5797
        %v5799 = vadd.s32 %v5798, 536870912
        %v5800 = vshrl.u32 %v5799, 30
        %v5801 = vshll.u32 %v5800, 30
        %v5802 = vsub.s32 %v5798, %v5801
        %vm5803 = vcmp.lt.s32.totalorder %v5802, 0
        %v5804 = vsub.s32 0, %v5802
        %v5805 = vsel %vm5803, %v5804, %v5802
        %v5806 = vclz %v5805
        %v5807 = vsub.s32 %v5806, 2
        %vm5808 = vcmp.gt.s32.totalorder 0, %v5807
        %v5809 = vsel %vm5808, 0, %v5807
        %v5810 = vsub.s32 32, %v5809
        %v5811 = vshll.u32 %v5802, %v5809
        %v5812 = vshrl.u32 %v5794, %v5810
        %v5813 = vor.u32 %v5811, %v5812
        %v5814 = vsub.s32 4294967266, %v5809
        %v5815 = vadd.s32 %v5814, 127
        %v5816 = vshll.u32 %v5815, 23
        %v5817 = vor.u32 4788187, %v5816
        %v5818 = vand.u32 2147483647, %v5817
        %v5820 = vcvt.s32.f32 %v5813
        %v5821 = vmul.f32 %v5820, %v5818
        %v5822 = vxor.u32 %v5821, 2147483648
        %v5823 = vsel %vm5740, %v5822, %v5821
        %v5824 = vsub.s32 4, %v5800
        %v5825 = vsel %vm5740, %v5824, %v5800
        %v5826 = vsel %vm5739, %v4586, %v5823
        %v5827 = vsel %vm5739, 0, %v5825
        %v5828 = vcosq.f32.pop %v5826
        %v5829 = vsinq.f32.pop %v5826
        %vm5830 = vweird.f32 %v4586
        %v5831 = vadd.s32 %v5827, 3
        %v5832 = vand.u32 %v5831, 3
        %vm5833 = vcmp.lt.s32.totalorder %v5832, 2
        %vm5834 = vcmp.eq.s32.totalorder %v5832, 0
        %v5835 = vxor.u32 %v5829, 2147483648
        %v5836 = vsel %vm5834, %v5828, %v5835
        %vm5837 = vcmp.eq.s32.totalorder %v5832, 2
        %v5838 = vxor.u32 %v5828, 2147483648
        %v5839 = vsel %vm5837, %v5838, %v5829
        %v5840 = vsel %vm5833, %v5836, %v5839
        %v5841 = vsel %vm5830, nan, %v5840
        %v5842 = vand.u32 2147483647, %v4501
        %vm5843 = vcmp.le.f32.partialorder %v5842, 0.7853982
        %vm5844 = vcmp.lt.s32.totalorder %v4501, 0
        %v5845 = vand.u32 %v4501, 2139095040
        %v5846 = vshrl.u32 %v5845, 23
        %v5847 = vsub.s32 %v5846, 127
        %v5848 = vand.u32 2147483647, %v4501
        %v5849 = vand.u32 %v5848, 8388607
        %v5850 = vor.u32 %v5849, 8388608
        %v5851 = vsub.s32 0, %v5850
        %v5852 = vadd.s32 %v5847, 1
        %vm5853 = vcmp.gt.s32.totalorder %v5852, 0
        %v5854 = vsel %vm5853, %v5852, 0
        %v5855 = vshrl.u32 %v5854, 5
        %v5856 = vand.u32 %v5854, 31
        %v5857 = vsub.s32 32, %v5856
        %v5858 = vshrl.u32 683565275, %v5857
        %v5859 = vshll.u32 683565275, %v5856
        %v5860 = vshrl.u32 2475754826, %v5857
        %v5861 = vor.u32 %v5859, %v5860
        %v5862 = vshll.u32 2475754826, %v5856
        %v5863 = vshrl.u32 2131351028, %v5857
        %v5864 = vor.u32 %v5862, %v5863
        %v5865 = vshll.u32 2131351028, %v5856
        %v5866 = vshrl.u32 2102212464, %v5857
        %v5867 = vor.u32 %v5865, %v5866
        %v5868 = vshll.u32 2102212464, %v5856
        %v5869 = vshrl.u32 920167782, %v5857
        %v5870 = vor.u32 %v5868, %v5869
        %v5871 = vshll.u32 920167782, %v5856
        %v5872 = vshrl.u32 1326507024, %v5857
        %v5873 = vor.u32 %v5871, %v5872
        %vm5874 = vcmp.lt.s32.totalorder %v5855, 1
        %vm5875 = vcmp.lt.s32.totalorder %v5855, 2
        %vm5876 = vcmp.lt.s32.totalorder %v5855, 3
        %vm5877 = vcmp.lt.s32.totalorder %v5855, 4
        %v5878 = vsel %vm5874, %v5858, %v5861
        %v5879 = vsel %vm5877, %v5867, 2102212464
        %v5880 = vsel %vm5876, %v5864, %v5879
        %v5881 = vsel %vm5875, %v5878, %v5880
        %v5882 = vsel %vm5874, %v5861, %v5864
        %v5883 = vsel %vm5877, %v5870, 920167782
        %v5884 = vsel %vm5876, %v5867, %v5883
        %v5885 = vsel %vm5875, %v5882, %v5884
        %v5886 = vsel %vm5874, %v5864, %v5867
        %v5887 = vsel %vm5877, %v5873, 1326507024
        %v5888 = vsel %vm5876, %v5870, %v5887
        %v5889 = vsel %vm5875, %v5886, %v5888
        %v5890 = vshll.u32 %v5850, 8
        %v5891 = vmul.u32.u64.compose %v5890, %v5889
        %v5892 = vextract.low.u32 %v5891
        %v5893 = vextract.high.u32 %v5891
        %v5894 = vmul.u32.u64.compose %v5890, %v5885
        %v5895 = vextract.low.u32 %v5894
        %v5896 = vextract.high.u32 %v5894
        %v5897 = vmul.u32 %v5890, %v5881
        %v5898 = vadd.s32 %v5893, %v5895
        %vm5899 = vc.u32 %v5893, %v5895
        %v5900 = vadd.s32 %v5896, 1
        %v5901 = vsel %vm5899, %v5900, %v5896
        %v5902 = vadd.s32 %v5897, %v5901
        %v5903 = vadd.s32 %v5902, 536870912
        %v5904 = vshrl.u32 %v5903, 30
        %v5905 = vshll.u32 %v5904, 30
        %v5906 = vsub.s32 %v5902, %v5905
        %vm5907 = vcmp.lt.s32.totalorder %v5906, 0
        %v5908 = vsub.s32 0, %v5906
        %v5909 = vsel %vm5907, %v5908, %v5906
        %v5910 = vclz %v5909
        %v5911 = vsub.s32 %v5910, 2
        %vm5912 = vcmp.gt.s32.totalorder 0, %v5911
        %v5913 = vsel %vm5912, 0, %v5911
        %v5914 = vsub.s32 32, %v5913
        %v5915 = vshll.u32 %v5906, %v5913
        %v5916 = vshrl.u32 %v5898, %v5914
        %v5917 = vor.u32 %v5915, %v5916
        %v5918 = vsub.s32 4294967266, %v5913
        %v5919 = vadd.s32 %v5918, 127
        %v5920 = vshll.u32 %v5919, 23
        %v5921 = vor.u32 4788187, %v5920
        %v5922 = vand.u32 2147483647, %v5921
        %v5924 = vcvt.s32.f32 %v5917
        %v5925 = vmul.f32 %v5924, %v5922
        %v5926 = vxor.u32 %v5925, 2147483648
        %v5927 = vsel %vm5844, %v5926, %v5925
        %v5928 = vsub.s32 4, %v5904
        %v5929 = vsel %vm5844, %v5928, %v5904
        %v5930 = vsel %vm5843, %v4501, %v5927
        %v5931 = vsel %vm5843, 0, %v5929
        %v5932 = vcosq.f32.pop %v5930
        %v5933 = vsinq.f32.pop %v5930
        %vm5934 = vweird.f32 %v4501
        %v5935 = vadd.s32 %v5931, 3
        %v5936 = vand.u32 %v5935, 3
        %vm5937 = vcmp.lt.s32.totalorder %v5936, 2
        %vm5938 = vcmp.eq.s32.totalorder %v5936, 0
        %v5939 = vxor.u32 %v5933, 2147483648
        %v5940 = vsel %vm5938, %v5932, %v5939
        %vm5941 = vcmp.eq.s32.totalorder %v5936, 2
        %v5942 = vxor.u32 %v5932, 2147483648
        %v5943 = vsel %vm5941, %v5942, %v5933
        %v5944 = vsel %vm5937, %v5940, %v5943
        %v5945 = vsel %vm5934, nan, %v5944
        %v5946 = vand.u32 2147483647, %v4503
        %vm5947 = vcmp.le.f32.partialorder %v5946, 0.7853982
        %vm5948 = vcmp.lt.s32.totalorder %v4503, 0
        %v5949 = vand.u32 %v4503, 2139095040
        %v5950 = vshrl.u32 %v5949, 23
        %v5951 = vsub.s32 %v5950, 127
        %v5952 = vand.u32 2147483647, %v4503
        %v5953 = vand.u32 %v5952, 8388607
        %v5954 = vor.u32 %v5953, 8388608
        %v5955 = vsub.s32 0, %v5954
        %v5956 = vadd.s32 %v5951, 1
        %vm5957 = vcmp.gt.s32.totalorder %v5956, 0
        %v5958 = vsel %vm5957, %v5956, 0
        %v5959 = vshrl.u32 %v5958, 5
        %v5960 = vand.u32 %v5958, 31
        %v5961 = vsub.s32 32, %v5960
        %v5962 = vshrl.u32 683565275, %v5961
        %v5963 = vshll.u32 683565275, %v5960
        %v5964 = vshrl.u32 2475754826, %v5961
        %v5965 = vor.u32 %v5963, %v5964
        %v5966 = vshll.u32 2475754826, %v5960
        %v5967 = vshrl.u32 2131351028, %v5961
        %v5968 = vor.u32 %v5966, %v5967
        %v5969 = vshll.u32 2131351028, %v5960
        %v5970 = vshrl.u32 2102212464, %v5961
        %v5971 = vor.u32 %v5969, %v5970
        %v5972 = vshll.u32 2102212464, %v5960
        %v5973 = vshrl.u32 920167782, %v5961
        %v5974 = vor.u32 %v5972, %v5973
        %v5975 = vshll.u32 920167782, %v5960
        %v5976 = vshrl.u32 1326507024, %v5961
        %v5977 = vor.u32 %v5975, %v5976
        %vm5978 = vcmp.lt.s32.totalorder %v5959, 1
        %vm5979 = vcmp.lt.s32.totalorder %v5959, 2
        %vm5980 = vcmp.lt.s32.totalorder %v5959, 3
        %vm5981 = vcmp.lt.s32.totalorder %v5959, 4
        %v5982 = vsel %vm5978, %v5962, %v5965
        %v5983 = vsel %vm5981, %v5971, 2102212464
        %v5984 = vsel %vm5980, %v5968, %v5983
        %v5985 = vsel %vm5979, %v5982, %v5984
        %v5986 = vsel %vm5978, %v5965, %v5968
        %v5987 = vsel %vm5981, %v5974, 920167782
        %v5988 = vsel %vm5980, %v5971, %v5987
        %v5989 = vsel %vm5979, %v5986, %v5988
        %v5990 = vsel %vm5978, %v5968, %v5971
        %v5991 = vsel %vm5981, %v5977, 1326507024
        %v5992 = vsel %vm5980, %v5974, %v5991
        %v5993 = vsel %vm5979, %v5990, %v5992
        %v5994 = vshll.u32 %v5954, 8
        %v5995 = vmul.u32.u64.compose %v5994, %v5993
        %v5996 = vextract.low.u32 %v5995
        %v5997 = vextract.high.u32 %v5995
        %v5998 = vmul.u32.u64.compose %v5994, %v5989
        %v5999 = vextract.low.u32 %v5998
        %v6000 = vextract.high.u32 %v5998
        %v6001 = vmul.u32 %v5994, %v5985
        %v6002 = vadd.s32 %v5997, %v5999
        %vm6003 = vc.u32 %v5997, %v5999
        %v6004 = vadd.s32 %v6000, 1
        %v6005 = vsel %vm6003, %v6004, %v6000
        %v6006 = vadd.s32 %v6001, %v6005
        %v6007 = vadd.s32 %v6006, 536870912
        %v6008 = vshrl.u32 %v6007, 30
        %v6009 = vshll.u32 %v6008, 30
        %v6010 = vsub.s32 %v6006, %v6009
        %vm6011 = vcmp.lt.s32.totalorder %v6010, 0
        %v6012 = vsub.s32 0, %v6010
        %v6013 = vsel %vm6011, %v6012, %v6010
        %v6014 = vclz %v6013
        %v6015 = vsub.s32 %v6014, 2
        %vm6016 = vcmp.gt.s32.totalorder 0, %v6015
        %v6017 = vsel %vm6016, 0, %v6015
        %v6018 = vsub.s32 32, %v6017
        %v6019 = vshll.u32 %v6010, %v6017
        %v6020 = vshrl.u32 %v6002, %v6018
        %v6021 = vor.u32 %v6019, %v6020
        %v6022 = vsub.s32 4294967266, %v6017
        %v6023 = vadd.s32 %v6022, 127
        %v6024 = vshll.u32 %v6023, 23
        %v6025 = vor.u32 4788187, %v6024
        %v6026 = vand.u32 2147483647, %v6025
        %v6028 = vcvt.s32.f32 %v6021
        %v6029 = vmul.f32 %v6028, %v6026
        %v6030 = vxor.u32 %v6029, 2147483648
        %v6031 = vsel %vm5948, %v6030, %v6029
        %v6032 = vsub.s32 4, %v6008
        %v6033 = vsel %vm5948, %v6032, %v6008
        %v6034 = vsel %vm5947, %v4503, %v6031
        %v6035 = vsel %vm5947, 0, %v6033
        %v6036 = vcosq.f32.pop %v6034
        %v6037 = vsinq.f32.pop %v6034
        %vm6038 = vweird.f32 %v4503
        %v6039 = vadd.s32 %v6035, 3
        %v6040 = vand.u32 %v6039, 3
        %vm6041 = vcmp.lt.s32.totalorder %v6040, 2
        %vm6042 = vcmp.eq.s32.totalorder %v6040, 0
        %v6043 = vxor.u32 %v6037, 2147483648
        %v6044 = vsel %vm6042, %v6036, %v6043
        %vm6045 = vcmp.eq.s32.totalorder %v6040, 2
        %v6046 = vxor.u32 %v6036, 2147483648
        %v6047 = vsel %vm6045, %v6046, %v6037
        %v6048 = vsel %vm6041, %v6044, %v6047
        %v6049 = vsel %vm6038, nan, %v6048
        %v6050 = vand.u32 2147483647, %v4590
        %vm6051 = vcmp.le.f32.partialorder %v6050, 0.7853982
        %vm6052 = vcmp.lt.s32.totalorder %v4590, 0
        %v6053 = vand.u32 %v4590, 2139095040
        %v6054 = vshrl.u32 %v6053, 23
        %v6055 = vsub.s32 %v6054, 127
        %v6056 = vand.u32 2147483647, %v4590
        %v6057 = vand.u32 %v6056, 8388607
        %v6058 = vor.u32 %v6057, 8388608
        %v6059 = vsub.s32 0, %v6058
        %v6060 = vadd.s32 %v6055, 1
        %vm6061 = vcmp.gt.s32.totalorder %v6060, 0
        %v6062 = vsel %vm6061, %v6060, 0
        %v6063 = vshrl.u32 %v6062, 5
        %v6064 = vand.u32 %v6062, 31
        %v6065 = vsub.s32 32, %v6064
        %v6066 = vshrl.u32 683565275, %v6065
        %v6067 = vshll.u32 683565275, %v6064
        %v6068 = vshrl.u32 2475754826, %v6065
        %v6069 = vor.u32 %v6067, %v6068
        %v6070 = vshll.u32 2475754826, %v6064
        %v6071 = vshrl.u32 2131351028, %v6065
        %v6072 = vor.u32 %v6070, %v6071
        %v6073 = vshll.u32 2131351028, %v6064
        %v6074 = vshrl.u32 2102212464, %v6065
        %v6075 = vor.u32 %v6073, %v6074
        %v6076 = vshll.u32 2102212464, %v6064
        %v6077 = vshrl.u32 920167782, %v6065
        %v6078 = vor.u32 %v6076, %v6077
        %v6079 = vshll.u32 920167782, %v6064
        %v6080 = vshrl.u32 1326507024, %v6065
        %v6081 = vor.u32 %v6079, %v6080
        %vm6082 = vcmp.lt.s32.totalorder %v6063, 1
        %vm6083 = vcmp.lt.s32.totalorder %v6063, 2
        %vm6084 = vcmp.lt.s32.totalorder %v6063, 3
        %vm6085 = vcmp.lt.s32.totalorder %v6063, 4
        %v6086 = vsel %vm6082, %v6066, %v6069
        %v6087 = vsel %vm6085, %v6075, 2102212464
        %v6088 = vsel %vm6084, %v6072, %v6087
        %v6089 = vsel %vm6083, %v6086, %v6088
        %v6090 = vsel %vm6082, %v6069, %v6072
        %v6091 = vsel %vm6085, %v6078, 920167782
        %v6092 = vsel %vm6084, %v6075, %v6091
        %v6093 = vsel %vm6083, %v6090, %v6092
        %v6094 = vsel %vm6082, %v6072, %v6075
        %v6095 = vsel %vm6085, %v6081, 1326507024
        %v6096 = vsel %vm6084, %v6078, %v6095
        %v6097 = vsel %vm6083, %v6094, %v6096
        %v6098 = vshll.u32 %v6058, 8
        %v6099 = vmul.u32.u64.compose %v6098, %v6097
        %v6100 = vextract.low.u32 %v6099
        %v6101 = vextract.high.u32 %v6099
        %v6102 = vmul.u32.u64.compose %v6098, %v6093
        %v6103 = vextract.low.u32 %v6102
        %v6104 = vextract.high.u32 %v6102
        %v6105 = vmul.u32 %v6098, %v6089
        %v6106 = vadd.s32 %v6101, %v6103
        %vm6107 = vc.u32 %v6101, %v6103
        %v6108 = vadd.s32 %v6104, 1
        %v6109 = vsel %vm6107, %v6108, %v6104
        %v6110 = vadd.s32 %v6105, %v6109
        %v6111 = vadd.s32 %v6110, 536870912
        %v6112 = vshrl.u32 %v6111, 30
        %v6113 = vshll.u32 %v6112, 30
        %v6114 = vsub.s32 %v6110, %v6113
        %vm6115 = vcmp.lt.s32.totalorder %v6114, 0
        %v6116 = vsub.s32 0, %v6114
        %v6117 = vsel %vm6115, %v6116, %v6114
        %v6118 = vclz %v6117
        %v6119 = vsub.s32 %v6118, 2
        %vm6120 = vcmp.gt.s32.totalorder 0, %v6119
        %v6121 = vsel %vm6120, 0, %v6119
        %v6122 = vsub.s32 32, %v6121
        %v6123 = vshll.u32 %v6114, %v6121
        %v6124 = vshrl.u32 %v6106, %v6122
        %v6125 = vor.u32 %v6123, %v6124
        %v6126 = vsub.s32 4294967266, %v6121
        %v6127 = vadd.s32 %v6126, 127
        %v6128 = vshll.u32 %v6127, 23
        %v6129 = vor.u32 4788187, %v6128
        %v6130 = vand.u32 2147483647, %v6129
        %v6132 = vcvt.s32.f32 %v6125
        %v6133 = vmul.f32 %v6132, %v6130
        %v6134 = vxor.u32 %v6133, 2147483648
        %v6135 = vsel %vm6052, %v6134, %v6133
        %v6136 = vsub.s32 4, %v6112
        %v6137 = vsel %vm6052, %v6136, %v6112
        %v6138 = vsel %vm6051, %v4590, %v6135
        %v6139 = vsel %vm6051, 0, %v6137
        %v6140 = vcosq.f32.pop %v6138
        %v6141 = vsinq.f32.pop %v6138
        %vm6142 = vweird.f32 %v4590
        %v6143 = vadd.s32 %v6139, 3
        %v6144 = vand.u32 %v6143, 3
        %vm6145 = vcmp.lt.s32.totalorder %v6144, 2
        %vm6146 = vcmp.eq.s32.totalorder %v6144, 0
        %v6147 = vxor.u32 %v6141, 2147483648
        %v6148 = vsel %vm6146, %v6140, %v6147
        %vm6149 = vcmp.eq.s32.totalorder %v6144, 2
        %v6150 = vxor.u32 %v6140, 2147483648
        %v6151 = vsel %vm6149, %v6150, %v6141
        %v6152 = vsel %vm6145, %v6148, %v6151
        %v6153 = vsel %vm6142, nan, %v6152
        %v6154 = vand.u32 2147483647, %v4592
        %vm6155 = vcmp.le.f32.partialorder %v6154, 0.7853982
        %vm6156 = vcmp.lt.s32.totalorder %v4592, 0
        %v6157 = vand.u32 %v4592, 2139095040
        %v6158 = vshrl.u32 %v6157, 23
        %v6159 = vsub.s32 %v6158, 127
        %v6160 = vand.u32 2147483647, %v4592
        %v6161 = vand.u32 %v6160, 8388607
        %v6162 = vor.u32 %v6161, 8388608
        %v6163 = vsub.s32 0, %v6162
        %v6164 = vadd.s32 %v6159, 1
        %vm6165 = vcmp.gt.s32.totalorder %v6164, 0
        %v6166 = vsel %vm6165, %v6164, 0
        %v6167 = vshrl.u32 %v6166, 5
        %v6168 = vand.u32 %v6166, 31
        %v6169 = vsub.s32 32, %v6168
        %v6170 = vshrl.u32 683565275, %v6169
        %v6171 = vshll.u32 683565275, %v6168
        %v6172 = vshrl.u32 2475754826, %v6169
        %v6173 = vor.u32 %v6171, %v6172
        %v6174 = vshll.u32 2475754826, %v6168
        %v6175 = vshrl.u32 2131351028, %v6169
        %v6176 = vor.u32 %v6174, %v6175
        %v6177 = vshll.u32 2131351028, %v6168
        %v6178 = vshrl.u32 2102212464, %v6169
        %v6179 = vor.u32 %v6177, %v6178
        %v6180 = vshll.u32 2102212464, %v6168
        %v6181 = vshrl.u32 920167782, %v6169
        %v6182 = vor.u32 %v6180, %v6181
        %v6183 = vshll.u32 920167782, %v6168
        %v6184 = vshrl.u32 1326507024, %v6169
        %v6185 = vor.u32 %v6183, %v6184
        %vm6186 = vcmp.lt.s32.totalorder %v6167, 1
        %vm6187 = vcmp.lt.s32.totalorder %v6167, 2
        %vm6188 = vcmp.lt.s32.totalorder %v6167, 3
        %vm6189 = vcmp.lt.s32.totalorder %v6167, 4
        %v6190 = vsel %vm6186, %v6170, %v6173
        %v6191 = vsel %vm6189, %v6179, 2102212464
        %v6192 = vsel %vm6188, %v6176, %v6191
        %v6193 = vsel %vm6187, %v6190, %v6192
        %v6194 = vsel %vm6186, %v6173, %v6176
        %v6195 = vsel %vm6189, %v6182, 920167782
        %v6196 = vsel %vm6188, %v6179, %v6195
        %v6197 = vsel %vm6187, %v6194, %v6196
        %v6198 = vsel %vm6186, %v6176, %v6179
        %v6199 = vsel %vm6189, %v6185, 1326507024
        %v6200 = vsel %vm6188, %v6182, %v6199
        %v6201 = vsel %vm6187, %v6198, %v6200
        %v6202 = vshll.u32 %v6162, 8
        %v6203 = vmul.u32.u64.compose %v6202, %v6201
        %v6204 = vextract.low.u32 %v6203
        %v6205 = vextract.high.u32 %v6203
        %v6206 = vmul.u32.u64.compose %v6202, %v6197
        %v6207 = vextract.low.u32 %v6206
        %v6208 = vextract.high.u32 %v6206
        %v6209 = vmul.u32 %v6202, %v6193
        %v6210 = vadd.s32 %v6205, %v6207
        %vm6211 = vc.u32 %v6205, %v6207
        %v6212 = vadd.s32 %v6208, 1
        %v6213 = vsel %vm6211, %v6212, %v6208
        %v6214 = vadd.s32 %v6209, %v6213
        %v6215 = vadd.s32 %v6214, 536870912
        %v6216 = vshrl.u32 %v6215, 30
        %v6217 = vshll.u32 %v6216, 30
        %v6218 = vsub.s32 %v6214, %v6217
        %vm6219 = vcmp.lt.s32.totalorder %v6218, 0
        %v6220 = vsub.s32 0, %v6218
        %v6221 = vsel %vm6219, %v6220, %v6218
        %v6222 = vclz %v6221
        %v6223 = vsub.s32 %v6222, 2
        %vm6224 = vcmp.gt.s32.totalorder 0, %v6223
        %v6225 = vsel %vm6224, 0, %v6223
        %v6226 = vsub.s32 32, %v6225
        %v6227 = vshll.u32 %v6218, %v6225
        %v6228 = vshrl.u32 %v6210, %v6226
        %v6229 = vor.u32 %v6227, %v6228
        %v6230 = vsub.s32 4294967266, %v6225
        %v6231 = vadd.s32 %v6230, 127
        %v6232 = vshll.u32 %v6231, 23
        %v6233 = vor.u32 4788187, %v6232
        %v6234 = vand.u32 2147483647, %v6233
        %v6236 = vcvt.s32.f32 %v6229
        %v6237 = vmul.f32 %v6236, %v6234
        %v6238 = vxor.u32 %v6237, 2147483648
        %v6239 = vsel %vm6156, %v6238, %v6237
        %v6240 = vsub.s32 4, %v6216
        %v6241 = vsel %vm6156, %v6240, %v6216
        %v6242 = vsel %vm6155, %v4592, %v6239
        %v6243 = vsel %vm6155, 0, %v6241
        %v6244 = vcosq.f32.pop %v6242
        %v6245 = vsinq.f32.pop %v6242
        %vm6246 = vweird.f32 %v4592
        %v6247 = vadd.s32 %v6243, 3
        %v6248 = vand.u32 %v6247, 3
        %vm6249 = vcmp.lt.s32.totalorder %v6248, 2
        %vm6250 = vcmp.eq.s32.totalorder %v6248, 0
        %v6251 = vxor.u32 %v6245, 2147483648
        %v6252 = vsel %vm6250, %v6244, %v6251
        %vm6253 = vcmp.eq.s32.totalorder %v6248, 2
        %v6254 = vxor.u32 %v6244, 2147483648
        %v6255 = vsel %vm6253, %v6254, %v6245
        %v6256 = vsel %vm6249, %v6252, %v6255
        %v6257 = vsel %vm6246, nan, %v6256
        %v6258 = vld [vmem:[%s7] sm:$0x7]
        %v6259 = vld [vmem:[%s8] sm:$0x7]
        %6261 = vset.pattern.permute.xlu0 0
        %6262 = vperm.xlu0 %6261, %v6259
        %v6263 = vpop.permute.xlu0 %6262
        %v6266 = vsel %vm2521, %v6258, 0
        %6268 = vmatprep.subr.mxu0 %v4801
        %6269 = vmatpush1.msra.mxu0 %v4697
        %6270 = vmatprep.subr.mxu0 %v5217
        %6271 = vmatpush1.msra.mxu0 %v5113
        %6272 = vmatprep.subr.mxu0 %v5633
        %6273 = vmatpush1.msra.mxu0 %v5529
        %6274 = vmatprep.subr.mxu0 %v6049
        %6275 = vmatpush1.msra.mxu0 %v5945
        %6276 = vmatprep.subr.mxu0 0.0
        %6277 = vmatpush1.msra.mxu0 0.0
        %6278 = vmatprep.subr.mxu0 0.0
        %6279 = vmatpush1.msra.mxu0 0.0
        %6280 = vmatprep.subr.mxu0 0.0
        %6281 = vmatpush1.msra.mxu0 0.0
        %6282 = vmatprep.subr.mxu0 0.0
        %6283 = vmatpush1.msra.mxu0 0.0
        %6284 = vmatprep.subr.mxu0 0.0
        %6285 = vmatpush1.msra.mxu0 0.0
        %6286 = vmatprep.subr.mxu0 0.0
        %6287 = vmatpush1.msra.mxu0 0.0
        %6288 = vmatprep.subr.mxu0 0.0
        %6289 = vmatpush1.msra.mxu0 0.0
        %6290 = vmatprep.subr.mxu0 0.0
        %6291 = vmatpush1.msra.mxu0 0.0
        %6292 = vmatprep.subr.mxu0 0.0
        %6293 = vmatpush1.msra.mxu0 0.0
        %6294 = vmatprep.subr.mxu0 0.0
        %6295 = vmatpush1.msra.mxu0 0.0
        %6296 = vmatprep.subr.mxu0 0.0
        %6297 = vmatpush1.msra.mxu0 0.0
        %6298 = vmatprep.subr.mxu0 0.0
        %6299 = vmatpush1.msra.mxu0 0.0
        %6300 = vmatprep.subr.mxu0 0.0
        %6301 = vmatpush1.msra.mxu0 0.0
        %6302 = vmatprep.subr.mxu0 0.0
        %6303 = vmatpush1.msra.mxu0 0.0
        %6304 = vmatprep.subr.mxu0 0.0
        %6305 = vmatpush1.msra.mxu0 0.0
        %6306 = vmatprep.subr.mxu0 0.0
        %6307 = vmatpush1.msra.mxu0 0.0
        %6308 = vmatprep.subr.mxu0 0.0
        %6309 = vmatpush1.msra.mxu0 0.0
        %6310 = vmatprep.subr.mxu0 0.0
        %6311 = vmatpush1.msra.mxu0 0.0
        %6312 = vmatprep.subr.mxu0 0.0
        %6313 = vmatpush1.msra.mxu0 0.0
        %6314 = vmatprep.subr.mxu0 0.0
        %6315 = vmatpush1.msra.mxu0 0.0
        %6316 = vmatprep.subr.mxu0 0.0
        %6317 = vmatpush1.msra.mxu0 0.0
        %6318 = vmatprep.subr.mxu0 0.0
        %6319 = vmatpush1.msra.mxu0 0.0
        %6320 = vmatprep.subr.mxu0 0.0
        %6321 = vmatpush1.msra.mxu0 0.0
        %6322 = vmatprep.subr.mxu0 0.0
        %6323 = vmatpush1.msra.mxu0 0.0
        %6324 = vmatprep.subr.mxu0 0.0
        %6325 = vmatpush1.msra.mxu0 0.0
        %6326 = vmatprep.subr.mxu0 0.0
        %6327 = vmatpush1.msra.mxu0 0.0
        %6328 = vmatprep.subr.mxu0 0.0
        %6329 = vmatpush1.msra.mxu0 0.0
        %6330 = vmatprep.subr.mxu0 0.0
        %6331 = vmatpush1.msra.mxu0 0.0
        %6332 = vmatprep.mubr.f32.mxu0 0.0
        %6333 = vmatmul.mubr.f32.gmra.mrb[0].mxu0 %v6266
        %v6334 = vpop.f32.mrb[0].mxu0
        %v6335 = vadd.f32 %v6263, %v6334
        %v6336 = vpop.f32.mrb[0].mxu0
        %v6337 = vadd.f32 %v6263, %v6336
        %6338 = vdwg.mxu0
        %6339 = vmatprep.subr.mxu0 %v5009
        %6340 = vmatpush1.msra.mxu0 %v4905
        %6341 = vmatprep.subr.mxu0 %v5425
        %6342 = vmatpush1.msra.mxu0 %v5321
        %6343 = vmatprep.subr.mxu0 %v5841
        %6344 = vmatpush1.msra.mxu0 %v5737
        %6345 = vmatprep.subr.mxu0 %v6257
        %6346 = vmatpush1.msra.mxu0 %v6153
        %6347 = vmatprep.subr.mxu0 0.0
        %6348 = vmatpush1.msra.mxu0 0.0
        %6349 = vmatprep.subr.mxu0 0.0
        %6350 = vmatpush1.msra.mxu0 0.0
        %6351 = vmatprep.subr.mxu0 0.0
        %6352 = vmatpush1.msra.mxu0 0.0
        %6353 = vmatprep.subr.mxu0 0.0
        %6354 = vmatpush1.msra.mxu0 0.0
        %6355 = vmatprep.subr.mxu0 0.0
        %6356 = vmatpush1.msra.mxu0 0.0
        %6357 = vmatprep.subr.mxu0 0.0
        %6358 = vmatpush1.msra.mxu0 0.0
        %6359 = vmatprep.subr.mxu0 0.0
        %6360 = vmatpush1.msra.mxu0 0.0
        %6361 = vmatprep.subr.mxu0 0.0
        %6362 = vmatpush1.msra.mxu0 0.0
        %6363 = vmatprep.subr.mxu0 0.0
        %6364 = vmatpush1.msra.mxu0 0.0
        %6365 = vmatprep.subr.mxu0 0.0
        %6366 = vmatpush1.msra.mxu0 0.0
        %6367 = vmatprep.subr.mxu0 0.0
        %6368 = vmatpush1.msra.mxu0 0.0
        %6369 = vmatprep.subr.mxu0 0.0
        %6370 = vmatpush1.msra.mxu0 0.0
        %6371 = vmatprep.subr.mxu0 0.0
        %6372 = vmatpush1.msra.mxu0 0.0
        %6373 = vmatprep.subr.mxu0 0.0
        %6374 = vmatpush1.msra.mxu0 0.0
        %6375 = vmatprep.subr.mxu0 0.0
        %6376 = vmatpush1.msra.mxu0 0.0
        %6377 = vmatprep.subr.mxu0 0.0
        %6378 = vmatpush1.msra.mxu0 0.0
        %6379 = vmatprep.subr.mxu0 0.0
        %6380 = vmatpush1.msra.mxu0 0.0
        %6381 = vmatprep.subr.mxu0 0.0
        %6382 = vmatpush1.msra.mxu0 0.0
        %6383 = vmatprep.subr.mxu0 0.0
        %6384 = vmatpush1.msra.mxu0 0.0
        %6385 = vmatprep.subr.mxu0 0.0
        %6386 = vmatpush1.msra.mxu0 0.0
        %6387 = vmatprep.subr.mxu0 0.0
        %6388 = vmatpush1.msra.mxu0 0.0
        %6389 = vmatprep.subr.mxu0 0.0
        %6390 = vmatpush1.msra.mxu0 0.0
        %6391 = vmatprep.subr.mxu0 0.0
        %6392 = vmatpush1.msra.mxu0 0.0
        %6393 = vmatprep.subr.mxu0 0.0
        %6394 = vmatpush1.msra.mxu0 0.0
        %6395 = vmatprep.subr.mxu0 0.0
        %6396 = vmatpush1.msra.mxu0 0.0
        %6397 = vmatprep.subr.mxu0 0.0
        %6398 = vmatpush1.msra.mxu0 0.0
        %6399 = vmatprep.subr.mxu0 0.0
        %6400 = vmatpush1.msra.mxu0 0.0
        %6401 = vmatprep.subr.mxu0 0.0
        %6402 = vmatpush1.msra.mxu0 0.0
        %6403 = vmatprep.mubr.f32.mxu0 0.0
        %6404 = vmatmul.mubr.f32.gmra.mrb[0].mxu0 %v6266
        %v6405 = vpop.f32.mrb[0].mxu0
        %v6406 = vadd.f32 %v6263, %v6405
        %v6407 = vpop.f32.mrb[0].mxu0
        %v6408 = vadd.f32 %v6263, %v6407
        %6409 = vdwg.mxu0
        %v6410 = vand.u32 2147483647, %v6335
        %vm6411 = vcmp.le.f32.partialorder %v6410, 0.7853982
        %vm6412 = vcmp.lt.s32.totalorder %v6335, 0
        %v6413 = vand.u32 %v6335, 2139095040
        %v6414 = vshrl.u32 %v6413, 23
        %v6415 = vsub.s32 %v6414, 127
        %v6416 = vand.u32 2147483647, %v6335
        %v6417 = vand.u32 %v6416, 8388607
        %v6418 = vor.u32 %v6417, 8388608
        %v6419 = vsub.s32 0, %v6418
        %v6420 = vadd.s32 %v6415, 1
        %vm6421 = vcmp.gt.s32.totalorder %v6420, 0
        %v6422 = vsel %vm6421, %v6420, 0
        %v6423 = vshrl.u32 %v6422, 5
        %v6424 = vand.u32 %v6422, 31
        %v6425 = vsub.s32 32, %v6424
        %v6426 = vshrl.u32 683565275, %v6425
        %v6427 = vshll.u32 683565275, %v6424
        %v6428 = vshrl.u32 2475754826, %v6425
        %v6429 = vor.u32 %v6427, %v6428
        %v6430 = vshll.u32 2475754826, %v6424
        %v6431 = vshrl.u32 2131351028, %v6425
        %v6432 = vor.u32 %v6430, %v6431
        %v6433 = vshll.u32 2131351028, %v6424
        %v6434 = vshrl.u32 2102212464, %v6425
        %v6435 = vor.u32 %v6433, %v6434
        %v6436 = vshll.u32 2102212464, %v6424
        %v6437 = vshrl.u32 920167782, %v6425
        %v6438 = vor.u32 %v6436, %v6437
        %v6439 = vshll.u32 920167782, %v6424
        %v6440 = vshrl.u32 1326507024, %v6425
        %v6441 = vor.u32 %v6439, %v6440
        %vm6442 = vcmp.lt.s32.totalorder %v6423, 1
        %vm6443 = vcmp.lt.s32.totalorder %v6423, 2
        %vm6444 = vcmp.lt.s32.totalorder %v6423, 3
        %vm6445 = vcmp.lt.s32.totalorder %v6423, 4
        %v6446 = vsel %vm6442, %v6426, %v6429
        %v6447 = vsel %vm6445, %v6435, 2102212464
        %v6448 = vsel %vm6444, %v6432, %v6447
        %v6449 = vsel %vm6443, %v6446, %v6448
        %v6450 = vsel %vm6442, %v6429, %v6432
        %v6451 = vsel %vm6445, %v6438, 920167782
        %v6452 = vsel %vm6444, %v6435, %v6451
        %v6453 = vsel %vm6443, %v6450, %v6452
        %v6454 = vsel %vm6442, %v6432, %v6435
        %v6455 = vsel %vm6445, %v6441, 1326507024
        %v6456 = vsel %vm6444, %v6438, %v6455
        %v6457 = vsel %vm6443, %v6454, %v6456
        %v6458 = vshll.u32 %v6418, 8
        %v6459 = vmul.u32.u64.compose %v6458, %v6457
        %v6460 = vextract.low.u32 %v6459
        %v6461 = vextract.high.u32 %v6459
        %v6462 = vmul.u32.u64.compose %v6458, %v6453
        %v6463 = vextract.low.u32 %v6462
        %v6464 = vextract.high.u32 %v6462
        %v6465 = vmul.u32 %v6458, %v6449
        %v6466 = vadd.s32 %v6461, %v6463
        %vm6467 = vc.u32 %v6461, %v6463
        %v6468 = vadd.s32 %v6464, 1
        %v6469 = vsel %vm6467, %v6468, %v6464
        %v6470 = vadd.s32 %v6465, %v6469
        %v6471 = vadd.s32 %v6470, 536870912
        %v6472 = vshrl.u32 %v6471, 30
        %v6473 = vshll.u32 %v6472, 30
        %v6474 = vsub.s32 %v6470, %v6473
        %vm6475 = vcmp.lt.s32.totalorder %v6474, 0
        %v6476 = vsub.s32 0, %v6474
        %v6477 = vsel %vm6475, %v6476, %v6474
        %v6478 = vclz %v6477
        %v6479 = vsub.s32 %v6478, 2
        %vm6480 = vcmp.gt.s32.totalorder 0, %v6479
        %v6481 = vsel %vm6480, 0, %v6479
        %v6482 = vsub.s32 32, %v6481
        %v6483 = vshll.u32 %v6474, %v6481
        %v6484 = vshrl.u32 %v6466, %v6482
        %v6485 = vor.u32 %v6483, %v6484
        %v6486 = vsub.s32 4294967266, %v6481
        %v6487 = vadd.s32 %v6486, 127
        %v6488 = vshll.u32 %v6487, 23
        %v6489 = vor.u32 4788187, %v6488
        %v6490 = vand.u32 2147483647, %v6489
        %v6492 = vcvt.s32.f32 %v6485
        %v6493 = vmul.f32 %v6492, %v6490
        %v6494 = vxor.u32 %v6493, 2147483648
        %v6495 = vsel %vm6412, %v6494, %v6493
        %v6496 = vsub.s32 4, %v6472
        %v6497 = vsel %vm6412, %v6496, %v6472
        %v6498 = vsel %vm6411, %v6335, %v6495
        %v6499 = vsel %vm6411, 0, %v6497
        %v6500 = vcosq.f32.pop %v6498
        %v6501 = vsinq.f32.pop %v6498
        %vm6502 = vweird.f32 %v6335
        %v6503 = vadd.s32 %v6499, 3
        %v6504 = vand.u32 %v6503, 3
        %vm6505 = vcmp.lt.s32.totalorder %v6504, 2
        %vm6506 = vcmp.eq.s32.totalorder %v6504, 0
        %v6507 = vxor.u32 %v6501, 2147483648
        %v6508 = vsel %vm6506, %v6500, %v6507
        %vm6509 = vcmp.eq.s32.totalorder %v6504, 2
        %v6510 = vxor.u32 %v6500, 2147483648
        %v6511 = vsel %vm6509, %v6510, %v6501
        %v6512 = vsel %vm6505, %v6508, %v6511
        %v6513 = vsel %vm6502, nan, %v6512
        %v6514 = vand.u32 2147483647, %v6337
        %vm6515 = vcmp.le.f32.partialorder %v6514, 0.7853982
        %vm6516 = vcmp.lt.s32.totalorder %v6337, 0
        %v6517 = vand.u32 %v6337, 2139095040
        %v6518 = vshrl.u32 %v6517, 23
        %v6519 = vsub.s32 %v6518, 127
        %v6520 = vand.u32 2147483647, %v6337
        %v6521 = vand.u32 %v6520, 8388607
        %v6522 = vor.u32 %v6521, 8388608
        %v6523 = vsub.s32 0, %v6522
        %v6524 = vadd.s32 %v6519, 1
        %vm6525 = vcmp.gt.s32.totalorder %v6524, 0
        %v6526 = vsel %vm6525, %v6524, 0
        %v6527 = vshrl.u32 %v6526, 5
        %v6528 = vand.u32 %v6526, 31
        %v6529 = vsub.s32 32, %v6528
        %v6530 = vshrl.u32 683565275, %v6529
        %v6531 = vshll.u32 683565275, %v6528
        %v6532 = vshrl.u32 2475754826, %v6529
        %v6533 = vor.u32 %v6531, %v6532
        %v6534 = vshll.u32 2475754826, %v6528
        %v6535 = vshrl.u32 2131351028, %v6529
        %v6536 = vor.u32 %v6534, %v6535
        %v6537 = vshll.u32 2131351028, %v6528
        %v6538 = vshrl.u32 2102212464, %v6529
        %v6539 = vor.u32 %v6537, %v6538
        %v6540 = vshll.u32 2102212464, %v6528
        %v6541 = vshrl.u32 920167782, %v6529
        %v6542 = vor.u32 %v6540, %v6541
        %v6543 = vshll.u32 920167782, %v6528
        %v6544 = vshrl.u32 1326507024, %v6529
        %v6545 = vor.u32 %v6543, %v6544
        %vm6546 = vcmp.lt.s32.totalorder %v6527, 1
        %vm6547 = vcmp.lt.s32.totalorder %v6527, 2
        %vm6548 = vcmp.lt.s32.totalorder %v6527, 3
        %vm6549 = vcmp.lt.s32.totalorder %v6527, 4
        %v6550 = vsel %vm6546, %v6530, %v6533
        %v6551 = vsel %vm6549, %v6539, 2102212464
        %v6552 = vsel %vm6548, %v6536, %v6551
        %v6553 = vsel %vm6547, %v6550, %v6552
        %v6554 = vsel %vm6546, %v6533, %v6536
        %v6555 = vsel %vm6549, %v6542, 920167782
        %v6556 = vsel %vm6548, %v6539, %v6555
        %v6557 = vsel %vm6547, %v6554, %v6556
        %v6558 = vsel %vm6546, %v6536, %v6539
        %v6559 = vsel %vm6549, %v6545, 1326507024
        %v6560 = vsel %vm6548, %v6542, %v6559
        %v6561 = vsel %vm6547, %v6558, %v6560
        %v6562 = vshll.u32 %v6522, 8
        %v6563 = vmul.u32.u64.compose %v6562, %v6561
        %v6564 = vextract.low.u32 %v6563
        %v6565 = vextract.high.u32 %v6563
        %v6566 = vmul.u32.u64.compose %v6562, %v6557
        %v6567 = vextract.low.u32 %v6566
        %v6568 = vextract.high.u32 %v6566
        %v6569 = vmul.u32 %v6562, %v6553
        %v6570 = vadd.s32 %v6565, %v6567
        %vm6571 = vc.u32 %v6565, %v6567
        %v6572 = vadd.s32 %v6568, 1
        %v6573 = vsel %vm6571, %v6572, %v6568
        %v6574 = vadd.s32 %v6569, %v6573
        %v6575 = vadd.s32 %v6574, 536870912
        %v6576 = vshrl.u32 %v6575, 30
        %v6577 = vshll.u32 %v6576, 30
        %v6578 = vsub.s32 %v6574, %v6577
        %vm6579 = vcmp.lt.s32.totalorder %v6578, 0
        %v6580 = vsub.s32 0, %v6578
        %v6581 = vsel %vm6579, %v6580, %v6578
        %v6582 = vclz %v6581
        %v6583 = vsub.s32 %v6582, 2
        %vm6584 = vcmp.gt.s32.totalorder 0, %v6583
        %v6585 = vsel %vm6584, 0, %v6583
        %v6586 = vsub.s32 32, %v6585
        %v6587 = vshll.u32 %v6578, %v6585
        %v6588 = vshrl.u32 %v6570, %v6586
        %v6589 = vor.u32 %v6587, %v6588
        %v6590 = vsub.s32 4294967266, %v6585
        %v6591 = vadd.s32 %v6590, 127
        %v6592 = vshll.u32 %v6591, 23
        %v6593 = vor.u32 4788187, %v6592
        %v6594 = vand.u32 2147483647, %v6593
        %v6596 = vcvt.s32.f32 %v6589
        %v6597 = vmul.f32 %v6596, %v6594
        %v6598 = vxor.u32 %v6597, 2147483648
        %v6599 = vsel %vm6516, %v6598, %v6597
        %v6600 = vsub.s32 4, %v6576
        %v6601 = vsel %vm6516, %v6600, %v6576
        %v6602 = vsel %vm6515, %v6337, %v6599
        %v6603 = vsel %vm6515, 0, %v6601
        %v6604 = vcosq.f32.pop %v6602
        %v6605 = vsinq.f32.pop %v6602
        %vm6606 = vweird.f32 %v6337
        %v6607 = vadd.s32 %v6603, 3
        %v6608 = vand.u32 %v6607, 3
        %vm6609 = vcmp.lt.s32.totalorder %v6608, 2
        %vm6610 = vcmp.eq.s32.totalorder %v6608, 0
        %v6611 = vxor.u32 %v6605, 2147483648
        %v6612 = vsel %vm6610, %v6604, %v6611
        %vm6613 = vcmp.eq.s32.totalorder %v6608, 2
        %v6614 = vxor.u32 %v6604, 2147483648
        %v6615 = vsel %vm6613, %v6614, %v6605
        %v6616 = vsel %vm6609, %v6612, %v6615
        %v6617 = vsel %vm6606, nan, %v6616
        %v6618 = vand.u32 2147483647, %v6406
        %vm6619 = vcmp.le.f32.partialorder %v6618, 0.7853982
        %vm6620 = vcmp.lt.s32.totalorder %v6406, 0
        %v6621 = vand.u32 %v6406, 2139095040
        %v6622 = vshrl.u32 %v6621, 23
        %v6623 = vsub.s32 %v6622, 127
        %v6624 = vand.u32 2147483647, %v6406
        %v6625 = vand.u32 %v6624, 8388607
        %v6626 = vor.u32 %v6625, 8388608
        %v6627 = vsub.s32 0, %v6626
        %v6628 = vadd.s32 %v6623, 1
        %vm6629 = vcmp.gt.s32.totalorder %v6628, 0
        %v6630 = vsel %vm6629, %v6628, 0
        %v6631 = vshrl.u32 %v6630, 5
        %v6632 = vand.u32 %v6630, 31
        %v6633 = vsub.s32 32, %v6632
        %v6634 = vshrl.u32 683565275, %v6633
        %v6635 = vshll.u32 683565275, %v6632
        %v6636 = vshrl.u32 2475754826, %v6633
        %v6637 = vor.u32 %v6635, %v6636
        %v6638 = vshll.u32 2475754826, %v6632
        %v6639 = vshrl.u32 2131351028, %v6633
        %v6640 = vor.u32 %v6638, %v6639
        %v6641 = vshll.u32 2131351028, %v6632
        %v6642 = vshrl.u32 2102212464, %v6633
        %v6643 = vor.u32 %v6641, %v6642
        %v6644 = vshll.u32 2102212464, %v6632
        %v6645 = vshrl.u32 920167782, %v6633
        %v6646 = vor.u32 %v6644, %v6645
        %v6647 = vshll.u32 920167782, %v6632
        %v6648 = vshrl.u32 1326507024, %v6633
        %v6649 = vor.u32 %v6647, %v6648
        %vm6650 = vcmp.lt.s32.totalorder %v6631, 1
        %vm6651 = vcmp.lt.s32.totalorder %v6631, 2
        %vm6652 = vcmp.lt.s32.totalorder %v6631, 3
        %vm6653 = vcmp.lt.s32.totalorder %v6631, 4
        %v6654 = vsel %vm6650, %v6634, %v6637
        %v6655 = vsel %vm6653, %v6643, 2102212464
        %v6656 = vsel %vm6652, %v6640, %v6655
        %v6657 = vsel %vm6651, %v6654, %v6656
        %v6658 = vsel %vm6650, %v6637, %v6640
        %v6659 = vsel %vm6653, %v6646, 920167782
        %v6660 = vsel %vm6652, %v6643, %v6659
        %v6661 = vsel %vm6651, %v6658, %v6660
        %v6662 = vsel %vm6650, %v6640, %v6643
        %v6663 = vsel %vm6653, %v6649, 1326507024
        %v6664 = vsel %vm6652, %v6646, %v6663
        %v6665 = vsel %vm6651, %v6662, %v6664
        %v6666 = vshll.u32 %v6626, 8
        %v6667 = vmul.u32.u64.compose %v6666, %v6665
        %v6668 = vextract.low.u32 %v6667
        %v6669 = vextract.high.u32 %v6667
        %v6670 = vmul.u32.u64.compose %v6666, %v6661
        %v6671 = vextract.low.u32 %v6670
        %v6672 = vextract.high.u32 %v6670
        %v6673 = vmul.u32 %v6666, %v6657
        %v6674 = vadd.s32 %v6669, %v6671
        %vm6675 = vc.u32 %v6669, %v6671
        %v6676 = vadd.s32 %v6672, 1
        %v6677 = vsel %vm6675, %v6676, %v6672
        %v6678 = vadd.s32 %v6673, %v6677
        %v6679 = vadd.s32 %v6678, 536870912
        %v6680 = vshrl.u32 %v6679, 30
        %v6681 = vshll.u32 %v6680, 30
        %v6682 = vsub.s32 %v6678, %v6681
        %vm6683 = vcmp.lt.s32.totalorder %v6682, 0
        %v6684 = vsub.s32 0, %v6682
        %v6685 = vsel %vm6683, %v6684, %v6682
        %v6686 = vclz %v6685
        %v6687 = vsub.s32 %v6686, 2
        %vm6688 = vcmp.gt.s32.totalorder 0, %v6687
        %v6689 = vsel %vm6688, 0, %v6687
        %v6690 = vsub.s32 32, %v6689
        %v6691 = vshll.u32 %v6682, %v6689
        %v6692 = vshrl.u32 %v6674, %v6690
        %v6693 = vor.u32 %v6691, %v6692
        %v6694 = vsub.s32 4294967266, %v6689
        %v6695 = vadd.s32 %v6694, 127
        %v6696 = vshll.u32 %v6695, 23
        %v6697 = vor.u32 4788187, %v6696
        %v6698 = vand.u32 2147483647, %v6697
        %v6700 = vcvt.s32.f32 %v6693
        %v6701 = vmul.f32 %v6700, %v6698
        %v6702 = vxor.u32 %v6701, 2147483648
        %v6703 = vsel %vm6620, %v6702, %v6701
        %v6704 = vsub.s32 4, %v6680
        %v6705 = vsel %vm6620, %v6704, %v6680
        %v6706 = vsel %vm6619, %v6406, %v6703
        %v6707 = vsel %vm6619, 0, %v6705
        %v6708 = vcosq.f32.pop %v6706
        %v6709 = vsinq.f32.pop %v6706
        %vm6710 = vweird.f32 %v6406
        %v6711 = vadd.s32 %v6707, 3
        %v6712 = vand.u32 %v6711, 3
        %vm6713 = vcmp.lt.s32.totalorder %v6712, 2
        %vm6714 = vcmp.eq.s32.totalorder %v6712, 0
        %v6715 = vxor.u32 %v6709, 2147483648
        %v6716 = vsel %vm6714, %v6708, %v6715
        %vm6717 = vcmp.eq.s32.totalorder %v6712, 2
        %v6718 = vxor.u32 %v6708, 2147483648
        %v6719 = vsel %vm6717, %v6718, %v6709
        %v6720 = vsel %vm6713, %v6716, %v6719
        %v6721 = vsel %vm6710, nan, %v6720
        %v6722 = vand.u32 2147483647, %v6408
        %vm6723 = vcmp.le.f32.partialorder %v6722, 0.7853982
        %vm6724 = vcmp.lt.s32.totalorder %v6408, 0
        %v6725 = vand.u32 %v6408, 2139095040
        %v6726 = vshrl.u32 %v6725, 23
        %v6727 = vsub.s32 %v6726, 127
        %v6728 = vand.u32 2147483647, %v6408
        %v6729 = vand.u32 %v6728, 8388607
        %v6730 = vor.u32 %v6729, 8388608
        %v6731 = vsub.s32 0, %v6730
        %v6732 = vadd.s32 %v6727, 1
        %vm6733 = vcmp.gt.s32.totalorder %v6732, 0
        %v6734 = vsel %vm6733, %v6732, 0
        %v6735 = vshrl.u32 %v6734, 5
        %v6736 = vand.u32 %v6734, 31
        %v6737 = vsub.s32 32, %v6736
        %v6738 = vshrl.u32 683565275, %v6737
        %v6739 = vshll.u32 683565275, %v6736
        %v6740 = vshrl.u32 2475754826, %v6737
        %v6741 = vor.u32 %v6739, %v6740
        %v6742 = vshll.u32 2475754826, %v6736
        %v6743 = vshrl.u32 2131351028, %v6737
        %v6744 = vor.u32 %v6742, %v6743
        %v6745 = vshll.u32 2131351028, %v6736
        %v6746 = vshrl.u32 2102212464, %v6737
        %v6747 = vor.u32 %v6745, %v6746
        %v6748 = vshll.u32 2102212464, %v6736
        %v6749 = vshrl.u32 920167782, %v6737
        %v6750 = vor.u32 %v6748, %v6749
        %v6751 = vshll.u32 920167782, %v6736
        %v6752 = vshrl.u32 1326507024, %v6737
        %v6753 = vor.u32 %v6751, %v6752
        %vm6754 = vcmp.lt.s32.totalorder %v6735, 1
        %vm6755 = vcmp.lt.s32.totalorder %v6735, 2
        %vm6756 = vcmp.lt.s32.totalorder %v6735, 3
        %vm6757 = vcmp.lt.s32.totalorder %v6735, 4
        %v6758 = vsel %vm6754, %v6738, %v6741
        %v6759 = vsel %vm6757, %v6747, 2102212464
        %v6760 = vsel %vm6756, %v6744, %v6759
        %v6761 = vsel %vm6755, %v6758, %v6760
        %v6762 = vsel %vm6754, %v6741, %v6744
        %v6763 = vsel %vm6757, %v6750, 920167782
        %v6764 = vsel %vm6756, %v6747, %v6763
        %v6765 = vsel %vm6755, %v6762, %v6764
        %v6766 = vsel %vm6754, %v6744, %v6747
        %v6767 = vsel %vm6757, %v6753, 1326507024
        %v6768 = vsel %vm6756, %v6750, %v6767
        %v6769 = vsel %vm6755, %v6766, %v6768
        %v6770 = vshll.u32 %v6730, 8
        %v6771 = vmul.u32.u64.compose %v6770, %v6769
        %v6772 = vextract.low.u32 %v6771
        %v6773 = vextract.high.u32 %v6771
        %v6774 = vmul.u32.u64.compose %v6770, %v6765
        %v6775 = vextract.low.u32 %v6774
        %v6776 = vextract.high.u32 %v6774
        %v6777 = vmul.u32 %v6770, %v6761
        %v6778 = vadd.s32 %v6773, %v6775
        %vm6779 = vc.u32 %v6773, %v6775
        %v6780 = vadd.s32 %v6776, 1
        %v6781 = vsel %vm6779, %v6780, %v6776
        %v6782 = vadd.s32 %v6777, %v6781
        %v6783 = vadd.s32 %v6782, 536870912
        %v6784 = vshrl.u32 %v6783, 30
        %v6785 = vshll.u32 %v6784, 30
        %v6786 = vsub.s32 %v6782, %v6785
        %vm6787 = vcmp.lt.s32.totalorder %v6786, 0
        %v6788 = vsub.s32 0, %v6786
        %v6789 = vsel %vm6787, %v6788, %v6786
        %v6790 = vclz %v6789
        %v6791 = vsub.s32 %v6790, 2
        %vm6792 = vcmp.gt.s32.totalorder 0, %v6791
        %v6793 = vsel %vm6792, 0, %v6791
        %v6794 = vsub.s32 32, %v6793
        %v6795 = vshll.u32 %v6786, %v6793
        %v6796 = vshrl.u32 %v6778, %v6794
        %v6797 = vor.u32 %v6795, %v6796
        %v6798 = vsub.s32 4294967266, %v6793
        %v6799 = vadd.s32 %v6798, 127
        %v6800 = vshll.u32 %v6799, 23
        %v6801 = vor.u32 4788187, %v6800
        %v6802 = vand.u32 2147483647, %v6801
        %v6804 = vcvt.s32.f32 %v6797
        %v6805 = vmul.f32 %v6804, %v6802
        %v6806 = vxor.u32 %v6805, 2147483648
        %v6807 = vsel %vm6724, %v6806, %v6805
        %v6808 = vsub.s32 4, %v6784
        %v6809 = vsel %vm6724, %v6808, %v6784
        %v6810 = vsel %vm6723, %v6408, %v6807
        %v6811 = vsel %vm6723, 0, %v6809
        %v6812 = vcosq.f32.pop %v6810
        %v6813 = vsinq.f32.pop %v6810
        %vm6814 = vweird.f32 %v6408
        %v6815 = vadd.s32 %v6811, 3
        %v6816 = vand.u32 %v6815, 3
        %vm6817 = vcmp.lt.s32.totalorder %v6816, 2
        %vm6818 = vcmp.eq.s32.totalorder %v6816, 0
        %v6819 = vxor.u32 %v6813, 2147483648
        %v6820 = vsel %vm6818, %v6812, %v6819
        %vm6821 = vcmp.eq.s32.totalorder %v6816, 2
        %v6822 = vxor.u32 %v6812, 2147483648
        %v6823 = vsel %vm6821, %v6822, %v6813
        %v6824 = vsel %vm6817, %v6820, %v6823
        %v6825 = vsel %vm6814, nan, %v6824
        %v6830 = vcombine.low %v6513, %v6617
        %v6831 = vcombine.low %v6721, %v6825
        %6834 = vst [vmem:[%s338] sm:$0x77] %v6830
        %6835 = vst [vmem:[%s338 + $0x8] sm:$0x77] %v6831
        %s6836 = sand.u32 %s225, 1
        %s6837 = scalar_lea.sflag [#allocation3], %s6836
        %s6838 = sand.u32 %s225, 1
        %s6839 = smul.addr %s6838, 16
        %s6840 = scalar_lea.vmem [#allocation2], %s6839
        // Predicated region
        $region57: #{tpu_custom_call.1} parent=55 // pred_check
          %p6841 = pneg %p235
        $region58: #{tpu_custom_call.1} parent=55 // pred_check_branch
          %6843 = sbr.rel (%p6841) target = $region60
        $region59: #{tpu_custom_call.1} parent=55 // pred_region
          %s6844 = smul.u32 4, %s23
          %s6846 = ssub.s32 256, 256
          %6847 = vsyncadd %s6837, %s6846
          %s6848 = smul.addr %s6844, 64
          %s6849 = scalar_lea.hbm %s9, %s6848
          %s6851 = sshll.u32 %s6840, 4
          %s6852 = int_to_ptr.vmem [resolvable:$true] %s6851
          %6854 = dma.vmem_to_hbm [thread:$0]  %s6852, 256, %s6849, %s6837
        $region60: #{tpu_custom_call.1} parent=55 // pred_fallthru
          _
      $region56: #{tpu_custom_call.1} parent=5 // pred_fallthru
        _
      %p6855 = scmp.le.s32.totalorder 2, %s18
      // Predicated region
      $region61: #{tpu_custom_call.1} parent=5 // pred_check
        %p6856 = pneg %p6855
      $region62: #{tpu_custom_call.1} parent=5 // pred_check_branch
        %6858 = sbr.rel (%p6856) target = $region64
      $region63: #{tpu_custom_call.1} parent=5 // pred_region
        %s6859 = ssub.s32 %s18, 2
        // Predicated region
        $region65: #{tpu_custom_call.1} parent=63 // pred_check
          %p6860 = pneg %p241
        $region66: #{tpu_custom_call.1} parent=63 // pred_check_branch
          %6862 = sbr.rel (%p6860) target = $region68
        $region67: #{tpu_custom_call.1} parent=63 // pred_region
          %s6863 = sand.u32 %s226, 1
          %s6864 = scalar_lea.sflag [#allocation3], %s6863
          %s6865 = sand.u32 %s226, 1
          %s6866 = smul.addr %s6865, 16
          %s6867 = scalar_lea.vmem [#allocation2], %s6866
          %6868 = dma.done %s6864, 256
        $region68: #{tpu_custom_call.1} parent=63 // pred_fallthru
          _
      $region64: #{tpu_custom_call.1} parent=5 // pred_fallthru
        _
    $region6: #{tpu_custom_call.1} parent=1 // loop_footer
      %s22 = sadd.s32 1, %s18
    $region7: #{tpu_custom_call.1} parent=1 // loop_footer_branch
      %17 = sbr.rel target = $region3
    $region8: #{tpu_custom_call.1} parent=1 // loop_exit
      _
    %6869 = vsyncpa [#allocation3], 1
    %s6870 = scalar_lea.sflag [#allocation3], 1
    %6871 = vsyncpa %s6870, 1

</llo_original>
